<compile_context>
chip_gen: v5e
topology: v5e:2x2
jax: 0.10.0
libtpu: 0.0.40
codegen_flags: <defaults>
</compile_context>

<pallas_src>
import jax
import jax.numpy as jnp
from jax.experimental import pallas as pl
from jax.experimental.pallas import tpu as pltpu

TRIGRAM_DIM = 30000          # matches the PyTorch module's assert
H1 = 300
H2 = 300
H3 = 128

# K padded to a lane-aligned multiple of the K tile (only +2.4% HBM bytes).
K_PAD = 30720                # 240 * 128
TK = 7680                    # 4 grid steps; bf16 w1 tile = 7680*300*2B ~= 4.4 MiB


def _dssm_kernel(x_ref, w1_ref, b1_ref, w2_ref, b2_ref, w3_ref, b3_ref,
                 o_ref, acc_ref):
    """Grid axis 0 walks K-tiles of the 30000-wide first contraction."""
    k = pl.program_id(0)

    @pl.when(k == 0)
    def _():
        # Fold the layer-1 bias into the accumulator init (saves an epilogue add).
        acc_ref[...] = jnp.broadcast_to(b1_ref[...], acc_ref.shape)

    # Layer-1 partial contraction: bf16 x bf16 products, f32 accumulation on MXU.
    acc_ref[...] += jnp.dot(x_ref[...], w1_ref[...],
                            preferred_element_type=jnp.float32)

    @pl.when(k == pl.num_programs(0) - 1)
    def _():
        # Fused epilogue: layers 2/3 on resident bf16 weights, f32 accumulation.
        h1 = jnp.tanh(acc_ref[...]).astype(jnp.bfloat16)           # [B, 300]
        h2 = jnp.tanh(jnp.dot(h1, w2_ref[...],
                              preferred_element_type=jnp.float32)
                      + b2_ref[...]).astype(jnp.bfloat16)          # [B, 300]
        h3 = jnp.tanh(jnp.dot(h2, w3_ref[...],
                              preferred_element_type=jnp.float32)
                      + b3_ref[...])                               # [B, 128] f32
        o_ref[...] = h3.astype(o_ref.dtype)


@jax.jit
def dssm_forward(x, w1_p, b1_2d, w2_bf, b2_2d, w3_bf, b3_2d):
    """x: [B, 30000] float32 -> [B, 128] float32.

    w1_p must be the pre-padded [K_PAD, H1] bf16 weight produced by
    `prepare_params` (padded rows are zero, so the result is identical to the
    unpadded contraction).  Only x (tiny vs. w1) is padded/cast per call.
    """
    B = x.shape[0]
    assert x.shape[1] == TRIGRAM_DIM
    x_p = jnp.pad(x.astype(jnp.bfloat16), ((0, 0), (0, K_PAD - TRIGRAM_DIM)))

    grid = (K_PAD // TK,)

    return pl.pallas_call(
        _dssm_kernel,
        out_shape=jax.ShapeDtypeStruct((B, H3), jnp.float32),
        grid_spec=pltpu.PrefetchScalarGridSpec(
            num_scalar_prefetch=0,
            grid=grid,
            in_specs=[
                pl.BlockSpec((B, TK), lambda k: (0, k)),     # x tile (bf16)
                pl.BlockSpec((TK, H1), lambda k: (k, 0)),    # w1 tile (bf16)
                pl.BlockSpec((1, H1), lambda k: (0, 0)),     # b1 (resident, f32)
                pl.BlockSpec((H1, H2), lambda k: (0, 0)),    # w2 (resident, bf16)
                pl.BlockSpec((1, H2), lambda k: (0, 0)),     # b2 (f32)
                pl.BlockSpec((H2, H3), lambda k: (0, 0)),    # w3 (resident, bf16)
                pl.BlockSpec((1, H3), lambda k: (0, 0)),     # b3 (f32)
            ],
            out_specs=pl.BlockSpec((B, H3), lambda k: (0, 0)),
            scratch_shapes=[pltpu.VMEM((B, H1), jnp.float32)],
        ),
        compiler_params=pltpu.CompilerParams(
            dimension_semantics=("arbitrary",),   # K is a reduction axis
            vmem_limit_bytes=32 << 20,
        ),
    )(x_p, w1_p, b1_2d, w2_bf, b2_2d, w3_bf, b3_2d)


def init_params(key):
    """Deterministic init mirroring the PyTorch module:
       weights ~ N(0, 1); biases ~ U(-1/sqrt(fan_in), 1/sqrt(fan_in)) (nn.Linear default).
       Weights stored as [in, out] (transposed vs. torch's [out, in])."""
    ks = jax.random.split(key, 6)
    w1 = jax.random.normal(ks[0], (TRIGRAM_DIM, H1), jnp.float32)
    w2 = jax.random.normal(ks[1], (H1, H2), jnp.float32)
    w3 = jax.random.normal(ks[2], (H2, H3), jnp.float32)
    b1 = jax.random.uniform(ks[3], (H1,), jnp.float32,
                            -1.0 / jnp.sqrt(TRIGRAM_DIM), 1.0 / jnp.sqrt(TRIGRAM_DIM))
    b2 = jax.random.uniform(ks[4], (H2,), jnp.float32,
                            -1.0 / jnp.sqrt(H1), 1.0 / jnp.sqrt(H1))
    b3 = jax.random.uniform(ks[5], (H3,), jnp.float32,
                            -1.0 / jnp.sqrt(H2), 1.0 / jnp.sqrt(H2))
    return w1, b1, w2, b2, w3, b3


def prepare_params(w1, b1, w2, b2, w3, b3):
    """One-time (outside jit) layout prep: pad K to K_PAD and cast weights to
       bf16; reshape biases to 2-D rows for lane layout."""
    w1_p = jnp.pad(w1.astype(jnp.bfloat16), ((0, K_PAD - TRIGRAM_DIM), (0, 0)))
    return (w1_p,
            b1.reshape(1, H1).astype(jnp.float32),
            w2.astype(jnp.bfloat16),
            b2.reshape(1, H2).astype(jnp.float32),
            w3.astype(jnp.bfloat16),
            b3.reshape(1, H3).astype(jnp.float32))


def reference_forward(x, w1_p, b1_2d, w2_bf, b2_2d, w3_bf, b3_2d):
    """Pure-JAX reference using the SAME casts as the kernel, so the only
       difference vs. the kernel is floating-point summation order."""
    xb = x.astype(jnp.bfloat16)
    h1 = jnp.tanh(jnp.dot(xb, w1_p[:TRIGRAM_DIM],
                          preferred_element_type=jnp.float32) + b1_2d)
    h1 = h1.astype(jnp.bfloat16)
    h2 = jnp.tanh(jnp.dot(h1, w2_bf,
                          preferred_element_type=jnp.float32) + b2_2d)
    h2 = h2.astype(jnp.bfloat16)
    return jnp.tanh(jnp.dot(h2, w3_bf,
                            preferred_element_type=jnp.float32) + b3_2d)


if __name__ == "__main__":
    key = jax.random.PRNGKey(0)
    pkey, xkey = jax.random.split(key)
    raw_params = init_params(pkey)          # module-faithful f32 parameters
    params = prepare_params(*raw_params)    # one-time pad + bf16 + bias reshape

    B = 8  # small batch
    # Sparse-ish non-negative trigram counts, like a DSSM bag-of-trigrams input.
    x = jax.random.uniform(xkey, (B, TRIGRAM_DIM), jnp.float32)
    x = jnp.where(x > 0.999, x, 0.0)

    out = jax.block_until_ready(dssm_forward(x, *params))
    assert out.shape == (B, H3) and out.dtype == jnp.float32

    ref = reference_forward(x, *params)
    err = float(jnp.max(jnp.abs(out - ref)))
    # bf16 weight streaming + MXU accumulation-order differences, amplified by
    # this net's std=1 weight init, bound the achievable agreement; 2e-2 still
    # cleanly separates a correct kernel (err ~1e-3) from an indexing bug (~1).
    assert err < 2e-2, f"mismatch vs. JAX reference (max abs err {err})"

    print("KERNEL_OK")
</pallas_src>

<mosaic_0001>
module attributes {stable_mosaic.version = 11 : i64} {
  func.func @_dssm_kernel(%arg0: i32, %arg1: memref<8x7680xbf16, #tpu.memory_space<vmem>>, %arg2: memref<7680x300xbf16, #tpu.memory_space<vmem>>, %arg3: memref<1x300xf32, #tpu.memory_space<vmem>>, %arg4: memref<300x300xbf16, #tpu.memory_space<vmem>>, %arg5: memref<1x300xf32, #tpu.memory_space<vmem>>, %arg6: memref<300x128xbf16, #tpu.memory_space<vmem>>, %arg7: memref<1x128xf32, #tpu.memory_space<vmem>>, %arg8: memref<8x128xf32, #tpu.memory_space<vmem>>, %arg9: memref<8x300xf32, #tpu.memory_space<vmem>>) attributes {dimension_semantics = [#tpu.dimension_semantics<arbitrary>], iteration_bounds = array<i64: 4>, scalar_prefetch = 0 : i64, scratch_operands = 1 : i64, tpu.core_type = #tpu.core_type<tc>, window_params = [{transform_indices = @transform_0, window_bounds = array<i64: 8, 7680>}, {transform_indices = @transform_1, window_bounds = array<i64: 7680, 300>}, {pipeline_mode = #tpu.pipeline_mode<synchronous>, transform_indices = @transform_2, window_bounds = array<i64: 1, 300>}, {pipeline_mode = #tpu.pipeline_mode<synchronous>, transform_indices = @transform_3, window_bounds = array<i64: 300, 300>}, {pipeline_mode = #tpu.pipeline_mode<synchronous>, transform_indices = @transform_4, window_bounds = array<i64: 1, 300>}, {pipeline_mode = #tpu.pipeline_mode<synchronous>, transform_indices = @transform_5, window_bounds = array<i64: 300, 128>}, {pipeline_mode = #tpu.pipeline_mode<synchronous>, transform_indices = @transform_6, window_bounds = array<i64: 1, 128>}, {pipeline_mode = #tpu.pipeline_mode<synchronous>, transform_indices = @transform_7, window_bounds = array<i64: 8, 128>}]} {
    %c0_i32 = arith.constant 0 : i32
    %0 = arith.cmpi eq, %arg0, %c0_i32 : i32
    %1 = arith.extui %0 : i1 to i32
    %c0_i32_0 = arith.constant 0 : i32
    %2 = arith.cmpi ne, %1, %c0_i32_0 : i32
    scf.if %2 {
      %c0_9 = arith.constant 0 : index
      %c0_10 = arith.constant 0 : index
      %12 = vector.load %arg3[%c0_9, %c0_10] : memref<1x300xf32, #tpu.memory_space<vmem>>, vector<1x300xf32>
      %13 = vector.shape_cast %12 : vector<1x300xf32> to vector<1x300xf32>
      %14 = vector.broadcast %13 : vector<1x300xf32> to vector<8x300xf32>
      %c0_11 = arith.constant 0 : index
      %c0_12 = arith.constant 0 : index
      %15 = vector.load %arg9[%c0_11, %c0_12] : memref<8x300xf32, #tpu.memory_space<vmem>>, vector<8x300xf32>
      tpu.vector_store %arg9[%c0_11, %c0_12], %14 {strides = array<i32>} : memref<8x300xf32, #tpu.memory_space<vmem>>, vector<8x300xf32>,
    } else {
    }
    %c0 = arith.constant 0 : index
    %c0_1 = arith.constant 0 : index
    %3 = vector.load %arg9[%c0, %c0_1] : memref<8x300xf32, #tpu.memory_space<vmem>>, vector<8x300xf32>
    %c0_2 = arith.constant 0 : index
    %c0_3 = arith.constant 0 : index
    %4 = vector.load %arg1[%c0_2, %c0_3] : memref<8x7680xbf16, #tpu.memory_space<vmem>>, vector<8x7680xbf16>
    %c0_4 = arith.constant 0 : index
    %c0_5 = arith.constant 0 : index
    %5 = vector.load %arg2[%c0_4, %c0_5] : memref<7680x300xbf16, #tpu.memory_space<vmem>>, vector<7680x300xbf16>
    %cst = arith.constant dense<0.000000e+00> : vector<8x300xf32>
    %6 = tpu.matmul %4, %5, %cst {dimension_numbers = #tpu.dot_dimension_numbers<[1], [0], [0], [1], [0, 0, 1, 1], [], []>} : vector<8x7680xbf16>, vector<7680x300xbf16>, vector<8x300xf32> -> vector<8x300xf32>
    %7 = arith.addf %3, %6 : vector<8x300xf32>
    %c0_6 = arith.constant 0 : index
    %c0_7 = arith.constant 0 : index
    %8 = vector.load %arg9[%c0_6, %c0_7] : memref<8x300xf32, #tpu.memory_space<vmem>>, vector<8x300xf32>
    tpu.vector_store %arg9[%c0_6, %c0_7], %7 {strides = array<i32>} : memref<8x300xf32, #tpu.memory_space<vmem>>, vector<8x300xf32>,
    %c3_i32 = arith.constant 3 : i32
    %9 = arith.cmpi eq, %arg0, %c3_i32 : i32
    %10 = arith.extui %9 : i1 to i32
    %c0_i32_8 = arith.constant 0 : i32
    %11 = arith.cmpi ne, %10, %c0_i32_8 : i32
    scf.if %11 {
      %c0_9 = arith.constant 0 : index
      %c0_10 = arith.constant 0 : index
      %12 = vector.load %arg9[%c0_9, %c0_10] : memref<8x300xf32, #tpu.memory_space<vmem>>, vector<8x300xf32>
      %13 = math.tanh %12 : vector<8x300xf32>
      %14 = arith.truncf %13 : vector<8x300xf32> to vector<8x300xbf16>
      %c0_11 = arith.constant 0 : index
      %c0_12 = arith.constant 0 : index
      %15 = vector.load %arg4[%c0_11, %c0_12] : memref<300x300xbf16, #tpu.memory_space<vmem>>, vector<300x300xbf16>
      %cst_13 = arith.constant dense<0.000000e+00> : vector<8x300xf32>
      %16 = tpu.matmul %14, %15, %cst_13 {dimension_numbers = #tpu.dot_dimension_numbers<[1], [0], [0], [1], [0, 0, 1, 1], [], []>} : vector<8x300xbf16>, vector<300x300xbf16>, vector<8x300xf32> -> vector<8x300xf32>
      %c0_14 = arith.constant 0 : index
      %c0_15 = arith.constant 0 : index
      %17 = vector.load %arg5[%c0_14, %c0_15] : memref<1x300xf32, #tpu.memory_space<vmem>>, vector<1x300xf32>
      %18 = vector.broadcast %17 : vector<1x300xf32> to vector<8x300xf32>
      %19 = arith.addf %16, %18 : vector<8x300xf32>
      %20 = math.tanh %19 : vector<8x300xf32>
      %21 = arith.truncf %20 : vector<8x300xf32> to vector<8x300xbf16>
      %c0_16 = arith.constant 0 : index
      %c0_17 = arith.constant 0 : index
      %22 = vector.load %arg6[%c0_16, %c0_17] : memref<300x128xbf16, #tpu.memory_space<vmem>>, vector<300x128xbf16>
      %cst_18 = arith.constant dense<0.000000e+00> : vector<8x128xf32>
      %23 = tpu.matmul %21, %22, %cst_18 {dimension_numbers = #tpu.dot_dimension_numbers<[1], [0], [0], [1], [0, 0, 1, 1], [], []>} : vector<8x300xbf16>, vector<300x128xbf16>, vector<8x128xf32> -> vector<8x128xf32>
      %c0_19 = arith.constant 0 : index
      %c0_20 = arith.constant 0 : index
      %24 = vector.load %arg7[%c0_19, %c0_20] : memref<1x128xf32, #tpu.memory_space<vmem>>, vector<1x128xf32>
      %25 = vector.broadcast %24 : vector<1x128xf32> to vector<8x128xf32>
      %26 = arith.addf %23, %25 : vector<8x128xf32>
      %27 = math.tanh %26 : vector<8x128xf32>
      %c0_21 = arith.constant 0 : index
      %c0_22 = arith.constant 0 : index
      %28 = vector.load %arg8[%c0_21, %c0_22] : memref<8x128xf32, #tpu.memory_space<vmem>>, vector<8x128xf32>
      tpu.vector_store %arg8[%c0_21, %c0_22], %27 {strides = array<i32>} : memref<8x128xf32, #tpu.memory_space<vmem>>, vector<8x128xf32>,
    } else {
    }
    return
  }
  func.func @transform_0(%arg0: i32) -> (i32, i32) {
    %c0_i32 = arith.constant 0 : i32
    %c0_i32_0 = arith.constant 0 : i32
    return %c0_i32, %arg0 : i32, i32
  }
  func.func @transform_1(%arg0: i32) -> (i32, i32) {
    %c0_i32 = arith.constant 0 : i32
    %c0_i32_0 = arith.constant 0 : i32
    return %arg0, %c0_i32 : i32, i32
  }
  func.func @transform_2(%arg0: i32) -> (i32, i32) {
    %c0_i32 = arith.constant 0 : i32
    %c0_i32_0 = arith.constant 0 : i32
    %c0_i32_1 = arith.constant 0 : i32
    return %c0_i32, %c0_i32_0 : i32, i32
  }
  func.func @transform_3(%arg0: i32) -> (i32, i32) {
    %c0_i32 = arith.constant 0 : i32
    %c0_i32_0 = arith.constant 0 : i32
    %c0_i32_1 = arith.constant 0 : i32
    return %c0_i32, %c0_i32_0 : i32, i32
  }
  func.func @transform_4(%arg0: i32) -> (i32, i32) {
    %c0_i32 = arith.constant 0 : i32
    %c0_i32_0 = arith.constant 0 : i32
    %c0_i32_1 = arith.constant 0 : i32
    return %c0_i32, %c0_i32_0 : i32, i32
  }
  func.func @transform_5(%arg0: i32) -> (i32, i32) {
    %c0_i32 = arith.constant 0 : i32
    %c0_i32_0 = arith.constant 0 : i32
    %c0_i32_1 = arith.constant 0 : i32
    return %c0_i32, %c0_i32_0 : i32, i32
  }
  func.func @transform_6(%arg0: i32) -> (i32, i32) {
    %c0_i32 = arith.constant 0 : i32
    %c0_i32_0 = arith.constant 0 : i32
    %c0_i32_1 = arith.constant 0 : i32
    return %c0_i32, %c0_i32_0 : i32, i32
  }
  func.func @transform_7(%arg0: i32) -> (i32, i32) {
    %c0_i32 = arith.constant 0 : i32
    %c0_i32_0 = arith.constant 0 : i32
    %c0_i32_1 = arith.constant 0 : i32
    return %c0_i32, %c0_i32_0 : i32, i32
  }
}

</mosaic_0001>

<llo_original>
// kernel: dssm_forward.1
$region0: #{dssm_forward.1}
  #allocation0 [shape = 'u32[]', space=smem, size = 0x4, offset = 0x4, fixed_abs, tag = 'smem constant byte address 0x4 - core index']
  #allocation1 [shape = 'u32[72,128]{1,0:T(1,128)}', space=vmem, size = 0x9000, scoped, tag = 'internal scratch']
  #allocation2 [shape = 'f32[8,300]{1,0:T(8,128)}', space=vmem, size = 0x3000, scoped, tag = 'scratch operand']
  %s0 = inlined_call_operand.vmem [shape: bf16[8,30720], index: 0, kind: input, shape index: {}]
  %s1 = inlined_call_operand.vmem [shape: bf16[30720,300], index: 1, kind: input, shape index: {}]
  %s2 = inlined_call_operand.vmem [shape: f32[1,300], index: 2, kind: input, shape index: {}]
  %s3 = inlined_call_operand.vmem [shape: bf16[300,300], index: 3, kind: input, shape index: {}]
  %s4 = inlined_call_operand.vmem [shape: f32[1,300], index: 4, kind: input, shape index: {}]
  %s5 = inlined_call_operand.vmem [shape: bf16[300,128], index: 5, kind: input, shape index: {}]
  %s6 = inlined_call_operand.vmem [shape: f32[1,128], index: 6, kind: input, shape index: {}]
  %s7 = inlined_call_operand.hbm [shape: f32[8,128], index: 7, kind: output, shape index: {}]
  %s8 = sld [smem:[#allocation0]]
  $region69: #{dssm_forward.1} parent=0
    _
  %s10 = ssub.s32 1, %s8
  %s11 = scalar_select 0, %s10, %s8
  $region1: #{dssm_forward.1} parent=0
    #allocation3 [shape = 'u8[4096]{0}', space=vmem, size = 0x1000, scoped, tag = 'output window, operand 0, single buffered']
    #allocation4 [shape = 's32[2]{0}', space=sflag, size = 0x8, scoped, tag = 'scoped memory for dssm_forward.1']
    %12 = vsyncpa [#allocation4], 0
    loop: start=0, step=1, limit=6
    $region2: #{dssm_forward.1} parent=1 // loop_pre_header
      _
    $region3: #{dssm_forward.1} parent=1 // loop_header
      %s14 = sphi 0, %s18
      %p15 = scmp.ge.s32.totalorder %s14, 6
      %s24 = sphi 0, %s26
      %s27 = sphi 0, %s24
      %s28 = sphi 0, %s27
      %s44 = sphi 0, %s28
      %s50 = sphi 0, %s52
      %s53 = sphi 0, %s50
      %s54 = sphi 0, %s53
      %s70 = sphi 0, %s54
      %s74 = sphi 0, %s74
      %s76 = sphi 0, %s74
      %s77 = sphi 0, %s76
      %s91 = sphi 0, %s77
      %s95 = sphi 0, %s95
      %s97 = sphi 0, %s95
      %s98 = sphi 0, %s97
      %s112 = sphi 0, %s98
      %s116 = sphi 0, %s116
      %s118 = sphi 0, %s116
      %s119 = sphi 0, %s118
      %s133 = sphi 0, %s119
      %s137 = sphi 0, %s137
      %s139 = sphi 0, %s137
      %s140 = sphi 0, %s139
      %s154 = sphi 0, %s140
      %s158 = sphi 0, %s158
      %s160 = sphi 0, %s158
      %s161 = sphi 0, %s160
      %s175 = sphi 0, %s161
      %s179 = sphi 0, %s179
      %s181 = sphi 0, %s179
      %s182 = sphi 0, %s181
      %s196 = sphi 0, %s182
    $region4: #{dssm_forward.1} parent=1 // loop_header_branch
      %17 = sbr.rel (%p15) target = $region8
    $region5: #{dssm_forward.1} parent=1 // loop_body
      %s19 = ssub.s32 %s14, 1
      %s20 = ssub.s32 %s14, 2
      %s21 = sadd.s32 %s14, 1
      %s22 = ssub.s32 %s14, %s21
      %p23 = scmp.eq.s32.totalorder %s22, 0
      %s25 = sadd.s32 %s24, 1
      %s26 = scalar_select %p23, %s24, %s25
      %p29 = pneg %p23
      %p30 = scmp.eq.s32.totalorder %s14, 3
      %p31 = por %p29, %p30
      %p32 = scmp.ne.s32.totalorder %s24, %s27
      %p33 = scmp.eq.s32.totalorder %s14, 0
      %p34 = por %p32, %p33
      %p35 = scmp.ne.s32.totalorder %s24, %s27
      %p36 = scmp.eq.s32.totalorder %s19, 3
      %p37 = por %p35, %p36
      %p38 = scmp.ne.s32.totalorder %s27, %s28
      %p39 = scmp.eq.s32.totalorder %s19, 0
      %p40 = por %p38, %p39
      %p41 = scmp.ne.s32.totalorder %s27, %s28
      %p42 = scmp.eq.s32.totalorder %s20, 3
      %p43 = por %p41, %p42
      %p45 = scmp.ne.s32.totalorder %s28, %s44
      %p46 = scmp.eq.s32.totalorder %s20, 0
      %p47 = por %p45, %p46
      %s48 = ssub.s32 %s14, %s21
      %p49 = scmp.eq.s32.totalorder %s48, 0
      %s51 = sadd.s32 %s50, 1
      %s52 = scalar_select %p49, %s50, %s51
      %p55 = pneg %p49
      %p56 = scmp.eq.s32.totalorder %s14, 3
      %p57 = por %p55, %p56
      %p58 = scmp.ne.s32.totalorder %s50, %s53
      %p59 = scmp.eq.s32.totalorder %s14, 0
      %p60 = por %p58, %p59
      %p61 = scmp.ne.s32.totalorder %s50, %s53
      %p62 = scmp.eq.s32.totalorder %s19, 3
      %p63 = por %p61, %p62
      %p64 = scmp.ne.s32.totalorder %s53, %s54
      %p65 = scmp.eq.s32.totalorder %s19, 0
      %p66 = por %p64, %p65
      %p67 = scmp.ne.s32.totalorder %s53, %s54
      %p68 = scmp.eq.s32.totalorder %s20, 3
      %p69 = por %p67, %p68
      %p71 = scmp.ne.s32.totalorder %s54, %s70
      %p72 = scmp.eq.s32.totalorder %s20, 0
      %p73 = por %p71, %p72
      %s75 = sadd.s32 %s74, 1
      %p78 = scmp.eq.s32.totalorder %s14, 3
      %p79 = scmp.ne.s32.totalorder %s74, %s76
      %p80 = scmp.eq.s32.totalorder %s14, 0
      %p81 = por %p79, %p80
      %p82 = scmp.ne.s32.totalorder %s74, %s76
      %p83 = scmp.eq.s32.totalorder %s19, 3
      %p84 = por %p82, %p83
      %p85 = scmp.ne.s32.totalorder %s76, %s77
      %p86 = scmp.eq.s32.totalorder %s19, 0
      %p87 = por %p85, %p86
      %p88 = scmp.ne.s32.totalorder %s76, %s77
      %p89 = scmp.eq.s32.totalorder %s20, 3
      %p90 = por %p88, %p89
      %p92 = scmp.ne.s32.totalorder %s77, %s91
      %p93 = scmp.eq.s32.totalorder %s20, 0
      %p94 = por %p92, %p93
      %s96 = sadd.s32 %s95, 1
      %p99 = scmp.eq.s32.totalorder %s14, 3
      %p100 = scmp.ne.s32.totalorder %s95, %s97
      %p101 = scmp.eq.s32.totalorder %s14, 0
      %p102 = por %p100, %p101
      %p103 = scmp.ne.s32.totalorder %s95, %s97
      %p104 = scmp.eq.s32.totalorder %s19, 3
      %p105 = por %p103, %p104
      %p106 = scmp.ne.s32.totalorder %s97, %s98
      %p107 = scmp.eq.s32.totalorder %s19, 0
      %p108 = por %p106, %p107
      %p109 = scmp.ne.s32.totalorder %s97, %s98
      %p110 = scmp.eq.s32.totalorder %s20, 3
      %p111 = por %p109, %p110
      %p113 = scmp.ne.s32.totalorder %s98, %s112
      %p114 = scmp.eq.s32.totalorder %s20, 0
      %p115 = por %p113, %p114
      %s117 = sadd.s32 %s116, 1
      %p120 = scmp.eq.s32.totalorder %s14, 3
      %p121 = scmp.ne.s32.totalorder %s116, %s118
      %p122 = scmp.eq.s32.totalorder %s14, 0
      %p123 = por %p121, %p122
      %p124 = scmp.ne.s32.totalorder %s116, %s118
      %p125 = scmp.eq.s32.totalorder %s19, 3
      %p126 = por %p124, %p125
      %p127 = scmp.ne.s32.totalorder %s118, %s119
      %p128 = scmp.eq.s32.totalorder %s19, 0
      %p129 = por %p127, %p128
      %p130 = scmp.ne.s32.totalorder %s118, %s119
      %p131 = scmp.eq.s32.totalorder %s20, 3
      %p132 = por %p130, %p131
      %p134 = scmp.ne.s32.totalorder %s119, %s133
      %p135 = scmp.eq.s32.totalorder %s20, 0
      %p136 = por %p134, %p135
      %s138 = sadd.s32 %s137, 1
      %p141 = scmp.eq.s32.totalorder %s14, 3
      %p142 = scmp.ne.s32.totalorder %s137, %s139
      %p143 = scmp.eq.s32.totalorder %s14, 0
      %p144 = por %p142, %p143
      %p145 = scmp.ne.s32.totalorder %s137, %s139
      %p146 = scmp.eq.s32.totalorder %s19, 3
      %p147 = por %p145, %p146
      %p148 = scmp.ne.s32.totalorder %s139, %s140
      %p149 = scmp.eq.s32.totalorder %s19, 0
      %p150 = por %p148, %p149
      %p151 = scmp.ne.s32.totalorder %s139, %s140
      %p152 = scmp.eq.s32.totalorder %s20, 3
      %p153 = por %p151, %p152
      %p155 = scmp.ne.s32.totalorder %s140, %s154
      %p156 = scmp.eq.s32.totalorder %s20, 0
      %p157 = por %p155, %p156
      %s159 = sadd.s32 %s158, 1
      %p162 = scmp.eq.s32.totalorder %s14, 3
      %p163 = scmp.ne.s32.totalorder %s158, %s160
      %p164 = scmp.eq.s32.totalorder %s14, 0
      %p165 = por %p163, %p164
      %p166 = scmp.ne.s32.totalorder %s158, %s160
      %p167 = scmp.eq.s32.totalorder %s19, 3
      %p168 = por %p166, %p167
      %p169 = scmp.ne.s32.totalorder %s160, %s161
      %p170 = scmp.eq.s32.totalorder %s19, 0
      %p171 = por %p169, %p170
      %p172 = scmp.ne.s32.totalorder %s160, %s161
      %p173 = scmp.eq.s32.totalorder %s20, 3
      %p174 = por %p172, %p173
      %p176 = scmp.ne.s32.totalorder %s161, %s175
      %p177 = scmp.eq.s32.totalorder %s20, 0
      %p178 = por %p176, %p177
      %s180 = sadd.s32 %s179, 1
      %p183 = scmp.eq.s32.totalorder %s14, 3
      %p184 = scmp.ne.s32.totalorder %s179, %s181
      %p185 = scmp.eq.s32.totalorder %s14, 0
      %p186 = por %p184, %p185
      %p187 = scmp.ne.s32.totalorder %s179, %s181
      %p188 = scmp.eq.s32.totalorder %s19, 3
      %p189 = por %p187, %p188
      %p190 = scmp.ne.s32.totalorder %s181, %s182
      %p191 = scmp.eq.s32.totalorder %s19, 0
      %p192 = por %p190, %p191
      %p193 = scmp.ne.s32.totalorder %s181, %s182
      %p194 = scmp.eq.s32.totalorder %s20, 3
      %p195 = por %p193, %p194
      %p197 = scmp.ne.s32.totalorder %s182, %s196
      %p198 = scmp.eq.s32.totalorder %s20, 0
      %p199 = por %p197, %p198
      %p200 = scmp.le.s32.totalorder 1, %s14
      %p201 = scmp.lt.s32.totalorder %s14, 5
      %p202 = pnand %p200, %p201
      %p203 = pneg %p202
      // Predicated region
      $region9: #{dssm_forward.1} parent=5 // pred_check
        _
      $region10: #{dssm_forward.1} parent=5 // pred_check_branch
        %205 = sbr.rel (%p202) target = $region12
      $region11: #{dssm_forward.1} parent=5 // pred_region
        %s206 = ssub.s32 %s14, 1
        // Predicated region
        $region13: #{dssm_forward.1} parent=11 // pred_check
          %p207 = pneg %p87
        $region14: #{dssm_forward.1} parent=11 // pred_check_branch
          %209 = sbr.rel (%p207) target = $region16
        $region15: #{dssm_forward.1} parent=11 // pred_region
          _
        $region16: #{dssm_forward.1} parent=11 // pred_fallthru
          _
        // Predicated region
        $region17: #{dssm_forward.1} parent=11 // pred_check
          %p210 = pneg %p108
        $region18: #{dssm_forward.1} parent=11 // pred_check_branch
          %212 = sbr.rel (%p210) target = $region20
        $region19: #{dssm_forward.1} parent=11 // pred_region
          _
        $region20: #{dssm_forward.1} parent=11 // pred_fallthru
          _
        // Predicated region
        $region21: #{dssm_forward.1} parent=11 // pred_check
          %p213 = pneg %p129
        $region22: #{dssm_forward.1} parent=11 // pred_check_branch
          %215 = sbr.rel (%p213) target = $region24
        $region23: #{dssm_forward.1} parent=11 // pred_region
          _
        $region24: #{dssm_forward.1} parent=11 // pred_fallthru
          _
        // Predicated region
        $region25: #{dssm_forward.1} parent=11 // pred_check
          %p216 = pneg %p150
        $region26: #{dssm_forward.1} parent=11 // pred_check_branch
          %218 = sbr.rel (%p216) target = $region28
        $region27: #{dssm_forward.1} parent=11 // pred_region
          _
        $region28: #{dssm_forward.1} parent=11 // pred_fallthru
          _
        // Predicated region
        $region29: #{dssm_forward.1} parent=11 // pred_check
          %p219 = pneg %p171
        $region30: #{dssm_forward.1} parent=11 // pred_check_branch
          %221 = sbr.rel (%p219) target = $region32
        $region31: #{dssm_forward.1} parent=11 // pred_region
          _
        $region32: #{dssm_forward.1} parent=11 // pred_fallthru
          _
      $region12: #{dssm_forward.1} parent=5 // pred_fallthru
        _
      %p222 = scmp.lt.s32.totalorder %s14, 4
      // Predicated region
      $region33: #{dssm_forward.1} parent=5 // pred_check
        %p223 = pneg %p222
      $region34: #{dssm_forward.1} parent=5 // pred_check_branch
        %225 = sbr.rel (%p223) target = $region36
      $region35: #{dssm_forward.1} parent=5 // pred_region
        // Predicated region
        $region37: #{dssm_forward.1} parent=35 // pred_check
          %p226 = pneg %p34
        $region38: #{dssm_forward.1} parent=35 // pred_check_branch
          %228 = sbr.rel (%p226) target = $region40
        $region39: #{dssm_forward.1} parent=35 // pred_region
          %s229 = smul.u32 60, %s14
          %p230 = scmp.lt.s32.totalorder %s229, 239
          %s231 = scalar_select %p230, %s229, 239
          %s232 = smul.addr %s231, 4
          %s233 = scalar_lea.vmem %s0, %s232
          %s234 = smul.u32 60, %s14
        $region40: #{dssm_forward.1} parent=35 // pred_fallthru
          _
        // Predicated region
        $region41: #{dssm_forward.1} parent=35 // pred_check
          %p235 = pneg %p60
        $region42: #{dssm_forward.1} parent=35 // pred_check_branch
          %237 = sbr.rel (%p235) target = $region44
        $region43: #{dssm_forward.1} parent=35 // pred_region
          %s238 = smul.u32 960, %s14
          %p239 = scmp.lt.s32.totalorder %s238, 3839
          %s240 = scalar_select %p239, %s238, 3839
          %s241 = smul.addr %s240, 3
          %s242 = smul.addr %s241, 4
          %s243 = scalar_lea.vmem %s1, %s242
          %s244 = smul.u32 960, %s14
        $region44: #{dssm_forward.1} parent=35 // pred_fallthru
          _
      $region36: #{dssm_forward.1} parent=5 // pred_fallthru
        _
      %p245 = scmp.le.s32.totalorder 1, %s14
      %p246 = scmp.lt.s32.totalorder %s14, 5
      %p247 = pnand %p245, %p246
      %p248 = pneg %p247
      // Predicated region
      $region45: #{dssm_forward.1} parent=5 // pred_check
        _
      $region46: #{dssm_forward.1} parent=5 // pred_check_branch
        %250 = sbr.rel (%p247) target = $region48
      $region47: #{dssm_forward.1} parent=5 // pred_region
        %s251 = ssub.s32 %s14, 1
        %s252 = smul.u32 60, %s19
        %p253 = scmp.lt.s32.totalorder %s252, 239
        %s254 = scalar_select %p253, %s252, 239
        %s255 = smul.addr %s254, 4
        %s256 = scalar_lea.vmem %s0, %s255
        %p257 = pneg %p40
        %p258 = pneg %p37
        %s259 = smul.u32 960, %s19
        %p260 = scmp.lt.s32.totalorder %s259, 3839
        %s261 = scalar_select %p260, %s259, 3839
        %s262 = smul.addr %s261, 3
        %s263 = smul.addr %s262, 4
        %s264 = scalar_lea.vmem %s1, %s263
        %p265 = pneg %p66
        %p266 = pneg %p63
        %p267 = pneg %p87
        %p268 = pneg %p84
        %p269 = pneg %p108
        %p270 = pneg %p105
        %p271 = pneg %p129
        %p272 = pneg %p126
        %p273 = pneg %p150
        %p274 = pneg %p147
        %p275 = pneg %p171
        %p276 = pneg %p168
        %p277 = pneg %p192
        %p278 = pneg %p189
        %s279 = smul.u32 60, %s19
        %p280 = scmp.lt.s32.totalorder %s279, 239
        %s281 = scalar_select %p280, %s279, 239
        %s282 = smul.addr %s281, 4
        %s283 = scalar_lea.vmem %s0, %s282
        %s284 = smul.u32 60, %s19
        %s285 = smul.u32 960, %s19
        %p286 = scmp.lt.s32.totalorder %s285, 3839
        %s287 = scalar_select %p286, %s285, 3839
        %s288 = smul.addr %s287, 3
        %s289 = smul.addr %s288, 4
        %s290 = scalar_lea.vmem %s1, %s289
        %s291 = smul.u32 960, %s19
        %p293 = scmp.eq.s32.totalorder %s19, 0
        // Predicated region
        $region49: #{dssm_forward.1} parent=47 // pred_check
          %p294 = pneg %p293
        $region50: #{dssm_forward.1} parent=47 // pred_check_branch
          %296 = sbr.rel (%p294) target = $region52
        $region51: #{dssm_forward.1} parent=47 // pred_region
          %v297 = vld [vmem:[%s2] sm:$0x7]
          %v299 = vperm.slane %v297, 0
          %v300 = vperm.slane %v297, 1
          %v301 = vperm.slane %v297, 2
          %305 = vst [vmem:[#allocation2] sm:$0xff] %v299
          %306 = vst [vmem:[#allocation2 + $0x8] sm:$0xff] %v300
          %vm307 = vcmask 359424
          %308 = vst.msk [vmem:[#allocation2 + $0x10] sm:$0xff] %vm307, %v301
        $region52: #{dssm_forward.1} parent=47 // pred_fallthru
          _
        %v309 = vld [vmem:[#allocation2] sm:$0xff]
        %v310 = vld [vmem:[#allocation2 + $0x8] sm:$0xff]
        %v311 = vld [vmem:[#allocation2 + $0x10] sm:$0xff]
        %v312 = vld [vmem:[%s283] sm:$0xff]
        %v313 = vld [vmem:[%s283 + $0x8] sm:$0xff]
        %v314 = vld [vmem:[%s283 + $0x10] sm:$0xff]
        %v315 = vld [vmem:[%s283 + $0x18] sm:$0xff]
        %v316 = vld [vmem:[%s283 + $0x20] sm:$0xff]
        %v317 = vld [vmem:[%s283 + $0x28] sm:$0xff]
        %v318 = vld [vmem:[%s283 + $0x30] sm:$0xff]
        %v319 = vld [vmem:[%s283 + $0x38] sm:$0xff]
        %v320 = vld [vmem:[%s283 + $0x40] sm:$0xff]
        %v321 = vld [vmem:[%s283 + $0x48] sm:$0xff]
        %v322 = vld [vmem:[%s283 + $0x50] sm:$0xff]
        %v323 = vld [vmem:[%s283 + $0x58] sm:$0xff]
        %v324 = vld [vmem:[%s283 + $0x60] sm:$0xff]
        %v325 = vld [vmem:[%s283 + $0x68] sm:$0xff]
        %v326 = vld [vmem:[%s283 + $0x70] sm:$0xff]
        %v327 = vld [vmem:[%s283 + $0x78] sm:$0xff]
        %v328 = vld [vmem:[%s283 + $0x80] sm:$0xff]
        %v329 = vld [vmem:[%s283 + $0x88] sm:$0xff]
        %v330 = vld [vmem:[%s283 + $0x90] sm:$0xff]
        %v331 = vld [vmem:[%s283 + $0x98] sm:$0xff]
        %v332 = vld [vmem:[%s283 + $0xa0] sm:$0xff]
        %v333 = vld [vmem:[%s283 + $0xa8] sm:$0xff]
        %v334 = vld [vmem:[%s283 + $0xb0] sm:$0xff]
        %v335 = vld [vmem:[%s283 + $0xb8] sm:$0xff]
        %v336 = vld [vmem:[%s283 + $0xc0] sm:$0xff]
        %v337 = vld [vmem:[%s283 + $0xc8] sm:$0xff]
        %v338 = vld [vmem:[%s283 + $0xd0] sm:$0xff]
        %v339 = vld [vmem:[%s283 + $0xd8] sm:$0xff]
        %v340 = vld [vmem:[%s283 + $0xe0] sm:$0xff]
        %v341 = vld [vmem:[%s283 + $0xe8] sm:$0xff]
        %v342 = vld [vmem:[%s290] sm:$0xff]
        %v343 = vld [vmem:[%s290 + $0x8] sm:$0xf]
        %v344 = vld [vmem:[%s290 + $0xc] sm:$0xff]
        %v345 = vld [vmem:[%s290 + $0x14] sm:$0xf]
        %v346 = vld [vmem:[%s290 + $0x18] sm:$0xff]
        %v347 = vld [vmem:[%s290 + $0x20] sm:$0xf]
        %v348 = vld [vmem:[%s290 + $0x24] sm:$0xff]
        %v349 = vld [vmem:[%s290 + $0x2c] sm:$0xf]
        %v350 = vld [vmem:[%s290 + $0x30] sm:$0xff]
        %v351 = vld [vmem:[%s290 + $0x38] sm:$0xf]
        %v352 = vld [vmem:[%s290 + $0x3c] sm:$0xff]
        %v353 = vld [vmem:[%s290 + $0x44] sm:$0xf]
        %v354 = vld [vmem:[%s290 + $0x48] sm:$0xff]
        %v355 = vld [vmem:[%s290 + $0x50] sm:$0xf]
        %v356 = vld [vmem:[%s290 + $0x54] sm:$0xff]
        %v357 = vld [vmem:[%s290 + $0x5c] sm:$0xf]
        %v358 = vld [vmem:[%s290 + $0x60] sm:$0xff]
        %v359 = vld [vmem:[%s290 + $0x68] sm:$0xf]
        %v360 = vld [vmem:[%s290 + $0x6c] sm:$0xff]
        %v361 = vld [vmem:[%s290 + $0x74] sm:$0xf]
        %v362 = vld [vmem:[%s290 + $0x78] sm:$0xff]
        %v363 = vld [vmem:[%s290 + $0x80] sm:$0xf]
        %v364 = vld [vmem:[%s290 + $0x84] sm:$0xff]
        %v365 = vld [vmem:[%s290 + $0x8c] sm:$0xf]
        %v366 = vld [vmem:[%s290 + $0x90] sm:$0xff]
        %v367 = vld [vmem:[%s290 + $0x98] sm:$0xf]
        %v368 = vld [vmem:[%s290 + $0x9c] sm:$0xff]
        %v369 = vld [vmem:[%s290 + $0xa4] sm:$0xf]
        %v370 = vld [vmem:[%s290 + $0xa8] sm:$0xff]
        %v371 = vld [vmem:[%s290 + $0xb0] sm:$0xf]
        %v372 = vld [vmem:[%s290 + $0xb4] sm:$0xff]
        %v373 = vld [vmem:[%s290 + $0xbc] sm:$0xf]
        %v374 = vld [vmem:[%s290 + $0xc0] sm:$0xff]
        %v375 = vld [vmem:[%s290 + $0xc8] sm:$0xf]
        %v376 = vld [vmem:[%s290 + $0xcc] sm:$0xff]
        %v377 = vld [vmem:[%s290 + $0xd4] sm:$0xf]
        %v378 = vld [vmem:[%s290 + $0xd8] sm:$0xff]
        %v379 = vld [vmem:[%s290 + $0xe0] sm:$0xf]
        %v380 = vld [vmem:[%s290 + $0xe4] sm:$0xff]
        %v381 = vld [vmem:[%s290 + $0xec] sm:$0xf]
        %v382 = vld [vmem:[%s290 + $0xf0] sm:$0xff]
        %v383 = vld [vmem:[%s290 + $0xf8] sm:$0xf]
        %v384 = vld [vmem:[%s290 + $0xfc] sm:$0xff]
        %v385 = vld [vmem:[%s290 + $0x104] sm:$0xf]
        %v386 = vld [vmem:[%s290 + $0x108] sm:$0xff]
        %v387 = vld [vmem:[%s290 + $0x110] sm:$0xf]
        %v388 = vld [vmem:[%s290 + $0x114] sm:$0xff]
        %v389 = vld [vmem:[%s290 + $0x11c] sm:$0xf]
        %v390 = vld [vmem:[%s290 + $0x120] sm:$0xff]
        %v391 = vld [vmem:[%s290 + $0x128] sm:$0xf]
        %v392 = vld [vmem:[%s290 + $0x12c] sm:$0xff]
        %v393 = vld [vmem:[%s290 + $0x134] sm:$0xf]
        %v394 = vld [vmem:[%s290 + $0x138] sm:$0xff]
        %v395 = vld [vmem:[%s290 + $0x140] sm:$0xf]
        %v396 = vld [vmem:[%s290 + $0x144] sm:$0xff]
        %v397 = vld [vmem:[%s290 + $0x14c] sm:$0xf]
        %v398 = vld [vmem:[%s290 + $0x150] sm:$0xff]
        %v399 = vld [vmem:[%s290 + $0x158] sm:$0xf]
        %v400 = vld [vmem:[%s290 + $0x15c] sm:$0xff]
        %v401 = vld [vmem:[%s290 + $0x164] sm:$0xf]
        %v402 = vld [vmem:[%s290 + $0x168] sm:$0xff]
        %v403 = vld [vmem:[%s290 + $0x170] sm:$0xf]
        %v404 = vld [vmem:[%s290 + $0x174] sm:$0xff]
        %v405 = vld [vmem:[%s290 + $0x17c] sm:$0xf]
        %v406 = vld [vmem:[%s290 + $0x180] sm:$0xff]
        %v407 = vld [vmem:[%s290 + $0x188] sm:$0xf]
        %v408 = vld [vmem:[%s290 + $0x18c] sm:$0xff]
        %v409 = vld [vmem:[%s290 + $0x194] sm:$0xf]
        %v410 = vld [vmem:[%s290 + $0x198] sm:$0xff]
        %v411 = vld [vmem:[%s290 + $0x1a0] sm:$0xf]
        %v412 = vld [vmem:[%s290 + $0x1a4] sm:$0xff]
        %v413 = vld [vmem:[%s290 + $0x1ac] sm:$0xf]
        %v414 = vld [vmem:[%s290 + $0x1b0] sm:$0xff]
        %v415 = vld [vmem:[%s290 + $0x1b8] sm:$0xf]
        %v416 = vld [vmem:[%s290 + $0x1bc] sm:$0xff]
        %v417 = vld [vmem:[%s290 + $0x1c4] sm:$0xf]
        %v418 = vld [vmem:[%s290 + $0x1c8] sm:$0xff]
        %v419 = vld [vmem:[%s290 + $0x1d0] sm:$0xf]
        %v420 = vld [vmem:[%s290 + $0x1d4] sm:$0xff]
        %v421 = vld [vmem:[%s290 + $0x1dc] sm:$0xf]
        %v422 = vld [vmem:[%s290 + $0x1e0] sm:$0xff]
        %v423 = vld [vmem:[%s290 + $0x1e8] sm:$0xf]
        %v424 = vld [vmem:[%s290 + $0x1ec] sm:$0xff]
        %v425 = vld [vmem:[%s290 + $0x1f4] sm:$0xf]
        %v426 = vld [vmem:[%s290 + $0x1f8] sm:$0xff]
        %v427 = vld [vmem:[%s290 + $0x200] sm:$0xf]
        %v428 = vld [vmem:[%s290 + $0x204] sm:$0xff]
        %v429 = vld [vmem:[%s290 + $0x20c] sm:$0xf]
        %v430 = vld [vmem:[%s290 + $0x210] sm:$0xff]
        %v431 = vld [vmem:[%s290 + $0x218] sm:$0xf]
        %v432 = vld [vmem:[%s290 + $0x21c] sm:$0xff]
        %v433 = vld [vmem:[%s290 + $0x224] sm:$0xf]
        %v434 = vld [vmem:[%s290 + $0x228] sm:$0xff]
        %v435 = vld [vmem:[%s290 + $0x230] sm:$0xf]
        %v436 = vld [vmem:[%s290 + $0x234] sm:$0xff]
        %v437 = vld [vmem:[%s290 + $0x23c] sm:$0xf]
        %v438 = vld [vmem:[%s290 + $0x240] sm:$0xff]
        %v439 = vld [vmem:[%s290 + $0x248] sm:$0xf]
        %v440 = vld [vmem:[%s290 + $0x24c] sm:$0xff]
        %v441 = vld [vmem:[%s290 + $0x254] sm:$0xf]
        %v442 = vld [vmem:[%s290 + $0x258] sm:$0xff]
        %v443 = vld [vmem:[%s290 + $0x260] sm:$0xf]
        %v444 = vld [vmem:[%s290 + $0x264] sm:$0xff]
        %v445 = vld [vmem:[%s290 + $0x26c] sm:$0xf]
        %v446 = vld [vmem:[%s290 + $0x270] sm:$0xff]
        %v447 = vld [vmem:[%s290 + $0x278] sm:$0xf]
        %v448 = vld [vmem:[%s290 + $0x27c] sm:$0xff]
        %v449 = vld [vmem:[%s290 + $0x284] sm:$0xf]
        %v450 = vld [vmem:[%s290 + $0x288] sm:$0xff]
        %v451 = vld [vmem:[%s290 + $0x290] sm:$0xf]
        %v452 = vld [vmem:[%s290 + $0x294] sm:$0xff]
        %v453 = vld [vmem:[%s290 + $0x29c] sm:$0xf]
        %v454 = vld [vmem:[%s290 + $0x2a0] sm:$0xff]
        %v455 = vld [vmem:[%s290 + $0x2a8] sm:$0xf]
        %v456 = vld [vmem:[%s290 + $0x2ac] sm:$0xff]
        %v457 = vld [vmem:[%s290 + $0x2b4] sm:$0xf]
        %v458 = vld [vmem:[%s290 + $0x2b8] sm:$0xff]
        %v459 = vld [vmem:[%s290 + $0x2c0] sm:$0xf]
        %v460 = vld [vmem:[%s290 + $0x2c4] sm:$0xff]
        %v461 = vld [vmem:[%s290 + $0x2cc] sm:$0xf]
        %v462 = vld [vmem:[%s290 + $0x2d0] sm:$0xff]
        %v463 = vld [vmem:[%s290 + $0x2d8] sm:$0xf]
        %v464 = vld [vmem:[%s290 + $0x2dc] sm:$0xff]
        %v465 = vld [vmem:[%s290 + $0x2e4] sm:$0xf]
        %v466 = vld [vmem:[%s290 + $0x2e8] sm:$0xff]
        %v467 = vld [vmem:[%s290 + $0x2f0] sm:$0xf]
        %v468 = vld [vmem:[%s290 + $0x2f4] sm:$0xff]
        %v469 = vld [vmem:[%s290 + $0x2fc] sm:$0xf]
        %v470 = vld [vmem:[%s290 + $0x300] sm:$0xff]
        %v471 = vld [vmem:[%s290 + $0x308] sm:$0xf]
        %v472 = vld [vmem:[%s290 + $0x30c] sm:$0xff]
        %v473 = vld [vmem:[%s290 + $0x314] sm:$0xf]
        %v474 = vld [vmem:[%s290 + $0x318] sm:$0xff]
        %v475 = vld [vmem:[%s290 + $0x320] sm:$0xf]
        %v476 = vld [vmem:[%s290 + $0x324] sm:$0xff]
        %v477 = vld [vmem:[%s290 + $0x32c] sm:$0xf]
        %v478 = vld [vmem:[%s290 + $0x330] sm:$0xff]
        %v479 = vld [vmem:[%s290 + $0x338] sm:$0xf]
        %v480 = vld [vmem:[%s290 + $0x33c] sm:$0xff]
        %v481 = vld [vmem:[%s290 + $0x344] sm:$0xf]
        %v482 = vld [vmem:[%s290 + $0x348] sm:$0xff]
        %v483 = vld [vmem:[%s290 + $0x350] sm:$0xf]
        %v484 = vld [vmem:[%s290 + $0x354] sm:$0xff]
        %v485 = vld [vmem:[%s290 + $0x35c] sm:$0xf]
        %v486 = vld [vmem:[%s290 + $0x360] sm:$0xff]
        %v487 = vld [vmem:[%s290 + $0x368] sm:$0xf]
        %v488 = vld [vmem:[%s290 + $0x36c] sm:$0xff]
        %v489 = vld [vmem:[%s290 + $0x374] sm:$0xf]
        %v490 = vld [vmem:[%s290 + $0x378] sm:$0xff]
        %v491 = vld [vmem:[%s290 + $0x380] sm:$0xf]
        %v492 = vld [vmem:[%s290 + $0x384] sm:$0xff]
        %v493 = vld [vmem:[%s290 + $0x38c] sm:$0xf]
        %v494 = vld [vmem:[%s290 + $0x390] sm:$0xff]
        %v495 = vld [vmem:[%s290 + $0x398] sm:$0xf]
        %v496 = vld [vmem:[%s290 + $0x39c] sm:$0xff]
        %v497 = vld [vmem:[%s290 + $0x3a4] sm:$0xf]
        %v498 = vld [vmem:[%s290 + $0x3a8] sm:$0xff]
        %v499 = vld [vmem:[%s290 + $0x3b0] sm:$0xf]
        %v500 = vld [vmem:[%s290 + $0x3b4] sm:$0xff]
        %v501 = vld [vmem:[%s290 + $0x3bc] sm:$0xf]
        %v502 = vld [vmem:[%s290 + $0x3c0] sm:$0xff]
        %v503 = vld [vmem:[%s290 + $0x3c8] sm:$0xf]
        %v504 = vld [vmem:[%s290 + $0x3cc] sm:$0xff]
        %v505 = vld [vmem:[%s290 + $0x3d4] sm:$0xf]
        %v506 = vld [vmem:[%s290 + $0x3d8] sm:$0xff]
        %v507 = vld [vmem:[%s290 + $0x3e0] sm:$0xf]
        %v508 = vld [vmem:[%s290 + $0x3e4] sm:$0xff]
        %v509 = vld [vmem:[%s290 + $0x3ec] sm:$0xf]
        %v510 = vld [vmem:[%s290 + $0x3f0] sm:$0xff]
        %v511 = vld [vmem:[%s290 + $0x3f8] sm:$0xf]
        %v512 = vld [vmem:[%s290 + $0x3fc] sm:$0xff]
        %v513 = vld [vmem:[%s290 + $0x404] sm:$0xf]
        %v514 = vld [vmem:[%s290 + $0x408] sm:$0xff]
        %v515 = vld [vmem:[%s290 + $0x410] sm:$0xf]
        %v516 = vld [vmem:[%s290 + $0x414] sm:$0xff]
        %v517 = vld [vmem:[%s290 + $0x41c] sm:$0xf]
        %v518 = vld [vmem:[%s290 + $0x420] sm:$0xff]
        %v519 = vld [vmem:[%s290 + $0x428] sm:$0xf]
        %v520 = vld [vmem:[%s290 + $0x42c] sm:$0xff]
        %v521 = vld [vmem:[%s290 + $0x434] sm:$0xf]
        %v522 = vld [vmem:[%s290 + $0x438] sm:$0xff]
        %v523 = vld [vmem:[%s290 + $0x440] sm:$0xf]
        %v524 = vld [vmem:[%s290 + $0x444] sm:$0xff]
        %v525 = vld [vmem:[%s290 + $0x44c] sm:$0xf]
        %v526 = vld [vmem:[%s290 + $0x450] sm:$0xff]
        %v527 = vld [vmem:[%s290 + $0x458] sm:$0xf]
        %v528 = vld [vmem:[%s290 + $0x45c] sm:$0xff]
        %v529 = vld [vmem:[%s290 + $0x464] sm:$0xf]
        %v530 = vld [vmem:[%s290 + $0x468] sm:$0xff]
        %v531 = vld [vmem:[%s290 + $0x470] sm:$0xf]
        %v532 = vld [vmem:[%s290 + $0x474] sm:$0xff]
        %v533 = vld [vmem:[%s290 + $0x47c] sm:$0xf]
        %v534 = vld [vmem:[%s290 + $0x480] sm:$0xff]
        %v535 = vld [vmem:[%s290 + $0x488] sm:$0xf]
        %v536 = vld [vmem:[%s290 + $0x48c] sm:$0xff]
        %v537 = vld [vmem:[%s290 + $0x494] sm:$0xf]
        %v538 = vld [vmem:[%s290 + $0x498] sm:$0xff]
        %v539 = vld [vmem:[%s290 + $0x4a0] sm:$0xf]
        %v540 = vld [vmem:[%s290 + $0x4a4] sm:$0xff]
        %v541 = vld [vmem:[%s290 + $0x4ac] sm:$0xf]
        %v542 = vld [vmem:[%s290 + $0x4b0] sm:$0xff]
        %v543 = vld [vmem:[%s290 + $0x4b8] sm:$0xf]
        %v544 = vld [vmem:[%s290 + $0x4bc] sm:$0xff]
        %v545 = vld [vmem:[%s290 + $0x4c4] sm:$0xf]
        %v546 = vld [vmem:[%s290 + $0x4c8] sm:$0xff]
        %v547 = vld [vmem:[%s290 + $0x4d0] sm:$0xf]
        %v548 = vld [vmem:[%s290 + $0x4d4] sm:$0xff]
        %v549 = vld [vmem:[%s290 + $0x4dc] sm:$0xf]
        %v550 = vld [vmem:[%s290 + $0x4e0] sm:$0xff]
        %v551 = vld [vmem:[%s290 + $0x4e8] sm:$0xf]
        %v552 = vld [vmem:[%s290 + $0x4ec] sm:$0xff]
        %v553 = vld [vmem:[%s290 + $0x4f4] sm:$0xf]
        %v554 = vld [vmem:[%s290 + $0x4f8] sm:$0xff]
        %v555 = vld [vmem:[%s290 + $0x500] sm:$0xf]
        %v556 = vld [vmem:[%s290 + $0x504] sm:$0xff]
        %v557 = vld [vmem:[%s290 + $0x50c] sm:$0xf]
        %v558 = vld [vmem:[%s290 + $0x510] sm:$0xff]
        %v559 = vld [vmem:[%s290 + $0x518] sm:$0xf]
        %v560 = vld [vmem:[%s290 + $0x51c] sm:$0xff]
        %v561 = vld [vmem:[%s290 + $0x524] sm:$0xf]
        %v562 = vld [vmem:[%s290 + $0x528] sm:$0xff]
        %v563 = vld [vmem:[%s290 + $0x530] sm:$0xf]
        %v564 = vld [vmem:[%s290 + $0x534] sm:$0xff]
        %v565 = vld [vmem:[%s290 + $0x53c] sm:$0xf]
        %v566 = vld [vmem:[%s290 + $0x540] sm:$0xff]
        %v567 = vld [vmem:[%s290 + $0x548] sm:$0xf]
        %v568 = vld [vmem:[%s290 + $0x54c] sm:$0xff]
        %v569 = vld [vmem:[%s290 + $0x554] sm:$0xf]
        %v570 = vld [vmem:[%s290 + $0x558] sm:$0xff]
        %v571 = vld [vmem:[%s290 + $0x560] sm:$0xf]
        %v572 = vld [vmem:[%s290 + $0x564] sm:$0xff]
        %v573 = vld [vmem:[%s290 + $0x56c] sm:$0xf]
        %v574 = vld [vmem:[%s290 + $0x570] sm:$0xff]
        %v575 = vld [vmem:[%s290 + $0x578] sm:$0xf]
        %v576 = vld [vmem:[%s290 + $0x57c] sm:$0xff]
        %v577 = vld [vmem:[%s290 + $0x584] sm:$0xf]
        %v578 = vld [vmem:[%s290 + $0x588] sm:$0xff]
        %v579 = vld [vmem:[%s290 + $0x590] sm:$0xf]
        %v580 = vld [vmem:[%s290 + $0x594] sm:$0xff]
        %v581 = vld [vmem:[%s290 + $0x59c] sm:$0xf]
        %v582 = vld [vmem:[%s290 + $0x5a0] sm:$0xff]
        %v583 = vld [vmem:[%s290 + $0x5a8] sm:$0xf]
        %v584 = vld [vmem:[%s290 + $0x5ac] sm:$0xff]
        %v585 = vld [vmem:[%s290 + $0x5b4] sm:$0xf]
        %v586 = vld [vmem:[%s290 + $0x5b8] sm:$0xff]
        %v587 = vld [vmem:[%s290 + $0x5c0] sm:$0xf]
        %v588 = vld [vmem:[%s290 + $0x5c4] sm:$0xff]
        %v589 = vld [vmem:[%s290 + $0x5cc] sm:$0xf]
        %v590 = vld [vmem:[%s290 + $0x5d0] sm:$0xff]
        %v591 = vld [vmem:[%s290 + $0x5d8] sm:$0xf]
        %v592 = vld [vmem:[%s290 + $0x5dc] sm:$0xff]
        %v593 = vld [vmem:[%s290 + $0x5e4] sm:$0xf]
        %v594 = vld [vmem:[%s290 + $0x5e8] sm:$0xff]
        %v595 = vld [vmem:[%s290 + $0x5f0] sm:$0xf]
        %v596 = vld [vmem:[%s290 + $0x5f4] sm:$0xff]
        %v597 = vld [vmem:[%s290 + $0x5fc] sm:$0xf]
        %v598 = vld [vmem:[%s290 + $0x600] sm:$0xff]
        %v599 = vld [vmem:[%s290 + $0x608] sm:$0xf]
        %v600 = vld [vmem:[%s290 + $0x60c] sm:$0xff]
        %v601 = vld [vmem:[%s290 + $0x614] sm:$0xf]
        %v602 = vld [vmem:[%s290 + $0x618] sm:$0xff]
        %v603 = vld [vmem:[%s290 + $0x620] sm:$0xf]
        %v604 = vld [vmem:[%s290 + $0x624] sm:$0xff]
        %v605 = vld [vmem:[%s290 + $0x62c] sm:$0xf]
        %v606 = vld [vmem:[%s290 + $0x630] sm:$0xff]
        %v607 = vld [vmem:[%s290 + $0x638] sm:$0xf]
        %v608 = vld [vmem:[%s290 + $0x63c] sm:$0xff]
        %v609 = vld [vmem:[%s290 + $0x644] sm:$0xf]
        %v610 = vld [vmem:[%s290 + $0x648] sm:$0xff]
        %v611 = vld [vmem:[%s290 + $0x650] sm:$0xf]
        %v612 = vld [vmem:[%s290 + $0x654] sm:$0xff]
        %v613 = vld [vmem:[%s290 + $0x65c] sm:$0xf]
        %v614 = vld [vmem:[%s290 + $0x660] sm:$0xff]
        %v615 = vld [vmem:[%s290 + $0x668] sm:$0xf]
        %v616 = vld [vmem:[%s290 + $0x66c] sm:$0xff]
        %v617 = vld [vmem:[%s290 + $0x674] sm:$0xf]
        %v618 = vld [vmem:[%s290 + $0x678] sm:$0xff]
        %v619 = vld [vmem:[%s290 + $0x680] sm:$0xf]
        %v620 = vld [vmem:[%s290 + $0x684] sm:$0xff]
        %v621 = vld [vmem:[%s290 + $0x68c] sm:$0xf]
        %v622 = vld [vmem:[%s290 + $0x690] sm:$0xff]
        %v623 = vld [vmem:[%s290 + $0x698] sm:$0xf]
        %v624 = vld [vmem:[%s290 + $0x69c] sm:$0xff]
        %v625 = vld [vmem:[%s290 + $0x6a4] sm:$0xf]
        %v626 = vld [vmem:[%s290 + $0x6a8] sm:$0xff]
        %v627 = vld [vmem:[%s290 + $0x6b0] sm:$0xf]
        %v628 = vld [vmem:[%s290 + $0x6b4] sm:$0xff]
        %v629 = vld [vmem:[%s290 + $0x6bc] sm:$0xf]
        %v630 = vld [vmem:[%s290 + $0x6c0] sm:$0xff]
        %v631 = vld [vmem:[%s290 + $0x6c8] sm:$0xf]
        %v632 = vld [vmem:[%s290 + $0x6cc] sm:$0xff]
        %v633 = vld [vmem:[%s290 + $0x6d4] sm:$0xf]
        %v634 = vld [vmem:[%s290 + $0x6d8] sm:$0xff]
        %v635 = vld [vmem:[%s290 + $0x6e0] sm:$0xf]
        %v636 = vld [vmem:[%s290 + $0x6e4] sm:$0xff]
        %v637 = vld [vmem:[%s290 + $0x6ec] sm:$0xf]
        %v638 = vld [vmem:[%s290 + $0x6f0] sm:$0xff]
        %v639 = vld [vmem:[%s290 + $0x6f8] sm:$0xf]
        %v640 = vld [vmem:[%s290 + $0x6fc] sm:$0xff]
        %v641 = vld [vmem:[%s290 + $0x704] sm:$0xf]
        %v642 = vld [vmem:[%s290 + $0x708] sm:$0xff]
        %v643 = vld [vmem:[%s290 + $0x710] sm:$0xf]
        %v644 = vld [vmem:[%s290 + $0x714] sm:$0xff]
        %v645 = vld [vmem:[%s290 + $0x71c] sm:$0xf]
        %v646 = vld [vmem:[%s290 + $0x720] sm:$0xff]
        %v647 = vld [vmem:[%s290 + $0x728] sm:$0xf]
        %v648 = vld [vmem:[%s290 + $0x72c] sm:$0xff]
        %v649 = vld [vmem:[%s290 + $0x734] sm:$0xf]
        %v650 = vld [vmem:[%s290 + $0x738] sm:$0xff]
        %v651 = vld [vmem:[%s290 + $0x740] sm:$0xf]
        %v652 = vld [vmem:[%s290 + $0x744] sm:$0xff]
        %v653 = vld [vmem:[%s290 + $0x74c] sm:$0xf]
        %v654 = vld [vmem:[%s290 + $0x750] sm:$0xff]
        %v655 = vld [vmem:[%s290 + $0x758] sm:$0xf]
        %v656 = vld [vmem:[%s290 + $0x75c] sm:$0xff]
        %v657 = vld [vmem:[%s290 + $0x764] sm:$0xf]
        %v658 = vld [vmem:[%s290 + $0x768] sm:$0xff]
        %v659 = vld [vmem:[%s290 + $0x770] sm:$0xf]
        %v660 = vld [vmem:[%s290 + $0x774] sm:$0xff]
        %v661 = vld [vmem:[%s290 + $0x77c] sm:$0xf]
        %v662 = vld [vmem:[%s290 + $0x780] sm:$0xff]
        %v663 = vld [vmem:[%s290 + $0x788] sm:$0xf]
        %v664 = vld [vmem:[%s290 + $0x78c] sm:$0xff]
        %v665 = vld [vmem:[%s290 + $0x794] sm:$0xf]
        %v666 = vld [vmem:[%s290 + $0x798] sm:$0xff]
        %v667 = vld [vmem:[%s290 + $0x7a0] sm:$0xf]
        %v668 = vld [vmem:[%s290 + $0x7a4] sm:$0xff]
        %v669 = vld [vmem:[%s290 + $0x7ac] sm:$0xf]
        %v670 = vld [vmem:[%s290 + $0x7b0] sm:$0xff]
        %v671 = vld [vmem:[%s290 + $0x7b8] sm:$0xf]
        %v672 = vld [vmem:[%s290 + $0x7bc] sm:$0xff]
        %v673 = vld [vmem:[%s290 + $0x7c4] sm:$0xf]
        %v674 = vld [vmem:[%s290 + $0x7c8] sm:$0xff]
        %v675 = vld [vmem:[%s290 + $0x7d0] sm:$0xf]
        %v676 = vld [vmem:[%s290 + $0x7d4] sm:$0xff]
        %v677 = vld [vmem:[%s290 + $0x7dc] sm:$0xf]
        %v678 = vld [vmem:[%s290 + $0x7e0] sm:$0xff]
        %v679 = vld [vmem:[%s290 + $0x7e8] sm:$0xf]
        %v680 = vld [vmem:[%s290 + $0x7ec] sm:$0xff]
        %v681 = vld [vmem:[%s290 + $0x7f4] sm:$0xf]
        %v682 = vld [vmem:[%s290 + $0x7f8] sm:$0xff]
        %v683 = vld [vmem:[%s290 + $0x800] sm:$0xf]
        %v684 = vld [vmem:[%s290 + $0x804] sm:$0xff]
        %v685 = vld [vmem:[%s290 + $0x80c] sm:$0xf]
        %v686 = vld [vmem:[%s290 + $0x810] sm:$0xff]
        %v687 = vld [vmem:[%s290 + $0x818] sm:$0xf]
        %v688 = vld [vmem:[%s290 + $0x81c] sm:$0xff]
        %v689 = vld [vmem:[%s290 + $0x824] sm:$0xf]
        %v690 = vld [vmem:[%s290 + $0x828] sm:$0xff]
        %v691 = vld [vmem:[%s290 + $0x830] sm:$0xf]
        %v692 = vld [vmem:[%s290 + $0x834] sm:$0xff]
        %v693 = vld [vmem:[%s290 + $0x83c] sm:$0xf]
        %v694 = vld [vmem:[%s290 + $0x840] sm:$0xff]
        %v695 = vld [vmem:[%s290 + $0x848] sm:$0xf]
        %v696 = vld [vmem:[%s290 + $0x84c] sm:$0xff]
        %v697 = vld [vmem:[%s290 + $0x854] sm:$0xf]
        %v698 = vld [vmem:[%s290 + $0x858] sm:$0xff]
        %v699 = vld [vmem:[%s290 + $0x860] sm:$0xf]
        %v700 = vld [vmem:[%s290 + $0x864] sm:$0xff]
        %v701 = vld [vmem:[%s290 + $0x86c] sm:$0xf]
        %v702 = vld [vmem:[%s290 + $0x870] sm:$0xff]
        %v703 = vld [vmem:[%s290 + $0x878] sm:$0xf]
        %v704 = vld [vmem:[%s290 + $0x87c] sm:$0xff]
        %v705 = vld [vmem:[%s290 + $0x884] sm:$0xf]
        %v706 = vld [vmem:[%s290 + $0x888] sm:$0xff]
        %v707 = vld [vmem:[%s290 + $0x890] sm:$0xf]
        %v708 = vld [vmem:[%s290 + $0x894] sm:$0xff]
        %v709 = vld [vmem:[%s290 + $0x89c] sm:$0xf]
        %v710 = vld [vmem:[%s290 + $0x8a0] sm:$0xff]
        %v711 = vld [vmem:[%s290 + $0x8a8] sm:$0xf]
        %v712 = vld [vmem:[%s290 + $0x8ac] sm:$0xff]
        %v713 = vld [vmem:[%s290 + $0x8b4] sm:$0xf]
        %v714 = vld [vmem:[%s290 + $0x8b8] sm:$0xff]
        %v715 = vld [vmem:[%s290 + $0x8c0] sm:$0xf]
        %v716 = vld [vmem:[%s290 + $0x8c4] sm:$0xff]
        %v717 = vld [vmem:[%s290 + $0x8cc] sm:$0xf]
        %v718 = vld [vmem:[%s290 + $0x8d0] sm:$0xff]
        %v719 = vld [vmem:[%s290 + $0x8d8] sm:$0xf]
        %v720 = vld [vmem:[%s290 + $0x8dc] sm:$0xff]
        %v721 = vld [vmem:[%s290 + $0x8e4] sm:$0xf]
        %v722 = vld [vmem:[%s290 + $0x8e8] sm:$0xff]
        %v723 = vld [vmem:[%s290 + $0x8f0] sm:$0xf]
        %v724 = vld [vmem:[%s290 + $0x8f4] sm:$0xff]
        %v725 = vld [vmem:[%s290 + $0x8fc] sm:$0xf]
        %v726 = vld [vmem:[%s290 + $0x900] sm:$0xff]
        %v727 = vld [vmem:[%s290 + $0x908] sm:$0xf]
        %v728 = vld [vmem:[%s290 + $0x90c] sm:$0xff]
        %v729 = vld [vmem:[%s290 + $0x914] sm:$0xf]
        %v730 = vld [vmem:[%s290 + $0x918] sm:$0xff]
        %v731 = vld [vmem:[%s290 + $0x920] sm:$0xf]
        %v732 = vld [vmem:[%s290 + $0x924] sm:$0xff]
        %v733 = vld [vmem:[%s290 + $0x92c] sm:$0xf]
        %v734 = vld [vmem:[%s290 + $0x930] sm:$0xff]
        %v735 = vld [vmem:[%s290 + $0x938] sm:$0xf]
        %v736 = vld [vmem:[%s290 + $0x93c] sm:$0xff]
        %v737 = vld [vmem:[%s290 + $0x944] sm:$0xf]
        %v738 = vld [vmem:[%s290 + $0x948] sm:$0xff]
        %v739 = vld [vmem:[%s290 + $0x950] sm:$0xf]
        %v740 = vld [vmem:[%s290 + $0x954] sm:$0xff]
        %v741 = vld [vmem:[%s290 + $0x95c] sm:$0xf]
        %v742 = vld [vmem:[%s290 + $0x960] sm:$0xff]
        %v743 = vld [vmem:[%s290 + $0x968] sm:$0xf]
        %v744 = vld [vmem:[%s290 + $0x96c] sm:$0xff]
        %v745 = vld [vmem:[%s290 + $0x974] sm:$0xf]
        %v746 = vld [vmem:[%s290 + $0x978] sm:$0xff]
        %v747 = vld [vmem:[%s290 + $0x980] sm:$0xf]
        %v748 = vld [vmem:[%s290 + $0x984] sm:$0xff]
        %v749 = vld [vmem:[%s290 + $0x98c] sm:$0xf]
        %v750 = vld [vmem:[%s290 + $0x990] sm:$0xff]
        %v751 = vld [vmem:[%s290 + $0x998] sm:$0xf]
        %v752 = vld [vmem:[%s290 + $0x99c] sm:$0xff]
        %v753 = vld [vmem:[%s290 + $0x9a4] sm:$0xf]
        %v754 = vld [vmem:[%s290 + $0x9a8] sm:$0xff]
        %v755 = vld [vmem:[%s290 + $0x9b0] sm:$0xf]
        %v756 = vld [vmem:[%s290 + $0x9b4] sm:$0xff]
        %v757 = vld [vmem:[%s290 + $0x9bc] sm:$0xf]
        %v758 = vld [vmem:[%s290 + $0x9c0] sm:$0xff]
        %v759 = vld [vmem:[%s290 + $0x9c8] sm:$0xf]
        %v760 = vld [vmem:[%s290 + $0x9cc] sm:$0xff]
        %v761 = vld [vmem:[%s290 + $0x9d4] sm:$0xf]
        %v762 = vld [vmem:[%s290 + $0x9d8] sm:$0xff]
        %v763 = vld [vmem:[%s290 + $0x9e0] sm:$0xf]
        %v764 = vld [vmem:[%s290 + $0x9e4] sm:$0xff]
        %v765 = vld [vmem:[%s290 + $0x9ec] sm:$0xf]
        %v766 = vld [vmem:[%s290 + $0x9f0] sm:$0xff]
        %v767 = vld [vmem:[%s290 + $0x9f8] sm:$0xf]
        %v768 = vld [vmem:[%s290 + $0x9fc] sm:$0xff]
        %v769 = vld [vmem:[%s290 + $0xa04] sm:$0xf]
        %v770 = vld [vmem:[%s290 + $0xa08] sm:$0xff]
        %v771 = vld [vmem:[%s290 + $0xa10] sm:$0xf]
        %v772 = vld [vmem:[%s290 + $0xa14] sm:$0xff]
        %v773 = vld [vmem:[%s290 + $0xa1c] sm:$0xf]
        %v774 = vld [vmem:[%s290 + $0xa20] sm:$0xff]
        %v775 = vld [vmem:[%s290 + $0xa28] sm:$0xf]
        %v776 = vld [vmem:[%s290 + $0xa2c] sm:$0xff]
        %v777 = vld [vmem:[%s290 + $0xa34] sm:$0xf]
        %v778 = vld [vmem:[%s290 + $0xa38] sm:$0xff]
        %v779 = vld [vmem:[%s290 + $0xa40] sm:$0xf]
        %v780 = vld [vmem:[%s290 + $0xa44] sm:$0xff]
        %v781 = vld [vmem:[%s290 + $0xa4c] sm:$0xf]
        %v782 = vld [vmem:[%s290 + $0xa50] sm:$0xff]
        %v783 = vld [vmem:[%s290 + $0xa58] sm:$0xf]
        %v784 = vld [vmem:[%s290 + $0xa5c] sm:$0xff]
        %v785 = vld [vmem:[%s290 + $0xa64] sm:$0xf]
        %v786 = vld [vmem:[%s290 + $0xa68] sm:$0xff]
        %v787 = vld [vmem:[%s290 + $0xa70] sm:$0xf]
        %v788 = vld [vmem:[%s290 + $0xa74] sm:$0xff]
        %v789 = vld [vmem:[%s290 + $0xa7c] sm:$0xf]
        %v790 = vld [vmem:[%s290 + $0xa80] sm:$0xff]
        %v791 = vld [vmem:[%s290 + $0xa88] sm:$0xf]
        %v792 = vld [vmem:[%s290 + $0xa8c] sm:$0xff]
        %v793 = vld [vmem:[%s290 + $0xa94] sm:$0xf]
        %v794 = vld [vmem:[%s290 + $0xa98] sm:$0xff]
        %v795 = vld [vmem:[%s290 + $0xaa0] sm:$0xf]
        %v796 = vld [vmem:[%s290 + $0xaa4] sm:$0xff]
        %v797 = vld [vmem:[%s290 + $0xaac] sm:$0xf]
        %v798 = vld [vmem:[%s290 + $0xab0] sm:$0xff]
        %v799 = vld [vmem:[%s290 + $0xab8] sm:$0xf]
        %v800 = vld [vmem:[%s290 + $0xabc] sm:$0xff]
        %v801 = vld [vmem:[%s290 + $0xac4] sm:$0xf]
        %v802 = vld [vmem:[%s290 + $0xac8] sm:$0xff]
        %v803 = vld [vmem:[%s290 + $0xad0] sm:$0xf]
        %v804 = vld [vmem:[%s290 + $0xad4] sm:$0xff]
        %v805 = vld [vmem:[%s290 + $0xadc] sm:$0xf]
        %v806 = vld [vmem:[%s290 + $0xae0] sm:$0xff]
        %v807 = vld [vmem:[%s290 + $0xae8] sm:$0xf]
        %v808 = vld [vmem:[%s290 + $0xaec] sm:$0xff]
        %v809 = vld [vmem:[%s290 + $0xaf4] sm:$0xf]
        %v810 = vld [vmem:[%s290 + $0xaf8] sm:$0xff]
        %v811 = vld [vmem:[%s290 + $0xb00] sm:$0xf]
        %v812 = vld [vmem:[%s290 + $0xb04] sm:$0xff]
        %v813 = vld [vmem:[%s290 + $0xb0c] sm:$0xf]
        %v814 = vld [vmem:[%s290 + $0xb10] sm:$0xff]
        %v815 = vld [vmem:[%s290 + $0xb18] sm:$0xf]
        %v816 = vld [vmem:[%s290 + $0xb1c] sm:$0xff]
        %v817 = vld [vmem:[%s290 + $0xb24] sm:$0xf]
        %v818 = vld [vmem:[%s290 + $0xb28] sm:$0xff]
        %v819 = vld [vmem:[%s290 + $0xb30] sm:$0xf]
        %v820 = vld [vmem:[%s290 + $0xb34] sm:$0xff]
        %v821 = vld [vmem:[%s290 + $0xb3c] sm:$0xf]
        %v822 = vld [vmem:[%s290 + $0xb40] sm:$0xff]
        %v823 = vld [vmem:[%s290 + $0xb48] sm:$0xf]
        %v824 = vld [vmem:[%s290 + $0xb4c] sm:$0xff]
        %v825 = vld [vmem:[%s290 + $0xb54] sm:$0xf]
        %v826 = vld [vmem:[%s290 + $0xb58] sm:$0xff]
        %v827 = vld [vmem:[%s290 + $0xb60] sm:$0xf]
        %v828 = vld [vmem:[%s290 + $0xb64] sm:$0xff]
        %v829 = vld [vmem:[%s290 + $0xb6c] sm:$0xf]
        %v830 = vld [vmem:[%s290 + $0xb70] sm:$0xff]
        %v831 = vld [vmem:[%s290 + $0xb78] sm:$0xf]
        %v832 = vld [vmem:[%s290 + $0xb7c] sm:$0xff]
        %v833 = vld [vmem:[%s290 + $0xb84] sm:$0xf]
        %v834 = vld [vmem:[%s290 + $0xb88] sm:$0xff]
        %v835 = vld [vmem:[%s290 + $0xb90] sm:$0xf]
        %v836 = vld [vmem:[%s290 + $0xb94] sm:$0xff]
        %v837 = vld [vmem:[%s290 + $0xb9c] sm:$0xf]
        %v838 = vld [vmem:[%s290 + $0xba0] sm:$0xff]
        %v839 = vld [vmem:[%s290 + $0xba8] sm:$0xf]
        %v840 = vld [vmem:[%s290 + $0xbac] sm:$0xff]
        %v841 = vld [vmem:[%s290 + $0xbb4] sm:$0xf]
        %v842 = vld [vmem:[%s290 + $0xbb8] sm:$0xff]
        %v843 = vld [vmem:[%s290 + $0xbc0] sm:$0xf]
        %v844 = vld [vmem:[%s290 + $0xbc4] sm:$0xff]
        %v845 = vld [vmem:[%s290 + $0xbcc] sm:$0xf]
        %v846 = vld [vmem:[%s290 + $0xbd0] sm:$0xff]
        %v847 = vld [vmem:[%s290 + $0xbd8] sm:$0xf]
        %v848 = vld [vmem:[%s290 + $0xbdc] sm:$0xff]
        %v849 = vld [vmem:[%s290 + $0xbe4] sm:$0xf]
        %v850 = vld [vmem:[%s290 + $0xbe8] sm:$0xff]
        %v851 = vld [vmem:[%s290 + $0xbf0] sm:$0xf]
        %v852 = vld [vmem:[%s290 + $0xbf4] sm:$0xff]
        %v853 = vld [vmem:[%s290 + $0xbfc] sm:$0xf]
        %v854 = vld [vmem:[%s290 + $0xc00] sm:$0xff]
        %v855 = vld [vmem:[%s290 + $0xc08] sm:$0xf]
        %v856 = vld [vmem:[%s290 + $0xc0c] sm:$0xff]
        %v857 = vld [vmem:[%s290 + $0xc14] sm:$0xf]
        %v858 = vld [vmem:[%s290 + $0xc18] sm:$0xff]
        %v859 = vld [vmem:[%s290 + $0xc20] sm:$0xf]
        %v860 = vld [vmem:[%s290 + $0xc24] sm:$0xff]
        %v861 = vld [vmem:[%s290 + $0xc2c] sm:$0xf]
        %v862 = vld [vmem:[%s290 + $0xc30] sm:$0xff]
        %v863 = vld [vmem:[%s290 + $0xc38] sm:$0xf]
        %v864 = vld [vmem:[%s290 + $0xc3c] sm:$0xff]
        %v865 = vld [vmem:[%s290 + $0xc44] sm:$0xf]
        %v866 = vld [vmem:[%s290 + $0xc48] sm:$0xff]
        %v867 = vld [vmem:[%s290 + $0xc50] sm:$0xf]
        %v868 = vld [vmem:[%s290 + $0xc54] sm:$0xff]
        %v869 = vld [vmem:[%s290 + $0xc5c] sm:$0xf]
        %v870 = vld [vmem:[%s290 + $0xc60] sm:$0xff]
        %v871 = vld [vmem:[%s290 + $0xc68] sm:$0xf]
        %v872 = vld [vmem:[%s290 + $0xc6c] sm:$0xff]
        %v873 = vld [vmem:[%s290 + $0xc74] sm:$0xf]
        %v874 = vld [vmem:[%s290 + $0xc78] sm:$0xff]
        %v875 = vld [vmem:[%s290 + $0xc80] sm:$0xf]
        %v876 = vld [vmem:[%s290 + $0xc84] sm:$0xff]
        %v877 = vld [vmem:[%s290 + $0xc8c] sm:$0xf]
        %v878 = vld [vmem:[%s290 + $0xc90] sm:$0xff]
        %v879 = vld [vmem:[%s290 + $0xc98] sm:$0xf]
        %v880 = vld [vmem:[%s290 + $0xc9c] sm:$0xff]
        %v881 = vld [vmem:[%s290 + $0xca4] sm:$0xf]
        %v882 = vld [vmem:[%s290 + $0xca8] sm:$0xff]
        %v883 = vld [vmem:[%s290 + $0xcb0] sm:$0xf]
        %v884 = vld [vmem:[%s290 + $0xcb4] sm:$0xff]
        %v885 = vld [vmem:[%s290 + $0xcbc] sm:$0xf]
        %v886 = vld [vmem:[%s290 + $0xcc0] sm:$0xff]
        %v887 = vld [vmem:[%s290 + $0xcc8] sm:$0xf]
        %v888 = vld [vmem:[%s290 + $0xccc] sm:$0xff]
        %v889 = vld [vmem:[%s290 + $0xcd4] sm:$0xf]
        %v890 = vld [vmem:[%s290 + $0xcd8] sm:$0xff]
        %v891 = vld [vmem:[%s290 + $0xce0] sm:$0xf]
        %v892 = vld [vmem:[%s290 + $0xce4] sm:$0xff]
        %v893 = vld [vmem:[%s290 + $0xcec] sm:$0xf]
        %v894 = vld [vmem:[%s290 + $0xcf0] sm:$0xff]
        %v895 = vld [vmem:[%s290 + $0xcf8] sm:$0xf]
        %v896 = vld [vmem:[%s290 + $0xcfc] sm:$0xff]
        %v897 = vld [vmem:[%s290 + $0xd04] sm:$0xf]
        %v898 = vld [vmem:[%s290 + $0xd08] sm:$0xff]
        %v899 = vld [vmem:[%s290 + $0xd10] sm:$0xf]
        %v900 = vld [vmem:[%s290 + $0xd14] sm:$0xff]
        %v901 = vld [vmem:[%s290 + $0xd1c] sm:$0xf]
        %v902 = vld [vmem:[%s290 + $0xd20] sm:$0xff]
        %v903 = vld [vmem:[%s290 + $0xd28] sm:$0xf]
        %v904 = vld [vmem:[%s290 + $0xd2c] sm:$0xff]
        %v905 = vld [vmem:[%s290 + $0xd34] sm:$0xf]
        %v906 = vld [vmem:[%s290 + $0xd38] sm:$0xff]
        %v907 = vld [vmem:[%s290 + $0xd40] sm:$0xf]
        %v908 = vld [vmem:[%s290 + $0xd44] sm:$0xff]
        %v909 = vld [vmem:[%s290 + $0xd4c] sm:$0xf]
        %v910 = vld [vmem:[%s290 + $0xd50] sm:$0xff]
        %v911 = vld [vmem:[%s290 + $0xd58] sm:$0xf]
        %v912 = vld [vmem:[%s290 + $0xd5c] sm:$0xff]
        %v913 = vld [vmem:[%s290 + $0xd64] sm:$0xf]
        %v914 = vld [vmem:[%s290 + $0xd68] sm:$0xff]
        %v915 = vld [vmem:[%s290 + $0xd70] sm:$0xf]
        %v916 = vld [vmem:[%s290 + $0xd74] sm:$0xff]
        %v917 = vld [vmem:[%s290 + $0xd7c] sm:$0xf]
        %v918 = vld [vmem:[%s290 + $0xd80] sm:$0xff]
        %v919 = vld [vmem:[%s290 + $0xd88] sm:$0xf]
        %v920 = vld [vmem:[%s290 + $0xd8c] sm:$0xff]
        %v921 = vld [vmem:[%s290 + $0xd94] sm:$0xf]
        %v922 = vld [vmem:[%s290 + $0xd98] sm:$0xff]
        %v923 = vld [vmem:[%s290 + $0xda0] sm:$0xf]
        %v924 = vld [vmem:[%s290 + $0xda4] sm:$0xff]
        %v925 = vld [vmem:[%s290 + $0xdac] sm:$0xf]
        %v926 = vld [vmem:[%s290 + $0xdb0] sm:$0xff]
        %v927 = vld [vmem:[%s290 + $0xdb8] sm:$0xf]
        %v928 = vld [vmem:[%s290 + $0xdbc] sm:$0xff]
        %v929 = vld [vmem:[%s290 + $0xdc4] sm:$0xf]
        %v930 = vld [vmem:[%s290 + $0xdc8] sm:$0xff]
        %v931 = vld [vmem:[%s290 + $0xdd0] sm:$0xf]
        %v932 = vld [vmem:[%s290 + $0xdd4] sm:$0xff]
        %v933 = vld [vmem:[%s290 + $0xddc] sm:$0xf]
        %v934 = vld [vmem:[%s290 + $0xde0] sm:$0xff]
        %v935 = vld [vmem:[%s290 + $0xde8] sm:$0xf]
        %v936 = vld [vmem:[%s290 + $0xdec] sm:$0xff]
        %v937 = vld [vmem:[%s290 + $0xdf4] sm:$0xf]
        %v938 = vld [vmem:[%s290 + $0xdf8] sm:$0xff]
        %v939 = vld [vmem:[%s290 + $0xe00] sm:$0xf]
        %v940 = vld [vmem:[%s290 + $0xe04] sm:$0xff]
        %v941 = vld [vmem:[%s290 + $0xe0c] sm:$0xf]
        %v942 = vld [vmem:[%s290 + $0xe10] sm:$0xff]
        %v943 = vld [vmem:[%s290 + $0xe18] sm:$0xf]
        %v944 = vld [vmem:[%s290 + $0xe1c] sm:$0xff]
        %v945 = vld [vmem:[%s290 + $0xe24] sm:$0xf]
        %v946 = vld [vmem:[%s290 + $0xe28] sm:$0xff]
        %v947 = vld [vmem:[%s290 + $0xe30] sm:$0xf]
        %v948 = vld [vmem:[%s290 + $0xe34] sm:$0xff]
        %v949 = vld [vmem:[%s290 + $0xe3c] sm:$0xf]
        %v950 = vld [vmem:[%s290 + $0xe40] sm:$0xff]
        %v951 = vld [vmem:[%s290 + $0xe48] sm:$0xf]
        %v952 = vld [vmem:[%s290 + $0xe4c] sm:$0xff]
        %v953 = vld [vmem:[%s290 + $0xe54] sm:$0xf]
        %v954 = vld [vmem:[%s290 + $0xe58] sm:$0xff]
        %v955 = vld [vmem:[%s290 + $0xe60] sm:$0xf]
        %v956 = vld [vmem:[%s290 + $0xe64] sm:$0xff]
        %v957 = vld [vmem:[%s290 + $0xe6c] sm:$0xf]
        %v958 = vld [vmem:[%s290 + $0xe70] sm:$0xff]
        %v959 = vld [vmem:[%s290 + $0xe78] sm:$0xf]
        %v960 = vld [vmem:[%s290 + $0xe7c] sm:$0xff]
        %v961 = vld [vmem:[%s290 + $0xe84] sm:$0xf]
        %v962 = vld [vmem:[%s290 + $0xe88] sm:$0xff]
        %v963 = vld [vmem:[%s290 + $0xe90] sm:$0xf]
        %v964 = vld [vmem:[%s290 + $0xe94] sm:$0xff]
        %v965 = vld [vmem:[%s290 + $0xe9c] sm:$0xf]
        %v966 = vld [vmem:[%s290 + $0xea0] sm:$0xff]
        %v967 = vld [vmem:[%s290 + $0xea8] sm:$0xf]
        %v968 = vld [vmem:[%s290 + $0xeac] sm:$0xff]
        %v969 = vld [vmem:[%s290 + $0xeb4] sm:$0xf]
        %v970 = vld [vmem:[%s290 + $0xeb8] sm:$0xff]
        %v971 = vld [vmem:[%s290 + $0xec0] sm:$0xf]
        %v972 = vld [vmem:[%s290 + $0xec4] sm:$0xff]
        %v973 = vld [vmem:[%s290 + $0xecc] sm:$0xf]
        %v974 = vld [vmem:[%s290 + $0xed0] sm:$0xff]
        %v975 = vld [vmem:[%s290 + $0xed8] sm:$0xf]
        %v976 = vld [vmem:[%s290 + $0xedc] sm:$0xff]
        %v977 = vld [vmem:[%s290 + $0xee4] sm:$0xf]
        %v978 = vld [vmem:[%s290 + $0xee8] sm:$0xff]
        %v979 = vld [vmem:[%s290 + $0xef0] sm:$0xf]
        %v980 = vld [vmem:[%s290 + $0xef4] sm:$0xff]
        %v981 = vld [vmem:[%s290 + $0xefc] sm:$0xf]
        %v982 = vld [vmem:[%s290 + $0xf00] sm:$0xff]
        %v983 = vld [vmem:[%s290 + $0xf08] sm:$0xf]
        %v984 = vld [vmem:[%s290 + $0xf0c] sm:$0xff]
        %v985 = vld [vmem:[%s290 + $0xf14] sm:$0xf]
        %v986 = vld [vmem:[%s290 + $0xf18] sm:$0xff]
        %v987 = vld [vmem:[%s290 + $0xf20] sm:$0xf]
        %v988 = vld [vmem:[%s290 + $0xf24] sm:$0xff]
        %v989 = vld [vmem:[%s290 + $0xf2c] sm:$0xf]
        %v990 = vld [vmem:[%s290 + $0xf30] sm:$0xff]
        %v991 = vld [vmem:[%s290 + $0xf38] sm:$0xf]
        %v992 = vld [vmem:[%s290 + $0xf3c] sm:$0xff]
        %v993 = vld [vmem:[%s290 + $0xf44] sm:$0xf]
        %v994 = vld [vmem:[%s290 + $0xf48] sm:$0xff]
        %v995 = vld [vmem:[%s290 + $0xf50] sm:$0xf]
        %v996 = vld [vmem:[%s290 + $0xf54] sm:$0xff]
        %v997 = vld [vmem:[%s290 + $0xf5c] sm:$0xf]
        %v998 = vld [vmem:[%s290 + $0xf60] sm:$0xff]
        %v999 = vld [vmem:[%s290 + $0xf68] sm:$0xf]
        %v1000 = vld [vmem:[%s290 + $0xf6c] sm:$0xff]
        %v1001 = vld [vmem:[%s290 + $0xf74] sm:$0xf]
        %v1002 = vld [vmem:[%s290 + $0xf78] sm:$0xff]
        %v1003 = vld [vmem:[%s290 + $0xf80] sm:$0xf]
        %v1004 = vld [vmem:[%s290 + $0xf84] sm:$0xff]
        %v1005 = vld [vmem:[%s290 + $0xf8c] sm:$0xf]
        %v1006 = vld [vmem:[%s290 + $0xf90] sm:$0xff]
        %v1007 = vld [vmem:[%s290 + $0xf98] sm:$0xf]
        %v1008 = vld [vmem:[%s290 + $0xf9c] sm:$0xff]
        %v1009 = vld [vmem:[%s290 + $0xfa4] sm:$0xf]
        %v1010 = vld [vmem:[%s290 + $0xfa8] sm:$0xff]
        %v1011 = vld [vmem:[%s290 + $0xfb0] sm:$0xf]
        %v1012 = vld [vmem:[%s290 + $0xfb4] sm:$0xff]
        %v1013 = vld [vmem:[%s290 + $0xfbc] sm:$0xf]
        %v1014 = vld [vmem:[%s290 + $0xfc0] sm:$0xff]
        %v1015 = vld [vmem:[%s290 + $0xfc8] sm:$0xf]
        %v1016 = vld [vmem:[%s290 + $0xfcc] sm:$0xff]
        %v1017 = vld [vmem:[%s290 + $0xfd4] sm:$0xf]
        %v1018 = vld [vmem:[%s290 + $0xfd8] sm:$0xff]
        %v1019 = vld [vmem:[%s290 + $0xfe0] sm:$0xf]
        %v1020 = vld [vmem:[%s290 + $0xfe4] sm:$0xff]
        %v1021 = vld [vmem:[%s290 + $0xfec] sm:$0xf]
        %v1022 = vld [vmem:[%s290 + $0xff0] sm:$0xff]
        %v1023 = vld [vmem:[%s290 + $0xff8] sm:$0xf]
        %v1024 = vld [vmem:[%s290 + $0xffc] sm:$0xff]
        %v1025 = vld [vmem:[%s290 + $0x1004] sm:$0xf]
        %v1026 = vld [vmem:[%s290 + $0x1008] sm:$0xff]
        %v1027 = vld [vmem:[%s290 + $0x1010] sm:$0xf]
        %v1028 = vld [vmem:[%s290 + $0x1014] sm:$0xff]
        %v1029 = vld [vmem:[%s290 + $0x101c] sm:$0xf]
        %v1030 = vld [vmem:[%s290 + $0x1020] sm:$0xff]
        %v1031 = vld [vmem:[%s290 + $0x1028] sm:$0xf]
        %v1032 = vld [vmem:[%s290 + $0x102c] sm:$0xff]
        %v1033 = vld [vmem:[%s290 + $0x1034] sm:$0xf]
        %v1034 = vld [vmem:[%s290 + $0x1038] sm:$0xff]
        %v1035 = vld [vmem:[%s290 + $0x1040] sm:$0xf]
        %v1036 = vld [vmem:[%s290 + $0x1044] sm:$0xff]
        %v1037 = vld [vmem:[%s290 + $0x104c] sm:$0xf]
        %v1038 = vld [vmem:[%s290 + $0x1050] sm:$0xff]
        %v1039 = vld [vmem:[%s290 + $0x1058] sm:$0xf]
        %v1040 = vld [vmem:[%s290 + $0x105c] sm:$0xff]
        %v1041 = vld [vmem:[%s290 + $0x1064] sm:$0xf]
        %v1042 = vld [vmem:[%s290 + $0x1068] sm:$0xff]
        %v1043 = vld [vmem:[%s290 + $0x1070] sm:$0xf]
        %v1044 = vld [vmem:[%s290 + $0x1074] sm:$0xff]
        %v1045 = vld [vmem:[%s290 + $0x107c] sm:$0xf]
        %v1046 = vld [vmem:[%s290 + $0x1080] sm:$0xff]
        %v1047 = vld [vmem:[%s290 + $0x1088] sm:$0xf]
        %v1048 = vld [vmem:[%s290 + $0x108c] sm:$0xff]
        %v1049 = vld [vmem:[%s290 + $0x1094] sm:$0xf]
        %v1050 = vld [vmem:[%s290 + $0x1098] sm:$0xff]
        %v1051 = vld [vmem:[%s290 + $0x10a0] sm:$0xf]
        %v1052 = vld [vmem:[%s290 + $0x10a4] sm:$0xff]
        %v1053 = vld [vmem:[%s290 + $0x10ac] sm:$0xf]
        %v1054 = vld [vmem:[%s290 + $0x10b0] sm:$0xff]
        %v1055 = vld [vmem:[%s290 + $0x10b8] sm:$0xf]
        %v1056 = vld [vmem:[%s290 + $0x10bc] sm:$0xff]
        %v1057 = vld [vmem:[%s290 + $0x10c4] sm:$0xf]
        %v1058 = vld [vmem:[%s290 + $0x10c8] sm:$0xff]
        %v1059 = vld [vmem:[%s290 + $0x10d0] sm:$0xf]
        %v1060 = vld [vmem:[%s290 + $0x10d4] sm:$0xff]
        %v1061 = vld [vmem:[%s290 + $0x10dc] sm:$0xf]
        %v1062 = vld [vmem:[%s290 + $0x10e0] sm:$0xff]
        %v1063 = vld [vmem:[%s290 + $0x10e8] sm:$0xf]
        %v1064 = vld [vmem:[%s290 + $0x10ec] sm:$0xff]
        %v1065 = vld [vmem:[%s290 + $0x10f4] sm:$0xf]
        %v1066 = vld [vmem:[%s290 + $0x10f8] sm:$0xff]
        %v1067 = vld [vmem:[%s290 + $0x1100] sm:$0xf]
        %v1068 = vld [vmem:[%s290 + $0x1104] sm:$0xff]
        %v1069 = vld [vmem:[%s290 + $0x110c] sm:$0xf]
        %v1070 = vld [vmem:[%s290 + $0x1110] sm:$0xff]
        %v1071 = vld [vmem:[%s290 + $0x1118] sm:$0xf]
        %v1072 = vld [vmem:[%s290 + $0x111c] sm:$0xff]
        %v1073 = vld [vmem:[%s290 + $0x1124] sm:$0xf]
        %v1074 = vld [vmem:[%s290 + $0x1128] sm:$0xff]
        %v1075 = vld [vmem:[%s290 + $0x1130] sm:$0xf]
        %v1076 = vld [vmem:[%s290 + $0x1134] sm:$0xff]
        %v1077 = vld [vmem:[%s290 + $0x113c] sm:$0xf]
        %v1078 = vld [vmem:[%s290 + $0x1140] sm:$0xff]
        %v1079 = vld [vmem:[%s290 + $0x1148] sm:$0xf]
        %v1080 = vld [vmem:[%s290 + $0x114c] sm:$0xff]
        %v1081 = vld [vmem:[%s290 + $0x1154] sm:$0xf]
        %v1082 = vld [vmem:[%s290 + $0x1158] sm:$0xff]
        %v1083 = vld [vmem:[%s290 + $0x1160] sm:$0xf]
        %v1084 = vld [vmem:[%s290 + $0x1164] sm:$0xff]
        %v1085 = vld [vmem:[%s290 + $0x116c] sm:$0xf]
        %v1086 = vld [vmem:[%s290 + $0x1170] sm:$0xff]
        %v1087 = vld [vmem:[%s290 + $0x1178] sm:$0xf]
        %v1088 = vld [vmem:[%s290 + $0x117c] sm:$0xff]
        %v1089 = vld [vmem:[%s290 + $0x1184] sm:$0xf]
        %v1090 = vld [vmem:[%s290 + $0x1188] sm:$0xff]
        %v1091 = vld [vmem:[%s290 + $0x1190] sm:$0xf]
        %v1092 = vld [vmem:[%s290 + $0x1194] sm:$0xff]
        %v1093 = vld [vmem:[%s290 + $0x119c] sm:$0xf]
        %v1094 = vld [vmem:[%s290 + $0x11a0] sm:$0xff]
        %v1095 = vld [vmem:[%s290 + $0x11a8] sm:$0xf]
        %v1096 = vld [vmem:[%s290 + $0x11ac] sm:$0xff]
        %v1097 = vld [vmem:[%s290 + $0x11b4] sm:$0xf]
        %v1098 = vld [vmem:[%s290 + $0x11b8] sm:$0xff]
        %v1099 = vld [vmem:[%s290 + $0x11c0] sm:$0xf]
        %v1100 = vld [vmem:[%s290 + $0x11c4] sm:$0xff]
        %v1101 = vld [vmem:[%s290 + $0x11cc] sm:$0xf]
        %v1102 = vld [vmem:[%s290 + $0x11d0] sm:$0xff]
        %v1103 = vld [vmem:[%s290 + $0x11d8] sm:$0xf]
        %v1104 = vld [vmem:[%s290 + $0x11dc] sm:$0xff]
        %v1105 = vld [vmem:[%s290 + $0x11e4] sm:$0xf]
        %v1106 = vld [vmem:[%s290 + $0x11e8] sm:$0xff]
        %v1107 = vld [vmem:[%s290 + $0x11f0] sm:$0xf]
        %v1108 = vld [vmem:[%s290 + $0x11f4] sm:$0xff]
        %v1109 = vld [vmem:[%s290 + $0x11fc] sm:$0xf]
        %v1110 = vld [vmem:[%s290 + $0x1200] sm:$0xff]
        %v1111 = vld [vmem:[%s290 + $0x1208] sm:$0xf]
        %v1112 = vld [vmem:[%s290 + $0x120c] sm:$0xff]
        %v1113 = vld [vmem:[%s290 + $0x1214] sm:$0xf]
        %v1114 = vld [vmem:[%s290 + $0x1218] sm:$0xff]
        %v1115 = vld [vmem:[%s290 + $0x1220] sm:$0xf]
        %v1116 = vld [vmem:[%s290 + $0x1224] sm:$0xff]
        %v1117 = vld [vmem:[%s290 + $0x122c] sm:$0xf]
        %v1118 = vld [vmem:[%s290 + $0x1230] sm:$0xff]
        %v1119 = vld [vmem:[%s290 + $0x1238] sm:$0xf]
        %v1120 = vld [vmem:[%s290 + $0x123c] sm:$0xff]
        %v1121 = vld [vmem:[%s290 + $0x1244] sm:$0xf]
        %v1122 = vld [vmem:[%s290 + $0x1248] sm:$0xff]
        %v1123 = vld [vmem:[%s290 + $0x1250] sm:$0xf]
        %v1124 = vld [vmem:[%s290 + $0x1254] sm:$0xff]
        %v1125 = vld [vmem:[%s290 + $0x125c] sm:$0xf]
        %v1126 = vld [vmem:[%s290 + $0x1260] sm:$0xff]
        %v1127 = vld [vmem:[%s290 + $0x1268] sm:$0xf]
        %v1128 = vld [vmem:[%s290 + $0x126c] sm:$0xff]
        %v1129 = vld [vmem:[%s290 + $0x1274] sm:$0xf]
        %v1130 = vld [vmem:[%s290 + $0x1278] sm:$0xff]
        %v1131 = vld [vmem:[%s290 + $0x1280] sm:$0xf]
        %v1132 = vld [vmem:[%s290 + $0x1284] sm:$0xff]
        %v1133 = vld [vmem:[%s290 + $0x128c] sm:$0xf]
        %v1134 = vld [vmem:[%s290 + $0x1290] sm:$0xff]
        %v1135 = vld [vmem:[%s290 + $0x1298] sm:$0xf]
        %v1136 = vld [vmem:[%s290 + $0x129c] sm:$0xff]
        %v1137 = vld [vmem:[%s290 + $0x12a4] sm:$0xf]
        %v1138 = vld [vmem:[%s290 + $0x12a8] sm:$0xff]
        %v1139 = vld [vmem:[%s290 + $0x12b0] sm:$0xf]
        %v1140 = vld [vmem:[%s290 + $0x12b4] sm:$0xff]
        %v1141 = vld [vmem:[%s290 + $0x12bc] sm:$0xf]
        %v1142 = vld [vmem:[%s290 + $0x12c0] sm:$0xff]
        %v1143 = vld [vmem:[%s290 + $0x12c8] sm:$0xf]
        %v1144 = vld [vmem:[%s290 + $0x12cc] sm:$0xff]
        %v1145 = vld [vmem:[%s290 + $0x12d4] sm:$0xf]
        %v1146 = vld [vmem:[%s290 + $0x12d8] sm:$0xff]
        %v1147 = vld [vmem:[%s290 + $0x12e0] sm:$0xf]
        %v1148 = vld [vmem:[%s290 + $0x12e4] sm:$0xff]
        %v1149 = vld [vmem:[%s290 + $0x12ec] sm:$0xf]
        %v1150 = vld [vmem:[%s290 + $0x12f0] sm:$0xff]
        %v1151 = vld [vmem:[%s290 + $0x12f8] sm:$0xf]
        %v1152 = vld [vmem:[%s290 + $0x12fc] sm:$0xff]
        %v1153 = vld [vmem:[%s290 + $0x1304] sm:$0xf]
        %v1154 = vld [vmem:[%s290 + $0x1308] sm:$0xff]
        %v1155 = vld [vmem:[%s290 + $0x1310] sm:$0xf]
        %v1156 = vld [vmem:[%s290 + $0x1314] sm:$0xff]
        %v1157 = vld [vmem:[%s290 + $0x131c] sm:$0xf]
        %v1158 = vld [vmem:[%s290 + $0x1320] sm:$0xff]
        %v1159 = vld [vmem:[%s290 + $0x1328] sm:$0xf]
        %v1160 = vld [vmem:[%s290 + $0x132c] sm:$0xff]
        %v1161 = vld [vmem:[%s290 + $0x1334] sm:$0xf]
        %v1162 = vld [vmem:[%s290 + $0x1338] sm:$0xff]
        %v1163 = vld [vmem:[%s290 + $0x1340] sm:$0xf]
        %v1164 = vld [vmem:[%s290 + $0x1344] sm:$0xff]
        %v1165 = vld [vmem:[%s290 + $0x134c] sm:$0xf]
        %v1166 = vld [vmem:[%s290 + $0x1350] sm:$0xff]
        %v1167 = vld [vmem:[%s290 + $0x1358] sm:$0xf]
        %v1168 = vld [vmem:[%s290 + $0x135c] sm:$0xff]
        %v1169 = vld [vmem:[%s290 + $0x1364] sm:$0xf]
        %v1170 = vld [vmem:[%s290 + $0x1368] sm:$0xff]
        %v1171 = vld [vmem:[%s290 + $0x1370] sm:$0xf]
        %v1172 = vld [vmem:[%s290 + $0x1374] sm:$0xff]
        %v1173 = vld [vmem:[%s290 + $0x137c] sm:$0xf]
        %v1174 = vld [vmem:[%s290 + $0x1380] sm:$0xff]
        %v1175 = vld [vmem:[%s290 + $0x1388] sm:$0xf]
        %v1176 = vld [vmem:[%s290 + $0x138c] sm:$0xff]
        %v1177 = vld [vmem:[%s290 + $0x1394] sm:$0xf]
        %v1178 = vld [vmem:[%s290 + $0x1398] sm:$0xff]
        %v1179 = vld [vmem:[%s290 + $0x13a0] sm:$0xf]
        %v1180 = vld [vmem:[%s290 + $0x13a4] sm:$0xff]
        %v1181 = vld [vmem:[%s290 + $0x13ac] sm:$0xf]
        %v1182 = vld [vmem:[%s290 + $0x13b0] sm:$0xff]
        %v1183 = vld [vmem:[%s290 + $0x13b8] sm:$0xf]
        %v1184 = vld [vmem:[%s290 + $0x13bc] sm:$0xff]
        %v1185 = vld [vmem:[%s290 + $0x13c4] sm:$0xf]
        %v1186 = vld [vmem:[%s290 + $0x13c8] sm:$0xff]
        %v1187 = vld [vmem:[%s290 + $0x13d0] sm:$0xf]
        %v1188 = vld [vmem:[%s290 + $0x13d4] sm:$0xff]
        %v1189 = vld [vmem:[%s290 + $0x13dc] sm:$0xf]
        %v1190 = vld [vmem:[%s290 + $0x13e0] sm:$0xff]
        %v1191 = vld [vmem:[%s290 + $0x13e8] sm:$0xf]
        %v1192 = vld [vmem:[%s290 + $0x13ec] sm:$0xff]
        %v1193 = vld [vmem:[%s290 + $0x13f4] sm:$0xf]
        %v1194 = vld [vmem:[%s290 + $0x13f8] sm:$0xff]
        %v1195 = vld [vmem:[%s290 + $0x1400] sm:$0xf]
        %v1196 = vld [vmem:[%s290 + $0x1404] sm:$0xff]
        %v1197 = vld [vmem:[%s290 + $0x140c] sm:$0xf]
        %v1198 = vld [vmem:[%s290 + $0x1410] sm:$0xff]
        %v1199 = vld [vmem:[%s290 + $0x1418] sm:$0xf]
        %v1200 = vld [vmem:[%s290 + $0x141c] sm:$0xff]
        %v1201 = vld [vmem:[%s290 + $0x1424] sm:$0xf]
        %v1202 = vld [vmem:[%s290 + $0x1428] sm:$0xff]
        %v1203 = vld [vmem:[%s290 + $0x1430] sm:$0xf]
        %v1204 = vld [vmem:[%s290 + $0x1434] sm:$0xff]
        %v1205 = vld [vmem:[%s290 + $0x143c] sm:$0xf]
        %v1206 = vld [vmem:[%s290 + $0x1440] sm:$0xff]
        %v1207 = vld [vmem:[%s290 + $0x1448] sm:$0xf]
        %v1208 = vld [vmem:[%s290 + $0x144c] sm:$0xff]
        %v1209 = vld [vmem:[%s290 + $0x1454] sm:$0xf]
        %v1210 = vld [vmem:[%s290 + $0x1458] sm:$0xff]
        %v1211 = vld [vmem:[%s290 + $0x1460] sm:$0xf]
        %v1212 = vld [vmem:[%s290 + $0x1464] sm:$0xff]
        %v1213 = vld [vmem:[%s290 + $0x146c] sm:$0xf]
        %v1214 = vld [vmem:[%s290 + $0x1470] sm:$0xff]
        %v1215 = vld [vmem:[%s290 + $0x1478] sm:$0xf]
        %v1216 = vld [vmem:[%s290 + $0x147c] sm:$0xff]
        %v1217 = vld [vmem:[%s290 + $0x1484] sm:$0xf]
        %v1218 = vld [vmem:[%s290 + $0x1488] sm:$0xff]
        %v1219 = vld [vmem:[%s290 + $0x1490] sm:$0xf]
        %v1220 = vld [vmem:[%s290 + $0x1494] sm:$0xff]
        %v1221 = vld [vmem:[%s290 + $0x149c] sm:$0xf]
        %v1222 = vld [vmem:[%s290 + $0x14a0] sm:$0xff]
        %v1223 = vld [vmem:[%s290 + $0x14a8] sm:$0xf]
        %v1224 = vld [vmem:[%s290 + $0x14ac] sm:$0xff]
        %v1225 = vld [vmem:[%s290 + $0x14b4] sm:$0xf]
        %v1226 = vld [vmem:[%s290 + $0x14b8] sm:$0xff]
        %v1227 = vld [vmem:[%s290 + $0x14c0] sm:$0xf]
        %v1228 = vld [vmem:[%s290 + $0x14c4] sm:$0xff]
        %v1229 = vld [vmem:[%s290 + $0x14cc] sm:$0xf]
        %v1230 = vld [vmem:[%s290 + $0x14d0] sm:$0xff]
        %v1231 = vld [vmem:[%s290 + $0x14d8] sm:$0xf]
        %v1232 = vld [vmem:[%s290 + $0x14dc] sm:$0xff]
        %v1233 = vld [vmem:[%s290 + $0x14e4] sm:$0xf]
        %v1234 = vld [vmem:[%s290 + $0x14e8] sm:$0xff]
        %v1235 = vld [vmem:[%s290 + $0x14f0] sm:$0xf]
        %v1236 = vld [vmem:[%s290 + $0x14f4] sm:$0xff]
        %v1237 = vld [vmem:[%s290 + $0x14fc] sm:$0xf]
        %v1238 = vld [vmem:[%s290 + $0x1500] sm:$0xff]
        %v1239 = vld [vmem:[%s290 + $0x1508] sm:$0xf]
        %v1240 = vld [vmem:[%s290 + $0x150c] sm:$0xff]
        %v1241 = vld [vmem:[%s290 + $0x1514] sm:$0xf]
        %v1242 = vld [vmem:[%s290 + $0x1518] sm:$0xff]
        %v1243 = vld [vmem:[%s290 + $0x1520] sm:$0xf]
        %v1244 = vld [vmem:[%s290 + $0x1524] sm:$0xff]
        %v1245 = vld [vmem:[%s290 + $0x152c] sm:$0xf]
        %v1246 = vld [vmem:[%s290 + $0x1530] sm:$0xff]
        %v1247 = vld [vmem:[%s290 + $0x1538] sm:$0xf]
        %v1248 = vld [vmem:[%s290 + $0x153c] sm:$0xff]
        %v1249 = vld [vmem:[%s290 + $0x1544] sm:$0xf]
        %v1250 = vld [vmem:[%s290 + $0x1548] sm:$0xff]
        %v1251 = vld [vmem:[%s290 + $0x1550] sm:$0xf]
        %v1252 = vld [vmem:[%s290 + $0x1554] sm:$0xff]
        %v1253 = vld [vmem:[%s290 + $0x155c] sm:$0xf]
        %v1254 = vld [vmem:[%s290 + $0x1560] sm:$0xff]
        %v1255 = vld [vmem:[%s290 + $0x1568] sm:$0xf]
        %v1256 = vld [vmem:[%s290 + $0x156c] sm:$0xff]
        %v1257 = vld [vmem:[%s290 + $0x1574] sm:$0xf]
        %v1258 = vld [vmem:[%s290 + $0x1578] sm:$0xff]
        %v1259 = vld [vmem:[%s290 + $0x1580] sm:$0xf]
        %v1260 = vld [vmem:[%s290 + $0x1584] sm:$0xff]
        %v1261 = vld [vmem:[%s290 + $0x158c] sm:$0xf]
        %v1262 = vld [vmem:[%s290 + $0x1590] sm:$0xff]
        %v1263 = vld [vmem:[%s290 + $0x1598] sm:$0xf]
        %v1264 = vld [vmem:[%s290 + $0x159c] sm:$0xff]
        %v1265 = vld [vmem:[%s290 + $0x15a4] sm:$0xf]
        %v1266 = vld [vmem:[%s290 + $0x15a8] sm:$0xff]
        %v1267 = vld [vmem:[%s290 + $0x15b0] sm:$0xf]
        %v1268 = vld [vmem:[%s290 + $0x15b4] sm:$0xff]
        %v1269 = vld [vmem:[%s290 + $0x15bc] sm:$0xf]
        %v1270 = vld [vmem:[%s290 + $0x15c0] sm:$0xff]
        %v1271 = vld [vmem:[%s290 + $0x15c8] sm:$0xf]
        %v1272 = vld [vmem:[%s290 + $0x15cc] sm:$0xff]
        %v1273 = vld [vmem:[%s290 + $0x15d4] sm:$0xf]
        %v1274 = vld [vmem:[%s290 + $0x15d8] sm:$0xff]
        %v1275 = vld [vmem:[%s290 + $0x15e0] sm:$0xf]
        %v1276 = vld [vmem:[%s290 + $0x15e4] sm:$0xff]
        %v1277 = vld [vmem:[%s290 + $0x15ec] sm:$0xf]
        %v1278 = vld [vmem:[%s290 + $0x15f0] sm:$0xff]
        %v1279 = vld [vmem:[%s290 + $0x15f8] sm:$0xf]
        %v1280 = vld [vmem:[%s290 + $0x15fc] sm:$0xff]
        %v1281 = vld [vmem:[%s290 + $0x1604] sm:$0xf]
        %v1282 = vld [vmem:[%s290 + $0x1608] sm:$0xff]
        %v1283 = vld [vmem:[%s290 + $0x1610] sm:$0xf]
        %v1284 = vld [vmem:[%s290 + $0x1614] sm:$0xff]
        %v1285 = vld [vmem:[%s290 + $0x161c] sm:$0xf]
        %v1286 = vld [vmem:[%s290 + $0x1620] sm:$0xff]
        %v1287 = vld [vmem:[%s290 + $0x1628] sm:$0xf]
        %v1288 = vld [vmem:[%s290 + $0x162c] sm:$0xff]
        %v1289 = vld [vmem:[%s290 + $0x1634] sm:$0xf]
        %v1290 = vld [vmem:[%s290 + $0x1638] sm:$0xff]
        %v1291 = vld [vmem:[%s290 + $0x1640] sm:$0xf]
        %v1292 = vld [vmem:[%s290 + $0x1644] sm:$0xff]
        %v1293 = vld [vmem:[%s290 + $0x164c] sm:$0xf]
        %v1294 = vld [vmem:[%s290 + $0x1650] sm:$0xff]
        %v1295 = vld [vmem:[%s290 + $0x1658] sm:$0xf]
        %v1296 = vld [vmem:[%s290 + $0x165c] sm:$0xff]
        %v1297 = vld [vmem:[%s290 + $0x1664] sm:$0xf]
        %v1298 = vld [vmem:[%s290 + $0x1668] sm:$0xff]
        %v1299 = vld [vmem:[%s290 + $0x1670] sm:$0xf]
        %v1300 = vld [vmem:[%s290 + $0x1674] sm:$0xff]
        %v1301 = vld [vmem:[%s290 + $0x167c] sm:$0xf]
        %v1302 = vld [vmem:[%s290 + $0x1680] sm:$0xff]
        %v1303 = vld [vmem:[%s290 + $0x1688] sm:$0xf]
        %v1304 = vld [vmem:[%s290 + $0x168c] sm:$0xff]
        %v1305 = vld [vmem:[%s290 + $0x1694] sm:$0xf]
        %v1306 = vld [vmem:[%s290 + $0x1698] sm:$0xff]
        %v1307 = vld [vmem:[%s290 + $0x16a0] sm:$0xf]
        %v1308 = vld [vmem:[%s290 + $0x16a4] sm:$0xff]
        %v1309 = vld [vmem:[%s290 + $0x16ac] sm:$0xf]
        %v1310 = vld [vmem:[%s290 + $0x16b0] sm:$0xff]
        %v1311 = vld [vmem:[%s290 + $0x16b8] sm:$0xf]
        %v1312 = vld [vmem:[%s290 + $0x16bc] sm:$0xff]
        %v1313 = vld [vmem:[%s290 + $0x16c4] sm:$0xf]
        %v1314 = vld [vmem:[%s290 + $0x16c8] sm:$0xff]
        %v1315 = vld [vmem:[%s290 + $0x16d0] sm:$0xf]
        %v1316 = vld [vmem:[%s290 + $0x16d4] sm:$0xff]
        %v1317 = vld [vmem:[%s290 + $0x16dc] sm:$0xf]
        %v1318 = vld [vmem:[%s290 + $0x16e0] sm:$0xff]
        %v1319 = vld [vmem:[%s290 + $0x16e8] sm:$0xf]
        %v1320 = vld [vmem:[%s290 + $0x16ec] sm:$0xff]
        %v1321 = vld [vmem:[%s290 + $0x16f4] sm:$0xf]
        %v1322 = vld [vmem:[%s290 + $0x16f8] sm:$0xff]
        %v1323 = vld [vmem:[%s290 + $0x1700] sm:$0xf]
        %v1324 = vld [vmem:[%s290 + $0x1704] sm:$0xff]
        %v1325 = vld [vmem:[%s290 + $0x170c] sm:$0xf]
        %v1326 = vld [vmem:[%s290 + $0x1710] sm:$0xff]
        %v1327 = vld [vmem:[%s290 + $0x1718] sm:$0xf]
        %v1328 = vld [vmem:[%s290 + $0x171c] sm:$0xff]
        %v1329 = vld [vmem:[%s290 + $0x1724] sm:$0xf]
        %v1330 = vld [vmem:[%s290 + $0x1728] sm:$0xff]
        %v1331 = vld [vmem:[%s290 + $0x1730] sm:$0xf]
        %v1332 = vld [vmem:[%s290 + $0x1734] sm:$0xff]
        %v1333 = vld [vmem:[%s290 + $0x173c] sm:$0xf]
        %v1334 = vld [vmem:[%s290 + $0x1740] sm:$0xff]
        %v1335 = vld [vmem:[%s290 + $0x1748] sm:$0xf]
        %v1336 = vld [vmem:[%s290 + $0x174c] sm:$0xff]
        %v1337 = vld [vmem:[%s290 + $0x1754] sm:$0xf]
        %v1338 = vld [vmem:[%s290 + $0x1758] sm:$0xff]
        %v1339 = vld [vmem:[%s290 + $0x1760] sm:$0xf]
        %v1340 = vld [vmem:[%s290 + $0x1764] sm:$0xff]
        %v1341 = vld [vmem:[%s290 + $0x176c] sm:$0xf]
        %v1342 = vld [vmem:[%s290 + $0x1770] sm:$0xff]
        %v1343 = vld [vmem:[%s290 + $0x1778] sm:$0xf]
        %v1344 = vld [vmem:[%s290 + $0x177c] sm:$0xff]
        %v1345 = vld [vmem:[%s290 + $0x1784] sm:$0xf]
        %v1346 = vld [vmem:[%s290 + $0x1788] sm:$0xff]
        %v1347 = vld [vmem:[%s290 + $0x1790] sm:$0xf]
        %v1348 = vld [vmem:[%s290 + $0x1794] sm:$0xff]
        %v1349 = vld [vmem:[%s290 + $0x179c] sm:$0xf]
        %v1350 = vld [vmem:[%s290 + $0x17a0] sm:$0xff]
        %v1351 = vld [vmem:[%s290 + $0x17a8] sm:$0xf]
        %v1352 = vld [vmem:[%s290 + $0x17ac] sm:$0xff]
        %v1353 = vld [vmem:[%s290 + $0x17b4] sm:$0xf]
        %v1354 = vld [vmem:[%s290 + $0x17b8] sm:$0xff]
        %v1355 = vld [vmem:[%s290 + $0x17c0] sm:$0xf]
        %v1356 = vld [vmem:[%s290 + $0x17c4] sm:$0xff]
        %v1357 = vld [vmem:[%s290 + $0x17cc] sm:$0xf]
        %v1358 = vld [vmem:[%s290 + $0x17d0] sm:$0xff]
        %v1359 = vld [vmem:[%s290 + $0x17d8] sm:$0xf]
        %v1360 = vld [vmem:[%s290 + $0x17dc] sm:$0xff]
        %v1361 = vld [vmem:[%s290 + $0x17e4] sm:$0xf]
        %v1362 = vld [vmem:[%s290 + $0x17e8] sm:$0xff]
        %v1363 = vld [vmem:[%s290 + $0x17f0] sm:$0xf]
        %v1364 = vld [vmem:[%s290 + $0x17f4] sm:$0xff]
        %v1365 = vld [vmem:[%s290 + $0x17fc] sm:$0xf]
        %v1366 = vld [vmem:[%s290 + $0x1800] sm:$0xff]
        %v1367 = vld [vmem:[%s290 + $0x1808] sm:$0xf]
        %v1368 = vld [vmem:[%s290 + $0x180c] sm:$0xff]
        %v1369 = vld [vmem:[%s290 + $0x1814] sm:$0xf]
        %v1370 = vld [vmem:[%s290 + $0x1818] sm:$0xff]
        %v1371 = vld [vmem:[%s290 + $0x1820] sm:$0xf]
        %v1372 = vld [vmem:[%s290 + $0x1824] sm:$0xff]
        %v1373 = vld [vmem:[%s290 + $0x182c] sm:$0xf]
        %v1374 = vld [vmem:[%s290 + $0x1830] sm:$0xff]
        %v1375 = vld [vmem:[%s290 + $0x1838] sm:$0xf]
        %v1376 = vld [vmem:[%s290 + $0x183c] sm:$0xff]
        %v1377 = vld [vmem:[%s290 + $0x1844] sm:$0xf]
        %v1378 = vld [vmem:[%s290 + $0x1848] sm:$0xff]
        %v1379 = vld [vmem:[%s290 + $0x1850] sm:$0xf]
        %v1380 = vld [vmem:[%s290 + $0x1854] sm:$0xff]
        %v1381 = vld [vmem:[%s290 + $0x185c] sm:$0xf]
        %v1382 = vld [vmem:[%s290 + $0x1860] sm:$0xff]
        %v1383 = vld [vmem:[%s290 + $0x1868] sm:$0xf]
        %v1384 = vld [vmem:[%s290 + $0x186c] sm:$0xff]
        %v1385 = vld [vmem:[%s290 + $0x1874] sm:$0xf]
        %v1386 = vld [vmem:[%s290 + $0x1878] sm:$0xff]
        %v1387 = vld [vmem:[%s290 + $0x1880] sm:$0xf]
        %v1388 = vld [vmem:[%s290 + $0x1884] sm:$0xff]
        %v1389 = vld [vmem:[%s290 + $0x188c] sm:$0xf]
        %v1390 = vld [vmem:[%s290 + $0x1890] sm:$0xff]
        %v1391 = vld [vmem:[%s290 + $0x1898] sm:$0xf]
        %v1392 = vld [vmem:[%s290 + $0x189c] sm:$0xff]
        %v1393 = vld [vmem:[%s290 + $0x18a4] sm:$0xf]
        %v1394 = vld [vmem:[%s290 + $0x18a8] sm:$0xff]
        %v1395 = vld [vmem:[%s290 + $0x18b0] sm:$0xf]
        %v1396 = vld [vmem:[%s290 + $0x18b4] sm:$0xff]
        %v1397 = vld [vmem:[%s290 + $0x18bc] sm:$0xf]
        %v1398 = vld [vmem:[%s290 + $0x18c0] sm:$0xff]
        %v1399 = vld [vmem:[%s290 + $0x18c8] sm:$0xf]
        %v1400 = vld [vmem:[%s290 + $0x18cc] sm:$0xff]
        %v1401 = vld [vmem:[%s290 + $0x18d4] sm:$0xf]
        %v1402 = vld [vmem:[%s290 + $0x18d8] sm:$0xff]
        %v1403 = vld [vmem:[%s290 + $0x18e0] sm:$0xf]
        %v1404 = vld [vmem:[%s290 + $0x18e4] sm:$0xff]
        %v1405 = vld [vmem:[%s290 + $0x18ec] sm:$0xf]
        %v1406 = vld [vmem:[%s290 + $0x18f0] sm:$0xff]
        %v1407 = vld [vmem:[%s290 + $0x18f8] sm:$0xf]
        %v1408 = vld [vmem:[%s290 + $0x18fc] sm:$0xff]
        %v1409 = vld [vmem:[%s290 + $0x1904] sm:$0xf]
        %v1410 = vld [vmem:[%s290 + $0x1908] sm:$0xff]
        %v1411 = vld [vmem:[%s290 + $0x1910] sm:$0xf]
        %v1412 = vld [vmem:[%s290 + $0x1914] sm:$0xff]
        %v1413 = vld [vmem:[%s290 + $0x191c] sm:$0xf]
        %v1414 = vld [vmem:[%s290 + $0x1920] sm:$0xff]
        %v1415 = vld [vmem:[%s290 + $0x1928] sm:$0xf]
        %v1416 = vld [vmem:[%s290 + $0x192c] sm:$0xff]
        %v1417 = vld [vmem:[%s290 + $0x1934] sm:$0xf]
        %v1418 = vld [vmem:[%s290 + $0x1938] sm:$0xff]
        %v1419 = vld [vmem:[%s290 + $0x1940] sm:$0xf]
        %v1420 = vld [vmem:[%s290 + $0x1944] sm:$0xff]
        %v1421 = vld [vmem:[%s290 + $0x194c] sm:$0xf]
        %v1422 = vld [vmem:[%s290 + $0x1950] sm:$0xff]
        %v1423 = vld [vmem:[%s290 + $0x1958] sm:$0xf]
        %v1424 = vld [vmem:[%s290 + $0x195c] sm:$0xff]
        %v1425 = vld [vmem:[%s290 + $0x1964] sm:$0xf]
        %v1426 = vld [vmem:[%s290 + $0x1968] sm:$0xff]
        %v1427 = vld [vmem:[%s290 + $0x1970] sm:$0xf]
        %v1428 = vld [vmem:[%s290 + $0x1974] sm:$0xff]
        %v1429 = vld [vmem:[%s290 + $0x197c] sm:$0xf]
        %v1430 = vld [vmem:[%s290 + $0x1980] sm:$0xff]
        %v1431 = vld [vmem:[%s290 + $0x1988] sm:$0xf]
        %v1432 = vld [vmem:[%s290 + $0x198c] sm:$0xff]
        %v1433 = vld [vmem:[%s290 + $0x1994] sm:$0xf]
        %v1434 = vld [vmem:[%s290 + $0x1998] sm:$0xff]
        %v1435 = vld [vmem:[%s290 + $0x19a0] sm:$0xf]
        %v1436 = vld [vmem:[%s290 + $0x19a4] sm:$0xff]
        %v1437 = vld [vmem:[%s290 + $0x19ac] sm:$0xf]
        %v1438 = vld [vmem:[%s290 + $0x19b0] sm:$0xff]
        %v1439 = vld [vmem:[%s290 + $0x19b8] sm:$0xf]
        %v1440 = vld [vmem:[%s290 + $0x19bc] sm:$0xff]
        %v1441 = vld [vmem:[%s290 + $0x19c4] sm:$0xf]
        %v1442 = vld [vmem:[%s290 + $0x19c8] sm:$0xff]
        %v1443 = vld [vmem:[%s290 + $0x19d0] sm:$0xf]
        %v1444 = vld [vmem:[%s290 + $0x19d4] sm:$0xff]
        %v1445 = vld [vmem:[%s290 + $0x19dc] sm:$0xf]
        %v1446 = vld [vmem:[%s290 + $0x19e0] sm:$0xff]
        %v1447 = vld [vmem:[%s290 + $0x19e8] sm:$0xf]
        %v1448 = vld [vmem:[%s290 + $0x19ec] sm:$0xff]
        %v1449 = vld [vmem:[%s290 + $0x19f4] sm:$0xf]
        %v1450 = vld [vmem:[%s290 + $0x19f8] sm:$0xff]
        %v1451 = vld [vmem:[%s290 + $0x1a00] sm:$0xf]
        %v1452 = vld [vmem:[%s290 + $0x1a04] sm:$0xff]
        %v1453 = vld [vmem:[%s290 + $0x1a0c] sm:$0xf]
        %v1454 = vld [vmem:[%s290 + $0x1a10] sm:$0xff]
        %v1455 = vld [vmem:[%s290 + $0x1a18] sm:$0xf]
        %v1456 = vld [vmem:[%s290 + $0x1a1c] sm:$0xff]
        %v1457 = vld [vmem:[%s290 + $0x1a24] sm:$0xf]
        %v1458 = vld [vmem:[%s290 + $0x1a28] sm:$0xff]
        %v1459 = vld [vmem:[%s290 + $0x1a30] sm:$0xf]
        %v1460 = vld [vmem:[%s290 + $0x1a34] sm:$0xff]
        %v1461 = vld [vmem:[%s290 + $0x1a3c] sm:$0xf]
        %v1462 = vld [vmem:[%s290 + $0x1a40] sm:$0xff]
        %v1463 = vld [vmem:[%s290 + $0x1a48] sm:$0xf]
        %v1464 = vld [vmem:[%s290 + $0x1a4c] sm:$0xff]
        %v1465 = vld [vmem:[%s290 + $0x1a54] sm:$0xf]
        %v1466 = vld [vmem:[%s290 + $0x1a58] sm:$0xff]
        %v1467 = vld [vmem:[%s290 + $0x1a60] sm:$0xf]
        %v1468 = vld [vmem:[%s290 + $0x1a64] sm:$0xff]
        %v1469 = vld [vmem:[%s290 + $0x1a6c] sm:$0xf]
        %v1470 = vld [vmem:[%s290 + $0x1a70] sm:$0xff]
        %v1471 = vld [vmem:[%s290 + $0x1a78] sm:$0xf]
        %v1472 = vld [vmem:[%s290 + $0x1a7c] sm:$0xff]
        %v1473 = vld [vmem:[%s290 + $0x1a84] sm:$0xf]
        %v1474 = vld [vmem:[%s290 + $0x1a88] sm:$0xff]
        %v1475 = vld [vmem:[%s290 + $0x1a90] sm:$0xf]
        %v1476 = vld [vmem:[%s290 + $0x1a94] sm:$0xff]
        %v1477 = vld [vmem:[%s290 + $0x1a9c] sm:$0xf]
        %v1478 = vld [vmem:[%s290 + $0x1aa0] sm:$0xff]
        %v1479 = vld [vmem:[%s290 + $0x1aa8] sm:$0xf]
        %v1480 = vld [vmem:[%s290 + $0x1aac] sm:$0xff]
        %v1481 = vld [vmem:[%s290 + $0x1ab4] sm:$0xf]
        %v1482 = vld [vmem:[%s290 + $0x1ab8] sm:$0xff]
        %v1483 = vld [vmem:[%s290 + $0x1ac0] sm:$0xf]
        %v1484 = vld [vmem:[%s290 + $0x1ac4] sm:$0xff]
        %v1485 = vld [vmem:[%s290 + $0x1acc] sm:$0xf]
        %v1486 = vld [vmem:[%s290 + $0x1ad0] sm:$0xff]
        %v1487 = vld [vmem:[%s290 + $0x1ad8] sm:$0xf]
        %v1488 = vld [vmem:[%s290 + $0x1adc] sm:$0xff]
        %v1489 = vld [vmem:[%s290 + $0x1ae4] sm:$0xf]
        %v1490 = vld [vmem:[%s290 + $0x1ae8] sm:$0xff]
        %v1491 = vld [vmem:[%s290 + $0x1af0] sm:$0xf]
        %v1492 = vld [vmem:[%s290 + $0x1af4] sm:$0xff]
        %v1493 = vld [vmem:[%s290 + $0x1afc] sm:$0xf]
        %v1494 = vld [vmem:[%s290 + $0x1b00] sm:$0xff]
        %v1495 = vld [vmem:[%s290 + $0x1b08] sm:$0xf]
        %v1496 = vld [vmem:[%s290 + $0x1b0c] sm:$0xff]
        %v1497 = vld [vmem:[%s290 + $0x1b14] sm:$0xf]
        %v1498 = vld [vmem:[%s290 + $0x1b18] sm:$0xff]
        %v1499 = vld [vmem:[%s290 + $0x1b20] sm:$0xf]
        %v1500 = vld [vmem:[%s290 + $0x1b24] sm:$0xff]
        %v1501 = vld [vmem:[%s290 + $0x1b2c] sm:$0xf]
        %v1502 = vld [vmem:[%s290 + $0x1b30] sm:$0xff]
        %v1503 = vld [vmem:[%s290 + $0x1b38] sm:$0xf]
        %v1504 = vld [vmem:[%s290 + $0x1b3c] sm:$0xff]
        %v1505 = vld [vmem:[%s290 + $0x1b44] sm:$0xf]
        %v1506 = vld [vmem:[%s290 + $0x1b48] sm:$0xff]
        %v1507 = vld [vmem:[%s290 + $0x1b50] sm:$0xf]
        %v1508 = vld [vmem:[%s290 + $0x1b54] sm:$0xff]
        %v1509 = vld [vmem:[%s290 + $0x1b5c] sm:$0xf]
        %v1510 = vld [vmem:[%s290 + $0x1b60] sm:$0xff]
        %v1511 = vld [vmem:[%s290 + $0x1b68] sm:$0xf]
        %v1512 = vld [vmem:[%s290 + $0x1b6c] sm:$0xff]
        %v1513 = vld [vmem:[%s290 + $0x1b74] sm:$0xf]
        %v1514 = vld [vmem:[%s290 + $0x1b78] sm:$0xff]
        %v1515 = vld [vmem:[%s290 + $0x1b80] sm:$0xf]
        %v1516 = vld [vmem:[%s290 + $0x1b84] sm:$0xff]
        %v1517 = vld [vmem:[%s290 + $0x1b8c] sm:$0xf]
        %v1518 = vld [vmem:[%s290 + $0x1b90] sm:$0xff]
        %v1519 = vld [vmem:[%s290 + $0x1b98] sm:$0xf]
        %v1520 = vld [vmem:[%s290 + $0x1b9c] sm:$0xff]
        %v1521 = vld [vmem:[%s290 + $0x1ba4] sm:$0xf]
        %v1522 = vld [vmem:[%s290 + $0x1ba8] sm:$0xff]
        %v1523 = vld [vmem:[%s290 + $0x1bb0] sm:$0xf]
        %v1524 = vld [vmem:[%s290 + $0x1bb4] sm:$0xff]
        %v1525 = vld [vmem:[%s290 + $0x1bbc] sm:$0xf]
        %v1526 = vld [vmem:[%s290 + $0x1bc0] sm:$0xff]
        %v1527 = vld [vmem:[%s290 + $0x1bc8] sm:$0xf]
        %v1528 = vld [vmem:[%s290 + $0x1bcc] sm:$0xff]
        %v1529 = vld [vmem:[%s290 + $0x1bd4] sm:$0xf]
        %v1530 = vld [vmem:[%s290 + $0x1bd8] sm:$0xff]
        %v1531 = vld [vmem:[%s290 + $0x1be0] sm:$0xf]
        %v1532 = vld [vmem:[%s290 + $0x1be4] sm:$0xff]
        %v1533 = vld [vmem:[%s290 + $0x1bec] sm:$0xf]
        %v1534 = vld [vmem:[%s290 + $0x1bf0] sm:$0xff]
        %v1535 = vld [vmem:[%s290 + $0x1bf8] sm:$0xf]
        %v1536 = vld [vmem:[%s290 + $0x1bfc] sm:$0xff]
        %v1537 = vld [vmem:[%s290 + $0x1c04] sm:$0xf]
        %v1538 = vld [vmem:[%s290 + $0x1c08] sm:$0xff]
        %v1539 = vld [vmem:[%s290 + $0x1c10] sm:$0xf]
        %v1540 = vld [vmem:[%s290 + $0x1c14] sm:$0xff]
        %v1541 = vld [vmem:[%s290 + $0x1c1c] sm:$0xf]
        %v1542 = vld [vmem:[%s290 + $0x1c20] sm:$0xff]
        %v1543 = vld [vmem:[%s290 + $0x1c28] sm:$0xf]
        %v1544 = vld [vmem:[%s290 + $0x1c2c] sm:$0xff]
        %v1545 = vld [vmem:[%s290 + $0x1c34] sm:$0xf]
        %v1546 = vld [vmem:[%s290 + $0x1c38] sm:$0xff]
        %v1547 = vld [vmem:[%s290 + $0x1c40] sm:$0xf]
        %v1548 = vld [vmem:[%s290 + $0x1c44] sm:$0xff]
        %v1549 = vld [vmem:[%s290 + $0x1c4c] sm:$0xf]
        %v1550 = vld [vmem:[%s290 + $0x1c50] sm:$0xff]
        %v1551 = vld [vmem:[%s290 + $0x1c58] sm:$0xf]
        %v1552 = vld [vmem:[%s290 + $0x1c5c] sm:$0xff]
        %v1553 = vld [vmem:[%s290 + $0x1c64] sm:$0xf]
        %v1554 = vld [vmem:[%s290 + $0x1c68] sm:$0xff]
        %v1555 = vld [vmem:[%s290 + $0x1c70] sm:$0xf]
        %v1556 = vld [vmem:[%s290 + $0x1c74] sm:$0xff]
        %v1557 = vld [vmem:[%s290 + $0x1c7c] sm:$0xf]
        %v1558 = vld [vmem:[%s290 + $0x1c80] sm:$0xff]
        %v1559 = vld [vmem:[%s290 + $0x1c88] sm:$0xf]
        %v1560 = vld [vmem:[%s290 + $0x1c8c] sm:$0xff]
        %v1561 = vld [vmem:[%s290 + $0x1c94] sm:$0xf]
        %v1562 = vld [vmem:[%s290 + $0x1c98] sm:$0xff]
        %v1563 = vld [vmem:[%s290 + $0x1ca0] sm:$0xf]
        %v1564 = vld [vmem:[%s290 + $0x1ca4] sm:$0xff]
        %v1565 = vld [vmem:[%s290 + $0x1cac] sm:$0xf]
        %v1566 = vld [vmem:[%s290 + $0x1cb0] sm:$0xff]
        %v1567 = vld [vmem:[%s290 + $0x1cb8] sm:$0xf]
        %v1568 = vld [vmem:[%s290 + $0x1cbc] sm:$0xff]
        %v1569 = vld [vmem:[%s290 + $0x1cc4] sm:$0xf]
        %v1570 = vld [vmem:[%s290 + $0x1cc8] sm:$0xff]
        %v1571 = vld [vmem:[%s290 + $0x1cd0] sm:$0xf]
        %v1572 = vld [vmem:[%s290 + $0x1cd4] sm:$0xff]
        %v1573 = vld [vmem:[%s290 + $0x1cdc] sm:$0xf]
        %v1574 = vld [vmem:[%s290 + $0x1ce0] sm:$0xff]
        %v1575 = vld [vmem:[%s290 + $0x1ce8] sm:$0xf]
        %v1576 = vld [vmem:[%s290 + $0x1cec] sm:$0xff]
        %v1577 = vld [vmem:[%s290 + $0x1cf4] sm:$0xf]
        %v1578 = vld [vmem:[%s290 + $0x1cf8] sm:$0xff]
        %v1579 = vld [vmem:[%s290 + $0x1d00] sm:$0xf]
        %v1580 = vld [vmem:[%s290 + $0x1d04] sm:$0xff]
        %v1581 = vld [vmem:[%s290 + $0x1d0c] sm:$0xf]
        %v1582 = vld [vmem:[%s290 + $0x1d10] sm:$0xff]
        %v1583 = vld [vmem:[%s290 + $0x1d18] sm:$0xf]
        %v1584 = vld [vmem:[%s290 + $0x1d1c] sm:$0xff]
        %v1585 = vld [vmem:[%s290 + $0x1d24] sm:$0xf]
        %v1586 = vld [vmem:[%s290 + $0x1d28] sm:$0xff]
        %v1587 = vld [vmem:[%s290 + $0x1d30] sm:$0xf]
        %v1588 = vld [vmem:[%s290 + $0x1d34] sm:$0xff]
        %v1589 = vld [vmem:[%s290 + $0x1d3c] sm:$0xf]
        %v1590 = vld [vmem:[%s290 + $0x1d40] sm:$0xff]
        %v1591 = vld [vmem:[%s290 + $0x1d48] sm:$0xf]
        %v1592 = vld [vmem:[%s290 + $0x1d4c] sm:$0xff]
        %v1593 = vld [vmem:[%s290 + $0x1d54] sm:$0xf]
        %v1594 = vld [vmem:[%s290 + $0x1d58] sm:$0xff]
        %v1595 = vld [vmem:[%s290 + $0x1d60] sm:$0xf]
        %v1596 = vld [vmem:[%s290 + $0x1d64] sm:$0xff]
        %v1597 = vld [vmem:[%s290 + $0x1d6c] sm:$0xf]
        %v1598 = vld [vmem:[%s290 + $0x1d70] sm:$0xff]
        %v1599 = vld [vmem:[%s290 + $0x1d78] sm:$0xf]
        %v1600 = vld [vmem:[%s290 + $0x1d7c] sm:$0xff]
        %v1601 = vld [vmem:[%s290 + $0x1d84] sm:$0xf]
        %v1602 = vld [vmem:[%s290 + $0x1d88] sm:$0xff]
        %v1603 = vld [vmem:[%s290 + $0x1d90] sm:$0xf]
        %v1604 = vld [vmem:[%s290 + $0x1d94] sm:$0xff]
        %v1605 = vld [vmem:[%s290 + $0x1d9c] sm:$0xf]
        %v1606 = vld [vmem:[%s290 + $0x1da0] sm:$0xff]
        %v1607 = vld [vmem:[%s290 + $0x1da8] sm:$0xf]
        %v1608 = vld [vmem:[%s290 + $0x1dac] sm:$0xff]
        %v1609 = vld [vmem:[%s290 + $0x1db4] sm:$0xf]
        %v1610 = vld [vmem:[%s290 + $0x1db8] sm:$0xff]
        %v1611 = vld [vmem:[%s290 + $0x1dc0] sm:$0xf]
        %v1612 = vld [vmem:[%s290 + $0x1dc4] sm:$0xff]
        %v1613 = vld [vmem:[%s290 + $0x1dcc] sm:$0xf]
        %v1614 = vld [vmem:[%s290 + $0x1dd0] sm:$0xff]
        %v1615 = vld [vmem:[%s290 + $0x1dd8] sm:$0xf]
        %v1616 = vld [vmem:[%s290 + $0x1ddc] sm:$0xff]
        %v1617 = vld [vmem:[%s290 + $0x1de4] sm:$0xf]
        %v1618 = vld [vmem:[%s290 + $0x1de8] sm:$0xff]
        %v1619 = vld [vmem:[%s290 + $0x1df0] sm:$0xf]
        %v1620 = vld [vmem:[%s290 + $0x1df4] sm:$0xff]
        %v1621 = vld [vmem:[%s290 + $0x1dfc] sm:$0xf]
        %v1622 = vld [vmem:[%s290 + $0x1e00] sm:$0xff]
        %v1623 = vld [vmem:[%s290 + $0x1e08] sm:$0xf]
        %v1624 = vld [vmem:[%s290 + $0x1e0c] sm:$0xff]
        %v1625 = vld [vmem:[%s290 + $0x1e14] sm:$0xf]
        %v1626 = vld [vmem:[%s290 + $0x1e18] sm:$0xff]
        %v1627 = vld [vmem:[%s290 + $0x1e20] sm:$0xf]
        %v1628 = vld [vmem:[%s290 + $0x1e24] sm:$0xff]
        %v1629 = vld [vmem:[%s290 + $0x1e2c] sm:$0xf]
        %v1630 = vld [vmem:[%s290 + $0x1e30] sm:$0xff]
        %v1631 = vld [vmem:[%s290 + $0x1e38] sm:$0xf]
        %v1632 = vld [vmem:[%s290 + $0x1e3c] sm:$0xff]
        %v1633 = vld [vmem:[%s290 + $0x1e44] sm:$0xf]
        %v1634 = vld [vmem:[%s290 + $0x1e48] sm:$0xff]
        %v1635 = vld [vmem:[%s290 + $0x1e50] sm:$0xf]
        %v1636 = vld [vmem:[%s290 + $0x1e54] sm:$0xff]
        %v1637 = vld [vmem:[%s290 + $0x1e5c] sm:$0xf]
        %v1638 = vld [vmem:[%s290 + $0x1e60] sm:$0xff]
        %v1639 = vld [vmem:[%s290 + $0x1e68] sm:$0xf]
        %v1640 = vld [vmem:[%s290 + $0x1e6c] sm:$0xff]
        %v1641 = vld [vmem:[%s290 + $0x1e74] sm:$0xf]
        %v1642 = vld [vmem:[%s290 + $0x1e78] sm:$0xff]
        %v1643 = vld [vmem:[%s290 + $0x1e80] sm:$0xf]
        %v1644 = vld [vmem:[%s290 + $0x1e84] sm:$0xff]
        %v1645 = vld [vmem:[%s290 + $0x1e8c] sm:$0xf]
        %v1646 = vld [vmem:[%s290 + $0x1e90] sm:$0xff]
        %v1647 = vld [vmem:[%s290 + $0x1e98] sm:$0xf]
        %v1648 = vld [vmem:[%s290 + $0x1e9c] sm:$0xff]
        %v1649 = vld [vmem:[%s290 + $0x1ea4] sm:$0xf]
        %v1650 = vld [vmem:[%s290 + $0x1ea8] sm:$0xff]
        %v1651 = vld [vmem:[%s290 + $0x1eb0] sm:$0xf]
        %v1652 = vld [vmem:[%s290 + $0x1eb4] sm:$0xff]
        %v1653 = vld [vmem:[%s290 + $0x1ebc] sm:$0xf]
        %v1654 = vld [vmem:[%s290 + $0x1ec0] sm:$0xff]
        %v1655 = vld [vmem:[%s290 + $0x1ec8] sm:$0xf]
        %v1656 = vld [vmem:[%s290 + $0x1ecc] sm:$0xff]
        %v1657 = vld [vmem:[%s290 + $0x1ed4] sm:$0xf]
        %v1658 = vld [vmem:[%s290 + $0x1ed8] sm:$0xff]
        %v1659 = vld [vmem:[%s290 + $0x1ee0] sm:$0xf]
        %v1660 = vld [vmem:[%s290 + $0x1ee4] sm:$0xff]
        %v1661 = vld [vmem:[%s290 + $0x1eec] sm:$0xf]
        %v1662 = vld [vmem:[%s290 + $0x1ef0] sm:$0xff]
        %v1663 = vld [vmem:[%s290 + $0x1ef8] sm:$0xf]
        %v1664 = vld [vmem:[%s290 + $0x1efc] sm:$0xff]
        %v1665 = vld [vmem:[%s290 + $0x1f04] sm:$0xf]
        %v1666 = vld [vmem:[%s290 + $0x1f08] sm:$0xff]
        %v1667 = vld [vmem:[%s290 + $0x1f10] sm:$0xf]
        %v1668 = vld [vmem:[%s290 + $0x1f14] sm:$0xff]
        %v1669 = vld [vmem:[%s290 + $0x1f1c] sm:$0xf]
        %v1670 = vld [vmem:[%s290 + $0x1f20] sm:$0xff]
        %v1671 = vld [vmem:[%s290 + $0x1f28] sm:$0xf]
        %v1672 = vld [vmem:[%s290 + $0x1f2c] sm:$0xff]
        %v1673 = vld [vmem:[%s290 + $0x1f34] sm:$0xf]
        %v1674 = vld [vmem:[%s290 + $0x1f38] sm:$0xff]
        %v1675 = vld [vmem:[%s290 + $0x1f40] sm:$0xf]
        %v1676 = vld [vmem:[%s290 + $0x1f44] sm:$0xff]
        %v1677 = vld [vmem:[%s290 + $0x1f4c] sm:$0xf]
        %v1678 = vld [vmem:[%s290 + $0x1f50] sm:$0xff]
        %v1679 = vld [vmem:[%s290 + $0x1f58] sm:$0xf]
        %v1680 = vld [vmem:[%s290 + $0x1f5c] sm:$0xff]
        %v1681 = vld [vmem:[%s290 + $0x1f64] sm:$0xf]
        %v1682 = vld [vmem:[%s290 + $0x1f68] sm:$0xff]
        %v1683 = vld [vmem:[%s290 + $0x1f70] sm:$0xf]
        %v1684 = vld [vmem:[%s290 + $0x1f74] sm:$0xff]
        %v1685 = vld [vmem:[%s290 + $0x1f7c] sm:$0xf]
        %v1686 = vld [vmem:[%s290 + $0x1f80] sm:$0xff]
        %v1687 = vld [vmem:[%s290 + $0x1f88] sm:$0xf]
        %v1688 = vld [vmem:[%s290 + $0x1f8c] sm:$0xff]
        %v1689 = vld [vmem:[%s290 + $0x1f94] sm:$0xf]
        %v1690 = vld [vmem:[%s290 + $0x1f98] sm:$0xff]
        %v1691 = vld [vmem:[%s290 + $0x1fa0] sm:$0xf]
        %v1692 = vld [vmem:[%s290 + $0x1fa4] sm:$0xff]
        %v1693 = vld [vmem:[%s290 + $0x1fac] sm:$0xf]
        %v1694 = vld [vmem:[%s290 + $0x1fb0] sm:$0xff]
        %v1695 = vld [vmem:[%s290 + $0x1fb8] sm:$0xf]
        %v1696 = vld [vmem:[%s290 + $0x1fbc] sm:$0xff]
        %v1697 = vld [vmem:[%s290 + $0x1fc4] sm:$0xf]
        %v1698 = vld [vmem:[%s290 + $0x1fc8] sm:$0xff]
        %v1699 = vld [vmem:[%s290 + $0x1fd0] sm:$0xf]
        %v1700 = vld [vmem:[%s290 + $0x1fd4] sm:$0xff]
        %v1701 = vld [vmem:[%s290 + $0x1fdc] sm:$0xf]
        %v1702 = vld [vmem:[%s290 + $0x1fe0] sm:$0xff]
        %v1703 = vld [vmem:[%s290 + $0x1fe8] sm:$0xf]
        %v1704 = vld [vmem:[%s290 + $0x1fec] sm:$0xff]
        %v1705 = vld [vmem:[%s290 + $0x1ff4] sm:$0xf]
        %v1706 = vld [vmem:[%s290 + $0x1ff8] sm:$0xff]
        %v1707 = vld [vmem:[%s290 + $0x2000] sm:$0xf]
        %v1708 = vld [vmem:[%s290 + $0x2004] sm:$0xff]
        %v1709 = vld [vmem:[%s290 + $0x200c] sm:$0xf]
        %v1710 = vld [vmem:[%s290 + $0x2010] sm:$0xff]
        %v1711 = vld [vmem:[%s290 + $0x2018] sm:$0xf]
        %v1712 = vld [vmem:[%s290 + $0x201c] sm:$0xff]
        %v1713 = vld [vmem:[%s290 + $0x2024] sm:$0xf]
        %v1714 = vld [vmem:[%s290 + $0x2028] sm:$0xff]
        %v1715 = vld [vmem:[%s290 + $0x2030] sm:$0xf]
        %v1716 = vld [vmem:[%s290 + $0x2034] sm:$0xff]
        %v1717 = vld [vmem:[%s290 + $0x203c] sm:$0xf]
        %v1718 = vld [vmem:[%s290 + $0x2040] sm:$0xff]
        %v1719 = vld [vmem:[%s290 + $0x2048] sm:$0xf]
        %v1720 = vld [vmem:[%s290 + $0x204c] sm:$0xff]
        %v1721 = vld [vmem:[%s290 + $0x2054] sm:$0xf]
        %v1722 = vld [vmem:[%s290 + $0x2058] sm:$0xff]
        %v1723 = vld [vmem:[%s290 + $0x2060] sm:$0xf]
        %v1724 = vld [vmem:[%s290 + $0x2064] sm:$0xff]
        %v1725 = vld [vmem:[%s290 + $0x206c] sm:$0xf]
        %v1726 = vld [vmem:[%s290 + $0x2070] sm:$0xff]
        %v1727 = vld [vmem:[%s290 + $0x2078] sm:$0xf]
        %v1728 = vld [vmem:[%s290 + $0x207c] sm:$0xff]
        %v1729 = vld [vmem:[%s290 + $0x2084] sm:$0xf]
        %v1730 = vld [vmem:[%s290 + $0x2088] sm:$0xff]
        %v1731 = vld [vmem:[%s290 + $0x2090] sm:$0xf]
        %v1732 = vld [vmem:[%s290 + $0x2094] sm:$0xff]
        %v1733 = vld [vmem:[%s290 + $0x209c] sm:$0xf]
        %v1734 = vld [vmem:[%s290 + $0x20a0] sm:$0xff]
        %v1735 = vld [vmem:[%s290 + $0x20a8] sm:$0xf]
        %v1736 = vld [vmem:[%s290 + $0x20ac] sm:$0xff]
        %v1737 = vld [vmem:[%s290 + $0x20b4] sm:$0xf]
        %v1738 = vld [vmem:[%s290 + $0x20b8] sm:$0xff]
        %v1739 = vld [vmem:[%s290 + $0x20c0] sm:$0xf]
        %v1740 = vld [vmem:[%s290 + $0x20c4] sm:$0xff]
        %v1741 = vld [vmem:[%s290 + $0x20cc] sm:$0xf]
        %v1742 = vld [vmem:[%s290 + $0x20d0] sm:$0xff]
        %v1743 = vld [vmem:[%s290 + $0x20d8] sm:$0xf]
        %v1744 = vld [vmem:[%s290 + $0x20dc] sm:$0xff]
        %v1745 = vld [vmem:[%s290 + $0x20e4] sm:$0xf]
        %v1746 = vld [vmem:[%s290 + $0x20e8] sm:$0xff]
        %v1747 = vld [vmem:[%s290 + $0x20f0] sm:$0xf]
        %v1748 = vld [vmem:[%s290 + $0x20f4] sm:$0xff]
        %v1749 = vld [vmem:[%s290 + $0x20fc] sm:$0xf]
        %v1750 = vld [vmem:[%s290 + $0x2100] sm:$0xff]
        %v1751 = vld [vmem:[%s290 + $0x2108] sm:$0xf]
        %v1752 = vld [vmem:[%s290 + $0x210c] sm:$0xff]
        %v1753 = vld [vmem:[%s290 + $0x2114] sm:$0xf]
        %v1754 = vld [vmem:[%s290 + $0x2118] sm:$0xff]
        %v1755 = vld [vmem:[%s290 + $0x2120] sm:$0xf]
        %v1756 = vld [vmem:[%s290 + $0x2124] sm:$0xff]
        %v1757 = vld [vmem:[%s290 + $0x212c] sm:$0xf]
        %v1758 = vld [vmem:[%s290 + $0x2130] sm:$0xff]
        %v1759 = vld [vmem:[%s290 + $0x2138] sm:$0xf]
        %v1760 = vld [vmem:[%s290 + $0x213c] sm:$0xff]
        %v1761 = vld [vmem:[%s290 + $0x2144] sm:$0xf]
        %v1762 = vld [vmem:[%s290 + $0x2148] sm:$0xff]
        %v1763 = vld [vmem:[%s290 + $0x2150] sm:$0xf]
        %v1764 = vld [vmem:[%s290 + $0x2154] sm:$0xff]
        %v1765 = vld [vmem:[%s290 + $0x215c] sm:$0xf]
        %v1766 = vld [vmem:[%s290 + $0x2160] sm:$0xff]
        %v1767 = vld [vmem:[%s290 + $0x2168] sm:$0xf]
        %v1768 = vld [vmem:[%s290 + $0x216c] sm:$0xff]
        %v1769 = vld [vmem:[%s290 + $0x2174] sm:$0xf]
        %v1770 = vld [vmem:[%s290 + $0x2178] sm:$0xff]
        %v1771 = vld [vmem:[%s290 + $0x2180] sm:$0xf]
        %v1772 = vld [vmem:[%s290 + $0x2184] sm:$0xff]
        %v1773 = vld [vmem:[%s290 + $0x218c] sm:$0xf]
        %v1774 = vld [vmem:[%s290 + $0x2190] sm:$0xff]
        %v1775 = vld [vmem:[%s290 + $0x2198] sm:$0xf]
        %v1776 = vld [vmem:[%s290 + $0x219c] sm:$0xff]
        %v1777 = vld [vmem:[%s290 + $0x21a4] sm:$0xf]
        %v1778 = vld [vmem:[%s290 + $0x21a8] sm:$0xff]
        %v1779 = vld [vmem:[%s290 + $0x21b0] sm:$0xf]
        %v1780 = vld [vmem:[%s290 + $0x21b4] sm:$0xff]
        %v1781 = vld [vmem:[%s290 + $0x21bc] sm:$0xf]
        %v1782 = vld [vmem:[%s290 + $0x21c0] sm:$0xff]
        %v1783 = vld [vmem:[%s290 + $0x21c8] sm:$0xf]
        %v1784 = vld [vmem:[%s290 + $0x21cc] sm:$0xff]
        %v1785 = vld [vmem:[%s290 + $0x21d4] sm:$0xf]
        %v1786 = vld [vmem:[%s290 + $0x21d8] sm:$0xff]
        %v1787 = vld [vmem:[%s290 + $0x21e0] sm:$0xf]
        %v1788 = vld [vmem:[%s290 + $0x21e4] sm:$0xff]
        %v1789 = vld [vmem:[%s290 + $0x21ec] sm:$0xf]
        %v1790 = vld [vmem:[%s290 + $0x21f0] sm:$0xff]
        %v1791 = vld [vmem:[%s290 + $0x21f8] sm:$0xf]
        %v1792 = vld [vmem:[%s290 + $0x21fc] sm:$0xff]
        %v1793 = vld [vmem:[%s290 + $0x2204] sm:$0xf]
        %v1794 = vld [vmem:[%s290 + $0x2208] sm:$0xff]
        %v1795 = vld [vmem:[%s290 + $0x2210] sm:$0xf]
        %v1796 = vld [vmem:[%s290 + $0x2214] sm:$0xff]
        %v1797 = vld [vmem:[%s290 + $0x221c] sm:$0xf]
        %v1798 = vld [vmem:[%s290 + $0x2220] sm:$0xff]
        %v1799 = vld [vmem:[%s290 + $0x2228] sm:$0xf]
        %v1800 = vld [vmem:[%s290 + $0x222c] sm:$0xff]
        %v1801 = vld [vmem:[%s290 + $0x2234] sm:$0xf]
        %v1802 = vld [vmem:[%s290 + $0x2238] sm:$0xff]
        %v1803 = vld [vmem:[%s290 + $0x2240] sm:$0xf]
        %v1804 = vld [vmem:[%s290 + $0x2244] sm:$0xff]
        %v1805 = vld [vmem:[%s290 + $0x224c] sm:$0xf]
        %v1806 = vld [vmem:[%s290 + $0x2250] sm:$0xff]
        %v1807 = vld [vmem:[%s290 + $0x2258] sm:$0xf]
        %v1808 = vld [vmem:[%s290 + $0x225c] sm:$0xff]
        %v1809 = vld [vmem:[%s290 + $0x2264] sm:$0xf]
        %v1810 = vld [vmem:[%s290 + $0x2268] sm:$0xff]
        %v1811 = vld [vmem:[%s290 + $0x2270] sm:$0xf]
        %v1812 = vld [vmem:[%s290 + $0x2274] sm:$0xff]
        %v1813 = vld [vmem:[%s290 + $0x227c] sm:$0xf]
        %v1814 = vld [vmem:[%s290 + $0x2280] sm:$0xff]
        %v1815 = vld [vmem:[%s290 + $0x2288] sm:$0xf]
        %v1816 = vld [vmem:[%s290 + $0x228c] sm:$0xff]
        %v1817 = vld [vmem:[%s290 + $0x2294] sm:$0xf]
        %v1818 = vld [vmem:[%s290 + $0x2298] sm:$0xff]
        %v1819 = vld [vmem:[%s290 + $0x22a0] sm:$0xf]
        %v1820 = vld [vmem:[%s290 + $0x22a4] sm:$0xff]
        %v1821 = vld [vmem:[%s290 + $0x22ac] sm:$0xf]
        %v1822 = vld [vmem:[%s290 + $0x22b0] sm:$0xff]
        %v1823 = vld [vmem:[%s290 + $0x22b8] sm:$0xf]
        %v1824 = vld [vmem:[%s290 + $0x22bc] sm:$0xff]
        %v1825 = vld [vmem:[%s290 + $0x22c4] sm:$0xf]
        %v1826 = vld [vmem:[%s290 + $0x22c8] sm:$0xff]
        %v1827 = vld [vmem:[%s290 + $0x22d0] sm:$0xf]
        %v1828 = vld [vmem:[%s290 + $0x22d4] sm:$0xff]
        %v1829 = vld [vmem:[%s290 + $0x22dc] sm:$0xf]
        %v1830 = vld [vmem:[%s290 + $0x22e0] sm:$0xff]
        %v1831 = vld [vmem:[%s290 + $0x22e8] sm:$0xf]
        %v1832 = vld [vmem:[%s290 + $0x22ec] sm:$0xff]
        %v1833 = vld [vmem:[%s290 + $0x22f4] sm:$0xf]
        %v1834 = vld [vmem:[%s290 + $0x22f8] sm:$0xff]
        %v1835 = vld [vmem:[%s290 + $0x2300] sm:$0xf]
        %v1836 = vld [vmem:[%s290 + $0x2304] sm:$0xff]
        %v1837 = vld [vmem:[%s290 + $0x230c] sm:$0xf]
        %v1838 = vld [vmem:[%s290 + $0x2310] sm:$0xff]
        %v1839 = vld [vmem:[%s290 + $0x2318] sm:$0xf]
        %v1840 = vld [vmem:[%s290 + $0x231c] sm:$0xff]
        %v1841 = vld [vmem:[%s290 + $0x2324] sm:$0xf]
        %v1842 = vld [vmem:[%s290 + $0x2328] sm:$0xff]
        %v1843 = vld [vmem:[%s290 + $0x2330] sm:$0xf]
        %v1844 = vld [vmem:[%s290 + $0x2334] sm:$0xff]
        %v1845 = vld [vmem:[%s290 + $0x233c] sm:$0xf]
        %v1846 = vld [vmem:[%s290 + $0x2340] sm:$0xff]
        %v1847 = vld [vmem:[%s290 + $0x2348] sm:$0xf]
        %v1848 = vld [vmem:[%s290 + $0x234c] sm:$0xff]
        %v1849 = vld [vmem:[%s290 + $0x2354] sm:$0xf]
        %v1850 = vld [vmem:[%s290 + $0x2358] sm:$0xff]
        %v1851 = vld [vmem:[%s290 + $0x2360] sm:$0xf]
        %v1852 = vld [vmem:[%s290 + $0x2364] sm:$0xff]
        %v1853 = vld [vmem:[%s290 + $0x236c] sm:$0xf]
        %v1854 = vld [vmem:[%s290 + $0x2370] sm:$0xff]
        %v1855 = vld [vmem:[%s290 + $0x2378] sm:$0xf]
        %v1856 = vld [vmem:[%s290 + $0x237c] sm:$0xff]
        %v1857 = vld [vmem:[%s290 + $0x2384] sm:$0xf]
        %v1858 = vld [vmem:[%s290 + $0x2388] sm:$0xff]
        %v1859 = vld [vmem:[%s290 + $0x2390] sm:$0xf]
        %v1860 = vld [vmem:[%s290 + $0x2394] sm:$0xff]
        %v1861 = vld [vmem:[%s290 + $0x239c] sm:$0xf]
        %v1862 = vld [vmem:[%s290 + $0x23a0] sm:$0xff]
        %v1863 = vld [vmem:[%s290 + $0x23a8] sm:$0xf]
        %v1864 = vld [vmem:[%s290 + $0x23ac] sm:$0xff]
        %v1865 = vld [vmem:[%s290 + $0x23b4] sm:$0xf]
        %v1866 = vld [vmem:[%s290 + $0x23b8] sm:$0xff]
        %v1867 = vld [vmem:[%s290 + $0x23c0] sm:$0xf]
        %v1868 = vld [vmem:[%s290 + $0x23c4] sm:$0xff]
        %v1869 = vld [vmem:[%s290 + $0x23cc] sm:$0xf]
        %v1870 = vld [vmem:[%s290 + $0x23d0] sm:$0xff]
        %v1871 = vld [vmem:[%s290 + $0x23d8] sm:$0xf]
        %v1872 = vld [vmem:[%s290 + $0x23dc] sm:$0xff]
        %v1873 = vld [vmem:[%s290 + $0x23e4] sm:$0xf]
        %v1874 = vld [vmem:[%s290 + $0x23e8] sm:$0xff]
        %v1875 = vld [vmem:[%s290 + $0x23f0] sm:$0xf]
        %v1876 = vld [vmem:[%s290 + $0x23f4] sm:$0xff]
        %v1877 = vld [vmem:[%s290 + $0x23fc] sm:$0xf]
        %v1878 = vld [vmem:[%s290 + $0x2400] sm:$0xff]
        %v1879 = vld [vmem:[%s290 + $0x2408] sm:$0xf]
        %v1880 = vld [vmem:[%s290 + $0x240c] sm:$0xff]
        %v1881 = vld [vmem:[%s290 + $0x2414] sm:$0xf]
        %v1882 = vld [vmem:[%s290 + $0x2418] sm:$0xff]
        %v1883 = vld [vmem:[%s290 + $0x2420] sm:$0xf]
        %v1884 = vld [vmem:[%s290 + $0x2424] sm:$0xff]
        %v1885 = vld [vmem:[%s290 + $0x242c] sm:$0xf]
        %v1886 = vld [vmem:[%s290 + $0x2430] sm:$0xff]
        %v1887 = vld [vmem:[%s290 + $0x2438] sm:$0xf]
        %v1888 = vld [vmem:[%s290 + $0x243c] sm:$0xff]
        %v1889 = vld [vmem:[%s290 + $0x2444] sm:$0xf]
        %v1890 = vld [vmem:[%s290 + $0x2448] sm:$0xff]
        %v1891 = vld [vmem:[%s290 + $0x2450] sm:$0xf]
        %v1892 = vld [vmem:[%s290 + $0x2454] sm:$0xff]
        %v1893 = vld [vmem:[%s290 + $0x245c] sm:$0xf]
        %v1894 = vld [vmem:[%s290 + $0x2460] sm:$0xff]
        %v1895 = vld [vmem:[%s290 + $0x2468] sm:$0xf]
        %v1896 = vld [vmem:[%s290 + $0x246c] sm:$0xff]
        %v1897 = vld [vmem:[%s290 + $0x2474] sm:$0xf]
        %v1898 = vld [vmem:[%s290 + $0x2478] sm:$0xff]
        %v1899 = vld [vmem:[%s290 + $0x2480] sm:$0xf]
        %v1900 = vld [vmem:[%s290 + $0x2484] sm:$0xff]
        %v1901 = vld [vmem:[%s290 + $0x248c] sm:$0xf]
        %v1902 = vld [vmem:[%s290 + $0x2490] sm:$0xff]
        %v1903 = vld [vmem:[%s290 + $0x2498] sm:$0xf]
        %v1904 = vld [vmem:[%s290 + $0x249c] sm:$0xff]
        %v1905 = vld [vmem:[%s290 + $0x24a4] sm:$0xf]
        %v1906 = vld [vmem:[%s290 + $0x24a8] sm:$0xff]
        %v1907 = vld [vmem:[%s290 + $0x24b0] sm:$0xf]
        %v1908 = vld [vmem:[%s290 + $0x24b4] sm:$0xff]
        %v1909 = vld [vmem:[%s290 + $0x24bc] sm:$0xf]
        %v1910 = vld [vmem:[%s290 + $0x24c0] sm:$0xff]
        %v1911 = vld [vmem:[%s290 + $0x24c8] sm:$0xf]
        %v1912 = vld [vmem:[%s290 + $0x24cc] sm:$0xff]
        %v1913 = vld [vmem:[%s290 + $0x24d4] sm:$0xf]
        %v1914 = vld [vmem:[%s290 + $0x24d8] sm:$0xff]
        %v1915 = vld [vmem:[%s290 + $0x24e0] sm:$0xf]
        %v1916 = vld [vmem:[%s290 + $0x24e4] sm:$0xff]
        %v1917 = vld [vmem:[%s290 + $0x24ec] sm:$0xf]
        %v1918 = vld [vmem:[%s290 + $0x24f0] sm:$0xff]
        %v1919 = vld [vmem:[%s290 + $0x24f8] sm:$0xf]
        %v1920 = vld [vmem:[%s290 + $0x24fc] sm:$0xff]
        %v1921 = vld [vmem:[%s290 + $0x2504] sm:$0xf]
        %v1922 = vld [vmem:[%s290 + $0x2508] sm:$0xff]
        %v1923 = vld [vmem:[%s290 + $0x2510] sm:$0xf]
        %v1924 = vld [vmem:[%s290 + $0x2514] sm:$0xff]
        %v1925 = vld [vmem:[%s290 + $0x251c] sm:$0xf]
        %v1926 = vld [vmem:[%s290 + $0x2520] sm:$0xff]
        %v1927 = vld [vmem:[%s290 + $0x2528] sm:$0xf]
        %v1928 = vld [vmem:[%s290 + $0x252c] sm:$0xff]
        %v1929 = vld [vmem:[%s290 + $0x2534] sm:$0xf]
        %v1930 = vld [vmem:[%s290 + $0x2538] sm:$0xff]
        %v1931 = vld [vmem:[%s290 + $0x2540] sm:$0xf]
        %v1932 = vld [vmem:[%s290 + $0x2544] sm:$0xff]
        %v1933 = vld [vmem:[%s290 + $0x254c] sm:$0xf]
        %v1934 = vld [vmem:[%s290 + $0x2550] sm:$0xff]
        %v1935 = vld [vmem:[%s290 + $0x2558] sm:$0xf]
        %v1936 = vld [vmem:[%s290 + $0x255c] sm:$0xff]
        %v1937 = vld [vmem:[%s290 + $0x2564] sm:$0xf]
        %v1938 = vld [vmem:[%s290 + $0x2568] sm:$0xff]
        %v1939 = vld [vmem:[%s290 + $0x2570] sm:$0xf]
        %v1940 = vld [vmem:[%s290 + $0x2574] sm:$0xff]
        %v1941 = vld [vmem:[%s290 + $0x257c] sm:$0xf]
        %v1942 = vld [vmem:[%s290 + $0x2580] sm:$0xff]
        %v1943 = vld [vmem:[%s290 + $0x2588] sm:$0xf]
        %v1944 = vld [vmem:[%s290 + $0x258c] sm:$0xff]
        %v1945 = vld [vmem:[%s290 + $0x2594] sm:$0xf]
        %v1946 = vld [vmem:[%s290 + $0x2598] sm:$0xff]
        %v1947 = vld [vmem:[%s290 + $0x25a0] sm:$0xf]
        %v1948 = vld [vmem:[%s290 + $0x25a4] sm:$0xff]
        %v1949 = vld [vmem:[%s290 + $0x25ac] sm:$0xf]
        %v1950 = vld [vmem:[%s290 + $0x25b0] sm:$0xff]
        %v1951 = vld [vmem:[%s290 + $0x25b8] sm:$0xf]
        %v1952 = vld [vmem:[%s290 + $0x25bc] sm:$0xff]
        %v1953 = vld [vmem:[%s290 + $0x25c4] sm:$0xf]
        %v1954 = vld [vmem:[%s290 + $0x25c8] sm:$0xff]
        %v1955 = vld [vmem:[%s290 + $0x25d0] sm:$0xf]
        %v1956 = vld [vmem:[%s290 + $0x25d4] sm:$0xff]
        %v1957 = vld [vmem:[%s290 + $0x25dc] sm:$0xf]
        %v1958 = vld [vmem:[%s290 + $0x25e0] sm:$0xff]
        %v1959 = vld [vmem:[%s290 + $0x25e8] sm:$0xf]
        %v1960 = vld [vmem:[%s290 + $0x25ec] sm:$0xff]
        %v1961 = vld [vmem:[%s290 + $0x25f4] sm:$0xf]
        %v1962 = vld [vmem:[%s290 + $0x25f8] sm:$0xff]
        %v1963 = vld [vmem:[%s290 + $0x2600] sm:$0xf]
        %v1964 = vld [vmem:[%s290 + $0x2604] sm:$0xff]
        %v1965 = vld [vmem:[%s290 + $0x260c] sm:$0xf]
        %v1966 = vld [vmem:[%s290 + $0x2610] sm:$0xff]
        %v1967 = vld [vmem:[%s290 + $0x2618] sm:$0xf]
        %v1968 = vld [vmem:[%s290 + $0x261c] sm:$0xff]
        %v1969 = vld [vmem:[%s290 + $0x2624] sm:$0xf]
        %v1970 = vld [vmem:[%s290 + $0x2628] sm:$0xff]
        %v1971 = vld [vmem:[%s290 + $0x2630] sm:$0xf]
        %v1972 = vld [vmem:[%s290 + $0x2634] sm:$0xff]
        %v1973 = vld [vmem:[%s290 + $0x263c] sm:$0xf]
        %v1974 = vld [vmem:[%s290 + $0x2640] sm:$0xff]
        %v1975 = vld [vmem:[%s290 + $0x2648] sm:$0xf]
        %v1976 = vld [vmem:[%s290 + $0x264c] sm:$0xff]
        %v1977 = vld [vmem:[%s290 + $0x2654] sm:$0xf]
        %v1978 = vld [vmem:[%s290 + $0x2658] sm:$0xff]
        %v1979 = vld [vmem:[%s290 + $0x2660] sm:$0xf]
        %v1980 = vld [vmem:[%s290 + $0x2664] sm:$0xff]
        %v1981 = vld [vmem:[%s290 + $0x266c] sm:$0xf]
        %v1982 = vld [vmem:[%s290 + $0x2670] sm:$0xff]
        %v1983 = vld [vmem:[%s290 + $0x2678] sm:$0xf]
        %v1984 = vld [vmem:[%s290 + $0x267c] sm:$0xff]
        %v1985 = vld [vmem:[%s290 + $0x2684] sm:$0xf]
        %v1986 = vld [vmem:[%s290 + $0x2688] sm:$0xff]
        %v1987 = vld [vmem:[%s290 + $0x2690] sm:$0xf]
        %v1988 = vld [vmem:[%s290 + $0x2694] sm:$0xff]
        %v1989 = vld [vmem:[%s290 + $0x269c] sm:$0xf]
        %v1990 = vld [vmem:[%s290 + $0x26a0] sm:$0xff]
        %v1991 = vld [vmem:[%s290 + $0x26a8] sm:$0xf]
        %v1992 = vld [vmem:[%s290 + $0x26ac] sm:$0xff]
        %v1993 = vld [vmem:[%s290 + $0x26b4] sm:$0xf]
        %v1994 = vld [vmem:[%s290 + $0x26b8] sm:$0xff]
        %v1995 = vld [vmem:[%s290 + $0x26c0] sm:$0xf]
        %v1996 = vld [vmem:[%s290 + $0x26c4] sm:$0xff]
        %v1997 = vld [vmem:[%s290 + $0x26cc] sm:$0xf]
        %v1998 = vld [vmem:[%s290 + $0x26d0] sm:$0xff]
        %v1999 = vld [vmem:[%s290 + $0x26d8] sm:$0xf]
        %v2000 = vld [vmem:[%s290 + $0x26dc] sm:$0xff]
        %v2001 = vld [vmem:[%s290 + $0x26e4] sm:$0xf]
        %v2002 = vld [vmem:[%s290 + $0x26e8] sm:$0xff]
        %v2003 = vld [vmem:[%s290 + $0x26f0] sm:$0xf]
        %v2004 = vld [vmem:[%s290 + $0x26f4] sm:$0xff]
        %v2005 = vld [vmem:[%s290 + $0x26fc] sm:$0xf]
        %v2006 = vld [vmem:[%s290 + $0x2700] sm:$0xff]
        %v2007 = vld [vmem:[%s290 + $0x2708] sm:$0xf]
        %v2008 = vld [vmem:[%s290 + $0x270c] sm:$0xff]
        %v2009 = vld [vmem:[%s290 + $0x2714] sm:$0xf]
        %v2010 = vld [vmem:[%s290 + $0x2718] sm:$0xff]
        %v2011 = vld [vmem:[%s290 + $0x2720] sm:$0xf]
        %v2012 = vld [vmem:[%s290 + $0x2724] sm:$0xff]
        %v2013 = vld [vmem:[%s290 + $0x272c] sm:$0xf]
        %v2014 = vld [vmem:[%s290 + $0x2730] sm:$0xff]
        %v2015 = vld [vmem:[%s290 + $0x2738] sm:$0xf]
        %v2016 = vld [vmem:[%s290 + $0x273c] sm:$0xff]
        %v2017 = vld [vmem:[%s290 + $0x2744] sm:$0xf]
        %v2018 = vld [vmem:[%s290 + $0x2748] sm:$0xff]
        %v2019 = vld [vmem:[%s290 + $0x2750] sm:$0xf]
        %v2020 = vld [vmem:[%s290 + $0x2754] sm:$0xff]
        %v2021 = vld [vmem:[%s290 + $0x275c] sm:$0xf]
        %v2022 = vld [vmem:[%s290 + $0x2760] sm:$0xff]
        %v2023 = vld [vmem:[%s290 + $0x2768] sm:$0xf]
        %v2024 = vld [vmem:[%s290 + $0x276c] sm:$0xff]
        %v2025 = vld [vmem:[%s290 + $0x2774] sm:$0xf]
        %v2026 = vld [vmem:[%s290 + $0x2778] sm:$0xff]
        %v2027 = vld [vmem:[%s290 + $0x2780] sm:$0xf]
        %v2028 = vld [vmem:[%s290 + $0x2784] sm:$0xff]
        %v2029 = vld [vmem:[%s290 + $0x278c] sm:$0xf]
        %v2030 = vld [vmem:[%s290 + $0x2790] sm:$0xff]
        %v2031 = vld [vmem:[%s290 + $0x2798] sm:$0xf]
        %v2032 = vld [vmem:[%s290 + $0x279c] sm:$0xff]
        %v2033 = vld [vmem:[%s290 + $0x27a4] sm:$0xf]
        %v2034 = vld [vmem:[%s290 + $0x27a8] sm:$0xff]
        %v2035 = vld [vmem:[%s290 + $0x27b0] sm:$0xf]
        %v2036 = vld [vmem:[%s290 + $0x27b4] sm:$0xff]
        %v2037 = vld [vmem:[%s290 + $0x27bc] sm:$0xf]
        %v2038 = vld [vmem:[%s290 + $0x27c0] sm:$0xff]
        %v2039 = vld [vmem:[%s290 + $0x27c8] sm:$0xf]
        %v2040 = vld [vmem:[%s290 + $0x27cc] sm:$0xff]
        %v2041 = vld [vmem:[%s290 + $0x27d4] sm:$0xf]
        %v2042 = vld [vmem:[%s290 + $0x27d8] sm:$0xff]
        %v2043 = vld [vmem:[%s290 + $0x27e0] sm:$0xf]
        %v2044 = vld [vmem:[%s290 + $0x27e4] sm:$0xff]
        %v2045 = vld [vmem:[%s290 + $0x27ec] sm:$0xf]
        %v2046 = vld [vmem:[%s290 + $0x27f0] sm:$0xff]
        %v2047 = vld [vmem:[%s290 + $0x27f8] sm:$0xf]
        %v2048 = vld [vmem:[%s290 + $0x27fc] sm:$0xff]
        %v2049 = vld [vmem:[%s290 + $0x2804] sm:$0xf]
        %v2050 = vld [vmem:[%s290 + $0x2808] sm:$0xff]
        %v2051 = vld [vmem:[%s290 + $0x2810] sm:$0xf]
        %v2052 = vld [vmem:[%s290 + $0x2814] sm:$0xff]
        %v2053 = vld [vmem:[%s290 + $0x281c] sm:$0xf]
        %v2054 = vld [vmem:[%s290 + $0x2820] sm:$0xff]
        %v2055 = vld [vmem:[%s290 + $0x2828] sm:$0xf]
        %v2056 = vld [vmem:[%s290 + $0x282c] sm:$0xff]
        %v2057 = vld [vmem:[%s290 + $0x2834] sm:$0xf]
        %v2058 = vld [vmem:[%s290 + $0x2838] sm:$0xff]
        %v2059 = vld [vmem:[%s290 + $0x2840] sm:$0xf]
        %v2060 = vld [vmem:[%s290 + $0x2844] sm:$0xff]
        %v2061 = vld [vmem:[%s290 + $0x284c] sm:$0xf]
        %v2062 = vld [vmem:[%s290 + $0x2850] sm:$0xff]
        %v2063 = vld [vmem:[%s290 + $0x2858] sm:$0xf]
        %v2064 = vld [vmem:[%s290 + $0x285c] sm:$0xff]
        %v2065 = vld [vmem:[%s290 + $0x2864] sm:$0xf]
        %v2066 = vld [vmem:[%s290 + $0x2868] sm:$0xff]
        %v2067 = vld [vmem:[%s290 + $0x2870] sm:$0xf]
        %v2068 = vld [vmem:[%s290 + $0x2874] sm:$0xff]
        %v2069 = vld [vmem:[%s290 + $0x287c] sm:$0xf]
        %v2070 = vld [vmem:[%s290 + $0x2880] sm:$0xff]
        %v2071 = vld [vmem:[%s290 + $0x2888] sm:$0xf]
        %v2072 = vld [vmem:[%s290 + $0x288c] sm:$0xff]
        %v2073 = vld [vmem:[%s290 + $0x2894] sm:$0xf]
        %v2074 = vld [vmem:[%s290 + $0x2898] sm:$0xff]
        %v2075 = vld [vmem:[%s290 + $0x28a0] sm:$0xf]
        %v2076 = vld [vmem:[%s290 + $0x28a4] sm:$0xff]
        %v2077 = vld [vmem:[%s290 + $0x28ac] sm:$0xf]
        %v2078 = vld [vmem:[%s290 + $0x28b0] sm:$0xff]
        %v2079 = vld [vmem:[%s290 + $0x28b8] sm:$0xf]
        %v2080 = vld [vmem:[%s290 + $0x28bc] sm:$0xff]
        %v2081 = vld [vmem:[%s290 + $0x28c4] sm:$0xf]
        %v2082 = vld [vmem:[%s290 + $0x28c8] sm:$0xff]
        %v2083 = vld [vmem:[%s290 + $0x28d0] sm:$0xf]
        %v2084 = vld [vmem:[%s290 + $0x28d4] sm:$0xff]
        %v2085 = vld [vmem:[%s290 + $0x28dc] sm:$0xf]
        %v2086 = vld [vmem:[%s290 + $0x28e0] sm:$0xff]
        %v2087 = vld [vmem:[%s290 + $0x28e8] sm:$0xf]
        %v2088 = vld [vmem:[%s290 + $0x28ec] sm:$0xff]
        %v2089 = vld [vmem:[%s290 + $0x28f4] sm:$0xf]
        %v2090 = vld [vmem:[%s290 + $0x28f8] sm:$0xff]
        %v2091 = vld [vmem:[%s290 + $0x2900] sm:$0xf]
        %v2092 = vld [vmem:[%s290 + $0x2904] sm:$0xff]
        %v2093 = vld [vmem:[%s290 + $0x290c] sm:$0xf]
        %v2094 = vld [vmem:[%s290 + $0x2910] sm:$0xff]
        %v2095 = vld [vmem:[%s290 + $0x2918] sm:$0xf]
        %v2096 = vld [vmem:[%s290 + $0x291c] sm:$0xff]
        %v2097 = vld [vmem:[%s290 + $0x2924] sm:$0xf]
        %v2098 = vld [vmem:[%s290 + $0x2928] sm:$0xff]
        %v2099 = vld [vmem:[%s290 + $0x2930] sm:$0xf]
        %v2100 = vld [vmem:[%s290 + $0x2934] sm:$0xff]
        %v2101 = vld [vmem:[%s290 + $0x293c] sm:$0xf]
        %v2102 = vld [vmem:[%s290 + $0x2940] sm:$0xff]
        %v2103 = vld [vmem:[%s290 + $0x2948] sm:$0xf]
        %v2104 = vld [vmem:[%s290 + $0x294c] sm:$0xff]
        %v2105 = vld [vmem:[%s290 + $0x2954] sm:$0xf]
        %v2106 = vld [vmem:[%s290 + $0x2958] sm:$0xff]
        %v2107 = vld [vmem:[%s290 + $0x2960] sm:$0xf]
        %v2108 = vld [vmem:[%s290 + $0x2964] sm:$0xff]
        %v2109 = vld [vmem:[%s290 + $0x296c] sm:$0xf]
        %v2110 = vld [vmem:[%s290 + $0x2970] sm:$0xff]
        %v2111 = vld [vmem:[%s290 + $0x2978] sm:$0xf]
        %v2112 = vld [vmem:[%s290 + $0x297c] sm:$0xff]
        %v2113 = vld [vmem:[%s290 + $0x2984] sm:$0xf]
        %v2114 = vld [vmem:[%s290 + $0x2988] sm:$0xff]
        %v2115 = vld [vmem:[%s290 + $0x2990] sm:$0xf]
        %v2116 = vld [vmem:[%s290 + $0x2994] sm:$0xff]
        %v2117 = vld [vmem:[%s290 + $0x299c] sm:$0xf]
        %v2118 = vld [vmem:[%s290 + $0x29a0] sm:$0xff]
        %v2119 = vld [vmem:[%s290 + $0x29a8] sm:$0xf]
        %v2120 = vld [vmem:[%s290 + $0x29ac] sm:$0xff]
        %v2121 = vld [vmem:[%s290 + $0x29b4] sm:$0xf]
        %v2122 = vld [vmem:[%s290 + $0x29b8] sm:$0xff]
        %v2123 = vld [vmem:[%s290 + $0x29c0] sm:$0xf]
        %v2124 = vld [vmem:[%s290 + $0x29c4] sm:$0xff]
        %v2125 = vld [vmem:[%s290 + $0x29cc] sm:$0xf]
        %v2126 = vld [vmem:[%s290 + $0x29d0] sm:$0xff]
        %v2127 = vld [vmem:[%s290 + $0x29d8] sm:$0xf]
        %v2128 = vld [vmem:[%s290 + $0x29dc] sm:$0xff]
        %v2129 = vld [vmem:[%s290 + $0x29e4] sm:$0xf]
        %v2130 = vld [vmem:[%s290 + $0x29e8] sm:$0xff]
        %v2131 = vld [vmem:[%s290 + $0x29f0] sm:$0xf]
        %v2132 = vld [vmem:[%s290 + $0x29f4] sm:$0xff]
        %v2133 = vld [vmem:[%s290 + $0x29fc] sm:$0xf]
        %v2134 = vld [vmem:[%s290 + $0x2a00] sm:$0xff]
        %v2135 = vld [vmem:[%s290 + $0x2a08] sm:$0xf]
        %v2136 = vld [vmem:[%s290 + $0x2a0c] sm:$0xff]
        %v2137 = vld [vmem:[%s290 + $0x2a14] sm:$0xf]
        %v2138 = vld [vmem:[%s290 + $0x2a18] sm:$0xff]
        %v2139 = vld [vmem:[%s290 + $0x2a20] sm:$0xf]
        %v2140 = vld [vmem:[%s290 + $0x2a24] sm:$0xff]
        %v2141 = vld [vmem:[%s290 + $0x2a2c] sm:$0xf]
        %v2142 = vld [vmem:[%s290 + $0x2a30] sm:$0xff]
        %v2143 = vld [vmem:[%s290 + $0x2a38] sm:$0xf]
        %v2144 = vld [vmem:[%s290 + $0x2a3c] sm:$0xff]
        %v2145 = vld [vmem:[%s290 + $0x2a44] sm:$0xf]
        %v2146 = vld [vmem:[%s290 + $0x2a48] sm:$0xff]
        %v2147 = vld [vmem:[%s290 + $0x2a50] sm:$0xf]
        %v2148 = vld [vmem:[%s290 + $0x2a54] sm:$0xff]
        %v2149 = vld [vmem:[%s290 + $0x2a5c] sm:$0xf]
        %v2150 = vld [vmem:[%s290 + $0x2a60] sm:$0xff]
        %v2151 = vld [vmem:[%s290 + $0x2a68] sm:$0xf]
        %v2152 = vld [vmem:[%s290 + $0x2a6c] sm:$0xff]
        %v2153 = vld [vmem:[%s290 + $0x2a74] sm:$0xf]
        %v2154 = vld [vmem:[%s290 + $0x2a78] sm:$0xff]
        %v2155 = vld [vmem:[%s290 + $0x2a80] sm:$0xf]
        %v2156 = vld [vmem:[%s290 + $0x2a84] sm:$0xff]
        %v2157 = vld [vmem:[%s290 + $0x2a8c] sm:$0xf]
        %v2158 = vld [vmem:[%s290 + $0x2a90] sm:$0xff]
        %v2159 = vld [vmem:[%s290 + $0x2a98] sm:$0xf]
        %v2160 = vld [vmem:[%s290 + $0x2a9c] sm:$0xff]
        %v2161 = vld [vmem:[%s290 + $0x2aa4] sm:$0xf]
        %v2162 = vld [vmem:[%s290 + $0x2aa8] sm:$0xff]
        %v2163 = vld [vmem:[%s290 + $0x2ab0] sm:$0xf]
        %v2164 = vld [vmem:[%s290 + $0x2ab4] sm:$0xff]
        %v2165 = vld [vmem:[%s290 + $0x2abc] sm:$0xf]
        %v2166 = vld [vmem:[%s290 + $0x2ac0] sm:$0xff]
        %v2167 = vld [vmem:[%s290 + $0x2ac8] sm:$0xf]
        %v2168 = vld [vmem:[%s290 + $0x2acc] sm:$0xff]
        %v2169 = vld [vmem:[%s290 + $0x2ad4] sm:$0xf]
        %v2170 = vld [vmem:[%s290 + $0x2ad8] sm:$0xff]
        %v2171 = vld [vmem:[%s290 + $0x2ae0] sm:$0xf]
        %v2172 = vld [vmem:[%s290 + $0x2ae4] sm:$0xff]
        %v2173 = vld [vmem:[%s290 + $0x2aec] sm:$0xf]
        %v2174 = vld [vmem:[%s290 + $0x2af0] sm:$0xff]
        %v2175 = vld [vmem:[%s290 + $0x2af8] sm:$0xf]
        %v2176 = vld [vmem:[%s290 + $0x2afc] sm:$0xff]
        %v2177 = vld [vmem:[%s290 + $0x2b04] sm:$0xf]
        %v2178 = vld [vmem:[%s290 + $0x2b08] sm:$0xff]
        %v2179 = vld [vmem:[%s290 + $0x2b10] sm:$0xf]
        %v2180 = vld [vmem:[%s290 + $0x2b14] sm:$0xff]
        %v2181 = vld [vmem:[%s290 + $0x2b1c] sm:$0xf]
        %v2182 = vld [vmem:[%s290 + $0x2b20] sm:$0xff]
        %v2183 = vld [vmem:[%s290 + $0x2b28] sm:$0xf]
        %v2184 = vld [vmem:[%s290 + $0x2b2c] sm:$0xff]
        %v2185 = vld [vmem:[%s290 + $0x2b34] sm:$0xf]
        %v2186 = vld [vmem:[%s290 + $0x2b38] sm:$0xff]
        %v2187 = vld [vmem:[%s290 + $0x2b40] sm:$0xf]
        %v2188 = vld [vmem:[%s290 + $0x2b44] sm:$0xff]
        %v2189 = vld [vmem:[%s290 + $0x2b4c] sm:$0xf]
        %v2190 = vld [vmem:[%s290 + $0x2b50] sm:$0xff]
        %v2191 = vld [vmem:[%s290 + $0x2b58] sm:$0xf]
        %v2192 = vld [vmem:[%s290 + $0x2b5c] sm:$0xff]
        %v2193 = vld [vmem:[%s290 + $0x2b64] sm:$0xf]
        %v2194 = vld [vmem:[%s290 + $0x2b68] sm:$0xff]
        %v2195 = vld [vmem:[%s290 + $0x2b70] sm:$0xf]
        %v2196 = vld [vmem:[%s290 + $0x2b74] sm:$0xff]
        %v2197 = vld [vmem:[%s290 + $0x2b7c] sm:$0xf]
        %v2198 = vld [vmem:[%s290 + $0x2b80] sm:$0xff]
        %v2199 = vld [vmem:[%s290 + $0x2b88] sm:$0xf]
        %v2200 = vld [vmem:[%s290 + $0x2b8c] sm:$0xff]
        %v2201 = vld [vmem:[%s290 + $0x2b94] sm:$0xf]
        %v2202 = vld [vmem:[%s290 + $0x2b98] sm:$0xff]
        %v2203 = vld [vmem:[%s290 + $0x2ba0] sm:$0xf]
        %v2204 = vld [vmem:[%s290 + $0x2ba4] sm:$0xff]
        %v2205 = vld [vmem:[%s290 + $0x2bac] sm:$0xf]
        %v2206 = vld [vmem:[%s290 + $0x2bb0] sm:$0xff]
        %v2207 = vld [vmem:[%s290 + $0x2bb8] sm:$0xf]
        %v2208 = vld [vmem:[%s290 + $0x2bbc] sm:$0xff]
        %v2209 = vld [vmem:[%s290 + $0x2bc4] sm:$0xf]
        %v2210 = vld [vmem:[%s290 + $0x2bc8] sm:$0xff]
        %v2211 = vld [vmem:[%s290 + $0x2bd0] sm:$0xf]
        %v2212 = vld [vmem:[%s290 + $0x2bd4] sm:$0xff]
        %v2213 = vld [vmem:[%s290 + $0x2bdc] sm:$0xf]
        %v2214 = vld [vmem:[%s290 + $0x2be0] sm:$0xff]
        %v2215 = vld [vmem:[%s290 + $0x2be8] sm:$0xf]
        %v2216 = vld [vmem:[%s290 + $0x2bec] sm:$0xff]
        %v2217 = vld [vmem:[%s290 + $0x2bf4] sm:$0xf]
        %v2218 = vld [vmem:[%s290 + $0x2bf8] sm:$0xff]
        %v2219 = vld [vmem:[%s290 + $0x2c00] sm:$0xf]
        %v2220 = vld [vmem:[%s290 + $0x2c04] sm:$0xff]
        %v2221 = vld [vmem:[%s290 + $0x2c0c] sm:$0xf]
        %v2222 = vld [vmem:[%s290 + $0x2c10] sm:$0xff]
        %v2223 = vld [vmem:[%s290 + $0x2c18] sm:$0xf]
        %v2224 = vld [vmem:[%s290 + $0x2c1c] sm:$0xff]
        %v2225 = vld [vmem:[%s290 + $0x2c24] sm:$0xf]
        %v2226 = vld [vmem:[%s290 + $0x2c28] sm:$0xff]
        %v2227 = vld [vmem:[%s290 + $0x2c30] sm:$0xf]
        %v2228 = vld [vmem:[%s290 + $0x2c34] sm:$0xff]
        %v2229 = vld [vmem:[%s290 + $0x2c3c] sm:$0xf]
        %v2230 = vld [vmem:[%s290 + $0x2c40] sm:$0xff]
        %v2231 = vld [vmem:[%s290 + $0x2c48] sm:$0xf]
        %v2232 = vld [vmem:[%s290 + $0x2c4c] sm:$0xff]
        %v2233 = vld [vmem:[%s290 + $0x2c54] sm:$0xf]
        %v2234 = vld [vmem:[%s290 + $0x2c58] sm:$0xff]
        %v2235 = vld [vmem:[%s290 + $0x2c60] sm:$0xf]
        %v2236 = vld [vmem:[%s290 + $0x2c64] sm:$0xff]
        %v2237 = vld [vmem:[%s290 + $0x2c6c] sm:$0xf]
        %v2238 = vld [vmem:[%s290 + $0x2c70] sm:$0xff]
        %v2239 = vld [vmem:[%s290 + $0x2c78] sm:$0xf]
        %v2240 = vld [vmem:[%s290 + $0x2c7c] sm:$0xff]
        %v2241 = vld [vmem:[%s290 + $0x2c84] sm:$0xf]
        %v2242 = vld [vmem:[%s290 + $0x2c88] sm:$0xff]
        %v2243 = vld [vmem:[%s290 + $0x2c90] sm:$0xf]
        %v2244 = vld [vmem:[%s290 + $0x2c94] sm:$0xff]
        %v2245 = vld [vmem:[%s290 + $0x2c9c] sm:$0xf]
        %v2246 = vld [vmem:[%s290 + $0x2ca0] sm:$0xff]
        %v2247 = vld [vmem:[%s290 + $0x2ca8] sm:$0xf]
        %v2248 = vld [vmem:[%s290 + $0x2cac] sm:$0xff]
        %v2249 = vld [vmem:[%s290 + $0x2cb4] sm:$0xf]
        %v2250 = vld [vmem:[%s290 + $0x2cb8] sm:$0xff]
        %v2251 = vld [vmem:[%s290 + $0x2cc0] sm:$0xf]
        %v2252 = vld [vmem:[%s290 + $0x2cc4] sm:$0xff]
        %v2253 = vld [vmem:[%s290 + $0x2ccc] sm:$0xf]
        %v2254 = vld [vmem:[%s290 + $0x2cd0] sm:$0xff]
        %v2255 = vld [vmem:[%s290 + $0x2cd8] sm:$0xf]
        %v2256 = vld [vmem:[%s290 + $0x2cdc] sm:$0xff]
        %v2257 = vld [vmem:[%s290 + $0x2ce4] sm:$0xf]
        %v2258 = vld [vmem:[%s290 + $0x2ce8] sm:$0xff]
        %v2259 = vld [vmem:[%s290 + $0x2cf0] sm:$0xf]
        %v2260 = vld [vmem:[%s290 + $0x2cf4] sm:$0xff]
        %v2261 = vld [vmem:[%s290 + $0x2cfc] sm:$0xf]
        %v2292 = vunpack.c.l.b16 %v312
        %v2293 = vunpack.c.h.b16 %v312
        %v2294 = vunpack.c.l.b16 %v313
        %v2295 = vunpack.c.h.b16 %v313
        %v2296 = vunpack.c.l.b16 %v314
        %v2297 = vunpack.c.h.b16 %v314
        %v2298 = vunpack.c.l.b16 %v315
        %v2299 = vunpack.c.h.b16 %v315
        %v2300 = vunpack.c.l.b16 %v316
        %v2301 = vunpack.c.h.b16 %v316
        %v2302 = vunpack.c.l.b16 %v317
        %v2303 = vunpack.c.h.b16 %v317
        %v2304 = vunpack.c.l.b16 %v318
        %v2305 = vunpack.c.h.b16 %v318
        %v2306 = vunpack.c.l.b16 %v319
        %v2307 = vunpack.c.h.b16 %v319
        %v2308 = vunpack.c.l.b16 %v320
        %v2309 = vunpack.c.h.b16 %v320
        %v2310 = vunpack.c.l.b16 %v321
        %v2311 = vunpack.c.h.b16 %v321
        %v2312 = vunpack.c.l.b16 %v322
        %v2313 = vunpack.c.h.b16 %v322
        %v2314 = vunpack.c.l.b16 %v323
        %v2315 = vunpack.c.h.b16 %v323
        %v2316 = vunpack.c.l.b16 %v324
        %v2317 = vunpack.c.h.b16 %v324
        %v2318 = vunpack.c.l.b16 %v325
        %v2319 = vunpack.c.h.b16 %v325
        %v2320 = vunpack.c.l.b16 %v326
        %v2321 = vunpack.c.h.b16 %v326
        %v2322 = vunpack.c.l.b16 %v327
        %v2323 = vunpack.c.h.b16 %v327
        %v2324 = vunpack.c.l.b16 %v328
        %v2325 = vunpack.c.h.b16 %v328
        %v2326 = vunpack.c.l.b16 %v329
        %v2327 = vunpack.c.h.b16 %v329
        %v2328 = vunpack.c.l.b16 %v330
        %v2329 = vunpack.c.h.b16 %v330
        %v2330 = vunpack.c.l.b16 %v331
        %v2331 = vunpack.c.h.b16 %v331
        %v2332 = vunpack.c.l.b16 %v332
        %v2333 = vunpack.c.h.b16 %v332
        %v2334 = vunpack.c.l.b16 %v333
        %v2335 = vunpack.c.h.b16 %v333
        %v2336 = vunpack.c.l.b16 %v334
        %v2337 = vunpack.c.h.b16 %v334
        %v2338 = vunpack.c.l.b16 %v335
        %v2339 = vunpack.c.h.b16 %v335
        %v2340 = vunpack.c.l.b16 %v336
        %v2341 = vunpack.c.h.b16 %v336
        %v2342 = vunpack.c.l.b16 %v337
        %v2343 = vunpack.c.h.b16 %v337
        %v2344 = vunpack.c.l.b16 %v338
        %v2345 = vunpack.c.h.b16 %v338
        %v2346 = vunpack.c.l.b16 %v339
        %v2347 = vunpack.c.h.b16 %v339
        %v2348 = vunpack.c.l.b16 %v340
        %v2349 = vunpack.c.h.b16 %v340
        %v2350 = vunpack.c.l.b16 %v341
        %v2351 = vunpack.c.h.b16 %v341
        %v2352 = vpack.c.b16 %v2292, %v2292
        %v2353 = vpack.c.b16 %v2293, %v2293
        %v2354 = vpack.c.b16 %v2294, %v2294
        %v2355 = vpack.c.b16 %v2295, %v2295
        %v2356 = vpack.c.b16 %v2296, %v2296
        %v2357 = vpack.c.b16 %v2297, %v2297
        %v2358 = vpack.c.b16 %v2298, %v2298
        %v2359 = vpack.c.b16 %v2299, %v2299
        %v2360 = vpack.c.b16 %v2300, %v2300
        %v2361 = vpack.c.b16 %v2301, %v2301
        %v2362 = vpack.c.b16 %v2302, %v2302
        %v2363 = vpack.c.b16 %v2303, %v2303
        %v2364 = vpack.c.b16 %v2304, %v2304
        %v2365 = vpack.c.b16 %v2305, %v2305
        %v2366 = vpack.c.b16 %v2306, %v2306
        %v2367 = vpack.c.b16 %v2307, %v2307
        %v2368 = vpack.c.b16 %v2308, %v2308
        %v2369 = vpack.c.b16 %v2309, %v2309
        %v2370 = vpack.c.b16 %v2310, %v2310
        %v2371 = vpack.c.b16 %v2311, %v2311
        %v2372 = vpack.c.b16 %v2312, %v2312
        %v2373 = vpack.c.b16 %v2313, %v2313
        %v2374 = vpack.c.b16 %v2314, %v2314
        %v2375 = vpack.c.b16 %v2315, %v2315
        %v2376 = vpack.c.b16 %v2316, %v2316
        %v2377 = vpack.c.b16 %v2317, %v2317
        %v2378 = vpack.c.b16 %v2318, %v2318
        %v2379 = vpack.c.b16 %v2319, %v2319
        %v2380 = vpack.c.b16 %v2320, %v2320
        %v2381 = vpack.c.b16 %v2321, %v2321
        %v2382 = vpack.c.b16 %v2322, %v2322
        %v2383 = vpack.c.b16 %v2323, %v2323
        %v2384 = vpack.c.b16 %v2324, %v2324
        %v2385 = vpack.c.b16 %v2325, %v2325
        %v2386 = vpack.c.b16 %v2326, %v2326
        %v2387 = vpack.c.b16 %v2327, %v2327
        %v2388 = vpack.c.b16 %v2328, %v2328
        %v2389 = vpack.c.b16 %v2329, %v2329
        %v2390 = vpack.c.b16 %v2330, %v2330
        %v2391 = vpack.c.b16 %v2331, %v2331
        %v2392 = vpack.c.b16 %v2332, %v2332
        %v2393 = vpack.c.b16 %v2333, %v2333
        %v2394 = vpack.c.b16 %v2334, %v2334
        %v2395 = vpack.c.b16 %v2335, %v2335
        %v2396 = vpack.c.b16 %v2336, %v2336
        %v2397 = vpack.c.b16 %v2337, %v2337
        %v2398 = vpack.c.b16 %v2338, %v2338
        %v2399 = vpack.c.b16 %v2339, %v2339
        %v2400 = vpack.c.b16 %v2340, %v2340
        %v2401 = vpack.c.b16 %v2341, %v2341
        %v2402 = vpack.c.b16 %v2342, %v2342
        %v2403 = vpack.c.b16 %v2343, %v2343
        %v2404 = vpack.c.b16 %v2344, %v2344
        %v2405 = vpack.c.b16 %v2345, %v2345
        %v2406 = vpack.c.b16 %v2346, %v2346
        %v2407 = vpack.c.b16 %v2347, %v2347
        %v2408 = vpack.c.b16 %v2348, %v2348
        %v2409 = vpack.c.b16 %v2349, %v2349
        %v2410 = vpack.c.b16 %v2350, %v2350
        %v2411 = vpack.c.b16 %v2351, %v2351
        %v4392 = vunpack.c.l.b16 %v342
        %v4393 = vunpack.c.h.b16 %v342
        %v4394 = vunpack.c.l.b16 %v343
        %v4395 = vunpack.c.l.b16 %v344
        %v4396 = vunpack.c.h.b16 %v344
        %v4397 = vunpack.c.l.b16 %v345
        %v4398 = vunpack.c.l.b16 %v346
        %v4399 = vunpack.c.h.b16 %v346
        %v4400 = vunpack.c.l.b16 %v347
        %v4401 = vunpack.c.l.b16 %v348
        %v4402 = vunpack.c.h.b16 %v348
        %v4403 = vunpack.c.l.b16 %v349
        %v4404 = vunpack.c.l.b16 %v350
        %v4405 = vunpack.c.h.b16 %v350
        %v4406 = vunpack.c.l.b16 %v351
        %v4407 = vunpack.c.l.b16 %v352
        %v4408 = vunpack.c.h.b16 %v352
        %v4409 = vunpack.c.l.b16 %v353
        %v4410 = vunpack.c.l.b16 %v354
        %v4411 = vunpack.c.h.b16 %v354
        %v4412 = vunpack.c.l.b16 %v355
        %v4413 = vunpack.c.l.b16 %v356
        %v4414 = vunpack.c.h.b16 %v356
        %v4415 = vunpack.c.l.b16 %v357
        %v4416 = vunpack.c.l.b16 %v358
        %v4417 = vunpack.c.h.b16 %v358
        %v4418 = vunpack.c.l.b16 %v359
        %v4419 = vunpack.c.l.b16 %v360
        %v4420 = vunpack.c.h.b16 %v360
        %v4421 = vunpack.c.l.b16 %v361
        %v4422 = vunpack.c.l.b16 %v362
        %v4423 = vunpack.c.h.b16 %v362
        %v4424 = vunpack.c.l.b16 %v363
        %v4425 = vunpack.c.l.b16 %v364
        %v4426 = vunpack.c.h.b16 %v364
        %v4427 = vunpack.c.l.b16 %v365
        %v4428 = vunpack.c.l.b16 %v366
        %v4429 = vunpack.c.h.b16 %v366
        %v4430 = vunpack.c.l.b16 %v367
        %v4431 = vunpack.c.l.b16 %v368
        %v4432 = vunpack.c.h.b16 %v368
        %v4433 = vunpack.c.l.b16 %v369
        %v4434 = vunpack.c.l.b16 %v370
        %v4435 = vunpack.c.h.b16 %v370
        %v4436 = vunpack.c.l.b16 %v371
        %v4437 = vunpack.c.l.b16 %v372
        %v4438 = vunpack.c.h.b16 %v372
        %v4439 = vunpack.c.l.b16 %v373
        %v4440 = vunpack.c.l.b16 %v374
        %v4441 = vunpack.c.h.b16 %v374
        %v4442 = vunpack.c.l.b16 %v375
        %v4443 = vunpack.c.l.b16 %v376
        %v4444 = vunpack.c.h.b16 %v376
        %v4445 = vunpack.c.l.b16 %v377
        %v4446 = vunpack.c.l.b16 %v378
        %v4447 = vunpack.c.h.b16 %v378
        %v4448 = vunpack.c.l.b16 %v379
        %v4449 = vunpack.c.l.b16 %v380
        %v4450 = vunpack.c.h.b16 %v380
        %v4451 = vunpack.c.l.b16 %v381
        %v4452 = vunpack.c.l.b16 %v382
        %v4453 = vunpack.c.h.b16 %v382
        %v4454 = vunpack.c.l.b16 %v383
        %v4455 = vunpack.c.l.b16 %v384
        %v4456 = vunpack.c.h.b16 %v384
        %v4457 = vunpack.c.l.b16 %v385
        %v4458 = vunpack.c.l.b16 %v386
        %v4459 = vunpack.c.h.b16 %v386
        %v4460 = vunpack.c.l.b16 %v387
        %v4461 = vunpack.c.l.b16 %v388
        %v4462 = vunpack.c.h.b16 %v388
        %v4463 = vunpack.c.l.b16 %v389
        %v4464 = vunpack.c.l.b16 %v390
        %v4465 = vunpack.c.h.b16 %v390
        %v4466 = vunpack.c.l.b16 %v391
        %v4467 = vunpack.c.l.b16 %v392
        %v4468 = vunpack.c.h.b16 %v392
        %v4469 = vunpack.c.l.b16 %v393
        %v4470 = vunpack.c.l.b16 %v394
        %v4471 = vunpack.c.h.b16 %v394
        %v4472 = vunpack.c.l.b16 %v395
        %v4473 = vunpack.c.l.b16 %v396
        %v4474 = vunpack.c.h.b16 %v396
        %v4475 = vunpack.c.l.b16 %v397
        %v4476 = vunpack.c.l.b16 %v398
        %v4477 = vunpack.c.h.b16 %v398
        %v4478 = vunpack.c.l.b16 %v399
        %v4479 = vunpack.c.l.b16 %v400
        %v4480 = vunpack.c.h.b16 %v400
        %v4481 = vunpack.c.l.b16 %v401
        %v4482 = vunpack.c.l.b16 %v402
        %v4483 = vunpack.c.h.b16 %v402
        %v4484 = vunpack.c.l.b16 %v403
        %v4485 = vunpack.c.l.b16 %v404
        %v4486 = vunpack.c.h.b16 %v404
        %v4487 = vunpack.c.l.b16 %v405
        %v4488 = vunpack.c.l.b16 %v406
        %v4489 = vunpack.c.h.b16 %v406
        %v4490 = vunpack.c.l.b16 %v407
        %v4491 = vunpack.c.l.b16 %v408
        %v4492 = vunpack.c.h.b16 %v408
        %v4493 = vunpack.c.l.b16 %v409
        %v4494 = vunpack.c.l.b16 %v410
        %v4495 = vunpack.c.h.b16 %v410
        %v4496 = vunpack.c.l.b16 %v411
        %v4497 = vunpack.c.l.b16 %v412
        %v4498 = vunpack.c.h.b16 %v412
        %v4499 = vunpack.c.l.b16 %v413
        %v4500 = vunpack.c.l.b16 %v414
        %v4501 = vunpack.c.h.b16 %v414
        %v4502 = vunpack.c.l.b16 %v415
        %v4503 = vunpack.c.l.b16 %v416
        %v4504 = vunpack.c.h.b16 %v416
        %v4505 = vunpack.c.l.b16 %v417
        %v4506 = vunpack.c.l.b16 %v418
        %v4507 = vunpack.c.h.b16 %v418
        %v4508 = vunpack.c.l.b16 %v419
        %v4509 = vunpack.c.l.b16 %v420
        %v4510 = vunpack.c.h.b16 %v420
        %v4511 = vunpack.c.l.b16 %v421
        %v4512 = vunpack.c.l.b16 %v422
        %v4513 = vunpack.c.h.b16 %v422
        %v4514 = vunpack.c.l.b16 %v423
        %v4515 = vunpack.c.l.b16 %v424
        %v4516 = vunpack.c.h.b16 %v424
        %v4517 = vunpack.c.l.b16 %v425
        %v4518 = vunpack.c.l.b16 %v426
        %v4519 = vunpack.c.h.b16 %v426
        %v4520 = vunpack.c.l.b16 %v427
        %v4521 = vunpack.c.l.b16 %v428
        %v4522 = vunpack.c.h.b16 %v428
        %v4523 = vunpack.c.l.b16 %v429
        %v4524 = vunpack.c.l.b16 %v430
        %v4525 = vunpack.c.h.b16 %v430
        %v4526 = vunpack.c.l.b16 %v431
        %v4527 = vunpack.c.l.b16 %v432
        %v4528 = vunpack.c.h.b16 %v432
        %v4529 = vunpack.c.l.b16 %v433
        %v4530 = vunpack.c.l.b16 %v434
        %v4531 = vunpack.c.h.b16 %v434
        %v4532 = vunpack.c.l.b16 %v435
        %v4533 = vunpack.c.l.b16 %v436
        %v4534 = vunpack.c.h.b16 %v436
        %v4535 = vunpack.c.l.b16 %v437
        %v4536 = vunpack.c.l.b16 %v438
        %v4537 = vunpack.c.h.b16 %v438
        %v4538 = vunpack.c.l.b16 %v439
        %v4539 = vunpack.c.l.b16 %v440
        %v4540 = vunpack.c.h.b16 %v440
        %v4541 = vunpack.c.l.b16 %v441
        %v4542 = vunpack.c.l.b16 %v442
        %v4543 = vunpack.c.h.b16 %v442
        %v4544 = vunpack.c.l.b16 %v443
        %v4545 = vunpack.c.l.b16 %v444
        %v4546 = vunpack.c.h.b16 %v444
        %v4547 = vunpack.c.l.b16 %v445
        %v4548 = vunpack.c.l.b16 %v446
        %v4549 = vunpack.c.h.b16 %v446
        %v4550 = vunpack.c.l.b16 %v447
        %v4551 = vunpack.c.l.b16 %v448
        %v4552 = vunpack.c.h.b16 %v448
        %v4553 = vunpack.c.l.b16 %v449
        %v4554 = vunpack.c.l.b16 %v450
        %v4555 = vunpack.c.h.b16 %v450
        %v4556 = vunpack.c.l.b16 %v451
        %v4557 = vunpack.c.l.b16 %v452
        %v4558 = vunpack.c.h.b16 %v452
        %v4559 = vunpack.c.l.b16 %v453
        %v4560 = vunpack.c.l.b16 %v454
        %v4561 = vunpack.c.h.b16 %v454
        %v4562 = vunpack.c.l.b16 %v455
        %v4563 = vunpack.c.l.b16 %v456
        %v4564 = vunpack.c.h.b16 %v456
        %v4565 = vunpack.c.l.b16 %v457
        %v4566 = vunpack.c.l.b16 %v458
        %v4567 = vunpack.c.h.b16 %v458
        %v4568 = vunpack.c.l.b16 %v459
        %v4569 = vunpack.c.l.b16 %v460
        %v4570 = vunpack.c.h.b16 %v460
        %v4571 = vunpack.c.l.b16 %v461
        %v4572 = vunpack.c.l.b16 %v462
        %v4573 = vunpack.c.h.b16 %v462
        %v4574 = vunpack.c.l.b16 %v463
        %v4575 = vunpack.c.l.b16 %v464
        %v4576 = vunpack.c.h.b16 %v464
        %v4577 = vunpack.c.l.b16 %v465
        %v4578 = vunpack.c.l.b16 %v466
        %v4579 = vunpack.c.h.b16 %v466
        %v4580 = vunpack.c.l.b16 %v467
        %v4581 = vunpack.c.l.b16 %v468
        %v4582 = vunpack.c.h.b16 %v468
        %v4583 = vunpack.c.l.b16 %v469
        %v4584 = vunpack.c.l.b16 %v470
        %v4585 = vunpack.c.h.b16 %v470
        %v4586 = vunpack.c.l.b16 %v471
        %v4587 = vunpack.c.l.b16 %v472
        %v4588 = vunpack.c.h.b16 %v472
        %v4589 = vunpack.c.l.b16 %v473
        %v4590 = vunpack.c.l.b16 %v474
        %v4591 = vunpack.c.h.b16 %v474
        %v4592 = vunpack.c.l.b16 %v475
        %v4593 = vunpack.c.l.b16 %v476
        %v4594 = vunpack.c.h.b16 %v476
        %v4595 = vunpack.c.l.b16 %v477
        %v4596 = vunpack.c.l.b16 %v478
        %v4597 = vunpack.c.h.b16 %v478
        %v4598 = vunpack.c.l.b16 %v479
        %v4599 = vunpack.c.l.b16 %v480
        %v4600 = vunpack.c.h.b16 %v480
        %v4601 = vunpack.c.l.b16 %v481
        %v4602 = vunpack.c.l.b16 %v482
        %v4603 = vunpack.c.h.b16 %v482
        %v4604 = vunpack.c.l.b16 %v483
        %v4605 = vunpack.c.l.b16 %v484
        %v4606 = vunpack.c.h.b16 %v484
        %v4607 = vunpack.c.l.b16 %v485
        %v4608 = vunpack.c.l.b16 %v486
        %v4609 = vunpack.c.h.b16 %v486
        %v4610 = vunpack.c.l.b16 %v487
        %v4611 = vunpack.c.l.b16 %v488
        %v4612 = vunpack.c.h.b16 %v488
        %v4613 = vunpack.c.l.b16 %v489
        %v4614 = vunpack.c.l.b16 %v490
        %v4615 = vunpack.c.h.b16 %v490
        %v4616 = vunpack.c.l.b16 %v491
        %v4617 = vunpack.c.l.b16 %v492
        %v4618 = vunpack.c.h.b16 %v492
        %v4619 = vunpack.c.l.b16 %v493
        %v4620 = vunpack.c.l.b16 %v494
        %v4621 = vunpack.c.h.b16 %v494
        %v4622 = vunpack.c.l.b16 %v495
        %v4623 = vunpack.c.l.b16 %v496
        %v4624 = vunpack.c.h.b16 %v496
        %v4625 = vunpack.c.l.b16 %v497
        %v4626 = vunpack.c.l.b16 %v498
        %v4627 = vunpack.c.h.b16 %v498
        %v4628 = vunpack.c.l.b16 %v499
        %v4629 = vunpack.c.l.b16 %v500
        %v4630 = vunpack.c.h.b16 %v500
        %v4631 = vunpack.c.l.b16 %v501
        %v4632 = vunpack.c.l.b16 %v502
        %v4633 = vunpack.c.h.b16 %v502
        %v4634 = vunpack.c.l.b16 %v503
        %v4635 = vunpack.c.l.b16 %v504
        %v4636 = vunpack.c.h.b16 %v504
        %v4637 = vunpack.c.l.b16 %v505
        %v4638 = vunpack.c.l.b16 %v506
        %v4639 = vunpack.c.h.b16 %v506
        %v4640 = vunpack.c.l.b16 %v507
        %v4641 = vunpack.c.l.b16 %v508
        %v4642 = vunpack.c.h.b16 %v508
        %v4643 = vunpack.c.l.b16 %v509
        %v4644 = vunpack.c.l.b16 %v510
        %v4645 = vunpack.c.h.b16 %v510
        %v4646 = vunpack.c.l.b16 %v511
        %v4647 = vunpack.c.l.b16 %v512
        %v4648 = vunpack.c.h.b16 %v512
        %v4649 = vunpack.c.l.b16 %v513
        %v4650 = vunpack.c.l.b16 %v514
        %v4651 = vunpack.c.h.b16 %v514
        %v4652 = vunpack.c.l.b16 %v515
        %v4653 = vunpack.c.l.b16 %v516
        %v4654 = vunpack.c.h.b16 %v516
        %v4655 = vunpack.c.l.b16 %v517
        %v4656 = vunpack.c.l.b16 %v518
        %v4657 = vunpack.c.h.b16 %v518
        %v4658 = vunpack.c.l.b16 %v519
        %v4659 = vunpack.c.l.b16 %v520
        %v4660 = vunpack.c.h.b16 %v520
        %v4661 = vunpack.c.l.b16 %v521
        %v4662 = vunpack.c.l.b16 %v522
        %v4663 = vunpack.c.h.b16 %v522
        %v4664 = vunpack.c.l.b16 %v523
        %v4665 = vunpack.c.l.b16 %v524
        %v4666 = vunpack.c.h.b16 %v524
        %v4667 = vunpack.c.l.b16 %v525
        %v4668 = vunpack.c.l.b16 %v526
        %v4669 = vunpack.c.h.b16 %v526
        %v4670 = vunpack.c.l.b16 %v527
        %v4671 = vunpack.c.l.b16 %v528
        %v4672 = vunpack.c.h.b16 %v528
        %v4673 = vunpack.c.l.b16 %v529
        %v4674 = vunpack.c.l.b16 %v530
        %v4675 = vunpack.c.h.b16 %v530
        %v4676 = vunpack.c.l.b16 %v531
        %v4677 = vunpack.c.l.b16 %v532
        %v4678 = vunpack.c.h.b16 %v532
        %v4679 = vunpack.c.l.b16 %v533
        %v4680 = vunpack.c.l.b16 %v534
        %v4681 = vunpack.c.h.b16 %v534
        %v4682 = vunpack.c.l.b16 %v535
        %v4683 = vunpack.c.l.b16 %v536
        %v4684 = vunpack.c.h.b16 %v536
        %v4685 = vunpack.c.l.b16 %v537
        %v4686 = vunpack.c.l.b16 %v538
        %v4687 = vunpack.c.h.b16 %v538
        %v4688 = vunpack.c.l.b16 %v539
        %v4689 = vunpack.c.l.b16 %v540
        %v4690 = vunpack.c.h.b16 %v540
        %v4691 = vunpack.c.l.b16 %v541
        %v4692 = vunpack.c.l.b16 %v542
        %v4693 = vunpack.c.h.b16 %v542
        %v4694 = vunpack.c.l.b16 %v543
        %v4695 = vunpack.c.l.b16 %v544
        %v4696 = vunpack.c.h.b16 %v544
        %v4697 = vunpack.c.l.b16 %v545
        %v4698 = vunpack.c.l.b16 %v546
        %v4699 = vunpack.c.h.b16 %v546
        %v4700 = vunpack.c.l.b16 %v547
        %v4701 = vunpack.c.l.b16 %v548
        %v4702 = vunpack.c.h.b16 %v548
        %v4703 = vunpack.c.l.b16 %v549
        %v4704 = vunpack.c.l.b16 %v550
        %v4705 = vunpack.c.h.b16 %v550
        %v4706 = vunpack.c.l.b16 %v551
        %v4707 = vunpack.c.l.b16 %v552
        %v4708 = vunpack.c.h.b16 %v552
        %v4709 = vunpack.c.l.b16 %v553
        %v4710 = vunpack.c.l.b16 %v554
        %v4711 = vunpack.c.h.b16 %v554
        %v4712 = vunpack.c.l.b16 %v555
        %v4713 = vunpack.c.l.b16 %v556
        %v4714 = vunpack.c.h.b16 %v556
        %v4715 = vunpack.c.l.b16 %v557
        %v4716 = vunpack.c.l.b16 %v558
        %v4717 = vunpack.c.h.b16 %v558
        %v4718 = vunpack.c.l.b16 %v559
        %v4719 = vunpack.c.l.b16 %v560
        %v4720 = vunpack.c.h.b16 %v560
        %v4721 = vunpack.c.l.b16 %v561
        %v4722 = vunpack.c.l.b16 %v562
        %v4723 = vunpack.c.h.b16 %v562
        %v4724 = vunpack.c.l.b16 %v563
        %v4725 = vunpack.c.l.b16 %v564
        %v4726 = vunpack.c.h.b16 %v564
        %v4727 = vunpack.c.l.b16 %v565
        %v4728 = vunpack.c.l.b16 %v566
        %v4729 = vunpack.c.h.b16 %v566
        %v4730 = vunpack.c.l.b16 %v567
        %v4731 = vunpack.c.l.b16 %v568
        %v4732 = vunpack.c.h.b16 %v568
        %v4733 = vunpack.c.l.b16 %v569
        %v4734 = vunpack.c.l.b16 %v570
        %v4735 = vunpack.c.h.b16 %v570
        %v4736 = vunpack.c.l.b16 %v571
        %v4737 = vunpack.c.l.b16 %v572
        %v4738 = vunpack.c.h.b16 %v572
        %v4739 = vunpack.c.l.b16 %v573
        %v4740 = vunpack.c.l.b16 %v574
        %v4741 = vunpack.c.h.b16 %v574
        %v4742 = vunpack.c.l.b16 %v575
        %v4743 = vunpack.c.l.b16 %v576
        %v4744 = vunpack.c.h.b16 %v576
        %v4745 = vunpack.c.l.b16 %v577
        %v4746 = vunpack.c.l.b16 %v578
        %v4747 = vunpack.c.h.b16 %v578
        %v4748 = vunpack.c.l.b16 %v579
        %v4749 = vunpack.c.l.b16 %v580
        %v4750 = vunpack.c.h.b16 %v580
        %v4751 = vunpack.c.l.b16 %v581
        %v4752 = vunpack.c.l.b16 %v582
        %v4753 = vunpack.c.h.b16 %v582
        %v4754 = vunpack.c.l.b16 %v583
        %v4755 = vunpack.c.l.b16 %v584
        %v4756 = vunpack.c.h.b16 %v584
        %v4757 = vunpack.c.l.b16 %v585
        %v4758 = vunpack.c.l.b16 %v586
        %v4759 = vunpack.c.h.b16 %v586
        %v4760 = vunpack.c.l.b16 %v587
        %v4761 = vunpack.c.l.b16 %v588
        %v4762 = vunpack.c.h.b16 %v588
        %v4763 = vunpack.c.l.b16 %v589
        %v4764 = vunpack.c.l.b16 %v590
        %v4765 = vunpack.c.h.b16 %v590
        %v4766 = vunpack.c.l.b16 %v591
        %v4767 = vunpack.c.l.b16 %v592
        %v4768 = vunpack.c.h.b16 %v592
        %v4769 = vunpack.c.l.b16 %v593
        %v4770 = vunpack.c.l.b16 %v594
        %v4771 = vunpack.c.h.b16 %v594
        %v4772 = vunpack.c.l.b16 %v595
        %v4773 = vunpack.c.l.b16 %v596
        %v4774 = vunpack.c.h.b16 %v596
        %v4775 = vunpack.c.l.b16 %v597
        %v4776 = vunpack.c.l.b16 %v598
        %v4777 = vunpack.c.h.b16 %v598
        %v4778 = vunpack.c.l.b16 %v599
        %v4779 = vunpack.c.l.b16 %v600
        %v4780 = vunpack.c.h.b16 %v600
        %v4781 = vunpack.c.l.b16 %v601
        %v4782 = vunpack.c.l.b16 %v602
        %v4783 = vunpack.c.h.b16 %v602
        %v4784 = vunpack.c.l.b16 %v603
        %v4785 = vunpack.c.l.b16 %v604
        %v4786 = vunpack.c.h.b16 %v604
        %v4787 = vunpack.c.l.b16 %v605
        %v4788 = vunpack.c.l.b16 %v606
        %v4789 = vunpack.c.h.b16 %v606
        %v4790 = vunpack.c.l.b16 %v607
        %v4791 = vunpack.c.l.b16 %v608
        %v4792 = vunpack.c.h.b16 %v608
        %v4793 = vunpack.c.l.b16 %v609
        %v4794 = vunpack.c.l.b16 %v610
        %v4795 = vunpack.c.h.b16 %v610
        %v4796 = vunpack.c.l.b16 %v611
        %v4797 = vunpack.c.l.b16 %v612
        %v4798 = vunpack.c.h.b16 %v612
        %v4799 = vunpack.c.l.b16 %v613
        %v4800 = vunpack.c.l.b16 %v614
        %v4801 = vunpack.c.h.b16 %v614
        %v4802 = vunpack.c.l.b16 %v615
        %v4803 = vunpack.c.l.b16 %v616
        %v4804 = vunpack.c.h.b16 %v616
        %v4805 = vunpack.c.l.b16 %v617
        %v4806 = vunpack.c.l.b16 %v618
        %v4807 = vunpack.c.h.b16 %v618
        %v4808 = vunpack.c.l.b16 %v619
        %v4809 = vunpack.c.l.b16 %v620
        %v4810 = vunpack.c.h.b16 %v620
        %v4811 = vunpack.c.l.b16 %v621
        %v4812 = vunpack.c.l.b16 %v622
        %v4813 = vunpack.c.h.b16 %v622
        %v4814 = vunpack.c.l.b16 %v623
        %v4815 = vunpack.c.l.b16 %v624
        %v4816 = vunpack.c.h.b16 %v624
        %v4817 = vunpack.c.l.b16 %v625
        %v4818 = vunpack.c.l.b16 %v626
        %v4819 = vunpack.c.h.b16 %v626
        %v4820 = vunpack.c.l.b16 %v627
        %v4821 = vunpack.c.l.b16 %v628
        %v4822 = vunpack.c.h.b16 %v628
        %v4823 = vunpack.c.l.b16 %v629
        %v4824 = vunpack.c.l.b16 %v630
        %v4825 = vunpack.c.h.b16 %v630
        %v4826 = vunpack.c.l.b16 %v631
        %v4827 = vunpack.c.l.b16 %v632
        %v4828 = vunpack.c.h.b16 %v632
        %v4829 = vunpack.c.l.b16 %v633
        %v4830 = vunpack.c.l.b16 %v634
        %v4831 = vunpack.c.h.b16 %v634
        %v4832 = vunpack.c.l.b16 %v635
        %v4833 = vunpack.c.l.b16 %v636
        %v4834 = vunpack.c.h.b16 %v636
        %v4835 = vunpack.c.l.b16 %v637
        %v4836 = vunpack.c.l.b16 %v638
        %v4837 = vunpack.c.h.b16 %v638
        %v4838 = vunpack.c.l.b16 %v639
        %v4839 = vunpack.c.l.b16 %v640
        %v4840 = vunpack.c.h.b16 %v640
        %v4841 = vunpack.c.l.b16 %v641
        %v4842 = vunpack.c.l.b16 %v642
        %v4843 = vunpack.c.h.b16 %v642
        %v4844 = vunpack.c.l.b16 %v643
        %v4845 = vunpack.c.l.b16 %v644
        %v4846 = vunpack.c.h.b16 %v644
        %v4847 = vunpack.c.l.b16 %v645
        %v4848 = vunpack.c.l.b16 %v646
        %v4849 = vunpack.c.h.b16 %v646
        %v4850 = vunpack.c.l.b16 %v647
        %v4851 = vunpack.c.l.b16 %v648
        %v4852 = vunpack.c.h.b16 %v648
        %v4853 = vunpack.c.l.b16 %v649
        %v4854 = vunpack.c.l.b16 %v650
        %v4855 = vunpack.c.h.b16 %v650
        %v4856 = vunpack.c.l.b16 %v651
        %v4857 = vunpack.c.l.b16 %v652
        %v4858 = vunpack.c.h.b16 %v652
        %v4859 = vunpack.c.l.b16 %v653
        %v4860 = vunpack.c.l.b16 %v654
        %v4861 = vunpack.c.h.b16 %v654
        %v4862 = vunpack.c.l.b16 %v655
        %v4863 = vunpack.c.l.b16 %v656
        %v4864 = vunpack.c.h.b16 %v656
        %v4865 = vunpack.c.l.b16 %v657
        %v4866 = vunpack.c.l.b16 %v658
        %v4867 = vunpack.c.h.b16 %v658
        %v4868 = vunpack.c.l.b16 %v659
        %v4869 = vunpack.c.l.b16 %v660
        %v4870 = vunpack.c.h.b16 %v660
        %v4871 = vunpack.c.l.b16 %v661
        %v4872 = vunpack.c.l.b16 %v662
        %v4873 = vunpack.c.h.b16 %v662
        %v4874 = vunpack.c.l.b16 %v663
        %v4875 = vunpack.c.l.b16 %v664
        %v4876 = vunpack.c.h.b16 %v664
        %v4877 = vunpack.c.l.b16 %v665
        %v4878 = vunpack.c.l.b16 %v666
        %v4879 = vunpack.c.h.b16 %v666
        %v4880 = vunpack.c.l.b16 %v667
        %v4881 = vunpack.c.l.b16 %v668
        %v4882 = vunpack.c.h.b16 %v668
        %v4883 = vunpack.c.l.b16 %v669
        %v4884 = vunpack.c.l.b16 %v670
        %v4885 = vunpack.c.h.b16 %v670
        %v4886 = vunpack.c.l.b16 %v671
        %v4887 = vunpack.c.l.b16 %v672
        %v4888 = vunpack.c.h.b16 %v672
        %v4889 = vunpack.c.l.b16 %v673
        %v4890 = vunpack.c.l.b16 %v674
        %v4891 = vunpack.c.h.b16 %v674
        %v4892 = vunpack.c.l.b16 %v675
        %v4893 = vunpack.c.l.b16 %v676
        %v4894 = vunpack.c.h.b16 %v676
        %v4895 = vunpack.c.l.b16 %v677
        %v4896 = vunpack.c.l.b16 %v678
        %v4897 = vunpack.c.h.b16 %v678
        %v4898 = vunpack.c.l.b16 %v679
        %v4899 = vunpack.c.l.b16 %v680
        %v4900 = vunpack.c.h.b16 %v680
        %v4901 = vunpack.c.l.b16 %v681
        %v4902 = vunpack.c.l.b16 %v682
        %v4903 = vunpack.c.h.b16 %v682
        %v4904 = vunpack.c.l.b16 %v683
        %v4905 = vunpack.c.l.b16 %v684
        %v4906 = vunpack.c.h.b16 %v684
        %v4907 = vunpack.c.l.b16 %v685
        %v4908 = vunpack.c.l.b16 %v686
        %v4909 = vunpack.c.h.b16 %v686
        %v4910 = vunpack.c.l.b16 %v687
        %v4911 = vunpack.c.l.b16 %v688
        %v4912 = vunpack.c.h.b16 %v688
        %v4913 = vunpack.c.l.b16 %v689
        %v4914 = vunpack.c.l.b16 %v690
        %v4915 = vunpack.c.h.b16 %v690
        %v4916 = vunpack.c.l.b16 %v691
        %v4917 = vunpack.c.l.b16 %v692
        %v4918 = vunpack.c.h.b16 %v692
        %v4919 = vunpack.c.l.b16 %v693
        %v4920 = vunpack.c.l.b16 %v694
        %v4921 = vunpack.c.h.b16 %v694
        %v4922 = vunpack.c.l.b16 %v695
        %v4923 = vunpack.c.l.b16 %v696
        %v4924 = vunpack.c.h.b16 %v696
        %v4925 = vunpack.c.l.b16 %v697
        %v4926 = vunpack.c.l.b16 %v698
        %v4927 = vunpack.c.h.b16 %v698
        %v4928 = vunpack.c.l.b16 %v699
        %v4929 = vunpack.c.l.b16 %v700
        %v4930 = vunpack.c.h.b16 %v700
        %v4931 = vunpack.c.l.b16 %v701
        %v4932 = vunpack.c.l.b16 %v702
        %v4933 = vunpack.c.h.b16 %v702
        %v4934 = vunpack.c.l.b16 %v703
        %v4935 = vunpack.c.l.b16 %v704
        %v4936 = vunpack.c.h.b16 %v704
        %v4937 = vunpack.c.l.b16 %v705
        %v4938 = vunpack.c.l.b16 %v706
        %v4939 = vunpack.c.h.b16 %v706
        %v4940 = vunpack.c.l.b16 %v707
        %v4941 = vunpack.c.l.b16 %v708
        %v4942 = vunpack.c.h.b16 %v708
        %v4943 = vunpack.c.l.b16 %v709
        %v4944 = vunpack.c.l.b16 %v710
        %v4945 = vunpack.c.h.b16 %v710
        %v4946 = vunpack.c.l.b16 %v711
        %v4947 = vunpack.c.l.b16 %v712
        %v4948 = vunpack.c.h.b16 %v712
        %v4949 = vunpack.c.l.b16 %v713
        %v4950 = vunpack.c.l.b16 %v714
        %v4951 = vunpack.c.h.b16 %v714
        %v4952 = vunpack.c.l.b16 %v715
        %v4953 = vunpack.c.l.b16 %v716
        %v4954 = vunpack.c.h.b16 %v716
        %v4955 = vunpack.c.l.b16 %v717
        %v4956 = vunpack.c.l.b16 %v718
        %v4957 = vunpack.c.h.b16 %v718
        %v4958 = vunpack.c.l.b16 %v719
        %v4959 = vunpack.c.l.b16 %v720
        %v4960 = vunpack.c.h.b16 %v720
        %v4961 = vunpack.c.l.b16 %v721
        %v4962 = vunpack.c.l.b16 %v722
        %v4963 = vunpack.c.h.b16 %v722
        %v4964 = vunpack.c.l.b16 %v723
        %v4965 = vunpack.c.l.b16 %v724
        %v4966 = vunpack.c.h.b16 %v724
        %v4967 = vunpack.c.l.b16 %v725
        %v4968 = vunpack.c.l.b16 %v726
        %v4969 = vunpack.c.h.b16 %v726
        %v4970 = vunpack.c.l.b16 %v727
        %v4971 = vunpack.c.l.b16 %v728
        %v4972 = vunpack.c.h.b16 %v728
        %v4973 = vunpack.c.l.b16 %v729
        %v4974 = vunpack.c.l.b16 %v730
        %v4975 = vunpack.c.h.b16 %v730
        %v4976 = vunpack.c.l.b16 %v731
        %v4977 = vunpack.c.l.b16 %v732
        %v4978 = vunpack.c.h.b16 %v732
        %v4979 = vunpack.c.l.b16 %v733
        %v4980 = vunpack.c.l.b16 %v734
        %v4981 = vunpack.c.h.b16 %v734
        %v4982 = vunpack.c.l.b16 %v735
        %v4983 = vunpack.c.l.b16 %v736
        %v4984 = vunpack.c.h.b16 %v736
        %v4985 = vunpack.c.l.b16 %v737
        %v4986 = vunpack.c.l.b16 %v738
        %v4987 = vunpack.c.h.b16 %v738
        %v4988 = vunpack.c.l.b16 %v739
        %v4989 = vunpack.c.l.b16 %v740
        %v4990 = vunpack.c.h.b16 %v740
        %v4991 = vunpack.c.l.b16 %v741
        %v4992 = vunpack.c.l.b16 %v742
        %v4993 = vunpack.c.h.b16 %v742
        %v4994 = vunpack.c.l.b16 %v743
        %v4995 = vunpack.c.l.b16 %v744
        %v4996 = vunpack.c.h.b16 %v744
        %v4997 = vunpack.c.l.b16 %v745
        %v4998 = vunpack.c.l.b16 %v746
        %v4999 = vunpack.c.h.b16 %v746
        %v5000 = vunpack.c.l.b16 %v747
        %v5001 = vunpack.c.l.b16 %v748
        %v5002 = vunpack.c.h.b16 %v748
        %v5003 = vunpack.c.l.b16 %v749
        %v5004 = vunpack.c.l.b16 %v750
        %v5005 = vunpack.c.h.b16 %v750
        %v5006 = vunpack.c.l.b16 %v751
        %v5007 = vunpack.c.l.b16 %v752
        %v5008 = vunpack.c.h.b16 %v752
        %v5009 = vunpack.c.l.b16 %v753
        %v5010 = vunpack.c.l.b16 %v754
        %v5011 = vunpack.c.h.b16 %v754
        %v5012 = vunpack.c.l.b16 %v755
        %v5013 = vunpack.c.l.b16 %v756
        %v5014 = vunpack.c.h.b16 %v756
        %v5015 = vunpack.c.l.b16 %v757
        %v5016 = vunpack.c.l.b16 %v758
        %v5017 = vunpack.c.h.b16 %v758
        %v5018 = vunpack.c.l.b16 %v759
        %v5019 = vunpack.c.l.b16 %v760
        %v5020 = vunpack.c.h.b16 %v760
        %v5021 = vunpack.c.l.b16 %v761
        %v5022 = vunpack.c.l.b16 %v762
        %v5023 = vunpack.c.h.b16 %v762
        %v5024 = vunpack.c.l.b16 %v763
        %v5025 = vunpack.c.l.b16 %v764
        %v5026 = vunpack.c.h.b16 %v764
        %v5027 = vunpack.c.l.b16 %v765
        %v5028 = vunpack.c.l.b16 %v766
        %v5029 = vunpack.c.h.b16 %v766
        %v5030 = vunpack.c.l.b16 %v767
        %v5031 = vunpack.c.l.b16 %v768
        %v5032 = vunpack.c.h.b16 %v768
        %v5033 = vunpack.c.l.b16 %v769
        %v5034 = vunpack.c.l.b16 %v770
        %v5035 = vunpack.c.h.b16 %v770
        %v5036 = vunpack.c.l.b16 %v771
        %v5037 = vunpack.c.l.b16 %v772
        %v5038 = vunpack.c.h.b16 %v772
        %v5039 = vunpack.c.l.b16 %v773
        %v5040 = vunpack.c.l.b16 %v774
        %v5041 = vunpack.c.h.b16 %v774
        %v5042 = vunpack.c.l.b16 %v775
        %v5043 = vunpack.c.l.b16 %v776
        %v5044 = vunpack.c.h.b16 %v776
        %v5045 = vunpack.c.l.b16 %v777
        %v5046 = vunpack.c.l.b16 %v778
        %v5047 = vunpack.c.h.b16 %v778
        %v5048 = vunpack.c.l.b16 %v779
        %v5049 = vunpack.c.l.b16 %v780
        %v5050 = vunpack.c.h.b16 %v780
        %v5051 = vunpack.c.l.b16 %v781
        %v5052 = vunpack.c.l.b16 %v782
        %v5053 = vunpack.c.h.b16 %v782
        %v5054 = vunpack.c.l.b16 %v783
        %v5055 = vunpack.c.l.b16 %v784
        %v5056 = vunpack.c.h.b16 %v784
        %v5057 = vunpack.c.l.b16 %v785
        %v5058 = vunpack.c.l.b16 %v786
        %v5059 = vunpack.c.h.b16 %v786
        %v5060 = vunpack.c.l.b16 %v787
        %v5061 = vunpack.c.l.b16 %v788
        %v5062 = vunpack.c.h.b16 %v788
        %v5063 = vunpack.c.l.b16 %v789
        %v5064 = vunpack.c.l.b16 %v790
        %v5065 = vunpack.c.h.b16 %v790
        %v5066 = vunpack.c.l.b16 %v791
        %v5067 = vunpack.c.l.b16 %v792
        %v5068 = vunpack.c.h.b16 %v792
        %v5069 = vunpack.c.l.b16 %v793
        %v5070 = vunpack.c.l.b16 %v794
        %v5071 = vunpack.c.h.b16 %v794
        %v5072 = vunpack.c.l.b16 %v795
        %v5073 = vunpack.c.l.b16 %v796
        %v5074 = vunpack.c.h.b16 %v796
        %v5075 = vunpack.c.l.b16 %v797
        %v5076 = vunpack.c.l.b16 %v798
        %v5077 = vunpack.c.h.b16 %v798
        %v5078 = vunpack.c.l.b16 %v799
        %v5079 = vunpack.c.l.b16 %v800
        %v5080 = vunpack.c.h.b16 %v800
        %v5081 = vunpack.c.l.b16 %v801
        %v5082 = vunpack.c.l.b16 %v802
        %v5083 = vunpack.c.h.b16 %v802
        %v5084 = vunpack.c.l.b16 %v803
        %v5085 = vunpack.c.l.b16 %v804
        %v5086 = vunpack.c.h.b16 %v804
        %v5087 = vunpack.c.l.b16 %v805
        %v5088 = vunpack.c.l.b16 %v806
        %v5089 = vunpack.c.h.b16 %v806
        %v5090 = vunpack.c.l.b16 %v807
        %v5091 = vunpack.c.l.b16 %v808
        %v5092 = vunpack.c.h.b16 %v808
        %v5093 = vunpack.c.l.b16 %v809
        %v5094 = vunpack.c.l.b16 %v810
        %v5095 = vunpack.c.h.b16 %v810
        %v5096 = vunpack.c.l.b16 %v811
        %v5097 = vunpack.c.l.b16 %v812
        %v5098 = vunpack.c.h.b16 %v812
        %v5099 = vunpack.c.l.b16 %v813
        %v5100 = vunpack.c.l.b16 %v814
        %v5101 = vunpack.c.h.b16 %v814
        %v5102 = vunpack.c.l.b16 %v815
        %v5103 = vunpack.c.l.b16 %v816
        %v5104 = vunpack.c.h.b16 %v816
        %v5105 = vunpack.c.l.b16 %v817
        %v5106 = vunpack.c.l.b16 %v818
        %v5107 = vunpack.c.h.b16 %v818
        %v5108 = vunpack.c.l.b16 %v819
        %v5109 = vunpack.c.l.b16 %v820
        %v5110 = vunpack.c.h.b16 %v820
        %v5111 = vunpack.c.l.b16 %v821
        %v5112 = vunpack.c.l.b16 %v822
        %v5113 = vunpack.c.h.b16 %v822
        %v5114 = vunpack.c.l.b16 %v823
        %v5115 = vunpack.c.l.b16 %v824
        %v5116 = vunpack.c.h.b16 %v824
        %v5117 = vunpack.c.l.b16 %v825
        %v5118 = vunpack.c.l.b16 %v826
        %v5119 = vunpack.c.h.b16 %v826
        %v5120 = vunpack.c.l.b16 %v827
        %v5121 = vunpack.c.l.b16 %v828
        %v5122 = vunpack.c.h.b16 %v828
        %v5123 = vunpack.c.l.b16 %v829
        %v5124 = vunpack.c.l.b16 %v830
        %v5125 = vunpack.c.h.b16 %v830
        %v5126 = vunpack.c.l.b16 %v831
        %v5127 = vunpack.c.l.b16 %v832
        %v5128 = vunpack.c.h.b16 %v832
        %v5129 = vunpack.c.l.b16 %v833
        %v5130 = vunpack.c.l.b16 %v834
        %v5131 = vunpack.c.h.b16 %v834
        %v5132 = vunpack.c.l.b16 %v835
        %v5133 = vunpack.c.l.b16 %v836
        %v5134 = vunpack.c.h.b16 %v836
        %v5135 = vunpack.c.l.b16 %v837
        %v5136 = vunpack.c.l.b16 %v838
        %v5137 = vunpack.c.h.b16 %v838
        %v5138 = vunpack.c.l.b16 %v839
        %v5139 = vunpack.c.l.b16 %v840
        %v5140 = vunpack.c.h.b16 %v840
        %v5141 = vunpack.c.l.b16 %v841
        %v5142 = vunpack.c.l.b16 %v842
        %v5143 = vunpack.c.h.b16 %v842
        %v5144 = vunpack.c.l.b16 %v843
        %v5145 = vunpack.c.l.b16 %v844
        %v5146 = vunpack.c.h.b16 %v844
        %v5147 = vunpack.c.l.b16 %v845
        %v5148 = vunpack.c.l.b16 %v846
        %v5149 = vunpack.c.h.b16 %v846
        %v5150 = vunpack.c.l.b16 %v847
        %v5151 = vunpack.c.l.b16 %v848
        %v5152 = vunpack.c.h.b16 %v848
        %v5153 = vunpack.c.l.b16 %v849
        %v5154 = vunpack.c.l.b16 %v850
        %v5155 = vunpack.c.h.b16 %v850
        %v5156 = vunpack.c.l.b16 %v851
        %v5157 = vunpack.c.l.b16 %v852
        %v5158 = vunpack.c.h.b16 %v852
        %v5159 = vunpack.c.l.b16 %v853
        %v5160 = vunpack.c.l.b16 %v854
        %v5161 = vunpack.c.h.b16 %v854
        %v5162 = vunpack.c.l.b16 %v855
        %v5163 = vunpack.c.l.b16 %v856
        %v5164 = vunpack.c.h.b16 %v856
        %v5165 = vunpack.c.l.b16 %v857
        %v5166 = vunpack.c.l.b16 %v858
        %v5167 = vunpack.c.h.b16 %v858
        %v5168 = vunpack.c.l.b16 %v859
        %v5169 = vunpack.c.l.b16 %v860
        %v5170 = vunpack.c.h.b16 %v860
        %v5171 = vunpack.c.l.b16 %v861
        %v5172 = vunpack.c.l.b16 %v862
        %v5173 = vunpack.c.h.b16 %v862
        %v5174 = vunpack.c.l.b16 %v863
        %v5175 = vunpack.c.l.b16 %v864
        %v5176 = vunpack.c.h.b16 %v864
        %v5177 = vunpack.c.l.b16 %v865
        %v5178 = vunpack.c.l.b16 %v866
        %v5179 = vunpack.c.h.b16 %v866
        %v5180 = vunpack.c.l.b16 %v867
        %v5181 = vunpack.c.l.b16 %v868
        %v5182 = vunpack.c.h.b16 %v868
        %v5183 = vunpack.c.l.b16 %v869
        %v5184 = vunpack.c.l.b16 %v870
        %v5185 = vunpack.c.h.b16 %v870
        %v5186 = vunpack.c.l.b16 %v871
        %v5187 = vunpack.c.l.b16 %v872
        %v5188 = vunpack.c.h.b16 %v872
        %v5189 = vunpack.c.l.b16 %v873
        %v5190 = vunpack.c.l.b16 %v874
        %v5191 = vunpack.c.h.b16 %v874
        %v5192 = vunpack.c.l.b16 %v875
        %v5193 = vunpack.c.l.b16 %v876
        %v5194 = vunpack.c.h.b16 %v876
        %v5195 = vunpack.c.l.b16 %v877
        %v5196 = vunpack.c.l.b16 %v878
        %v5197 = vunpack.c.h.b16 %v878
        %v5198 = vunpack.c.l.b16 %v879
        %v5199 = vunpack.c.l.b16 %v880
        %v5200 = vunpack.c.h.b16 %v880
        %v5201 = vunpack.c.l.b16 %v881
        %v5202 = vunpack.c.l.b16 %v882
        %v5203 = vunpack.c.h.b16 %v882
        %v5204 = vunpack.c.l.b16 %v883
        %v5205 = vunpack.c.l.b16 %v884
        %v5206 = vunpack.c.h.b16 %v884
        %v5207 = vunpack.c.l.b16 %v885
        %v5208 = vunpack.c.l.b16 %v886
        %v5209 = vunpack.c.h.b16 %v886
        %v5210 = vunpack.c.l.b16 %v887
        %v5211 = vunpack.c.l.b16 %v888
        %v5212 = vunpack.c.h.b16 %v888
        %v5213 = vunpack.c.l.b16 %v889
        %v5214 = vunpack.c.l.b16 %v890
        %v5215 = vunpack.c.h.b16 %v890
        %v5216 = vunpack.c.l.b16 %v891
        %v5217 = vunpack.c.l.b16 %v892
        %v5218 = vunpack.c.h.b16 %v892
        %v5219 = vunpack.c.l.b16 %v893
        %v5220 = vunpack.c.l.b16 %v894
        %v5221 = vunpack.c.h.b16 %v894
        %v5222 = vunpack.c.l.b16 %v895
        %v5223 = vunpack.c.l.b16 %v896
        %v5224 = vunpack.c.h.b16 %v896
        %v5225 = vunpack.c.l.b16 %v897
        %v5226 = vunpack.c.l.b16 %v898
        %v5227 = vunpack.c.h.b16 %v898
        %v5228 = vunpack.c.l.b16 %v899
        %v5229 = vunpack.c.l.b16 %v900
        %v5230 = vunpack.c.h.b16 %v900
        %v5231 = vunpack.c.l.b16 %v901
        %v5232 = vunpack.c.l.b16 %v902
        %v5233 = vunpack.c.h.b16 %v902
        %v5234 = vunpack.c.l.b16 %v903
        %v5235 = vunpack.c.l.b16 %v904
        %v5236 = vunpack.c.h.b16 %v904
        %v5237 = vunpack.c.l.b16 %v905
        %v5238 = vunpack.c.l.b16 %v906
        %v5239 = vunpack.c.h.b16 %v906
        %v5240 = vunpack.c.l.b16 %v907
        %v5241 = vunpack.c.l.b16 %v908
        %v5242 = vunpack.c.h.b16 %v908
        %v5243 = vunpack.c.l.b16 %v909
        %v5244 = vunpack.c.l.b16 %v910
        %v5245 = vunpack.c.h.b16 %v910
        %v5246 = vunpack.c.l.b16 %v911
        %v5247 = vunpack.c.l.b16 %v912
        %v5248 = vunpack.c.h.b16 %v912
        %v5249 = vunpack.c.l.b16 %v913
        %v5250 = vunpack.c.l.b16 %v914
        %v5251 = vunpack.c.h.b16 %v914
        %v5252 = vunpack.c.l.b16 %v915
        %v5253 = vunpack.c.l.b16 %v916
        %v5254 = vunpack.c.h.b16 %v916
        %v5255 = vunpack.c.l.b16 %v917
        %v5256 = vunpack.c.l.b16 %v918
        %v5257 = vunpack.c.h.b16 %v918
        %v5258 = vunpack.c.l.b16 %v919
        %v5259 = vunpack.c.l.b16 %v920
        %v5260 = vunpack.c.h.b16 %v920
        %v5261 = vunpack.c.l.b16 %v921
        %v5262 = vunpack.c.l.b16 %v922
        %v5263 = vunpack.c.h.b16 %v922
        %v5264 = vunpack.c.l.b16 %v923
        %v5265 = vunpack.c.l.b16 %v924
        %v5266 = vunpack.c.h.b16 %v924
        %v5267 = vunpack.c.l.b16 %v925
        %v5268 = vunpack.c.l.b16 %v926
        %v5269 = vunpack.c.h.b16 %v926
        %v5270 = vunpack.c.l.b16 %v927
        %v5271 = vunpack.c.l.b16 %v928
        %v5272 = vunpack.c.h.b16 %v928
        %v5273 = vunpack.c.l.b16 %v929
        %v5274 = vunpack.c.l.b16 %v930
        %v5275 = vunpack.c.h.b16 %v930
        %v5276 = vunpack.c.l.b16 %v931
        %v5277 = vunpack.c.l.b16 %v932
        %v5278 = vunpack.c.h.b16 %v932
        %v5279 = vunpack.c.l.b16 %v933
        %v5280 = vunpack.c.l.b16 %v934
        %v5281 = vunpack.c.h.b16 %v934
        %v5282 = vunpack.c.l.b16 %v935
        %v5283 = vunpack.c.l.b16 %v936
        %v5284 = vunpack.c.h.b16 %v936
        %v5285 = vunpack.c.l.b16 %v937
        %v5286 = vunpack.c.l.b16 %v938
        %v5287 = vunpack.c.h.b16 %v938
        %v5288 = vunpack.c.l.b16 %v939
        %v5289 = vunpack.c.l.b16 %v940
        %v5290 = vunpack.c.h.b16 %v940
        %v5291 = vunpack.c.l.b16 %v941
        %v5292 = vunpack.c.l.b16 %v942
        %v5293 = vunpack.c.h.b16 %v942
        %v5294 = vunpack.c.l.b16 %v943
        %v5295 = vunpack.c.l.b16 %v944
        %v5296 = vunpack.c.h.b16 %v944
        %v5297 = vunpack.c.l.b16 %v945
        %v5298 = vunpack.c.l.b16 %v946
        %v5299 = vunpack.c.h.b16 %v946
        %v5300 = vunpack.c.l.b16 %v947
        %v5301 = vunpack.c.l.b16 %v948
        %v5302 = vunpack.c.h.b16 %v948
        %v5303 = vunpack.c.l.b16 %v949
        %v5304 = vunpack.c.l.b16 %v950
        %v5305 = vunpack.c.h.b16 %v950
        %v5306 = vunpack.c.l.b16 %v951
        %v5307 = vunpack.c.l.b16 %v952
        %v5308 = vunpack.c.h.b16 %v952
        %v5309 = vunpack.c.l.b16 %v953
        %v5310 = vunpack.c.l.b16 %v954
        %v5311 = vunpack.c.h.b16 %v954
        %v5312 = vunpack.c.l.b16 %v955
        %v5313 = vunpack.c.l.b16 %v956
        %v5314 = vunpack.c.h.b16 %v956
        %v5315 = vunpack.c.l.b16 %v957
        %v5316 = vunpack.c.l.b16 %v958
        %v5317 = vunpack.c.h.b16 %v958
        %v5318 = vunpack.c.l.b16 %v959
        %v5319 = vunpack.c.l.b16 %v960
        %v5320 = vunpack.c.h.b16 %v960
        %v5321 = vunpack.c.l.b16 %v961
        %v5322 = vunpack.c.l.b16 %v962
        %v5323 = vunpack.c.h.b16 %v962
        %v5324 = vunpack.c.l.b16 %v963
        %v5325 = vunpack.c.l.b16 %v964
        %v5326 = vunpack.c.h.b16 %v964
        %v5327 = vunpack.c.l.b16 %v965
        %v5328 = vunpack.c.l.b16 %v966
        %v5329 = vunpack.c.h.b16 %v966
        %v5330 = vunpack.c.l.b16 %v967
        %v5331 = vunpack.c.l.b16 %v968
        %v5332 = vunpack.c.h.b16 %v968
        %v5333 = vunpack.c.l.b16 %v969
        %v5334 = vunpack.c.l.b16 %v970
        %v5335 = vunpack.c.h.b16 %v970
        %v5336 = vunpack.c.l.b16 %v971
        %v5337 = vunpack.c.l.b16 %v972
        %v5338 = vunpack.c.h.b16 %v972
        %v5339 = vunpack.c.l.b16 %v973
        %v5340 = vunpack.c.l.b16 %v974
        %v5341 = vunpack.c.h.b16 %v974
        %v5342 = vunpack.c.l.b16 %v975
        %v5343 = vunpack.c.l.b16 %v976
        %v5344 = vunpack.c.h.b16 %v976
        %v5345 = vunpack.c.l.b16 %v977
        %v5346 = vunpack.c.l.b16 %v978
        %v5347 = vunpack.c.h.b16 %v978
        %v5348 = vunpack.c.l.b16 %v979
        %v5349 = vunpack.c.l.b16 %v980
        %v5350 = vunpack.c.h.b16 %v980
        %v5351 = vunpack.c.l.b16 %v981
        %v5352 = vunpack.c.l.b16 %v982
        %v5353 = vunpack.c.h.b16 %v982
        %v5354 = vunpack.c.l.b16 %v983
        %v5355 = vunpack.c.l.b16 %v984
        %v5356 = vunpack.c.h.b16 %v984
        %v5357 = vunpack.c.l.b16 %v985
        %v5358 = vunpack.c.l.b16 %v986
        %v5359 = vunpack.c.h.b16 %v986
        %v5360 = vunpack.c.l.b16 %v987
        %v5361 = vunpack.c.l.b16 %v988
        %v5362 = vunpack.c.h.b16 %v988
        %v5363 = vunpack.c.l.b16 %v989
        %v5364 = vunpack.c.l.b16 %v990
        %v5365 = vunpack.c.h.b16 %v990
        %v5366 = vunpack.c.l.b16 %v991
        %v5367 = vunpack.c.l.b16 %v992
        %v5368 = vunpack.c.h.b16 %v992
        %v5369 = vunpack.c.l.b16 %v993
        %v5370 = vunpack.c.l.b16 %v994
        %v5371 = vunpack.c.h.b16 %v994
        %v5372 = vunpack.c.l.b16 %v995
        %v5373 = vunpack.c.l.b16 %v996
        %v5374 = vunpack.c.h.b16 %v996
        %v5375 = vunpack.c.l.b16 %v997
        %v5376 = vunpack.c.l.b16 %v998
        %v5377 = vunpack.c.h.b16 %v998
        %v5378 = vunpack.c.l.b16 %v999
        %v5379 = vunpack.c.l.b16 %v1000
        %v5380 = vunpack.c.h.b16 %v1000
        %v5381 = vunpack.c.l.b16 %v1001
        %v5382 = vunpack.c.l.b16 %v1002
        %v5383 = vunpack.c.h.b16 %v1002
        %v5384 = vunpack.c.l.b16 %v1003
        %v5385 = vunpack.c.l.b16 %v1004
        %v5386 = vunpack.c.h.b16 %v1004
        %v5387 = vunpack.c.l.b16 %v1005
        %v5388 = vunpack.c.l.b16 %v1006
        %v5389 = vunpack.c.h.b16 %v1006
        %v5390 = vunpack.c.l.b16 %v1007
        %v5391 = vunpack.c.l.b16 %v1008
        %v5392 = vunpack.c.h.b16 %v1008
        %v5393 = vunpack.c.l.b16 %v1009
        %v5394 = vunpack.c.l.b16 %v1010
        %v5395 = vunpack.c.h.b16 %v1010
        %v5396 = vunpack.c.l.b16 %v1011
        %v5397 = vunpack.c.l.b16 %v1012
        %v5398 = vunpack.c.h.b16 %v1012
        %v5399 = vunpack.c.l.b16 %v1013
        %v5400 = vunpack.c.l.b16 %v1014
        %v5401 = vunpack.c.h.b16 %v1014
        %v5402 = vunpack.c.l.b16 %v1015
        %v5403 = vunpack.c.l.b16 %v1016
        %v5404 = vunpack.c.h.b16 %v1016
        %v5405 = vunpack.c.l.b16 %v1017
        %v5406 = vunpack.c.l.b16 %v1018
        %v5407 = vunpack.c.h.b16 %v1018
        %v5408 = vunpack.c.l.b16 %v1019
        %v5409 = vunpack.c.l.b16 %v1020
        %v5410 = vunpack.c.h.b16 %v1020
        %v5411 = vunpack.c.l.b16 %v1021
        %v5412 = vunpack.c.l.b16 %v1022
        %v5413 = vunpack.c.h.b16 %v1022
        %v5414 = vunpack.c.l.b16 %v1023
        %v5415 = vunpack.c.l.b16 %v1024
        %v5416 = vunpack.c.h.b16 %v1024
        %v5417 = vunpack.c.l.b16 %v1025
        %v5418 = vunpack.c.l.b16 %v1026
        %v5419 = vunpack.c.h.b16 %v1026
        %v5420 = vunpack.c.l.b16 %v1027
        %v5421 = vunpack.c.l.b16 %v1028
        %v5422 = vunpack.c.h.b16 %v1028
        %v5423 = vunpack.c.l.b16 %v1029
        %v5424 = vunpack.c.l.b16 %v1030
        %v5425 = vunpack.c.h.b16 %v1030
        %v5426 = vunpack.c.l.b16 %v1031
        %v5427 = vunpack.c.l.b16 %v1032
        %v5428 = vunpack.c.h.b16 %v1032
        %v5429 = vunpack.c.l.b16 %v1033
        %v5430 = vunpack.c.l.b16 %v1034
        %v5431 = vunpack.c.h.b16 %v1034
        %v5432 = vunpack.c.l.b16 %v1035
        %v5433 = vunpack.c.l.b16 %v1036
        %v5434 = vunpack.c.h.b16 %v1036
        %v5435 = vunpack.c.l.b16 %v1037
        %v5436 = vunpack.c.l.b16 %v1038
        %v5437 = vunpack.c.h.b16 %v1038
        %v5438 = vunpack.c.l.b16 %v1039
        %v5439 = vunpack.c.l.b16 %v1040
        %v5440 = vunpack.c.h.b16 %v1040
        %v5441 = vunpack.c.l.b16 %v1041
        %v5442 = vunpack.c.l.b16 %v1042
        %v5443 = vunpack.c.h.b16 %v1042
        %v5444 = vunpack.c.l.b16 %v1043
        %v5445 = vunpack.c.l.b16 %v1044
        %v5446 = vunpack.c.h.b16 %v1044
        %v5447 = vunpack.c.l.b16 %v1045
        %v5448 = vunpack.c.l.b16 %v1046
        %v5449 = vunpack.c.h.b16 %v1046
        %v5450 = vunpack.c.l.b16 %v1047
        %v5451 = vunpack.c.l.b16 %v1048
        %v5452 = vunpack.c.h.b16 %v1048
        %v5453 = vunpack.c.l.b16 %v1049
        %v5454 = vunpack.c.l.b16 %v1050
        %v5455 = vunpack.c.h.b16 %v1050
        %v5456 = vunpack.c.l.b16 %v1051
        %v5457 = vunpack.c.l.b16 %v1052
        %v5458 = vunpack.c.h.b16 %v1052
        %v5459 = vunpack.c.l.b16 %v1053
        %v5460 = vunpack.c.l.b16 %v1054
        %v5461 = vunpack.c.h.b16 %v1054
        %v5462 = vunpack.c.l.b16 %v1055
        %v5463 = vunpack.c.l.b16 %v1056
        %v5464 = vunpack.c.h.b16 %v1056
        %v5465 = vunpack.c.l.b16 %v1057
        %v5466 = vunpack.c.l.b16 %v1058
        %v5467 = vunpack.c.h.b16 %v1058
        %v5468 = vunpack.c.l.b16 %v1059
        %v5469 = vunpack.c.l.b16 %v1060
        %v5470 = vunpack.c.h.b16 %v1060
        %v5471 = vunpack.c.l.b16 %v1061
        %v5472 = vunpack.c.l.b16 %v1062
        %v5473 = vunpack.c.h.b16 %v1062
        %v5474 = vunpack.c.l.b16 %v1063
        %v5475 = vunpack.c.l.b16 %v1064
        %v5476 = vunpack.c.h.b16 %v1064
        %v5477 = vunpack.c.l.b16 %v1065
        %v5478 = vunpack.c.l.b16 %v1066
        %v5479 = vunpack.c.h.b16 %v1066
        %v5480 = vunpack.c.l.b16 %v1067
        %v5481 = vunpack.c.l.b16 %v1068
        %v5482 = vunpack.c.h.b16 %v1068
        %v5483 = vunpack.c.l.b16 %v1069
        %v5484 = vunpack.c.l.b16 %v1070
        %v5485 = vunpack.c.h.b16 %v1070
        %v5486 = vunpack.c.l.b16 %v1071
        %v5487 = vunpack.c.l.b16 %v1072
        %v5488 = vunpack.c.h.b16 %v1072
        %v5489 = vunpack.c.l.b16 %v1073
        %v5490 = vunpack.c.l.b16 %v1074
        %v5491 = vunpack.c.h.b16 %v1074
        %v5492 = vunpack.c.l.b16 %v1075
        %v5493 = vunpack.c.l.b16 %v1076
        %v5494 = vunpack.c.h.b16 %v1076
        %v5495 = vunpack.c.l.b16 %v1077
        %v5496 = vunpack.c.l.b16 %v1078
        %v5497 = vunpack.c.h.b16 %v1078
        %v5498 = vunpack.c.l.b16 %v1079
        %v5499 = vunpack.c.l.b16 %v1080
        %v5500 = vunpack.c.h.b16 %v1080
        %v5501 = vunpack.c.l.b16 %v1081
        %v5502 = vunpack.c.l.b16 %v1082
        %v5503 = vunpack.c.h.b16 %v1082
        %v5504 = vunpack.c.l.b16 %v1083
        %v5505 = vunpack.c.l.b16 %v1084
        %v5506 = vunpack.c.h.b16 %v1084
        %v5507 = vunpack.c.l.b16 %v1085
        %v5508 = vunpack.c.l.b16 %v1086
        %v5509 = vunpack.c.h.b16 %v1086
        %v5510 = vunpack.c.l.b16 %v1087
        %v5511 = vunpack.c.l.b16 %v1088
        %v5512 = vunpack.c.h.b16 %v1088
        %v5513 = vunpack.c.l.b16 %v1089
        %v5514 = vunpack.c.l.b16 %v1090
        %v5515 = vunpack.c.h.b16 %v1090
        %v5516 = vunpack.c.l.b16 %v1091
        %v5517 = vunpack.c.l.b16 %v1092
        %v5518 = vunpack.c.h.b16 %v1092
        %v5519 = vunpack.c.l.b16 %v1093
        %v5520 = vunpack.c.l.b16 %v1094
        %v5521 = vunpack.c.h.b16 %v1094
        %v5522 = vunpack.c.l.b16 %v1095
        %v5523 = vunpack.c.l.b16 %v1096
        %v5524 = vunpack.c.h.b16 %v1096
        %v5525 = vunpack.c.l.b16 %v1097
        %v5526 = vunpack.c.l.b16 %v1098
        %v5527 = vunpack.c.h.b16 %v1098
        %v5528 = vunpack.c.l.b16 %v1099
        %v5529 = vunpack.c.l.b16 %v1100
        %v5530 = vunpack.c.h.b16 %v1100
        %v5531 = vunpack.c.l.b16 %v1101
        %v5532 = vunpack.c.l.b16 %v1102
        %v5533 = vunpack.c.h.b16 %v1102
        %v5534 = vunpack.c.l.b16 %v1103
        %v5535 = vunpack.c.l.b16 %v1104
        %v5536 = vunpack.c.h.b16 %v1104
        %v5537 = vunpack.c.l.b16 %v1105
        %v5538 = vunpack.c.l.b16 %v1106
        %v5539 = vunpack.c.h.b16 %v1106
        %v5540 = vunpack.c.l.b16 %v1107
        %v5541 = vunpack.c.l.b16 %v1108
        %v5542 = vunpack.c.h.b16 %v1108
        %v5543 = vunpack.c.l.b16 %v1109
        %v5544 = vunpack.c.l.b16 %v1110
        %v5545 = vunpack.c.h.b16 %v1110
        %v5546 = vunpack.c.l.b16 %v1111
        %v5547 = vunpack.c.l.b16 %v1112
        %v5548 = vunpack.c.h.b16 %v1112
        %v5549 = vunpack.c.l.b16 %v1113
        %v5550 = vunpack.c.l.b16 %v1114
        %v5551 = vunpack.c.h.b16 %v1114
        %v5552 = vunpack.c.l.b16 %v1115
        %v5553 = vunpack.c.l.b16 %v1116
        %v5554 = vunpack.c.h.b16 %v1116
        %v5555 = vunpack.c.l.b16 %v1117
        %v5556 = vunpack.c.l.b16 %v1118
        %v5557 = vunpack.c.h.b16 %v1118
        %v5558 = vunpack.c.l.b16 %v1119
        %v5559 = vunpack.c.l.b16 %v1120
        %v5560 = vunpack.c.h.b16 %v1120
        %v5561 = vunpack.c.l.b16 %v1121
        %v5562 = vunpack.c.l.b16 %v1122
        %v5563 = vunpack.c.h.b16 %v1122
        %v5564 = vunpack.c.l.b16 %v1123
        %v5565 = vunpack.c.l.b16 %v1124
        %v5566 = vunpack.c.h.b16 %v1124
        %v5567 = vunpack.c.l.b16 %v1125
        %v5568 = vunpack.c.l.b16 %v1126
        %v5569 = vunpack.c.h.b16 %v1126
        %v5570 = vunpack.c.l.b16 %v1127
        %v5571 = vunpack.c.l.b16 %v1128
        %v5572 = vunpack.c.h.b16 %v1128
        %v5573 = vunpack.c.l.b16 %v1129
        %v5574 = vunpack.c.l.b16 %v1130
        %v5575 = vunpack.c.h.b16 %v1130
        %v5576 = vunpack.c.l.b16 %v1131
        %v5577 = vunpack.c.l.b16 %v1132
        %v5578 = vunpack.c.h.b16 %v1132
        %v5579 = vunpack.c.l.b16 %v1133
        %v5580 = vunpack.c.l.b16 %v1134
        %v5581 = vunpack.c.h.b16 %v1134
        %v5582 = vunpack.c.l.b16 %v1135
        %v5583 = vunpack.c.l.b16 %v1136
        %v5584 = vunpack.c.h.b16 %v1136
        %v5585 = vunpack.c.l.b16 %v1137
        %v5586 = vunpack.c.l.b16 %v1138
        %v5587 = vunpack.c.h.b16 %v1138
        %v5588 = vunpack.c.l.b16 %v1139
        %v5589 = vunpack.c.l.b16 %v1140
        %v5590 = vunpack.c.h.b16 %v1140
        %v5591 = vunpack.c.l.b16 %v1141
        %v5592 = vunpack.c.l.b16 %v1142
        %v5593 = vunpack.c.h.b16 %v1142
        %v5594 = vunpack.c.l.b16 %v1143
        %v5595 = vunpack.c.l.b16 %v1144
        %v5596 = vunpack.c.h.b16 %v1144
        %v5597 = vunpack.c.l.b16 %v1145
        %v5598 = vunpack.c.l.b16 %v1146
        %v5599 = vunpack.c.h.b16 %v1146
        %v5600 = vunpack.c.l.b16 %v1147
        %v5601 = vunpack.c.l.b16 %v1148
        %v5602 = vunpack.c.h.b16 %v1148
        %v5603 = vunpack.c.l.b16 %v1149
        %v5604 = vunpack.c.l.b16 %v1150
        %v5605 = vunpack.c.h.b16 %v1150
        %v5606 = vunpack.c.l.b16 %v1151
        %v5607 = vunpack.c.l.b16 %v1152
        %v5608 = vunpack.c.h.b16 %v1152
        %v5609 = vunpack.c.l.b16 %v1153
        %v5610 = vunpack.c.l.b16 %v1154
        %v5611 = vunpack.c.h.b16 %v1154
        %v5612 = vunpack.c.l.b16 %v1155
        %v5613 = vunpack.c.l.b16 %v1156
        %v5614 = vunpack.c.h.b16 %v1156
        %v5615 = vunpack.c.l.b16 %v1157
        %v5616 = vunpack.c.l.b16 %v1158
        %v5617 = vunpack.c.h.b16 %v1158
        %v5618 = vunpack.c.l.b16 %v1159
        %v5619 = vunpack.c.l.b16 %v1160
        %v5620 = vunpack.c.h.b16 %v1160
        %v5621 = vunpack.c.l.b16 %v1161
        %v5622 = vunpack.c.l.b16 %v1162
        %v5623 = vunpack.c.h.b16 %v1162
        %v5624 = vunpack.c.l.b16 %v1163
        %v5625 = vunpack.c.l.b16 %v1164
        %v5626 = vunpack.c.h.b16 %v1164
        %v5627 = vunpack.c.l.b16 %v1165
        %v5628 = vunpack.c.l.b16 %v1166
        %v5629 = vunpack.c.h.b16 %v1166
        %v5630 = vunpack.c.l.b16 %v1167
        %v5631 = vunpack.c.l.b16 %v1168
        %v5632 = vunpack.c.h.b16 %v1168
        %v5633 = vunpack.c.l.b16 %v1169
        %v5634 = vunpack.c.l.b16 %v1170
        %v5635 = vunpack.c.h.b16 %v1170
        %v5636 = vunpack.c.l.b16 %v1171
        %v5637 = vunpack.c.l.b16 %v1172
        %v5638 = vunpack.c.h.b16 %v1172
        %v5639 = vunpack.c.l.b16 %v1173
        %v5640 = vunpack.c.l.b16 %v1174
        %v5641 = vunpack.c.h.b16 %v1174
        %v5642 = vunpack.c.l.b16 %v1175
        %v5643 = vunpack.c.l.b16 %v1176
        %v5644 = vunpack.c.h.b16 %v1176
        %v5645 = vunpack.c.l.b16 %v1177
        %v5646 = vunpack.c.l.b16 %v1178
        %v5647 = vunpack.c.h.b16 %v1178
        %v5648 = vunpack.c.l.b16 %v1179
        %v5649 = vunpack.c.l.b16 %v1180
        %v5650 = vunpack.c.h.b16 %v1180
        %v5651 = vunpack.c.l.b16 %v1181
        %v5652 = vunpack.c.l.b16 %v1182
        %v5653 = vunpack.c.h.b16 %v1182
        %v5654 = vunpack.c.l.b16 %v1183
        %v5655 = vunpack.c.l.b16 %v1184
        %v5656 = vunpack.c.h.b16 %v1184
        %v5657 = vunpack.c.l.b16 %v1185
        %v5658 = vunpack.c.l.b16 %v1186
        %v5659 = vunpack.c.h.b16 %v1186
        %v5660 = vunpack.c.l.b16 %v1187
        %v5661 = vunpack.c.l.b16 %v1188
        %v5662 = vunpack.c.h.b16 %v1188
        %v5663 = vunpack.c.l.b16 %v1189
        %v5664 = vunpack.c.l.b16 %v1190
        %v5665 = vunpack.c.h.b16 %v1190
        %v5666 = vunpack.c.l.b16 %v1191
        %v5667 = vunpack.c.l.b16 %v1192
        %v5668 = vunpack.c.h.b16 %v1192
        %v5669 = vunpack.c.l.b16 %v1193
        %v5670 = vunpack.c.l.b16 %v1194
        %v5671 = vunpack.c.h.b16 %v1194
        %v5672 = vunpack.c.l.b16 %v1195
        %v5673 = vunpack.c.l.b16 %v1196
        %v5674 = vunpack.c.h.b16 %v1196
        %v5675 = vunpack.c.l.b16 %v1197
        %v5676 = vunpack.c.l.b16 %v1198
        %v5677 = vunpack.c.h.b16 %v1198
        %v5678 = vunpack.c.l.b16 %v1199
        %v5679 = vunpack.c.l.b16 %v1200
        %v5680 = vunpack.c.h.b16 %v1200
        %v5681 = vunpack.c.l.b16 %v1201
        %v5682 = vunpack.c.l.b16 %v1202
        %v5683 = vunpack.c.h.b16 %v1202
        %v5684 = vunpack.c.l.b16 %v1203
        %v5685 = vunpack.c.l.b16 %v1204
        %v5686 = vunpack.c.h.b16 %v1204
        %v5687 = vunpack.c.l.b16 %v1205
        %v5688 = vunpack.c.l.b16 %v1206
        %v5689 = vunpack.c.h.b16 %v1206
        %v5690 = vunpack.c.l.b16 %v1207
        %v5691 = vunpack.c.l.b16 %v1208
        %v5692 = vunpack.c.h.b16 %v1208
        %v5693 = vunpack.c.l.b16 %v1209
        %v5694 = vunpack.c.l.b16 %v1210
        %v5695 = vunpack.c.h.b16 %v1210
        %v5696 = vunpack.c.l.b16 %v1211
        %v5697 = vunpack.c.l.b16 %v1212
        %v5698 = vunpack.c.h.b16 %v1212
        %v5699 = vunpack.c.l.b16 %v1213
        %v5700 = vunpack.c.l.b16 %v1214
        %v5701 = vunpack.c.h.b16 %v1214
        %v5702 = vunpack.c.l.b16 %v1215
        %v5703 = vunpack.c.l.b16 %v1216
        %v5704 = vunpack.c.h.b16 %v1216
        %v5705 = vunpack.c.l.b16 %v1217
        %v5706 = vunpack.c.l.b16 %v1218
        %v5707 = vunpack.c.h.b16 %v1218
        %v5708 = vunpack.c.l.b16 %v1219
        %v5709 = vunpack.c.l.b16 %v1220
        %v5710 = vunpack.c.h.b16 %v1220
        %v5711 = vunpack.c.l.b16 %v1221
        %v5712 = vunpack.c.l.b16 %v1222
        %v5713 = vunpack.c.h.b16 %v1222
        %v5714 = vunpack.c.l.b16 %v1223
        %v5715 = vunpack.c.l.b16 %v1224
        %v5716 = vunpack.c.h.b16 %v1224
        %v5717 = vunpack.c.l.b16 %v1225
        %v5718 = vunpack.c.l.b16 %v1226
        %v5719 = vunpack.c.h.b16 %v1226
        %v5720 = vunpack.c.l.b16 %v1227
        %v5721 = vunpack.c.l.b16 %v1228
        %v5722 = vunpack.c.h.b16 %v1228
        %v5723 = vunpack.c.l.b16 %v1229
        %v5724 = vunpack.c.l.b16 %v1230
        %v5725 = vunpack.c.h.b16 %v1230
        %v5726 = vunpack.c.l.b16 %v1231
        %v5727 = vunpack.c.l.b16 %v1232
        %v5728 = vunpack.c.h.b16 %v1232
        %v5729 = vunpack.c.l.b16 %v1233
        %v5730 = vunpack.c.l.b16 %v1234
        %v5731 = vunpack.c.h.b16 %v1234
        %v5732 = vunpack.c.l.b16 %v1235
        %v5733 = vunpack.c.l.b16 %v1236
        %v5734 = vunpack.c.h.b16 %v1236
        %v5735 = vunpack.c.l.b16 %v1237
        %v5736 = vunpack.c.l.b16 %v1238
        %v5737 = vunpack.c.h.b16 %v1238
        %v5738 = vunpack.c.l.b16 %v1239
        %v5739 = vunpack.c.l.b16 %v1240
        %v5740 = vunpack.c.h.b16 %v1240
        %v5741 = vunpack.c.l.b16 %v1241
        %v5742 = vunpack.c.l.b16 %v1242
        %v5743 = vunpack.c.h.b16 %v1242
        %v5744 = vunpack.c.l.b16 %v1243
        %v5745 = vunpack.c.l.b16 %v1244
        %v5746 = vunpack.c.h.b16 %v1244
        %v5747 = vunpack.c.l.b16 %v1245
        %v5748 = vunpack.c.l.b16 %v1246
        %v5749 = vunpack.c.h.b16 %v1246
        %v5750 = vunpack.c.l.b16 %v1247
        %v5751 = vunpack.c.l.b16 %v1248
        %v5752 = vunpack.c.h.b16 %v1248
        %v5753 = vunpack.c.l.b16 %v1249
        %v5754 = vunpack.c.l.b16 %v1250
        %v5755 = vunpack.c.h.b16 %v1250
        %v5756 = vunpack.c.l.b16 %v1251
        %v5757 = vunpack.c.l.b16 %v1252
        %v5758 = vunpack.c.h.b16 %v1252
        %v5759 = vunpack.c.l.b16 %v1253
        %v5760 = vunpack.c.l.b16 %v1254
        %v5761 = vunpack.c.h.b16 %v1254
        %v5762 = vunpack.c.l.b16 %v1255
        %v5763 = vunpack.c.l.b16 %v1256
        %v5764 = vunpack.c.h.b16 %v1256
        %v5765 = vunpack.c.l.b16 %v1257
        %v5766 = vunpack.c.l.b16 %v1258
        %v5767 = vunpack.c.h.b16 %v1258
        %v5768 = vunpack.c.l.b16 %v1259
        %v5769 = vunpack.c.l.b16 %v1260
        %v5770 = vunpack.c.h.b16 %v1260
        %v5771 = vunpack.c.l.b16 %v1261
        %v5772 = vunpack.c.l.b16 %v1262
        %v5773 = vunpack.c.h.b16 %v1262
        %v5774 = vunpack.c.l.b16 %v1263
        %v5775 = vunpack.c.l.b16 %v1264
        %v5776 = vunpack.c.h.b16 %v1264
        %v5777 = vunpack.c.l.b16 %v1265
        %v5778 = vunpack.c.l.b16 %v1266
        %v5779 = vunpack.c.h.b16 %v1266
        %v5780 = vunpack.c.l.b16 %v1267
        %v5781 = vunpack.c.l.b16 %v1268
        %v5782 = vunpack.c.h.b16 %v1268
        %v5783 = vunpack.c.l.b16 %v1269
        %v5784 = vunpack.c.l.b16 %v1270
        %v5785 = vunpack.c.h.b16 %v1270
        %v5786 = vunpack.c.l.b16 %v1271
        %v5787 = vunpack.c.l.b16 %v1272
        %v5788 = vunpack.c.h.b16 %v1272
        %v5789 = vunpack.c.l.b16 %v1273
        %v5790 = vunpack.c.l.b16 %v1274
        %v5791 = vunpack.c.h.b16 %v1274
        %v5792 = vunpack.c.l.b16 %v1275
        %v5793 = vunpack.c.l.b16 %v1276
        %v5794 = vunpack.c.h.b16 %v1276
        %v5795 = vunpack.c.l.b16 %v1277
        %v5796 = vunpack.c.l.b16 %v1278
        %v5797 = vunpack.c.h.b16 %v1278
        %v5798 = vunpack.c.l.b16 %v1279
        %v5799 = vunpack.c.l.b16 %v1280
        %v5800 = vunpack.c.h.b16 %v1280
        %v5801 = vunpack.c.l.b16 %v1281
        %v5802 = vunpack.c.l.b16 %v1282
        %v5803 = vunpack.c.h.b16 %v1282
        %v5804 = vunpack.c.l.b16 %v1283
        %v5805 = vunpack.c.l.b16 %v1284
        %v5806 = vunpack.c.h.b16 %v1284
        %v5807 = vunpack.c.l.b16 %v1285
        %v5808 = vunpack.c.l.b16 %v1286
        %v5809 = vunpack.c.h.b16 %v1286
        %v5810 = vunpack.c.l.b16 %v1287
        %v5811 = vunpack.c.l.b16 %v1288
        %v5812 = vunpack.c.h.b16 %v1288
        %v5813 = vunpack.c.l.b16 %v1289
        %v5814 = vunpack.c.l.b16 %v1290
        %v5815 = vunpack.c.h.b16 %v1290
        %v5816 = vunpack.c.l.b16 %v1291
        %v5817 = vunpack.c.l.b16 %v1292
        %v5818 = vunpack.c.h.b16 %v1292
        %v5819 = vunpack.c.l.b16 %v1293
        %v5820 = vunpack.c.l.b16 %v1294
        %v5821 = vunpack.c.h.b16 %v1294
        %v5822 = vunpack.c.l.b16 %v1295
        %v5823 = vunpack.c.l.b16 %v1296
        %v5824 = vunpack.c.h.b16 %v1296
        %v5825 = vunpack.c.l.b16 %v1297
        %v5826 = vunpack.c.l.b16 %v1298
        %v5827 = vunpack.c.h.b16 %v1298
        %v5828 = vunpack.c.l.b16 %v1299
        %v5829 = vunpack.c.l.b16 %v1300
        %v5830 = vunpack.c.h.b16 %v1300
        %v5831 = vunpack.c.l.b16 %v1301
        %v5832 = vunpack.c.l.b16 %v1302
        %v5833 = vunpack.c.h.b16 %v1302
        %v5834 = vunpack.c.l.b16 %v1303
        %v5835 = vunpack.c.l.b16 %v1304
        %v5836 = vunpack.c.h.b16 %v1304
        %v5837 = vunpack.c.l.b16 %v1305
        %v5838 = vunpack.c.l.b16 %v1306
        %v5839 = vunpack.c.h.b16 %v1306
        %v5840 = vunpack.c.l.b16 %v1307
        %v5841 = vunpack.c.l.b16 %v1308
        %v5842 = vunpack.c.h.b16 %v1308
        %v5843 = vunpack.c.l.b16 %v1309
        %v5844 = vunpack.c.l.b16 %v1310
        %v5845 = vunpack.c.h.b16 %v1310
        %v5846 = vunpack.c.l.b16 %v1311
        %v5847 = vunpack.c.l.b16 %v1312
        %v5848 = vunpack.c.h.b16 %v1312
        %v5849 = vunpack.c.l.b16 %v1313
        %v5850 = vunpack.c.l.b16 %v1314
        %v5851 = vunpack.c.h.b16 %v1314
        %v5852 = vunpack.c.l.b16 %v1315
        %v5853 = vunpack.c.l.b16 %v1316
        %v5854 = vunpack.c.h.b16 %v1316
        %v5855 = vunpack.c.l.b16 %v1317
        %v5856 = vunpack.c.l.b16 %v1318
        %v5857 = vunpack.c.h.b16 %v1318
        %v5858 = vunpack.c.l.b16 %v1319
        %v5859 = vunpack.c.l.b16 %v1320
        %v5860 = vunpack.c.h.b16 %v1320
        %v5861 = vunpack.c.l.b16 %v1321
        %v5862 = vunpack.c.l.b16 %v1322
        %v5863 = vunpack.c.h.b16 %v1322
        %v5864 = vunpack.c.l.b16 %v1323
        %v5865 = vunpack.c.l.b16 %v1324
        %v5866 = vunpack.c.h.b16 %v1324
        %v5867 = vunpack.c.l.b16 %v1325
        %v5868 = vunpack.c.l.b16 %v1326
        %v5869 = vunpack.c.h.b16 %v1326
        %v5870 = vunpack.c.l.b16 %v1327
        %v5871 = vunpack.c.l.b16 %v1328
        %v5872 = vunpack.c.h.b16 %v1328
        %v5873 = vunpack.c.l.b16 %v1329
        %v5874 = vunpack.c.l.b16 %v1330
        %v5875 = vunpack.c.h.b16 %v1330
        %v5876 = vunpack.c.l.b16 %v1331
        %v5877 = vunpack.c.l.b16 %v1332
        %v5878 = vunpack.c.h.b16 %v1332
        %v5879 = vunpack.c.l.b16 %v1333
        %v5880 = vunpack.c.l.b16 %v1334
        %v5881 = vunpack.c.h.b16 %v1334
        %v5882 = vunpack.c.l.b16 %v1335
        %v5883 = vunpack.c.l.b16 %v1336
        %v5884 = vunpack.c.h.b16 %v1336
        %v5885 = vunpack.c.l.b16 %v1337
        %v5886 = vunpack.c.l.b16 %v1338
        %v5887 = vunpack.c.h.b16 %v1338
        %v5888 = vunpack.c.l.b16 %v1339
        %v5889 = vunpack.c.l.b16 %v1340
        %v5890 = vunpack.c.h.b16 %v1340
        %v5891 = vunpack.c.l.b16 %v1341
        %v5892 = vunpack.c.l.b16 %v1342
        %v5893 = vunpack.c.h.b16 %v1342
        %v5894 = vunpack.c.l.b16 %v1343
        %v5895 = vunpack.c.l.b16 %v1344
        %v5896 = vunpack.c.h.b16 %v1344
        %v5897 = vunpack.c.l.b16 %v1345
        %v5898 = vunpack.c.l.b16 %v1346
        %v5899 = vunpack.c.h.b16 %v1346
        %v5900 = vunpack.c.l.b16 %v1347
        %v5901 = vunpack.c.l.b16 %v1348
        %v5902 = vunpack.c.h.b16 %v1348
        %v5903 = vunpack.c.l.b16 %v1349
        %v5904 = vunpack.c.l.b16 %v1350
        %v5905 = vunpack.c.h.b16 %v1350
        %v5906 = vunpack.c.l.b16 %v1351
        %v5907 = vunpack.c.l.b16 %v1352
        %v5908 = vunpack.c.h.b16 %v1352
        %v5909 = vunpack.c.l.b16 %v1353
        %v5910 = vunpack.c.l.b16 %v1354
        %v5911 = vunpack.c.h.b16 %v1354
        %v5912 = vunpack.c.l.b16 %v1355
        %v5913 = vunpack.c.l.b16 %v1356
        %v5914 = vunpack.c.h.b16 %v1356
        %v5915 = vunpack.c.l.b16 %v1357
        %v5916 = vunpack.c.l.b16 %v1358
        %v5917 = vunpack.c.h.b16 %v1358
        %v5918 = vunpack.c.l.b16 %v1359
        %v5919 = vunpack.c.l.b16 %v1360
        %v5920 = vunpack.c.h.b16 %v1360
        %v5921 = vunpack.c.l.b16 %v1361
        %v5922 = vunpack.c.l.b16 %v1362
        %v5923 = vunpack.c.h.b16 %v1362
        %v5924 = vunpack.c.l.b16 %v1363
        %v5925 = vunpack.c.l.b16 %v1364
        %v5926 = vunpack.c.h.b16 %v1364
        %v5927 = vunpack.c.l.b16 %v1365
        %v5928 = vunpack.c.l.b16 %v1366
        %v5929 = vunpack.c.h.b16 %v1366
        %v5930 = vunpack.c.l.b16 %v1367
        %v5931 = vunpack.c.l.b16 %v1368
        %v5932 = vunpack.c.h.b16 %v1368
        %v5933 = vunpack.c.l.b16 %v1369
        %v5934 = vunpack.c.l.b16 %v1370
        %v5935 = vunpack.c.h.b16 %v1370
        %v5936 = vunpack.c.l.b16 %v1371
        %v5937 = vunpack.c.l.b16 %v1372
        %v5938 = vunpack.c.h.b16 %v1372
        %v5939 = vunpack.c.l.b16 %v1373
        %v5940 = vunpack.c.l.b16 %v1374
        %v5941 = vunpack.c.h.b16 %v1374
        %v5942 = vunpack.c.l.b16 %v1375
        %v5943 = vunpack.c.l.b16 %v1376
        %v5944 = vunpack.c.h.b16 %v1376
        %v5945 = vunpack.c.l.b16 %v1377
        %v5946 = vunpack.c.l.b16 %v1378
        %v5947 = vunpack.c.h.b16 %v1378
        %v5948 = vunpack.c.l.b16 %v1379
        %v5949 = vunpack.c.l.b16 %v1380
        %v5950 = vunpack.c.h.b16 %v1380
        %v5951 = vunpack.c.l.b16 %v1381
        %v5952 = vunpack.c.l.b16 %v1382
        %v5953 = vunpack.c.h.b16 %v1382
        %v5954 = vunpack.c.l.b16 %v1383
        %v5955 = vunpack.c.l.b16 %v1384
        %v5956 = vunpack.c.h.b16 %v1384
        %v5957 = vunpack.c.l.b16 %v1385
        %v5958 = vunpack.c.l.b16 %v1386
        %v5959 = vunpack.c.h.b16 %v1386
        %v5960 = vunpack.c.l.b16 %v1387
        %v5961 = vunpack.c.l.b16 %v1388
        %v5962 = vunpack.c.h.b16 %v1388
        %v5963 = vunpack.c.l.b16 %v1389
        %v5964 = vunpack.c.l.b16 %v1390
        %v5965 = vunpack.c.h.b16 %v1390
        %v5966 = vunpack.c.l.b16 %v1391
        %v5967 = vunpack.c.l.b16 %v1392
        %v5968 = vunpack.c.h.b16 %v1392
        %v5969 = vunpack.c.l.b16 %v1393
        %v5970 = vunpack.c.l.b16 %v1394
        %v5971 = vunpack.c.h.b16 %v1394
        %v5972 = vunpack.c.l.b16 %v1395
        %v5973 = vunpack.c.l.b16 %v1396
        %v5974 = vunpack.c.h.b16 %v1396
        %v5975 = vunpack.c.l.b16 %v1397
        %v5976 = vunpack.c.l.b16 %v1398
        %v5977 = vunpack.c.h.b16 %v1398
        %v5978 = vunpack.c.l.b16 %v1399
        %v5979 = vunpack.c.l.b16 %v1400
        %v5980 = vunpack.c.h.b16 %v1400
        %v5981 = vunpack.c.l.b16 %v1401
        %v5982 = vunpack.c.l.b16 %v1402
        %v5983 = vunpack.c.h.b16 %v1402
        %v5984 = vunpack.c.l.b16 %v1403
        %v5985 = vunpack.c.l.b16 %v1404
        %v5986 = vunpack.c.h.b16 %v1404
        %v5987 = vunpack.c.l.b16 %v1405
        %v5988 = vunpack.c.l.b16 %v1406
        %v5989 = vunpack.c.h.b16 %v1406
        %v5990 = vunpack.c.l.b16 %v1407
        %v5991 = vunpack.c.l.b16 %v1408
        %v5992 = vunpack.c.h.b16 %v1408
        %v5993 = vunpack.c.l.b16 %v1409
        %v5994 = vunpack.c.l.b16 %v1410
        %v5995 = vunpack.c.h.b16 %v1410
        %v5996 = vunpack.c.l.b16 %v1411
        %v5997 = vunpack.c.l.b16 %v1412
        %v5998 = vunpack.c.h.b16 %v1412
        %v5999 = vunpack.c.l.b16 %v1413
        %v6000 = vunpack.c.l.b16 %v1414
        %v6001 = vunpack.c.h.b16 %v1414
        %v6002 = vunpack.c.l.b16 %v1415
        %v6003 = vunpack.c.l.b16 %v1416
        %v6004 = vunpack.c.h.b16 %v1416
        %v6005 = vunpack.c.l.b16 %v1417
        %v6006 = vunpack.c.l.b16 %v1418
        %v6007 = vunpack.c.h.b16 %v1418
        %v6008 = vunpack.c.l.b16 %v1419
        %v6009 = vunpack.c.l.b16 %v1420
        %v6010 = vunpack.c.h.b16 %v1420
        %v6011 = vunpack.c.l.b16 %v1421
        %v6012 = vunpack.c.l.b16 %v1422
        %v6013 = vunpack.c.h.b16 %v1422
        %v6014 = vunpack.c.l.b16 %v1423
        %v6015 = vunpack.c.l.b16 %v1424
        %v6016 = vunpack.c.h.b16 %v1424
        %v6017 = vunpack.c.l.b16 %v1425
        %v6018 = vunpack.c.l.b16 %v1426
        %v6019 = vunpack.c.h.b16 %v1426
        %v6020 = vunpack.c.l.b16 %v1427
        %v6021 = vunpack.c.l.b16 %v1428
        %v6022 = vunpack.c.h.b16 %v1428
        %v6023 = vunpack.c.l.b16 %v1429
        %v6024 = vunpack.c.l.b16 %v1430
        %v6025 = vunpack.c.h.b16 %v1430
        %v6026 = vunpack.c.l.b16 %v1431
        %v6027 = vunpack.c.l.b16 %v1432
        %v6028 = vunpack.c.h.b16 %v1432
        %v6029 = vunpack.c.l.b16 %v1433
        %v6030 = vunpack.c.l.b16 %v1434
        %v6031 = vunpack.c.h.b16 %v1434
        %v6032 = vunpack.c.l.b16 %v1435
        %v6033 = vunpack.c.l.b16 %v1436
        %v6034 = vunpack.c.h.b16 %v1436
        %v6035 = vunpack.c.l.b16 %v1437
        %v6036 = vunpack.c.l.b16 %v1438
        %v6037 = vunpack.c.h.b16 %v1438
        %v6038 = vunpack.c.l.b16 %v1439
        %v6039 = vunpack.c.l.b16 %v1440
        %v6040 = vunpack.c.h.b16 %v1440
        %v6041 = vunpack.c.l.b16 %v1441
        %v6042 = vunpack.c.l.b16 %v1442
        %v6043 = vunpack.c.h.b16 %v1442
        %v6044 = vunpack.c.l.b16 %v1443
        %v6045 = vunpack.c.l.b16 %v1444
        %v6046 = vunpack.c.h.b16 %v1444
        %v6047 = vunpack.c.l.b16 %v1445
        %v6048 = vunpack.c.l.b16 %v1446
        %v6049 = vunpack.c.h.b16 %v1446
        %v6050 = vunpack.c.l.b16 %v1447
        %v6051 = vunpack.c.l.b16 %v1448
        %v6052 = vunpack.c.h.b16 %v1448
        %v6053 = vunpack.c.l.b16 %v1449
        %v6054 = vunpack.c.l.b16 %v1450
        %v6055 = vunpack.c.h.b16 %v1450
        %v6056 = vunpack.c.l.b16 %v1451
        %v6057 = vunpack.c.l.b16 %v1452
        %v6058 = vunpack.c.h.b16 %v1452
        %v6059 = vunpack.c.l.b16 %v1453
        %v6060 = vunpack.c.l.b16 %v1454
        %v6061 = vunpack.c.h.b16 %v1454
        %v6062 = vunpack.c.l.b16 %v1455
        %v6063 = vunpack.c.l.b16 %v1456
        %v6064 = vunpack.c.h.b16 %v1456
        %v6065 = vunpack.c.l.b16 %v1457
        %v6066 = vunpack.c.l.b16 %v1458
        %v6067 = vunpack.c.h.b16 %v1458
        %v6068 = vunpack.c.l.b16 %v1459
        %v6069 = vunpack.c.l.b16 %v1460
        %v6070 = vunpack.c.h.b16 %v1460
        %v6071 = vunpack.c.l.b16 %v1461
        %v6072 = vunpack.c.l.b16 %v1462
        %v6073 = vunpack.c.h.b16 %v1462
        %v6074 = vunpack.c.l.b16 %v1463
        %v6075 = vunpack.c.l.b16 %v1464
        %v6076 = vunpack.c.h.b16 %v1464
        %v6077 = vunpack.c.l.b16 %v1465
        %v6078 = vunpack.c.l.b16 %v1466
        %v6079 = vunpack.c.h.b16 %v1466
        %v6080 = vunpack.c.l.b16 %v1467
        %v6081 = vunpack.c.l.b16 %v1468
        %v6082 = vunpack.c.h.b16 %v1468
        %v6083 = vunpack.c.l.b16 %v1469
        %v6084 = vunpack.c.l.b16 %v1470
        %v6085 = vunpack.c.h.b16 %v1470
        %v6086 = vunpack.c.l.b16 %v1471
        %v6087 = vunpack.c.l.b16 %v1472
        %v6088 = vunpack.c.h.b16 %v1472
        %v6089 = vunpack.c.l.b16 %v1473
        %v6090 = vunpack.c.l.b16 %v1474
        %v6091 = vunpack.c.h.b16 %v1474
        %v6092 = vunpack.c.l.b16 %v1475
        %v6093 = vunpack.c.l.b16 %v1476
        %v6094 = vunpack.c.h.b16 %v1476
        %v6095 = vunpack.c.l.b16 %v1477
        %v6096 = vunpack.c.l.b16 %v1478
        %v6097 = vunpack.c.h.b16 %v1478
        %v6098 = vunpack.c.l.b16 %v1479
        %v6099 = vunpack.c.l.b16 %v1480
        %v6100 = vunpack.c.h.b16 %v1480
        %v6101 = vunpack.c.l.b16 %v1481
        %v6102 = vunpack.c.l.b16 %v1482
        %v6103 = vunpack.c.h.b16 %v1482
        %v6104 = vunpack.c.l.b16 %v1483
        %v6105 = vunpack.c.l.b16 %v1484
        %v6106 = vunpack.c.h.b16 %v1484
        %v6107 = vunpack.c.l.b16 %v1485
        %v6108 = vunpack.c.l.b16 %v1486
        %v6109 = vunpack.c.h.b16 %v1486
        %v6110 = vunpack.c.l.b16 %v1487
        %v6111 = vunpack.c.l.b16 %v1488
        %v6112 = vunpack.c.h.b16 %v1488
        %v6113 = vunpack.c.l.b16 %v1489
        %v6114 = vunpack.c.l.b16 %v1490
        %v6115 = vunpack.c.h.b16 %v1490
        %v6116 = vunpack.c.l.b16 %v1491
        %v6117 = vunpack.c.l.b16 %v1492
        %v6118 = vunpack.c.h.b16 %v1492
        %v6119 = vunpack.c.l.b16 %v1493
        %v6120 = vunpack.c.l.b16 %v1494
        %v6121 = vunpack.c.h.b16 %v1494
        %v6122 = vunpack.c.l.b16 %v1495
        %v6123 = vunpack.c.l.b16 %v1496
        %v6124 = vunpack.c.h.b16 %v1496
        %v6125 = vunpack.c.l.b16 %v1497
        %v6126 = vunpack.c.l.b16 %v1498
        %v6127 = vunpack.c.h.b16 %v1498
        %v6128 = vunpack.c.l.b16 %v1499
        %v6129 = vunpack.c.l.b16 %v1500
        %v6130 = vunpack.c.h.b16 %v1500
        %v6131 = vunpack.c.l.b16 %v1501
        %v6132 = vunpack.c.l.b16 %v1502
        %v6133 = vunpack.c.h.b16 %v1502
        %v6134 = vunpack.c.l.b16 %v1503
        %v6135 = vunpack.c.l.b16 %v1504
        %v6136 = vunpack.c.h.b16 %v1504
        %v6137 = vunpack.c.l.b16 %v1505
        %v6138 = vunpack.c.l.b16 %v1506
        %v6139 = vunpack.c.h.b16 %v1506
        %v6140 = vunpack.c.l.b16 %v1507
        %v6141 = vunpack.c.l.b16 %v1508
        %v6142 = vunpack.c.h.b16 %v1508
        %v6143 = vunpack.c.l.b16 %v1509
        %v6144 = vunpack.c.l.b16 %v1510
        %v6145 = vunpack.c.h.b16 %v1510
        %v6146 = vunpack.c.l.b16 %v1511
        %v6147 = vunpack.c.l.b16 %v1512
        %v6148 = vunpack.c.h.b16 %v1512
        %v6149 = vunpack.c.l.b16 %v1513
        %v6150 = vunpack.c.l.b16 %v1514
        %v6151 = vunpack.c.h.b16 %v1514
        %v6152 = vunpack.c.l.b16 %v1515
        %v6153 = vunpack.c.l.b16 %v1516
        %v6154 = vunpack.c.h.b16 %v1516
        %v6155 = vunpack.c.l.b16 %v1517
        %v6156 = vunpack.c.l.b16 %v1518
        %v6157 = vunpack.c.h.b16 %v1518
        %v6158 = vunpack.c.l.b16 %v1519
        %v6159 = vunpack.c.l.b16 %v1520
        %v6160 = vunpack.c.h.b16 %v1520
        %v6161 = vunpack.c.l.b16 %v1521
        %v6162 = vunpack.c.l.b16 %v1522
        %v6163 = vunpack.c.h.b16 %v1522
        %v6164 = vunpack.c.l.b16 %v1523
        %v6165 = vunpack.c.l.b16 %v1524
        %v6166 = vunpack.c.h.b16 %v1524
        %v6167 = vunpack.c.l.b16 %v1525
        %v6168 = vunpack.c.l.b16 %v1526
        %v6169 = vunpack.c.h.b16 %v1526
        %v6170 = vunpack.c.l.b16 %v1527
        %v6171 = vunpack.c.l.b16 %v1528
        %v6172 = vunpack.c.h.b16 %v1528
        %v6173 = vunpack.c.l.b16 %v1529
        %v6174 = vunpack.c.l.b16 %v1530
        %v6175 = vunpack.c.h.b16 %v1530
        %v6176 = vunpack.c.l.b16 %v1531
        %v6177 = vunpack.c.l.b16 %v1532
        %v6178 = vunpack.c.h.b16 %v1532
        %v6179 = vunpack.c.l.b16 %v1533
        %v6180 = vunpack.c.l.b16 %v1534
        %v6181 = vunpack.c.h.b16 %v1534
        %v6182 = vunpack.c.l.b16 %v1535
        %v6183 = vunpack.c.l.b16 %v1536
        %v6184 = vunpack.c.h.b16 %v1536
        %v6185 = vunpack.c.l.b16 %v1537
        %v6186 = vunpack.c.l.b16 %v1538
        %v6187 = vunpack.c.h.b16 %v1538
        %v6188 = vunpack.c.l.b16 %v1539
        %v6189 = vunpack.c.l.b16 %v1540
        %v6190 = vunpack.c.h.b16 %v1540
        %v6191 = vunpack.c.l.b16 %v1541
        %v6192 = vunpack.c.l.b16 %v1542
        %v6193 = vunpack.c.h.b16 %v1542
        %v6194 = vunpack.c.l.b16 %v1543
        %v6195 = vunpack.c.l.b16 %v1544
        %v6196 = vunpack.c.h.b16 %v1544
        %v6197 = vunpack.c.l.b16 %v1545
        %v6198 = vunpack.c.l.b16 %v1546
        %v6199 = vunpack.c.h.b16 %v1546
        %v6200 = vunpack.c.l.b16 %v1547
        %v6201 = vunpack.c.l.b16 %v1548
        %v6202 = vunpack.c.h.b16 %v1548
        %v6203 = vunpack.c.l.b16 %v1549
        %v6204 = vunpack.c.l.b16 %v1550
        %v6205 = vunpack.c.h.b16 %v1550
        %v6206 = vunpack.c.l.b16 %v1551
        %v6207 = vunpack.c.l.b16 %v1552
        %v6208 = vunpack.c.h.b16 %v1552
        %v6209 = vunpack.c.l.b16 %v1553
        %v6210 = vunpack.c.l.b16 %v1554
        %v6211 = vunpack.c.h.b16 %v1554
        %v6212 = vunpack.c.l.b16 %v1555
        %v6213 = vunpack.c.l.b16 %v1556
        %v6214 = vunpack.c.h.b16 %v1556
        %v6215 = vunpack.c.l.b16 %v1557
        %v6216 = vunpack.c.l.b16 %v1558
        %v6217 = vunpack.c.h.b16 %v1558
        %v6218 = vunpack.c.l.b16 %v1559
        %v6219 = vunpack.c.l.b16 %v1560
        %v6220 = vunpack.c.h.b16 %v1560
        %v6221 = vunpack.c.l.b16 %v1561
        %v6222 = vunpack.c.l.b16 %v1562
        %v6223 = vunpack.c.h.b16 %v1562
        %v6224 = vunpack.c.l.b16 %v1563
        %v6225 = vunpack.c.l.b16 %v1564
        %v6226 = vunpack.c.h.b16 %v1564
        %v6227 = vunpack.c.l.b16 %v1565
        %v6228 = vunpack.c.l.b16 %v1566
        %v6229 = vunpack.c.h.b16 %v1566
        %v6230 = vunpack.c.l.b16 %v1567
        %v6231 = vunpack.c.l.b16 %v1568
        %v6232 = vunpack.c.h.b16 %v1568
        %v6233 = vunpack.c.l.b16 %v1569
        %v6234 = vunpack.c.l.b16 %v1570
        %v6235 = vunpack.c.h.b16 %v1570
        %v6236 = vunpack.c.l.b16 %v1571
        %v6237 = vunpack.c.l.b16 %v1572
        %v6238 = vunpack.c.h.b16 %v1572
        %v6239 = vunpack.c.l.b16 %v1573
        %v6240 = vunpack.c.l.b16 %v1574
        %v6241 = vunpack.c.h.b16 %v1574
        %v6242 = vunpack.c.l.b16 %v1575
        %v6243 = vunpack.c.l.b16 %v1576
        %v6244 = vunpack.c.h.b16 %v1576
        %v6245 = vunpack.c.l.b16 %v1577
        %v6246 = vunpack.c.l.b16 %v1578
        %v6247 = vunpack.c.h.b16 %v1578
        %v6248 = vunpack.c.l.b16 %v1579
        %v6249 = vunpack.c.l.b16 %v1580
        %v6250 = vunpack.c.h.b16 %v1580
        %v6251 = vunpack.c.l.b16 %v1581
        %v6252 = vunpack.c.l.b16 %v1582
        %v6253 = vunpack.c.h.b16 %v1582
        %v6254 = vunpack.c.l.b16 %v1583
        %v6255 = vunpack.c.l.b16 %v1584
        %v6256 = vunpack.c.h.b16 %v1584
        %v6257 = vunpack.c.l.b16 %v1585
        %v6258 = vunpack.c.l.b16 %v1586
        %v6259 = vunpack.c.h.b16 %v1586
        %v6260 = vunpack.c.l.b16 %v1587
        %v6261 = vunpack.c.l.b16 %v1588
        %v6262 = vunpack.c.h.b16 %v1588
        %v6263 = vunpack.c.l.b16 %v1589
        %v6264 = vunpack.c.l.b16 %v1590
        %v6265 = vunpack.c.h.b16 %v1590
        %v6266 = vunpack.c.l.b16 %v1591
        %v6267 = vunpack.c.l.b16 %v1592
        %v6268 = vunpack.c.h.b16 %v1592
        %v6269 = vunpack.c.l.b16 %v1593
        %v6270 = vunpack.c.l.b16 %v1594
        %v6271 = vunpack.c.h.b16 %v1594
        %v6272 = vunpack.c.l.b16 %v1595
        %v6273 = vunpack.c.l.b16 %v1596
        %v6274 = vunpack.c.h.b16 %v1596
        %v6275 = vunpack.c.l.b16 %v1597
        %v6276 = vunpack.c.l.b16 %v1598
        %v6277 = vunpack.c.h.b16 %v1598
        %v6278 = vunpack.c.l.b16 %v1599
        %v6279 = vunpack.c.l.b16 %v1600
        %v6280 = vunpack.c.h.b16 %v1600
        %v6281 = vunpack.c.l.b16 %v1601
        %v6282 = vunpack.c.l.b16 %v1602
        %v6283 = vunpack.c.h.b16 %v1602
        %v6284 = vunpack.c.l.b16 %v1603
        %v6285 = vunpack.c.l.b16 %v1604
        %v6286 = vunpack.c.h.b16 %v1604
        %v6287 = vunpack.c.l.b16 %v1605
        %v6288 = vunpack.c.l.b16 %v1606
        %v6289 = vunpack.c.h.b16 %v1606
        %v6290 = vunpack.c.l.b16 %v1607
        %v6291 = vunpack.c.l.b16 %v1608
        %v6292 = vunpack.c.h.b16 %v1608
        %v6293 = vunpack.c.l.b16 %v1609
        %v6294 = vunpack.c.l.b16 %v1610
        %v6295 = vunpack.c.h.b16 %v1610
        %v6296 = vunpack.c.l.b16 %v1611
        %v6297 = vunpack.c.l.b16 %v1612
        %v6298 = vunpack.c.h.b16 %v1612
        %v6299 = vunpack.c.l.b16 %v1613
        %v6300 = vunpack.c.l.b16 %v1614
        %v6301 = vunpack.c.h.b16 %v1614
        %v6302 = vunpack.c.l.b16 %v1615
        %v6303 = vunpack.c.l.b16 %v1616
        %v6304 = vunpack.c.h.b16 %v1616
        %v6305 = vunpack.c.l.b16 %v1617
        %v6306 = vunpack.c.l.b16 %v1618
        %v6307 = vunpack.c.h.b16 %v1618
        %v6308 = vunpack.c.l.b16 %v1619
        %v6309 = vunpack.c.l.b16 %v1620
        %v6310 = vunpack.c.h.b16 %v1620
        %v6311 = vunpack.c.l.b16 %v1621
        %v6312 = vunpack.c.l.b16 %v1622
        %v6313 = vunpack.c.h.b16 %v1622
        %v6314 = vunpack.c.l.b16 %v1623
        %v6315 = vunpack.c.l.b16 %v1624
        %v6316 = vunpack.c.h.b16 %v1624
        %v6317 = vunpack.c.l.b16 %v1625
        %v6318 = vunpack.c.l.b16 %v1626
        %v6319 = vunpack.c.h.b16 %v1626
        %v6320 = vunpack.c.l.b16 %v1627
        %v6321 = vunpack.c.l.b16 %v1628
        %v6322 = vunpack.c.h.b16 %v1628
        %v6323 = vunpack.c.l.b16 %v1629
        %v6324 = vunpack.c.l.b16 %v1630
        %v6325 = vunpack.c.h.b16 %v1630
        %v6326 = vunpack.c.l.b16 %v1631
        %v6327 = vunpack.c.l.b16 %v1632
        %v6328 = vunpack.c.h.b16 %v1632
        %v6329 = vunpack.c.l.b16 %v1633
        %v6330 = vunpack.c.l.b16 %v1634
        %v6331 = vunpack.c.h.b16 %v1634
        %v6332 = vunpack.c.l.b16 %v1635
        %v6333 = vunpack.c.l.b16 %v1636
        %v6334 = vunpack.c.h.b16 %v1636
        %v6335 = vunpack.c.l.b16 %v1637
        %v6336 = vunpack.c.l.b16 %v1638
        %v6337 = vunpack.c.h.b16 %v1638
        %v6338 = vunpack.c.l.b16 %v1639
        %v6339 = vunpack.c.l.b16 %v1640
        %v6340 = vunpack.c.h.b16 %v1640
        %v6341 = vunpack.c.l.b16 %v1641
        %v6342 = vunpack.c.l.b16 %v1642
        %v6343 = vunpack.c.h.b16 %v1642
        %v6344 = vunpack.c.l.b16 %v1643
        %v6345 = vunpack.c.l.b16 %v1644
        %v6346 = vunpack.c.h.b16 %v1644
        %v6347 = vunpack.c.l.b16 %v1645
        %v6348 = vunpack.c.l.b16 %v1646
        %v6349 = vunpack.c.h.b16 %v1646
        %v6350 = vunpack.c.l.b16 %v1647
        %v6351 = vunpack.c.l.b16 %v1648
        %v6352 = vunpack.c.h.b16 %v1648
        %v6353 = vunpack.c.l.b16 %v1649
        %v6354 = vunpack.c.l.b16 %v1650
        %v6355 = vunpack.c.h.b16 %v1650
        %v6356 = vunpack.c.l.b16 %v1651
        %v6357 = vunpack.c.l.b16 %v1652
        %v6358 = vunpack.c.h.b16 %v1652
        %v6359 = vunpack.c.l.b16 %v1653
        %v6360 = vunpack.c.l.b16 %v1654
        %v6361 = vunpack.c.h.b16 %v1654
        %v6362 = vunpack.c.l.b16 %v1655
        %v6363 = vunpack.c.l.b16 %v1656
        %v6364 = vunpack.c.h.b16 %v1656
        %v6365 = vunpack.c.l.b16 %v1657
        %v6366 = vunpack.c.l.b16 %v1658
        %v6367 = vunpack.c.h.b16 %v1658
        %v6368 = vunpack.c.l.b16 %v1659
        %v6369 = vunpack.c.l.b16 %v1660
        %v6370 = vunpack.c.h.b16 %v1660
        %v6371 = vunpack.c.l.b16 %v1661
        %v6372 = vunpack.c.l.b16 %v1662
        %v6373 = vunpack.c.h.b16 %v1662
        %v6374 = vunpack.c.l.b16 %v1663
        %v6375 = vunpack.c.l.b16 %v1664
        %v6376 = vunpack.c.h.b16 %v1664
        %v6377 = vunpack.c.l.b16 %v1665
        %v6378 = vunpack.c.l.b16 %v1666
        %v6379 = vunpack.c.h.b16 %v1666
        %v6380 = vunpack.c.l.b16 %v1667
        %v6381 = vunpack.c.l.b16 %v1668
        %v6382 = vunpack.c.h.b16 %v1668
        %v6383 = vunpack.c.l.b16 %v1669
        %v6384 = vunpack.c.l.b16 %v1670
        %v6385 = vunpack.c.h.b16 %v1670
        %v6386 = vunpack.c.l.b16 %v1671
        %v6387 = vunpack.c.l.b16 %v1672
        %v6388 = vunpack.c.h.b16 %v1672
        %v6389 = vunpack.c.l.b16 %v1673
        %v6390 = vunpack.c.l.b16 %v1674
        %v6391 = vunpack.c.h.b16 %v1674
        %v6392 = vunpack.c.l.b16 %v1675
        %v6393 = vunpack.c.l.b16 %v1676
        %v6394 = vunpack.c.h.b16 %v1676
        %v6395 = vunpack.c.l.b16 %v1677
        %v6396 = vunpack.c.l.b16 %v1678
        %v6397 = vunpack.c.h.b16 %v1678
        %v6398 = vunpack.c.l.b16 %v1679
        %v6399 = vunpack.c.l.b16 %v1680
        %v6400 = vunpack.c.h.b16 %v1680
        %v6401 = vunpack.c.l.b16 %v1681
        %v6402 = vunpack.c.l.b16 %v1682
        %v6403 = vunpack.c.h.b16 %v1682
        %v6404 = vunpack.c.l.b16 %v1683
        %v6405 = vunpack.c.l.b16 %v1684
        %v6406 = vunpack.c.h.b16 %v1684
        %v6407 = vunpack.c.l.b16 %v1685
        %v6408 = vunpack.c.l.b16 %v1686
        %v6409 = vunpack.c.h.b16 %v1686
        %v6410 = vunpack.c.l.b16 %v1687
        %v6411 = vunpack.c.l.b16 %v1688
        %v6412 = vunpack.c.h.b16 %v1688
        %v6413 = vunpack.c.l.b16 %v1689
        %v6414 = vunpack.c.l.b16 %v1690
        %v6415 = vunpack.c.h.b16 %v1690
        %v6416 = vunpack.c.l.b16 %v1691
        %v6417 = vunpack.c.l.b16 %v1692
        %v6418 = vunpack.c.h.b16 %v1692
        %v6419 = vunpack.c.l.b16 %v1693
        %v6420 = vunpack.c.l.b16 %v1694
        %v6421 = vunpack.c.h.b16 %v1694
        %v6422 = vunpack.c.l.b16 %v1695
        %v6423 = vunpack.c.l.b16 %v1696
        %v6424 = vunpack.c.h.b16 %v1696
        %v6425 = vunpack.c.l.b16 %v1697
        %v6426 = vunpack.c.l.b16 %v1698
        %v6427 = vunpack.c.h.b16 %v1698
        %v6428 = vunpack.c.l.b16 %v1699
        %v6429 = vunpack.c.l.b16 %v1700
        %v6430 = vunpack.c.h.b16 %v1700
        %v6431 = vunpack.c.l.b16 %v1701
        %v6432 = vunpack.c.l.b16 %v1702
        %v6433 = vunpack.c.h.b16 %v1702
        %v6434 = vunpack.c.l.b16 %v1703
        %v6435 = vunpack.c.l.b16 %v1704
        %v6436 = vunpack.c.h.b16 %v1704
        %v6437 = vunpack.c.l.b16 %v1705
        %v6438 = vunpack.c.l.b16 %v1706
        %v6439 = vunpack.c.h.b16 %v1706
        %v6440 = vunpack.c.l.b16 %v1707
        %v6441 = vunpack.c.l.b16 %v1708
        %v6442 = vunpack.c.h.b16 %v1708
        %v6443 = vunpack.c.l.b16 %v1709
        %v6444 = vunpack.c.l.b16 %v1710
        %v6445 = vunpack.c.h.b16 %v1710
        %v6446 = vunpack.c.l.b16 %v1711
        %v6447 = vunpack.c.l.b16 %v1712
        %v6448 = vunpack.c.h.b16 %v1712
        %v6449 = vunpack.c.l.b16 %v1713
        %v6450 = vunpack.c.l.b16 %v1714
        %v6451 = vunpack.c.h.b16 %v1714
        %v6452 = vunpack.c.l.b16 %v1715
        %v6453 = vunpack.c.l.b16 %v1716
        %v6454 = vunpack.c.h.b16 %v1716
        %v6455 = vunpack.c.l.b16 %v1717
        %v6456 = vunpack.c.l.b16 %v1718
        %v6457 = vunpack.c.h.b16 %v1718
        %v6458 = vunpack.c.l.b16 %v1719
        %v6459 = vunpack.c.l.b16 %v1720
        %v6460 = vunpack.c.h.b16 %v1720
        %v6461 = vunpack.c.l.b16 %v1721
        %v6462 = vunpack.c.l.b16 %v1722
        %v6463 = vunpack.c.h.b16 %v1722
        %v6464 = vunpack.c.l.b16 %v1723
        %v6465 = vunpack.c.l.b16 %v1724
        %v6466 = vunpack.c.h.b16 %v1724
        %v6467 = vunpack.c.l.b16 %v1725
        %v6468 = vunpack.c.l.b16 %v1726
        %v6469 = vunpack.c.h.b16 %v1726
        %v6470 = vunpack.c.l.b16 %v1727
        %v6471 = vunpack.c.l.b16 %v1728
        %v6472 = vunpack.c.h.b16 %v1728
        %v6473 = vunpack.c.l.b16 %v1729
        %v6474 = vunpack.c.l.b16 %v1730
        %v6475 = vunpack.c.h.b16 %v1730
        %v6476 = vunpack.c.l.b16 %v1731
        %v6477 = vunpack.c.l.b16 %v1732
        %v6478 = vunpack.c.h.b16 %v1732
        %v6479 = vunpack.c.l.b16 %v1733
        %v6480 = vunpack.c.l.b16 %v1734
        %v6481 = vunpack.c.h.b16 %v1734
        %v6482 = vunpack.c.l.b16 %v1735
        %v6483 = vunpack.c.l.b16 %v1736
        %v6484 = vunpack.c.h.b16 %v1736
        %v6485 = vunpack.c.l.b16 %v1737
        %v6486 = vunpack.c.l.b16 %v1738
        %v6487 = vunpack.c.h.b16 %v1738
        %v6488 = vunpack.c.l.b16 %v1739
        %v6489 = vunpack.c.l.b16 %v1740
        %v6490 = vunpack.c.h.b16 %v1740
        %v6491 = vunpack.c.l.b16 %v1741
        %v6492 = vunpack.c.l.b16 %v1742
        %v6493 = vunpack.c.h.b16 %v1742
        %v6494 = vunpack.c.l.b16 %v1743
        %v6495 = vunpack.c.l.b16 %v1744
        %v6496 = vunpack.c.h.b16 %v1744
        %v6497 = vunpack.c.l.b16 %v1745
        %v6498 = vunpack.c.l.b16 %v1746
        %v6499 = vunpack.c.h.b16 %v1746
        %v6500 = vunpack.c.l.b16 %v1747
        %v6501 = vunpack.c.l.b16 %v1748
        %v6502 = vunpack.c.h.b16 %v1748
        %v6503 = vunpack.c.l.b16 %v1749
        %v6504 = vunpack.c.l.b16 %v1750
        %v6505 = vunpack.c.h.b16 %v1750
        %v6506 = vunpack.c.l.b16 %v1751
        %v6507 = vunpack.c.l.b16 %v1752
        %v6508 = vunpack.c.h.b16 %v1752
        %v6509 = vunpack.c.l.b16 %v1753
        %v6510 = vunpack.c.l.b16 %v1754
        %v6511 = vunpack.c.h.b16 %v1754
        %v6512 = vunpack.c.l.b16 %v1755
        %v6513 = vunpack.c.l.b16 %v1756
        %v6514 = vunpack.c.h.b16 %v1756
        %v6515 = vunpack.c.l.b16 %v1757
        %v6516 = vunpack.c.l.b16 %v1758
        %v6517 = vunpack.c.h.b16 %v1758
        %v6518 = vunpack.c.l.b16 %v1759
        %v6519 = vunpack.c.l.b16 %v1760
        %v6520 = vunpack.c.h.b16 %v1760
        %v6521 = vunpack.c.l.b16 %v1761
        %v6522 = vunpack.c.l.b16 %v1762
        %v6523 = vunpack.c.h.b16 %v1762
        %v6524 = vunpack.c.l.b16 %v1763
        %v6525 = vunpack.c.l.b16 %v1764
        %v6526 = vunpack.c.h.b16 %v1764
        %v6527 = vunpack.c.l.b16 %v1765
        %v6528 = vunpack.c.l.b16 %v1766
        %v6529 = vunpack.c.h.b16 %v1766
        %v6530 = vunpack.c.l.b16 %v1767
        %v6531 = vunpack.c.l.b16 %v1768
        %v6532 = vunpack.c.h.b16 %v1768
        %v6533 = vunpack.c.l.b16 %v1769
        %v6534 = vunpack.c.l.b16 %v1770
        %v6535 = vunpack.c.h.b16 %v1770
        %v6536 = vunpack.c.l.b16 %v1771
        %v6537 = vunpack.c.l.b16 %v1772
        %v6538 = vunpack.c.h.b16 %v1772
        %v6539 = vunpack.c.l.b16 %v1773
        %v6540 = vunpack.c.l.b16 %v1774
        %v6541 = vunpack.c.h.b16 %v1774
        %v6542 = vunpack.c.l.b16 %v1775
        %v6543 = vunpack.c.l.b16 %v1776
        %v6544 = vunpack.c.h.b16 %v1776
        %v6545 = vunpack.c.l.b16 %v1777
        %v6546 = vunpack.c.l.b16 %v1778
        %v6547 = vunpack.c.h.b16 %v1778
        %v6548 = vunpack.c.l.b16 %v1779
        %v6549 = vunpack.c.l.b16 %v1780
        %v6550 = vunpack.c.h.b16 %v1780
        %v6551 = vunpack.c.l.b16 %v1781
        %v6552 = vunpack.c.l.b16 %v1782
        %v6553 = vunpack.c.h.b16 %v1782
        %v6554 = vunpack.c.l.b16 %v1783
        %v6555 = vunpack.c.l.b16 %v1784
        %v6556 = vunpack.c.h.b16 %v1784
        %v6557 = vunpack.c.l.b16 %v1785
        %v6558 = vunpack.c.l.b16 %v1786
        %v6559 = vunpack.c.h.b16 %v1786
        %v6560 = vunpack.c.l.b16 %v1787
        %v6561 = vunpack.c.l.b16 %v1788
        %v6562 = vunpack.c.h.b16 %v1788
        %v6563 = vunpack.c.l.b16 %v1789
        %v6564 = vunpack.c.l.b16 %v1790
        %v6565 = vunpack.c.h.b16 %v1790
        %v6566 = vunpack.c.l.b16 %v1791
        %v6567 = vunpack.c.l.b16 %v1792
        %v6568 = vunpack.c.h.b16 %v1792
        %v6569 = vunpack.c.l.b16 %v1793
        %v6570 = vunpack.c.l.b16 %v1794
        %v6571 = vunpack.c.h.b16 %v1794
        %v6572 = vunpack.c.l.b16 %v1795
        %v6573 = vunpack.c.l.b16 %v1796
        %v6574 = vunpack.c.h.b16 %v1796
        %v6575 = vunpack.c.l.b16 %v1797
        %v6576 = vunpack.c.l.b16 %v1798
        %v6577 = vunpack.c.h.b16 %v1798
        %v6578 = vunpack.c.l.b16 %v1799
        %v6579 = vunpack.c.l.b16 %v1800
        %v6580 = vunpack.c.h.b16 %v1800
        %v6581 = vunpack.c.l.b16 %v1801
        %v6582 = vunpack.c.l.b16 %v1802
        %v6583 = vunpack.c.h.b16 %v1802
        %v6584 = vunpack.c.l.b16 %v1803
        %v6585 = vunpack.c.l.b16 %v1804
        %v6586 = vunpack.c.h.b16 %v1804
        %v6587 = vunpack.c.l.b16 %v1805
        %v6588 = vunpack.c.l.b16 %v1806
        %v6589 = vunpack.c.h.b16 %v1806
        %v6590 = vunpack.c.l.b16 %v1807
        %v6591 = vunpack.c.l.b16 %v1808
        %v6592 = vunpack.c.h.b16 %v1808
        %v6593 = vunpack.c.l.b16 %v1809
        %v6594 = vunpack.c.l.b16 %v1810
        %v6595 = vunpack.c.h.b16 %v1810
        %v6596 = vunpack.c.l.b16 %v1811
        %v6597 = vunpack.c.l.b16 %v1812
        %v6598 = vunpack.c.h.b16 %v1812
        %v6599 = vunpack.c.l.b16 %v1813
        %v6600 = vunpack.c.l.b16 %v1814
        %v6601 = vunpack.c.h.b16 %v1814
        %v6602 = vunpack.c.l.b16 %v1815
        %v6603 = vunpack.c.l.b16 %v1816
        %v6604 = vunpack.c.h.b16 %v1816
        %v6605 = vunpack.c.l.b16 %v1817
        %v6606 = vunpack.c.l.b16 %v1818
        %v6607 = vunpack.c.h.b16 %v1818
        %v6608 = vunpack.c.l.b16 %v1819
        %v6609 = vunpack.c.l.b16 %v1820
        %v6610 = vunpack.c.h.b16 %v1820
        %v6611 = vunpack.c.l.b16 %v1821
        %v6612 = vunpack.c.l.b16 %v1822
        %v6613 = vunpack.c.h.b16 %v1822
        %v6614 = vunpack.c.l.b16 %v1823
        %v6615 = vunpack.c.l.b16 %v1824
        %v6616 = vunpack.c.h.b16 %v1824
        %v6617 = vunpack.c.l.b16 %v1825
        %v6618 = vunpack.c.l.b16 %v1826
        %v6619 = vunpack.c.h.b16 %v1826
        %v6620 = vunpack.c.l.b16 %v1827
        %v6621 = vunpack.c.l.b16 %v1828
        %v6622 = vunpack.c.h.b16 %v1828
        %v6623 = vunpack.c.l.b16 %v1829
        %v6624 = vunpack.c.l.b16 %v1830
        %v6625 = vunpack.c.h.b16 %v1830
        %v6626 = vunpack.c.l.b16 %v1831
        %v6627 = vunpack.c.l.b16 %v1832
        %v6628 = vunpack.c.h.b16 %v1832
        %v6629 = vunpack.c.l.b16 %v1833
        %v6630 = vunpack.c.l.b16 %v1834
        %v6631 = vunpack.c.h.b16 %v1834
        %v6632 = vunpack.c.l.b16 %v1835
        %v6633 = vunpack.c.l.b16 %v1836
        %v6634 = vunpack.c.h.b16 %v1836
        %v6635 = vunpack.c.l.b16 %v1837
        %v6636 = vunpack.c.l.b16 %v1838
        %v6637 = vunpack.c.h.b16 %v1838
        %v6638 = vunpack.c.l.b16 %v1839
        %v6639 = vunpack.c.l.b16 %v1840
        %v6640 = vunpack.c.h.b16 %v1840
        %v6641 = vunpack.c.l.b16 %v1841
        %v6642 = vunpack.c.l.b16 %v1842
        %v6643 = vunpack.c.h.b16 %v1842
        %v6644 = vunpack.c.l.b16 %v1843
        %v6645 = vunpack.c.l.b16 %v1844
        %v6646 = vunpack.c.h.b16 %v1844
        %v6647 = vunpack.c.l.b16 %v1845
        %v6648 = vunpack.c.l.b16 %v1846
        %v6649 = vunpack.c.h.b16 %v1846
        %v6650 = vunpack.c.l.b16 %v1847
        %v6651 = vunpack.c.l.b16 %v1848
        %v6652 = vunpack.c.h.b16 %v1848
        %v6653 = vunpack.c.l.b16 %v1849
        %v6654 = vunpack.c.l.b16 %v1850
        %v6655 = vunpack.c.h.b16 %v1850
        %v6656 = vunpack.c.l.b16 %v1851
        %v6657 = vunpack.c.l.b16 %v1852
        %v6658 = vunpack.c.h.b16 %v1852
        %v6659 = vunpack.c.l.b16 %v1853
        %v6660 = vunpack.c.l.b16 %v1854
        %v6661 = vunpack.c.h.b16 %v1854
        %v6662 = vunpack.c.l.b16 %v1855
        %v6663 = vunpack.c.l.b16 %v1856
        %v6664 = vunpack.c.h.b16 %v1856
        %v6665 = vunpack.c.l.b16 %v1857
        %v6666 = vunpack.c.l.b16 %v1858
        %v6667 = vunpack.c.h.b16 %v1858
        %v6668 = vunpack.c.l.b16 %v1859
        %v6669 = vunpack.c.l.b16 %v1860
        %v6670 = vunpack.c.h.b16 %v1860
        %v6671 = vunpack.c.l.b16 %v1861
        %v6672 = vunpack.c.l.b16 %v1862
        %v6673 = vunpack.c.h.b16 %v1862
        %v6674 = vunpack.c.l.b16 %v1863
        %v6675 = vunpack.c.l.b16 %v1864
        %v6676 = vunpack.c.h.b16 %v1864
        %v6677 = vunpack.c.l.b16 %v1865
        %v6678 = vunpack.c.l.b16 %v1866
        %v6679 = vunpack.c.h.b16 %v1866
        %v6680 = vunpack.c.l.b16 %v1867
        %v6681 = vunpack.c.l.b16 %v1868
        %v6682 = vunpack.c.h.b16 %v1868
        %v6683 = vunpack.c.l.b16 %v1869
        %v6684 = vunpack.c.l.b16 %v1870
        %v6685 = vunpack.c.h.b16 %v1870
        %v6686 = vunpack.c.l.b16 %v1871
        %v6687 = vunpack.c.l.b16 %v1872
        %v6688 = vunpack.c.h.b16 %v1872
        %v6689 = vunpack.c.l.b16 %v1873
        %v6690 = vunpack.c.l.b16 %v1874
        %v6691 = vunpack.c.h.b16 %v1874
        %v6692 = vunpack.c.l.b16 %v1875
        %v6693 = vunpack.c.l.b16 %v1876
        %v6694 = vunpack.c.h.b16 %v1876
        %v6695 = vunpack.c.l.b16 %v1877
        %v6696 = vunpack.c.l.b16 %v1878
        %v6697 = vunpack.c.h.b16 %v1878
        %v6698 = vunpack.c.l.b16 %v1879
        %v6699 = vunpack.c.l.b16 %v1880
        %v6700 = vunpack.c.h.b16 %v1880
        %v6701 = vunpack.c.l.b16 %v1881
        %v6702 = vunpack.c.l.b16 %v1882
        %v6703 = vunpack.c.h.b16 %v1882
        %v6704 = vunpack.c.l.b16 %v1883
        %v6705 = vunpack.c.l.b16 %v1884
        %v6706 = vunpack.c.h.b16 %v1884
        %v6707 = vunpack.c.l.b16 %v1885
        %v6708 = vunpack.c.l.b16 %v1886
        %v6709 = vunpack.c.h.b16 %v1886
        %v6710 = vunpack.c.l.b16 %v1887
        %v6711 = vunpack.c.l.b16 %v1888
        %v6712 = vunpack.c.h.b16 %v1888
        %v6713 = vunpack.c.l.b16 %v1889
        %v6714 = vunpack.c.l.b16 %v1890
        %v6715 = vunpack.c.h.b16 %v1890
        %v6716 = vunpack.c.l.b16 %v1891
        %v6717 = vunpack.c.l.b16 %v1892
        %v6718 = vunpack.c.h.b16 %v1892
        %v6719 = vunpack.c.l.b16 %v1893
        %v6720 = vunpack.c.l.b16 %v1894
        %v6721 = vunpack.c.h.b16 %v1894
        %v6722 = vunpack.c.l.b16 %v1895
        %v6723 = vunpack.c.l.b16 %v1896
        %v6724 = vunpack.c.h.b16 %v1896
        %v6725 = vunpack.c.l.b16 %v1897
        %v6726 = vunpack.c.l.b16 %v1898
        %v6727 = vunpack.c.h.b16 %v1898
        %v6728 = vunpack.c.l.b16 %v1899
        %v6729 = vunpack.c.l.b16 %v1900
        %v6730 = vunpack.c.h.b16 %v1900
        %v6731 = vunpack.c.l.b16 %v1901
        %v6732 = vunpack.c.l.b16 %v1902
        %v6733 = vunpack.c.h.b16 %v1902
        %v6734 = vunpack.c.l.b16 %v1903
        %v6735 = vunpack.c.l.b16 %v1904
        %v6736 = vunpack.c.h.b16 %v1904
        %v6737 = vunpack.c.l.b16 %v1905
        %v6738 = vunpack.c.l.b16 %v1906
        %v6739 = vunpack.c.h.b16 %v1906
        %v6740 = vunpack.c.l.b16 %v1907
        %v6741 = vunpack.c.l.b16 %v1908
        %v6742 = vunpack.c.h.b16 %v1908
        %v6743 = vunpack.c.l.b16 %v1909
        %v6744 = vunpack.c.l.b16 %v1910
        %v6745 = vunpack.c.h.b16 %v1910
        %v6746 = vunpack.c.l.b16 %v1911
        %v6747 = vunpack.c.l.b16 %v1912
        %v6748 = vunpack.c.h.b16 %v1912
        %v6749 = vunpack.c.l.b16 %v1913
        %v6750 = vunpack.c.l.b16 %v1914
        %v6751 = vunpack.c.h.b16 %v1914
        %v6752 = vunpack.c.l.b16 %v1915
        %v6753 = vunpack.c.l.b16 %v1916
        %v6754 = vunpack.c.h.b16 %v1916
        %v6755 = vunpack.c.l.b16 %v1917
        %v6756 = vunpack.c.l.b16 %v1918
        %v6757 = vunpack.c.h.b16 %v1918
        %v6758 = vunpack.c.l.b16 %v1919
        %v6759 = vunpack.c.l.b16 %v1920
        %v6760 = vunpack.c.h.b16 %v1920
        %v6761 = vunpack.c.l.b16 %v1921
        %v6762 = vunpack.c.l.b16 %v1922
        %v6763 = vunpack.c.h.b16 %v1922
        %v6764 = vunpack.c.l.b16 %v1923
        %v6765 = vunpack.c.l.b16 %v1924
        %v6766 = vunpack.c.h.b16 %v1924
        %v6767 = vunpack.c.l.b16 %v1925
        %v6768 = vunpack.c.l.b16 %v1926
        %v6769 = vunpack.c.h.b16 %v1926
        %v6770 = vunpack.c.l.b16 %v1927
        %v6771 = vunpack.c.l.b16 %v1928
        %v6772 = vunpack.c.h.b16 %v1928
        %v6773 = vunpack.c.l.b16 %v1929
        %v6774 = vunpack.c.l.b16 %v1930
        %v6775 = vunpack.c.h.b16 %v1930
        %v6776 = vunpack.c.l.b16 %v1931
        %v6777 = vunpack.c.l.b16 %v1932
        %v6778 = vunpack.c.h.b16 %v1932
        %v6779 = vunpack.c.l.b16 %v1933
        %v6780 = vunpack.c.l.b16 %v1934
        %v6781 = vunpack.c.h.b16 %v1934
        %v6782 = vunpack.c.l.b16 %v1935
        %v6783 = vunpack.c.l.b16 %v1936
        %v6784 = vunpack.c.h.b16 %v1936
        %v6785 = vunpack.c.l.b16 %v1937
        %v6786 = vunpack.c.l.b16 %v1938
        %v6787 = vunpack.c.h.b16 %v1938
        %v6788 = vunpack.c.l.b16 %v1939
        %v6789 = vunpack.c.l.b16 %v1940
        %v6790 = vunpack.c.h.b16 %v1940
        %v6791 = vunpack.c.l.b16 %v1941
        %v6792 = vunpack.c.l.b16 %v1942
        %v6793 = vunpack.c.h.b16 %v1942
        %v6794 = vunpack.c.l.b16 %v1943
        %v6795 = vunpack.c.l.b16 %v1944
        %v6796 = vunpack.c.h.b16 %v1944
        %v6797 = vunpack.c.l.b16 %v1945
        %v6798 = vunpack.c.l.b16 %v1946
        %v6799 = vunpack.c.h.b16 %v1946
        %v6800 = vunpack.c.l.b16 %v1947
        %v6801 = vunpack.c.l.b16 %v1948
        %v6802 = vunpack.c.h.b16 %v1948
        %v6803 = vunpack.c.l.b16 %v1949
        %v6804 = vunpack.c.l.b16 %v1950
        %v6805 = vunpack.c.h.b16 %v1950
        %v6806 = vunpack.c.l.b16 %v1951
        %v6807 = vunpack.c.l.b16 %v1952
        %v6808 = vunpack.c.h.b16 %v1952
        %v6809 = vunpack.c.l.b16 %v1953
        %v6810 = vunpack.c.l.b16 %v1954
        %v6811 = vunpack.c.h.b16 %v1954
        %v6812 = vunpack.c.l.b16 %v1955
        %v6813 = vunpack.c.l.b16 %v1956
        %v6814 = vunpack.c.h.b16 %v1956
        %v6815 = vunpack.c.l.b16 %v1957
        %v6816 = vunpack.c.l.b16 %v1958
        %v6817 = vunpack.c.h.b16 %v1958
        %v6818 = vunpack.c.l.b16 %v1959
        %v6819 = vunpack.c.l.b16 %v1960
        %v6820 = vunpack.c.h.b16 %v1960
        %v6821 = vunpack.c.l.b16 %v1961
        %v6822 = vunpack.c.l.b16 %v1962
        %v6823 = vunpack.c.h.b16 %v1962
        %v6824 = vunpack.c.l.b16 %v1963
        %v6825 = vunpack.c.l.b16 %v1964
        %v6826 = vunpack.c.h.b16 %v1964
        %v6827 = vunpack.c.l.b16 %v1965
        %v6828 = vunpack.c.l.b16 %v1966
        %v6829 = vunpack.c.h.b16 %v1966
        %v6830 = vunpack.c.l.b16 %v1967
        %v6831 = vunpack.c.l.b16 %v1968
        %v6832 = vunpack.c.h.b16 %v1968
        %v6833 = vunpack.c.l.b16 %v1969
        %v6834 = vunpack.c.l.b16 %v1970
        %v6835 = vunpack.c.h.b16 %v1970
        %v6836 = vunpack.c.l.b16 %v1971
        %v6837 = vunpack.c.l.b16 %v1972
        %v6838 = vunpack.c.h.b16 %v1972
        %v6839 = vunpack.c.l.b16 %v1973
        %v6840 = vunpack.c.l.b16 %v1974
        %v6841 = vunpack.c.h.b16 %v1974
        %v6842 = vunpack.c.l.b16 %v1975
        %v6843 = vunpack.c.l.b16 %v1976
        %v6844 = vunpack.c.h.b16 %v1976
        %v6845 = vunpack.c.l.b16 %v1977
        %v6846 = vunpack.c.l.b16 %v1978
        %v6847 = vunpack.c.h.b16 %v1978
        %v6848 = vunpack.c.l.b16 %v1979
        %v6849 = vunpack.c.l.b16 %v1980
        %v6850 = vunpack.c.h.b16 %v1980
        %v6851 = vunpack.c.l.b16 %v1981
        %v6852 = vunpack.c.l.b16 %v1982
        %v6853 = vunpack.c.h.b16 %v1982
        %v6854 = vunpack.c.l.b16 %v1983
        %v6855 = vunpack.c.l.b16 %v1984
        %v6856 = vunpack.c.h.b16 %v1984
        %v6857 = vunpack.c.l.b16 %v1985
        %v6858 = vunpack.c.l.b16 %v1986
        %v6859 = vunpack.c.h.b16 %v1986
        %v6860 = vunpack.c.l.b16 %v1987
        %v6861 = vunpack.c.l.b16 %v1988
        %v6862 = vunpack.c.h.b16 %v1988
        %v6863 = vunpack.c.l.b16 %v1989
        %v6864 = vunpack.c.l.b16 %v1990
        %v6865 = vunpack.c.h.b16 %v1990
        %v6866 = vunpack.c.l.b16 %v1991
        %v6867 = vunpack.c.l.b16 %v1992
        %v6868 = vunpack.c.h.b16 %v1992
        %v6869 = vunpack.c.l.b16 %v1993
        %v6870 = vunpack.c.l.b16 %v1994
        %v6871 = vunpack.c.h.b16 %v1994
        %v6872 = vunpack.c.l.b16 %v1995
        %v6873 = vunpack.c.l.b16 %v1996
        %v6874 = vunpack.c.h.b16 %v1996
        %v6875 = vunpack.c.l.b16 %v1997
        %v6876 = vunpack.c.l.b16 %v1998
        %v6877 = vunpack.c.h.b16 %v1998
        %v6878 = vunpack.c.l.b16 %v1999
        %v6879 = vunpack.c.l.b16 %v2000
        %v6880 = vunpack.c.h.b16 %v2000
        %v6881 = vunpack.c.l.b16 %v2001
        %v6882 = vunpack.c.l.b16 %v2002
        %v6883 = vunpack.c.h.b16 %v2002
        %v6884 = vunpack.c.l.b16 %v2003
        %v6885 = vunpack.c.l.b16 %v2004
        %v6886 = vunpack.c.h.b16 %v2004
        %v6887 = vunpack.c.l.b16 %v2005
        %v6888 = vunpack.c.l.b16 %v2006
        %v6889 = vunpack.c.h.b16 %v2006
        %v6890 = vunpack.c.l.b16 %v2007
        %v6891 = vunpack.c.l.b16 %v2008
        %v6892 = vunpack.c.h.b16 %v2008
        %v6893 = vunpack.c.l.b16 %v2009
        %v6894 = vunpack.c.l.b16 %v2010
        %v6895 = vunpack.c.h.b16 %v2010
        %v6896 = vunpack.c.l.b16 %v2011
        %v6897 = vunpack.c.l.b16 %v2012
        %v6898 = vunpack.c.h.b16 %v2012
        %v6899 = vunpack.c.l.b16 %v2013
        %v6900 = vunpack.c.l.b16 %v2014
        %v6901 = vunpack.c.h.b16 %v2014
        %v6902 = vunpack.c.l.b16 %v2015
        %v6903 = vunpack.c.l.b16 %v2016
        %v6904 = vunpack.c.h.b16 %v2016
        %v6905 = vunpack.c.l.b16 %v2017
        %v6906 = vunpack.c.l.b16 %v2018
        %v6907 = vunpack.c.h.b16 %v2018
        %v6908 = vunpack.c.l.b16 %v2019
        %v6909 = vunpack.c.l.b16 %v2020
        %v6910 = vunpack.c.h.b16 %v2020
        %v6911 = vunpack.c.l.b16 %v2021
        %v6912 = vunpack.c.l.b16 %v2022
        %v6913 = vunpack.c.h.b16 %v2022
        %v6914 = vunpack.c.l.b16 %v2023
        %v6915 = vunpack.c.l.b16 %v2024
        %v6916 = vunpack.c.h.b16 %v2024
        %v6917 = vunpack.c.l.b16 %v2025
        %v6918 = vunpack.c.l.b16 %v2026
        %v6919 = vunpack.c.h.b16 %v2026
        %v6920 = vunpack.c.l.b16 %v2027
        %v6921 = vunpack.c.l.b16 %v2028
        %v6922 = vunpack.c.h.b16 %v2028
        %v6923 = vunpack.c.l.b16 %v2029
        %v6924 = vunpack.c.l.b16 %v2030
        %v6925 = vunpack.c.h.b16 %v2030
        %v6926 = vunpack.c.l.b16 %v2031
        %v6927 = vunpack.c.l.b16 %v2032
        %v6928 = vunpack.c.h.b16 %v2032
        %v6929 = vunpack.c.l.b16 %v2033
        %v6930 = vunpack.c.l.b16 %v2034
        %v6931 = vunpack.c.h.b16 %v2034
        %v6932 = vunpack.c.l.b16 %v2035
        %v6933 = vunpack.c.l.b16 %v2036
        %v6934 = vunpack.c.h.b16 %v2036
        %v6935 = vunpack.c.l.b16 %v2037
        %v6936 = vunpack.c.l.b16 %v2038
        %v6937 = vunpack.c.h.b16 %v2038
        %v6938 = vunpack.c.l.b16 %v2039
        %v6939 = vunpack.c.l.b16 %v2040
        %v6940 = vunpack.c.h.b16 %v2040
        %v6941 = vunpack.c.l.b16 %v2041
        %v6942 = vunpack.c.l.b16 %v2042
        %v6943 = vunpack.c.h.b16 %v2042
        %v6944 = vunpack.c.l.b16 %v2043
        %v6945 = vunpack.c.l.b16 %v2044
        %v6946 = vunpack.c.h.b16 %v2044
        %v6947 = vunpack.c.l.b16 %v2045
        %v6948 = vunpack.c.l.b16 %v2046
        %v6949 = vunpack.c.h.b16 %v2046
        %v6950 = vunpack.c.l.b16 %v2047
        %v6951 = vunpack.c.l.b16 %v2048
        %v6952 = vunpack.c.h.b16 %v2048
        %v6953 = vunpack.c.l.b16 %v2049
        %v6954 = vunpack.c.l.b16 %v2050
        %v6955 = vunpack.c.h.b16 %v2050
        %v6956 = vunpack.c.l.b16 %v2051
        %v6957 = vunpack.c.l.b16 %v2052
        %v6958 = vunpack.c.h.b16 %v2052
        %v6959 = vunpack.c.l.b16 %v2053
        %v6960 = vunpack.c.l.b16 %v2054
        %v6961 = vunpack.c.h.b16 %v2054
        %v6962 = vunpack.c.l.b16 %v2055
        %v6963 = vunpack.c.l.b16 %v2056
        %v6964 = vunpack.c.h.b16 %v2056
        %v6965 = vunpack.c.l.b16 %v2057
        %v6966 = vunpack.c.l.b16 %v2058
        %v6967 = vunpack.c.h.b16 %v2058
        %v6968 = vunpack.c.l.b16 %v2059
        %v6969 = vunpack.c.l.b16 %v2060
        %v6970 = vunpack.c.h.b16 %v2060
        %v6971 = vunpack.c.l.b16 %v2061
        %v6972 = vunpack.c.l.b16 %v2062
        %v6973 = vunpack.c.h.b16 %v2062
        %v6974 = vunpack.c.l.b16 %v2063
        %v6975 = vunpack.c.l.b16 %v2064
        %v6976 = vunpack.c.h.b16 %v2064
        %v6977 = vunpack.c.l.b16 %v2065
        %v6978 = vunpack.c.l.b16 %v2066
        %v6979 = vunpack.c.h.b16 %v2066
        %v6980 = vunpack.c.l.b16 %v2067
        %v6981 = vunpack.c.l.b16 %v2068
        %v6982 = vunpack.c.h.b16 %v2068
        %v6983 = vunpack.c.l.b16 %v2069
        %v6984 = vunpack.c.l.b16 %v2070
        %v6985 = vunpack.c.h.b16 %v2070
        %v6986 = vunpack.c.l.b16 %v2071
        %v6987 = vunpack.c.l.b16 %v2072
        %v6988 = vunpack.c.h.b16 %v2072
        %v6989 = vunpack.c.l.b16 %v2073
        %v6990 = vunpack.c.l.b16 %v2074
        %v6991 = vunpack.c.h.b16 %v2074
        %v6992 = vunpack.c.l.b16 %v2075
        %v6993 = vunpack.c.l.b16 %v2076
        %v6994 = vunpack.c.h.b16 %v2076
        %v6995 = vunpack.c.l.b16 %v2077
        %v6996 = vunpack.c.l.b16 %v2078
        %v6997 = vunpack.c.h.b16 %v2078
        %v6998 = vunpack.c.l.b16 %v2079
        %v6999 = vunpack.c.l.b16 %v2080
        %v7000 = vunpack.c.h.b16 %v2080
        %v7001 = vunpack.c.l.b16 %v2081
        %v7002 = vunpack.c.l.b16 %v2082
        %v7003 = vunpack.c.h.b16 %v2082
        %v7004 = vunpack.c.l.b16 %v2083
        %v7005 = vunpack.c.l.b16 %v2084
        %v7006 = vunpack.c.h.b16 %v2084
        %v7007 = vunpack.c.l.b16 %v2085
        %v7008 = vunpack.c.l.b16 %v2086
        %v7009 = vunpack.c.h.b16 %v2086
        %v7010 = vunpack.c.l.b16 %v2087
        %v7011 = vunpack.c.l.b16 %v2088
        %v7012 = vunpack.c.h.b16 %v2088
        %v7013 = vunpack.c.l.b16 %v2089
        %v7014 = vunpack.c.l.b16 %v2090
        %v7015 = vunpack.c.h.b16 %v2090
        %v7016 = vunpack.c.l.b16 %v2091
        %v7017 = vunpack.c.l.b16 %v2092
        %v7018 = vunpack.c.h.b16 %v2092
        %v7019 = vunpack.c.l.b16 %v2093
        %v7020 = vunpack.c.l.b16 %v2094
        %v7021 = vunpack.c.h.b16 %v2094
        %v7022 = vunpack.c.l.b16 %v2095
        %v7023 = vunpack.c.l.b16 %v2096
        %v7024 = vunpack.c.h.b16 %v2096
        %v7025 = vunpack.c.l.b16 %v2097
        %v7026 = vunpack.c.l.b16 %v2098
        %v7027 = vunpack.c.h.b16 %v2098
        %v7028 = vunpack.c.l.b16 %v2099
        %v7029 = vunpack.c.l.b16 %v2100
        %v7030 = vunpack.c.h.b16 %v2100
        %v7031 = vunpack.c.l.b16 %v2101
        %v7032 = vunpack.c.l.b16 %v2102
        %v7033 = vunpack.c.h.b16 %v2102
        %v7034 = vunpack.c.l.b16 %v2103
        %v7035 = vunpack.c.l.b16 %v2104
        %v7036 = vunpack.c.h.b16 %v2104
        %v7037 = vunpack.c.l.b16 %v2105
        %v7038 = vunpack.c.l.b16 %v2106
        %v7039 = vunpack.c.h.b16 %v2106
        %v7040 = vunpack.c.l.b16 %v2107
        %v7041 = vunpack.c.l.b16 %v2108
        %v7042 = vunpack.c.h.b16 %v2108
        %v7043 = vunpack.c.l.b16 %v2109
        %v7044 = vunpack.c.l.b16 %v2110
        %v7045 = vunpack.c.h.b16 %v2110
        %v7046 = vunpack.c.l.b16 %v2111
        %v7047 = vunpack.c.l.b16 %v2112
        %v7048 = vunpack.c.h.b16 %v2112
        %v7049 = vunpack.c.l.b16 %v2113
        %v7050 = vunpack.c.l.b16 %v2114
        %v7051 = vunpack.c.h.b16 %v2114
        %v7052 = vunpack.c.l.b16 %v2115
        %v7053 = vunpack.c.l.b16 %v2116
        %v7054 = vunpack.c.h.b16 %v2116
        %v7055 = vunpack.c.l.b16 %v2117
        %v7056 = vunpack.c.l.b16 %v2118
        %v7057 = vunpack.c.h.b16 %v2118
        %v7058 = vunpack.c.l.b16 %v2119
        %v7059 = vunpack.c.l.b16 %v2120
        %v7060 = vunpack.c.h.b16 %v2120
        %v7061 = vunpack.c.l.b16 %v2121
        %v7062 = vunpack.c.l.b16 %v2122
        %v7063 = vunpack.c.h.b16 %v2122
        %v7064 = vunpack.c.l.b16 %v2123
        %v7065 = vunpack.c.l.b16 %v2124
        %v7066 = vunpack.c.h.b16 %v2124
        %v7067 = vunpack.c.l.b16 %v2125
        %v7068 = vunpack.c.l.b16 %v2126
        %v7069 = vunpack.c.h.b16 %v2126
        %v7070 = vunpack.c.l.b16 %v2127
        %v7071 = vunpack.c.l.b16 %v2128
        %v7072 = vunpack.c.h.b16 %v2128
        %v7073 = vunpack.c.l.b16 %v2129
        %v7074 = vunpack.c.l.b16 %v2130
        %v7075 = vunpack.c.h.b16 %v2130
        %v7076 = vunpack.c.l.b16 %v2131
        %v7077 = vunpack.c.l.b16 %v2132
        %v7078 = vunpack.c.h.b16 %v2132
        %v7079 = vunpack.c.l.b16 %v2133
        %v7080 = vunpack.c.l.b16 %v2134
        %v7081 = vunpack.c.h.b16 %v2134
        %v7082 = vunpack.c.l.b16 %v2135
        %v7083 = vunpack.c.l.b16 %v2136
        %v7084 = vunpack.c.h.b16 %v2136
        %v7085 = vunpack.c.l.b16 %v2137
        %v7086 = vunpack.c.l.b16 %v2138
        %v7087 = vunpack.c.h.b16 %v2138
        %v7088 = vunpack.c.l.b16 %v2139
        %v7089 = vunpack.c.l.b16 %v2140
        %v7090 = vunpack.c.h.b16 %v2140
        %v7091 = vunpack.c.l.b16 %v2141
        %v7092 = vunpack.c.l.b16 %v2142
        %v7093 = vunpack.c.h.b16 %v2142
        %v7094 = vunpack.c.l.b16 %v2143
        %v7095 = vunpack.c.l.b16 %v2144
        %v7096 = vunpack.c.h.b16 %v2144
        %v7097 = vunpack.c.l.b16 %v2145
        %v7098 = vunpack.c.l.b16 %v2146
        %v7099 = vunpack.c.h.b16 %v2146
        %v7100 = vunpack.c.l.b16 %v2147
        %v7101 = vunpack.c.l.b16 %v2148
        %v7102 = vunpack.c.h.b16 %v2148
        %v7103 = vunpack.c.l.b16 %v2149
        %v7104 = vunpack.c.l.b16 %v2150
        %v7105 = vunpack.c.h.b16 %v2150
        %v7106 = vunpack.c.l.b16 %v2151
        %v7107 = vunpack.c.l.b16 %v2152
        %v7108 = vunpack.c.h.b16 %v2152
        %v7109 = vunpack.c.l.b16 %v2153
        %v7110 = vunpack.c.l.b16 %v2154
        %v7111 = vunpack.c.h.b16 %v2154
        %v7112 = vunpack.c.l.b16 %v2155
        %v7113 = vunpack.c.l.b16 %v2156
        %v7114 = vunpack.c.h.b16 %v2156
        %v7115 = vunpack.c.l.b16 %v2157
        %v7116 = vunpack.c.l.b16 %v2158
        %v7117 = vunpack.c.h.b16 %v2158
        %v7118 = vunpack.c.l.b16 %v2159
        %v7119 = vunpack.c.l.b16 %v2160
        %v7120 = vunpack.c.h.b16 %v2160
        %v7121 = vunpack.c.l.b16 %v2161
        %v7122 = vunpack.c.l.b16 %v2162
        %v7123 = vunpack.c.h.b16 %v2162
        %v7124 = vunpack.c.l.b16 %v2163
        %v7125 = vunpack.c.l.b16 %v2164
        %v7126 = vunpack.c.h.b16 %v2164
        %v7127 = vunpack.c.l.b16 %v2165
        %v7128 = vunpack.c.l.b16 %v2166
        %v7129 = vunpack.c.h.b16 %v2166
        %v7130 = vunpack.c.l.b16 %v2167
        %v7131 = vunpack.c.l.b16 %v2168
        %v7132 = vunpack.c.h.b16 %v2168
        %v7133 = vunpack.c.l.b16 %v2169
        %v7134 = vunpack.c.l.b16 %v2170
        %v7135 = vunpack.c.h.b16 %v2170
        %v7136 = vunpack.c.l.b16 %v2171
        %v7137 = vunpack.c.l.b16 %v2172
        %v7138 = vunpack.c.h.b16 %v2172
        %v7139 = vunpack.c.l.b16 %v2173
        %v7140 = vunpack.c.l.b16 %v2174
        %v7141 = vunpack.c.h.b16 %v2174
        %v7142 = vunpack.c.l.b16 %v2175
        %v7143 = vunpack.c.l.b16 %v2176
        %v7144 = vunpack.c.h.b16 %v2176
        %v7145 = vunpack.c.l.b16 %v2177
        %v7146 = vunpack.c.l.b16 %v2178
        %v7147 = vunpack.c.h.b16 %v2178
        %v7148 = vunpack.c.l.b16 %v2179
        %v7149 = vunpack.c.l.b16 %v2180
        %v7150 = vunpack.c.h.b16 %v2180
        %v7151 = vunpack.c.l.b16 %v2181
        %v7152 = vunpack.c.l.b16 %v2182
        %v7153 = vunpack.c.h.b16 %v2182
        %v7154 = vunpack.c.l.b16 %v2183
        %v7155 = vunpack.c.l.b16 %v2184
        %v7156 = vunpack.c.h.b16 %v2184
        %v7157 = vunpack.c.l.b16 %v2185
        %v7158 = vunpack.c.l.b16 %v2186
        %v7159 = vunpack.c.h.b16 %v2186
        %v7160 = vunpack.c.l.b16 %v2187
        %v7161 = vunpack.c.l.b16 %v2188
        %v7162 = vunpack.c.h.b16 %v2188
        %v7163 = vunpack.c.l.b16 %v2189
        %v7164 = vunpack.c.l.b16 %v2190
        %v7165 = vunpack.c.h.b16 %v2190
        %v7166 = vunpack.c.l.b16 %v2191
        %v7167 = vunpack.c.l.b16 %v2192
        %v7168 = vunpack.c.h.b16 %v2192
        %v7169 = vunpack.c.l.b16 %v2193
        %v7170 = vunpack.c.l.b16 %v2194
        %v7171 = vunpack.c.h.b16 %v2194
        %v7172 = vunpack.c.l.b16 %v2195
        %v7173 = vunpack.c.l.b16 %v2196
        %v7174 = vunpack.c.h.b16 %v2196
        %v7175 = vunpack.c.l.b16 %v2197
        %v7176 = vunpack.c.l.b16 %v2198
        %v7177 = vunpack.c.h.b16 %v2198
        %v7178 = vunpack.c.l.b16 %v2199
        %v7179 = vunpack.c.l.b16 %v2200
        %v7180 = vunpack.c.h.b16 %v2200
        %v7181 = vunpack.c.l.b16 %v2201
        %v7182 = vunpack.c.l.b16 %v2202
        %v7183 = vunpack.c.h.b16 %v2202
        %v7184 = vunpack.c.l.b16 %v2203
        %v7185 = vunpack.c.l.b16 %v2204
        %v7186 = vunpack.c.h.b16 %v2204
        %v7187 = vunpack.c.l.b16 %v2205
        %v7188 = vunpack.c.l.b16 %v2206
        %v7189 = vunpack.c.h.b16 %v2206
        %v7190 = vunpack.c.l.b16 %v2207
        %v7191 = vunpack.c.l.b16 %v2208
        %v7192 = vunpack.c.h.b16 %v2208
        %v7193 = vunpack.c.l.b16 %v2209
        %v7194 = vunpack.c.l.b16 %v2210
        %v7195 = vunpack.c.h.b16 %v2210
        %v7196 = vunpack.c.l.b16 %v2211
        %v7197 = vunpack.c.l.b16 %v2212
        %v7198 = vunpack.c.h.b16 %v2212
        %v7199 = vunpack.c.l.b16 %v2213
        %v7200 = vunpack.c.l.b16 %v2214
        %v7201 = vunpack.c.h.b16 %v2214
        %v7202 = vunpack.c.l.b16 %v2215
        %v7203 = vunpack.c.l.b16 %v2216
        %v7204 = vunpack.c.h.b16 %v2216
        %v7205 = vunpack.c.l.b16 %v2217
        %v7206 = vunpack.c.l.b16 %v2218
        %v7207 = vunpack.c.h.b16 %v2218
        %v7208 = vunpack.c.l.b16 %v2219
        %v7209 = vunpack.c.l.b16 %v2220
        %v7210 = vunpack.c.h.b16 %v2220
        %v7211 = vunpack.c.l.b16 %v2221
        %v7212 = vunpack.c.l.b16 %v2222
        %v7213 = vunpack.c.h.b16 %v2222
        %v7214 = vunpack.c.l.b16 %v2223
        %v7215 = vunpack.c.l.b16 %v2224
        %v7216 = vunpack.c.h.b16 %v2224
        %v7217 = vunpack.c.l.b16 %v2225
        %v7218 = vunpack.c.l.b16 %v2226
        %v7219 = vunpack.c.h.b16 %v2226
        %v7220 = vunpack.c.l.b16 %v2227
        %v7221 = vunpack.c.l.b16 %v2228
        %v7222 = vunpack.c.h.b16 %v2228
        %v7223 = vunpack.c.l.b16 %v2229
        %v7224 = vunpack.c.l.b16 %v2230
        %v7225 = vunpack.c.h.b16 %v2230
        %v7226 = vunpack.c.l.b16 %v2231
        %v7227 = vunpack.c.l.b16 %v2232
        %v7228 = vunpack.c.h.b16 %v2232
        %v7229 = vunpack.c.l.b16 %v2233
        %v7230 = vunpack.c.l.b16 %v2234
        %v7231 = vunpack.c.h.b16 %v2234
        %v7232 = vunpack.c.l.b16 %v2235
        %v7233 = vunpack.c.l.b16 %v2236
        %v7234 = vunpack.c.h.b16 %v2236
        %v7235 = vunpack.c.l.b16 %v2237
        %v7236 = vunpack.c.l.b16 %v2238
        %v7237 = vunpack.c.h.b16 %v2238
        %v7238 = vunpack.c.l.b16 %v2239
        %v7239 = vunpack.c.l.b16 %v2240
        %v7240 = vunpack.c.h.b16 %v2240
        %v7241 = vunpack.c.l.b16 %v2241
        %v7242 = vunpack.c.l.b16 %v2242
        %v7243 = vunpack.c.h.b16 %v2242
        %v7244 = vunpack.c.l.b16 %v2243
        %v7245 = vunpack.c.l.b16 %v2244
        %v7246 = vunpack.c.h.b16 %v2244
        %v7247 = vunpack.c.l.b16 %v2245
        %v7248 = vunpack.c.l.b16 %v2246
        %v7249 = vunpack.c.h.b16 %v2246
        %v7250 = vunpack.c.l.b16 %v2247
        %v7251 = vunpack.c.l.b16 %v2248
        %v7252 = vunpack.c.h.b16 %v2248
        %v7253 = vunpack.c.l.b16 %v2249
        %v7254 = vunpack.c.l.b16 %v2250
        %v7255 = vunpack.c.h.b16 %v2250
        %v7256 = vunpack.c.l.b16 %v2251
        %v7257 = vunpack.c.l.b16 %v2252
        %v7258 = vunpack.c.h.b16 %v2252
        %v7259 = vunpack.c.l.b16 %v2253
        %v7260 = vunpack.c.l.b16 %v2254
        %v7261 = vunpack.c.h.b16 %v2254
        %v7262 = vunpack.c.l.b16 %v2255
        %v7263 = vunpack.c.l.b16 %v2256
        %v7264 = vunpack.c.h.b16 %v2256
        %v7265 = vunpack.c.l.b16 %v2257
        %v7266 = vunpack.c.l.b16 %v2258
        %v7267 = vunpack.c.h.b16 %v2258
        %v7268 = vunpack.c.l.b16 %v2259
        %v7269 = vunpack.c.l.b16 %v2260
        %v7270 = vunpack.c.h.b16 %v2260
        %v7271 = vunpack.c.l.b16 %v2261
        %v7272 = vpack.c.b16 %v4395, %v4392
        %v7273 = vpack.c.b16 %v4396, %v4393
        %v7274 = vpack.c.b16 %v4397, %v4394
        %v7275 = vpack.c.b16 %v4401, %v4398
        %v7276 = vpack.c.b16 %v4402, %v4399
        %v7277 = vpack.c.b16 %v4403, %v4400
        %v7278 = vpack.c.b16 %v4407, %v4404
        %v7279 = vpack.c.b16 %v4408, %v4405
        %v7280 = vpack.c.b16 %v4409, %v4406
        %v7281 = vpack.c.b16 %v4413, %v4410
        %v7282 = vpack.c.b16 %v4414, %v4411
        %v7283 = vpack.c.b16 %v4415, %v4412
        %v7284 = vpack.c.b16 %v4419, %v4416
        %v7285 = vpack.c.b16 %v4420, %v4417
        %v7286 = vpack.c.b16 %v4421, %v4418
        %v7287 = vpack.c.b16 %v4425, %v4422
        %v7288 = vpack.c.b16 %v4426, %v4423
        %v7289 = vpack.c.b16 %v4427, %v4424
        %v7290 = vpack.c.b16 %v4431, %v4428
        %v7291 = vpack.c.b16 %v4432, %v4429
        %v7292 = vpack.c.b16 %v4433, %v4430
        %v7293 = vpack.c.b16 %v4437, %v4434
        %v7294 = vpack.c.b16 %v4438, %v4435
        %v7295 = vpack.c.b16 %v4439, %v4436
        %v7296 = vpack.c.b16 %v4443, %v4440
        %v7297 = vpack.c.b16 %v4444, %v4441
        %v7298 = vpack.c.b16 %v4445, %v4442
        %v7299 = vpack.c.b16 %v4449, %v4446
        %v7300 = vpack.c.b16 %v4450, %v4447
        %v7301 = vpack.c.b16 %v4451, %v4448
        %v7302 = vpack.c.b16 %v4455, %v4452
        %v7303 = vpack.c.b16 %v4456, %v4453
        %v7304 = vpack.c.b16 %v4457, %v4454
        %v7305 = vpack.c.b16 %v4461, %v4458
        %v7306 = vpack.c.b16 %v4462, %v4459
        %v7307 = vpack.c.b16 %v4463, %v4460
        %v7308 = vpack.c.b16 %v4467, %v4464
        %v7309 = vpack.c.b16 %v4468, %v4465
        %v7310 = vpack.c.b16 %v4469, %v4466
        %v7311 = vpack.c.b16 %v4473, %v4470
        %v7312 = vpack.c.b16 %v4474, %v4471
        %v7313 = vpack.c.b16 %v4475, %v4472
        %v7314 = vpack.c.b16 %v4479, %v4476
        %v7315 = vpack.c.b16 %v4480, %v4477
        %v7316 = vpack.c.b16 %v4481, %v4478
        %v7317 = vpack.c.b16 %v4485, %v4482
        %v7318 = vpack.c.b16 %v4486, %v4483
        %v7319 = vpack.c.b16 %v4487, %v4484
        %v7320 = vpack.c.b16 %v4491, %v4488
        %v7321 = vpack.c.b16 %v4492, %v4489
        %v7322 = vpack.c.b16 %v4493, %v4490
        %v7323 = vpack.c.b16 %v4497, %v4494
        %v7324 = vpack.c.b16 %v4498, %v4495
        %v7325 = vpack.c.b16 %v4499, %v4496
        %v7326 = vpack.c.b16 %v4503, %v4500
        %v7327 = vpack.c.b16 %v4504, %v4501
        %v7328 = vpack.c.b16 %v4505, %v4502
        %v7329 = vpack.c.b16 %v4509, %v4506
        %v7330 = vpack.c.b16 %v4510, %v4507
        %v7331 = vpack.c.b16 %v4511, %v4508
        %v7332 = vpack.c.b16 %v4515, %v4512
        %v7333 = vpack.c.b16 %v4516, %v4513
        %v7334 = vpack.c.b16 %v4517, %v4514
        %v7335 = vpack.c.b16 %v4521, %v4518
        %v7336 = vpack.c.b16 %v4522, %v4519
        %v7337 = vpack.c.b16 %v4523, %v4520
        %v7338 = vpack.c.b16 %v4527, %v4524
        %v7339 = vpack.c.b16 %v4528, %v4525
        %v7340 = vpack.c.b16 %v4529, %v4526
        %v7341 = vpack.c.b16 %v4533, %v4530
        %v7342 = vpack.c.b16 %v4534, %v4531
        %v7343 = vpack.c.b16 %v4535, %v4532
        %v7344 = vpack.c.b16 %v4539, %v4536
        %v7345 = vpack.c.b16 %v4540, %v4537
        %v7346 = vpack.c.b16 %v4541, %v4538
        %v7347 = vpack.c.b16 %v4545, %v4542
        %v7348 = vpack.c.b16 %v4546, %v4543
        %v7349 = vpack.c.b16 %v4547, %v4544
        %v7350 = vpack.c.b16 %v4551, %v4548
        %v7351 = vpack.c.b16 %v4552, %v4549
        %v7352 = vpack.c.b16 %v4553, %v4550
        %v7353 = vpack.c.b16 %v4557, %v4554
        %v7354 = vpack.c.b16 %v4558, %v4555
        %v7355 = vpack.c.b16 %v4559, %v4556
        %v7356 = vpack.c.b16 %v4563, %v4560
        %v7357 = vpack.c.b16 %v4564, %v4561
        %v7358 = vpack.c.b16 %v4565, %v4562
        %v7359 = vpack.c.b16 %v4569, %v4566
        %v7360 = vpack.c.b16 %v4570, %v4567
        %v7361 = vpack.c.b16 %v4571, %v4568
        %v7362 = vpack.c.b16 %v4575, %v4572
        %v7363 = vpack.c.b16 %v4576, %v4573
        %v7364 = vpack.c.b16 %v4577, %v4574
        %v7365 = vpack.c.b16 %v4581, %v4578
        %v7366 = vpack.c.b16 %v4582, %v4579
        %v7367 = vpack.c.b16 %v4583, %v4580
        %v7368 = vpack.c.b16 %v4587, %v4584
        %v7369 = vpack.c.b16 %v4588, %v4585
        %v7370 = vpack.c.b16 %v4589, %v4586
        %v7371 = vpack.c.b16 %v4593, %v4590
        %v7372 = vpack.c.b16 %v4594, %v4591
        %v7373 = vpack.c.b16 %v4595, %v4592
        %v7374 = vpack.c.b16 %v4599, %v4596
        %v7375 = vpack.c.b16 %v4600, %v4597
        %v7376 = vpack.c.b16 %v4601, %v4598
        %v7377 = vpack.c.b16 %v4605, %v4602
        %v7378 = vpack.c.b16 %v4606, %v4603
        %v7379 = vpack.c.b16 %v4607, %v4604
        %v7380 = vpack.c.b16 %v4611, %v4608
        %v7381 = vpack.c.b16 %v4612, %v4609
        %v7382 = vpack.c.b16 %v4613, %v4610
        %v7383 = vpack.c.b16 %v4617, %v4614
        %v7384 = vpack.c.b16 %v4618, %v4615
        %v7385 = vpack.c.b16 %v4619, %v4616
        %v7386 = vpack.c.b16 %v4623, %v4620
        %v7387 = vpack.c.b16 %v4624, %v4621
        %v7388 = vpack.c.b16 %v4625, %v4622
        %v7389 = vpack.c.b16 %v4629, %v4626
        %v7390 = vpack.c.b16 %v4630, %v4627
        %v7391 = vpack.c.b16 %v4631, %v4628
        %v7392 = vpack.c.b16 %v4635, %v4632
        %v7393 = vpack.c.b16 %v4636, %v4633
        %v7394 = vpack.c.b16 %v4637, %v4634
        %v7395 = vpack.c.b16 %v4641, %v4638
        %v7396 = vpack.c.b16 %v4642, %v4639
        %v7397 = vpack.c.b16 %v4643, %v4640
        %v7398 = vpack.c.b16 %v4647, %v4644
        %v7399 = vpack.c.b16 %v4648, %v4645
        %v7400 = vpack.c.b16 %v4649, %v4646
        %v7401 = vpack.c.b16 %v4653, %v4650
        %v7402 = vpack.c.b16 %v4654, %v4651
        %v7403 = vpack.c.b16 %v4655, %v4652
        %v7404 = vpack.c.b16 %v4659, %v4656
        %v7405 = vpack.c.b16 %v4660, %v4657
        %v7406 = vpack.c.b16 %v4661, %v4658
        %v7407 = vpack.c.b16 %v4665, %v4662
        %v7408 = vpack.c.b16 %v4666, %v4663
        %v7409 = vpack.c.b16 %v4667, %v4664
        %v7410 = vpack.c.b16 %v4671, %v4668
        %v7411 = vpack.c.b16 %v4672, %v4669
        %v7412 = vpack.c.b16 %v4673, %v4670
        %v7413 = vpack.c.b16 %v4677, %v4674
        %v7414 = vpack.c.b16 %v4678, %v4675
        %v7415 = vpack.c.b16 %v4679, %v4676
        %v7416 = vpack.c.b16 %v4683, %v4680
        %v7417 = vpack.c.b16 %v4684, %v4681
        %v7418 = vpack.c.b16 %v4685, %v4682
        %v7419 = vpack.c.b16 %v4689, %v4686
        %v7420 = vpack.c.b16 %v4690, %v4687
        %v7421 = vpack.c.b16 %v4691, %v4688
        %v7422 = vpack.c.b16 %v4695, %v4692
        %v7423 = vpack.c.b16 %v4696, %v4693
        %v7424 = vpack.c.b16 %v4697, %v4694
        %v7425 = vpack.c.b16 %v4701, %v4698
        %v7426 = vpack.c.b16 %v4702, %v4699
        %v7427 = vpack.c.b16 %v4703, %v4700
        %v7428 = vpack.c.b16 %v4707, %v4704
        %v7429 = vpack.c.b16 %v4708, %v4705
        %v7430 = vpack.c.b16 %v4709, %v4706
        %v7431 = vpack.c.b16 %v4713, %v4710
        %v7432 = vpack.c.b16 %v4714, %v4711
        %v7433 = vpack.c.b16 %v4715, %v4712
        %v7434 = vpack.c.b16 %v4719, %v4716
        %v7435 = vpack.c.b16 %v4720, %v4717
        %v7436 = vpack.c.b16 %v4721, %v4718
        %v7437 = vpack.c.b16 %v4725, %v4722
        %v7438 = vpack.c.b16 %v4726, %v4723
        %v7439 = vpack.c.b16 %v4727, %v4724
        %v7440 = vpack.c.b16 %v4731, %v4728
        %v7441 = vpack.c.b16 %v4732, %v4729
        %v7442 = vpack.c.b16 %v4733, %v4730
        %v7443 = vpack.c.b16 %v4737, %v4734
        %v7444 = vpack.c.b16 %v4738, %v4735
        %v7445 = vpack.c.b16 %v4739, %v4736
        %v7446 = vpack.c.b16 %v4743, %v4740
        %v7447 = vpack.c.b16 %v4744, %v4741
        %v7448 = vpack.c.b16 %v4745, %v4742
        %v7449 = vpack.c.b16 %v4749, %v4746
        %v7450 = vpack.c.b16 %v4750, %v4747
        %v7451 = vpack.c.b16 %v4751, %v4748
        %v7452 = vpack.c.b16 %v4755, %v4752
        %v7453 = vpack.c.b16 %v4756, %v4753
        %v7454 = vpack.c.b16 %v4757, %v4754
        %v7455 = vpack.c.b16 %v4761, %v4758
        %v7456 = vpack.c.b16 %v4762, %v4759
        %v7457 = vpack.c.b16 %v4763, %v4760
        %v7458 = vpack.c.b16 %v4767, %v4764
        %v7459 = vpack.c.b16 %v4768, %v4765
        %v7460 = vpack.c.b16 %v4769, %v4766
        %v7461 = vpack.c.b16 %v4773, %v4770
        %v7462 = vpack.c.b16 %v4774, %v4771
        %v7463 = vpack.c.b16 %v4775, %v4772
        %v7464 = vpack.c.b16 %v4779, %v4776
        %v7465 = vpack.c.b16 %v4780, %v4777
        %v7466 = vpack.c.b16 %v4781, %v4778
        %v7467 = vpack.c.b16 %v4785, %v4782
        %v7468 = vpack.c.b16 %v4786, %v4783
        %v7469 = vpack.c.b16 %v4787, %v4784
        %v7470 = vpack.c.b16 %v4791, %v4788
        %v7471 = vpack.c.b16 %v4792, %v4789
        %v7472 = vpack.c.b16 %v4793, %v4790
        %v7473 = vpack.c.b16 %v4797, %v4794
        %v7474 = vpack.c.b16 %v4798, %v4795
        %v7475 = vpack.c.b16 %v4799, %v4796
        %v7476 = vpack.c.b16 %v4803, %v4800
        %v7477 = vpack.c.b16 %v4804, %v4801
        %v7478 = vpack.c.b16 %v4805, %v4802
        %v7479 = vpack.c.b16 %v4809, %v4806
        %v7480 = vpack.c.b16 %v4810, %v4807
        %v7481 = vpack.c.b16 %v4811, %v4808
        %v7482 = vpack.c.b16 %v4815, %v4812
        %v7483 = vpack.c.b16 %v4816, %v4813
        %v7484 = vpack.c.b16 %v4817, %v4814
        %v7485 = vpack.c.b16 %v4821, %v4818
        %v7486 = vpack.c.b16 %v4822, %v4819
        %v7487 = vpack.c.b16 %v4823, %v4820
        %v7488 = vpack.c.b16 %v4827, %v4824
        %v7489 = vpack.c.b16 %v4828, %v4825
        %v7490 = vpack.c.b16 %v4829, %v4826
        %v7491 = vpack.c.b16 %v4833, %v4830
        %v7492 = vpack.c.b16 %v4834, %v4831
        %v7493 = vpack.c.b16 %v4835, %v4832
        %v7494 = vpack.c.b16 %v4839, %v4836
        %v7495 = vpack.c.b16 %v4840, %v4837
        %v7496 = vpack.c.b16 %v4841, %v4838
        %v7497 = vpack.c.b16 %v4845, %v4842
        %v7498 = vpack.c.b16 %v4846, %v4843
        %v7499 = vpack.c.b16 %v4847, %v4844
        %v7500 = vpack.c.b16 %v4851, %v4848
        %v7501 = vpack.c.b16 %v4852, %v4849
        %v7502 = vpack.c.b16 %v4853, %v4850
        %v7503 = vpack.c.b16 %v4857, %v4854
        %v7504 = vpack.c.b16 %v4858, %v4855
        %v7505 = vpack.c.b16 %v4859, %v4856
        %v7506 = vpack.c.b16 %v4863, %v4860
        %v7507 = vpack.c.b16 %v4864, %v4861
        %v7508 = vpack.c.b16 %v4865, %v4862
        %v7509 = vpack.c.b16 %v4869, %v4866
        %v7510 = vpack.c.b16 %v4870, %v4867
        %v7511 = vpack.c.b16 %v4871, %v4868
        %v7512 = vpack.c.b16 %v4875, %v4872
        %v7513 = vpack.c.b16 %v4876, %v4873
        %v7514 = vpack.c.b16 %v4877, %v4874
        %v7515 = vpack.c.b16 %v4881, %v4878
        %v7516 = vpack.c.b16 %v4882, %v4879
        %v7517 = vpack.c.b16 %v4883, %v4880
        %v7518 = vpack.c.b16 %v4887, %v4884
        %v7519 = vpack.c.b16 %v4888, %v4885
        %v7520 = vpack.c.b16 %v4889, %v4886
        %v7521 = vpack.c.b16 %v4893, %v4890
        %v7522 = vpack.c.b16 %v4894, %v4891
        %v7523 = vpack.c.b16 %v4895, %v4892
        %v7524 = vpack.c.b16 %v4899, %v4896
        %v7525 = vpack.c.b16 %v4900, %v4897
        %v7526 = vpack.c.b16 %v4901, %v4898
        %v7527 = vpack.c.b16 %v4905, %v4902
        %v7528 = vpack.c.b16 %v4906, %v4903
        %v7529 = vpack.c.b16 %v4907, %v4904
        %v7530 = vpack.c.b16 %v4911, %v4908
        %v7531 = vpack.c.b16 %v4912, %v4909
        %v7532 = vpack.c.b16 %v4913, %v4910
        %v7533 = vpack.c.b16 %v4917, %v4914
        %v7534 = vpack.c.b16 %v4918, %v4915
        %v7535 = vpack.c.b16 %v4919, %v4916
        %v7536 = vpack.c.b16 %v4923, %v4920
        %v7537 = vpack.c.b16 %v4924, %v4921
        %v7538 = vpack.c.b16 %v4925, %v4922
        %v7539 = vpack.c.b16 %v4929, %v4926
        %v7540 = vpack.c.b16 %v4930, %v4927
        %v7541 = vpack.c.b16 %v4931, %v4928
        %v7542 = vpack.c.b16 %v4935, %v4932
        %v7543 = vpack.c.b16 %v4936, %v4933
        %v7544 = vpack.c.b16 %v4937, %v4934
        %v7545 = vpack.c.b16 %v4941, %v4938
        %v7546 = vpack.c.b16 %v4942, %v4939
        %v7547 = vpack.c.b16 %v4943, %v4940
        %v7548 = vpack.c.b16 %v4947, %v4944
        %v7549 = vpack.c.b16 %v4948, %v4945
        %v7550 = vpack.c.b16 %v4949, %v4946
        %v7551 = vpack.c.b16 %v4953, %v4950
        %v7552 = vpack.c.b16 %v4954, %v4951
        %v7553 = vpack.c.b16 %v4955, %v4952
        %v7554 = vpack.c.b16 %v4959, %v4956
        %v7555 = vpack.c.b16 %v4960, %v4957
        %v7556 = vpack.c.b16 %v4961, %v4958
        %v7557 = vpack.c.b16 %v4965, %v4962
        %v7558 = vpack.c.b16 %v4966, %v4963
        %v7559 = vpack.c.b16 %v4967, %v4964
        %v7560 = vpack.c.b16 %v4971, %v4968
        %v7561 = vpack.c.b16 %v4972, %v4969
        %v7562 = vpack.c.b16 %v4973, %v4970
        %v7563 = vpack.c.b16 %v4977, %v4974
        %v7564 = vpack.c.b16 %v4978, %v4975
        %v7565 = vpack.c.b16 %v4979, %v4976
        %v7566 = vpack.c.b16 %v4983, %v4980
        %v7567 = vpack.c.b16 %v4984, %v4981
        %v7568 = vpack.c.b16 %v4985, %v4982
        %v7569 = vpack.c.b16 %v4989, %v4986
        %v7570 = vpack.c.b16 %v4990, %v4987
        %v7571 = vpack.c.b16 %v4991, %v4988
        %v7572 = vpack.c.b16 %v4995, %v4992
        %v7573 = vpack.c.b16 %v4996, %v4993
        %v7574 = vpack.c.b16 %v4997, %v4994
        %v7575 = vpack.c.b16 %v5001, %v4998
        %v7576 = vpack.c.b16 %v5002, %v4999
        %v7577 = vpack.c.b16 %v5003, %v5000
        %v7578 = vpack.c.b16 %v5007, %v5004
        %v7579 = vpack.c.b16 %v5008, %v5005
        %v7580 = vpack.c.b16 %v5009, %v5006
        %v7581 = vpack.c.b16 %v5013, %v5010
        %v7582 = vpack.c.b16 %v5014, %v5011
        %v7583 = vpack.c.b16 %v5015, %v5012
        %v7584 = vpack.c.b16 %v5019, %v5016
        %v7585 = vpack.c.b16 %v5020, %v5017
        %v7586 = vpack.c.b16 %v5021, %v5018
        %v7587 = vpack.c.b16 %v5025, %v5022
        %v7588 = vpack.c.b16 %v5026, %v5023
        %v7589 = vpack.c.b16 %v5027, %v5024
        %v7590 = vpack.c.b16 %v5031, %v5028
        %v7591 = vpack.c.b16 %v5032, %v5029
        %v7592 = vpack.c.b16 %v5033, %v5030
        %v7593 = vpack.c.b16 %v5037, %v5034
        %v7594 = vpack.c.b16 %v5038, %v5035
        %v7595 = vpack.c.b16 %v5039, %v5036
        %v7596 = vpack.c.b16 %v5043, %v5040
        %v7597 = vpack.c.b16 %v5044, %v5041
        %v7598 = vpack.c.b16 %v5045, %v5042
        %v7599 = vpack.c.b16 %v5049, %v5046
        %v7600 = vpack.c.b16 %v5050, %v5047
        %v7601 = vpack.c.b16 %v5051, %v5048
        %v7602 = vpack.c.b16 %v5055, %v5052
        %v7603 = vpack.c.b16 %v5056, %v5053
        %v7604 = vpack.c.b16 %v5057, %v5054
        %v7605 = vpack.c.b16 %v5061, %v5058
        %v7606 = vpack.c.b16 %v5062, %v5059
        %v7607 = vpack.c.b16 %v5063, %v5060
        %v7608 = vpack.c.b16 %v5067, %v5064
        %v7609 = vpack.c.b16 %v5068, %v5065
        %v7610 = vpack.c.b16 %v5069, %v5066
        %v7611 = vpack.c.b16 %v5073, %v5070
        %v7612 = vpack.c.b16 %v5074, %v5071
        %v7613 = vpack.c.b16 %v5075, %v5072
        %v7614 = vpack.c.b16 %v5079, %v5076
        %v7615 = vpack.c.b16 %v5080, %v5077
        %v7616 = vpack.c.b16 %v5081, %v5078
        %v7617 = vpack.c.b16 %v5085, %v5082
        %v7618 = vpack.c.b16 %v5086, %v5083
        %v7619 = vpack.c.b16 %v5087, %v5084
        %v7620 = vpack.c.b16 %v5091, %v5088
        %v7621 = vpack.c.b16 %v5092, %v5089
        %v7622 = vpack.c.b16 %v5093, %v5090
        %v7623 = vpack.c.b16 %v5097, %v5094
        %v7624 = vpack.c.b16 %v5098, %v5095
        %v7625 = vpack.c.b16 %v5099, %v5096
        %v7626 = vpack.c.b16 %v5103, %v5100
        %v7627 = vpack.c.b16 %v5104, %v5101
        %v7628 = vpack.c.b16 %v5105, %v5102
        %v7629 = vpack.c.b16 %v5109, %v5106
        %v7630 = vpack.c.b16 %v5110, %v5107
        %v7631 = vpack.c.b16 %v5111, %v5108
        %v7632 = vpack.c.b16 %v5115, %v5112
        %v7633 = vpack.c.b16 %v5116, %v5113
        %v7634 = vpack.c.b16 %v5117, %v5114
        %v7635 = vpack.c.b16 %v5121, %v5118
        %v7636 = vpack.c.b16 %v5122, %v5119
        %v7637 = vpack.c.b16 %v5123, %v5120
        %v7638 = vpack.c.b16 %v5127, %v5124
        %v7639 = vpack.c.b16 %v5128, %v5125
        %v7640 = vpack.c.b16 %v5129, %v5126
        %v7641 = vpack.c.b16 %v5133, %v5130
        %v7642 = vpack.c.b16 %v5134, %v5131
        %v7643 = vpack.c.b16 %v5135, %v5132
        %v7644 = vpack.c.b16 %v5139, %v5136
        %v7645 = vpack.c.b16 %v5140, %v5137
        %v7646 = vpack.c.b16 %v5141, %v5138
        %v7647 = vpack.c.b16 %v5145, %v5142
        %v7648 = vpack.c.b16 %v5146, %v5143
        %v7649 = vpack.c.b16 %v5147, %v5144
        %v7650 = vpack.c.b16 %v5151, %v5148
        %v7651 = vpack.c.b16 %v5152, %v5149
        %v7652 = vpack.c.b16 %v5153, %v5150
        %v7653 = vpack.c.b16 %v5157, %v5154
        %v7654 = vpack.c.b16 %v5158, %v5155
        %v7655 = vpack.c.b16 %v5159, %v5156
        %v7656 = vpack.c.b16 %v5163, %v5160
        %v7657 = vpack.c.b16 %v5164, %v5161
        %v7658 = vpack.c.b16 %v5165, %v5162
        %v7659 = vpack.c.b16 %v5169, %v5166
        %v7660 = vpack.c.b16 %v5170, %v5167
        %v7661 = vpack.c.b16 %v5171, %v5168
        %v7662 = vpack.c.b16 %v5175, %v5172
        %v7663 = vpack.c.b16 %v5176, %v5173
        %v7664 = vpack.c.b16 %v5177, %v5174
        %v7665 = vpack.c.b16 %v5181, %v5178
        %v7666 = vpack.c.b16 %v5182, %v5179
        %v7667 = vpack.c.b16 %v5183, %v5180
        %v7668 = vpack.c.b16 %v5187, %v5184
        %v7669 = vpack.c.b16 %v5188, %v5185
        %v7670 = vpack.c.b16 %v5189, %v5186
        %v7671 = vpack.c.b16 %v5193, %v5190
        %v7672 = vpack.c.b16 %v5194, %v5191
        %v7673 = vpack.c.b16 %v5195, %v5192
        %v7674 = vpack.c.b16 %v5199, %v5196
        %v7675 = vpack.c.b16 %v5200, %v5197
        %v7676 = vpack.c.b16 %v5201, %v5198
        %v7677 = vpack.c.b16 %v5205, %v5202
        %v7678 = vpack.c.b16 %v5206, %v5203
        %v7679 = vpack.c.b16 %v5207, %v5204
        %v7680 = vpack.c.b16 %v5211, %v5208
        %v7681 = vpack.c.b16 %v5212, %v5209
        %v7682 = vpack.c.b16 %v5213, %v5210
        %v7683 = vpack.c.b16 %v5217, %v5214
        %v7684 = vpack.c.b16 %v5218, %v5215
        %v7685 = vpack.c.b16 %v5219, %v5216
        %v7686 = vpack.c.b16 %v5223, %v5220
        %v7687 = vpack.c.b16 %v5224, %v5221
        %v7688 = vpack.c.b16 %v5225, %v5222
        %v7689 = vpack.c.b16 %v5229, %v5226
        %v7690 = vpack.c.b16 %v5230, %v5227
        %v7691 = vpack.c.b16 %v5231, %v5228
        %v7692 = vpack.c.b16 %v5235, %v5232
        %v7693 = vpack.c.b16 %v5236, %v5233
        %v7694 = vpack.c.b16 %v5237, %v5234
        %v7695 = vpack.c.b16 %v5241, %v5238
        %v7696 = vpack.c.b16 %v5242, %v5239
        %v7697 = vpack.c.b16 %v5243, %v5240
        %v7698 = vpack.c.b16 %v5247, %v5244
        %v7699 = vpack.c.b16 %v5248, %v5245
        %v7700 = vpack.c.b16 %v5249, %v5246
        %v7701 = vpack.c.b16 %v5253, %v5250
        %v7702 = vpack.c.b16 %v5254, %v5251
        %v7703 = vpack.c.b16 %v5255, %v5252
        %v7704 = vpack.c.b16 %v5259, %v5256
        %v7705 = vpack.c.b16 %v5260, %v5257
        %v7706 = vpack.c.b16 %v5261, %v5258
        %v7707 = vpack.c.b16 %v5265, %v5262
        %v7708 = vpack.c.b16 %v5266, %v5263
        %v7709 = vpack.c.b16 %v5267, %v5264
        %v7710 = vpack.c.b16 %v5271, %v5268
        %v7711 = vpack.c.b16 %v5272, %v5269
        %v7712 = vpack.c.b16 %v5273, %v5270
        %v7713 = vpack.c.b16 %v5277, %v5274
        %v7714 = vpack.c.b16 %v5278, %v5275
        %v7715 = vpack.c.b16 %v5279, %v5276
        %v7716 = vpack.c.b16 %v5283, %v5280
        %v7717 = vpack.c.b16 %v5284, %v5281
        %v7718 = vpack.c.b16 %v5285, %v5282
        %v7719 = vpack.c.b16 %v5289, %v5286
        %v7720 = vpack.c.b16 %v5290, %v5287
        %v7721 = vpack.c.b16 %v5291, %v5288
        %v7722 = vpack.c.b16 %v5295, %v5292
        %v7723 = vpack.c.b16 %v5296, %v5293
        %v7724 = vpack.c.b16 %v5297, %v5294
        %v7725 = vpack.c.b16 %v5301, %v5298
        %v7726 = vpack.c.b16 %v5302, %v5299
        %v7727 = vpack.c.b16 %v5303, %v5300
        %v7728 = vpack.c.b16 %v5307, %v5304
        %v7729 = vpack.c.b16 %v5308, %v5305
        %v7730 = vpack.c.b16 %v5309, %v5306
        %v7731 = vpack.c.b16 %v5313, %v5310
        %v7732 = vpack.c.b16 %v5314, %v5311
        %v7733 = vpack.c.b16 %v5315, %v5312
        %v7734 = vpack.c.b16 %v5319, %v5316
        %v7735 = vpack.c.b16 %v5320, %v5317
        %v7736 = vpack.c.b16 %v5321, %v5318
        %v7737 = vpack.c.b16 %v5325, %v5322
        %v7738 = vpack.c.b16 %v5326, %v5323
        %v7739 = vpack.c.b16 %v5327, %v5324
        %v7740 = vpack.c.b16 %v5331, %v5328
        %v7741 = vpack.c.b16 %v5332, %v5329
        %v7742 = vpack.c.b16 %v5333, %v5330
        %v7743 = vpack.c.b16 %v5337, %v5334
        %v7744 = vpack.c.b16 %v5338, %v5335
        %v7745 = vpack.c.b16 %v5339, %v5336
        %v7746 = vpack.c.b16 %v5343, %v5340
        %v7747 = vpack.c.b16 %v5344, %v5341
        %v7748 = vpack.c.b16 %v5345, %v5342
        %v7749 = vpack.c.b16 %v5349, %v5346
        %v7750 = vpack.c.b16 %v5350, %v5347
        %v7751 = vpack.c.b16 %v5351, %v5348
        %v7752 = vpack.c.b16 %v5355, %v5352
        %v7753 = vpack.c.b16 %v5356, %v5353
        %v7754 = vpack.c.b16 %v5357, %v5354
        %v7755 = vpack.c.b16 %v5361, %v5358
        %v7756 = vpack.c.b16 %v5362, %v5359
        %v7757 = vpack.c.b16 %v5363, %v5360
        %v7758 = vpack.c.b16 %v5367, %v5364
        %v7759 = vpack.c.b16 %v5368, %v5365
        %v7760 = vpack.c.b16 %v5369, %v5366
        %v7761 = vpack.c.b16 %v5373, %v5370
        %v7762 = vpack.c.b16 %v5374, %v5371
        %v7763 = vpack.c.b16 %v5375, %v5372
        %v7764 = vpack.c.b16 %v5379, %v5376
        %v7765 = vpack.c.b16 %v5380, %v5377
        %v7766 = vpack.c.b16 %v5381, %v5378
        %v7767 = vpack.c.b16 %v5385, %v5382
        %v7768 = vpack.c.b16 %v5386, %v5383
        %v7769 = vpack.c.b16 %v5387, %v5384
        %v7770 = vpack.c.b16 %v5391, %v5388
        %v7771 = vpack.c.b16 %v5392, %v5389
        %v7772 = vpack.c.b16 %v5393, %v5390
        %v7773 = vpack.c.b16 %v5397, %v5394
        %v7774 = vpack.c.b16 %v5398, %v5395
        %v7775 = vpack.c.b16 %v5399, %v5396
        %v7776 = vpack.c.b16 %v5403, %v5400
        %v7777 = vpack.c.b16 %v5404, %v5401
        %v7778 = vpack.c.b16 %v5405, %v5402
        %v7779 = vpack.c.b16 %v5409, %v5406
        %v7780 = vpack.c.b16 %v5410, %v5407
        %v7781 = vpack.c.b16 %v5411, %v5408
        %v7782 = vpack.c.b16 %v5415, %v5412
        %v7783 = vpack.c.b16 %v5416, %v5413
        %v7784 = vpack.c.b16 %v5417, %v5414
        %v7785 = vpack.c.b16 %v5421, %v5418
        %v7786 = vpack.c.b16 %v5422, %v5419
        %v7787 = vpack.c.b16 %v5423, %v5420
        %v7788 = vpack.c.b16 %v5427, %v5424
        %v7789 = vpack.c.b16 %v5428, %v5425
        %v7790 = vpack.c.b16 %v5429, %v5426
        %v7791 = vpack.c.b16 %v5433, %v5430
        %v7792 = vpack.c.b16 %v5434, %v5431
        %v7793 = vpack.c.b16 %v5435, %v5432
        %v7794 = vpack.c.b16 %v5439, %v5436
        %v7795 = vpack.c.b16 %v5440, %v5437
        %v7796 = vpack.c.b16 %v5441, %v5438
        %v7797 = vpack.c.b16 %v5445, %v5442
        %v7798 = vpack.c.b16 %v5446, %v5443
        %v7799 = vpack.c.b16 %v5447, %v5444
        %v7800 = vpack.c.b16 %v5451, %v5448
        %v7801 = vpack.c.b16 %v5452, %v5449
        %v7802 = vpack.c.b16 %v5453, %v5450
        %v7803 = vpack.c.b16 %v5457, %v5454
        %v7804 = vpack.c.b16 %v5458, %v5455
        %v7805 = vpack.c.b16 %v5459, %v5456
        %v7806 = vpack.c.b16 %v5463, %v5460
        %v7807 = vpack.c.b16 %v5464, %v5461
        %v7808 = vpack.c.b16 %v5465, %v5462
        %v7809 = vpack.c.b16 %v5469, %v5466
        %v7810 = vpack.c.b16 %v5470, %v5467
        %v7811 = vpack.c.b16 %v5471, %v5468
        %v7812 = vpack.c.b16 %v5475, %v5472
        %v7813 = vpack.c.b16 %v5476, %v5473
        %v7814 = vpack.c.b16 %v5477, %v5474
        %v7815 = vpack.c.b16 %v5481, %v5478
        %v7816 = vpack.c.b16 %v5482, %v5479
        %v7817 = vpack.c.b16 %v5483, %v5480
        %v7818 = vpack.c.b16 %v5487, %v5484
        %v7819 = vpack.c.b16 %v5488, %v5485
        %v7820 = vpack.c.b16 %v5489, %v5486
        %v7821 = vpack.c.b16 %v5493, %v5490
        %v7822 = vpack.c.b16 %v5494, %v5491
        %v7823 = vpack.c.b16 %v5495, %v5492
        %v7824 = vpack.c.b16 %v5499, %v5496
        %v7825 = vpack.c.b16 %v5500, %v5497
        %v7826 = vpack.c.b16 %v5501, %v5498
        %v7827 = vpack.c.b16 %v5505, %v5502
        %v7828 = vpack.c.b16 %v5506, %v5503
        %v7829 = vpack.c.b16 %v5507, %v5504
        %v7830 = vpack.c.b16 %v5511, %v5508
        %v7831 = vpack.c.b16 %v5512, %v5509
        %v7832 = vpack.c.b16 %v5513, %v5510
        %v7833 = vpack.c.b16 %v5517, %v5514
        %v7834 = vpack.c.b16 %v5518, %v5515
        %v7835 = vpack.c.b16 %v5519, %v5516
        %v7836 = vpack.c.b16 %v5523, %v5520
        %v7837 = vpack.c.b16 %v5524, %v5521
        %v7838 = vpack.c.b16 %v5525, %v5522
        %v7839 = vpack.c.b16 %v5529, %v5526
        %v7840 = vpack.c.b16 %v5530, %v5527
        %v7841 = vpack.c.b16 %v5531, %v5528
        %v7842 = vpack.c.b16 %v5535, %v5532
        %v7843 = vpack.c.b16 %v5536, %v5533
        %v7844 = vpack.c.b16 %v5537, %v5534
        %v7845 = vpack.c.b16 %v5541, %v5538
        %v7846 = vpack.c.b16 %v5542, %v5539
        %v7847 = vpack.c.b16 %v5543, %v5540
        %v7848 = vpack.c.b16 %v5547, %v5544
        %v7849 = vpack.c.b16 %v5548, %v5545
        %v7850 = vpack.c.b16 %v5549, %v5546
        %v7851 = vpack.c.b16 %v5553, %v5550
        %v7852 = vpack.c.b16 %v5554, %v5551
        %v7853 = vpack.c.b16 %v5555, %v5552
        %v7854 = vpack.c.b16 %v5559, %v5556
        %v7855 = vpack.c.b16 %v5560, %v5557
        %v7856 = vpack.c.b16 %v5561, %v5558
        %v7857 = vpack.c.b16 %v5565, %v5562
        %v7858 = vpack.c.b16 %v5566, %v5563
        %v7859 = vpack.c.b16 %v5567, %v5564
        %v7860 = vpack.c.b16 %v5571, %v5568
        %v7861 = vpack.c.b16 %v5572, %v5569
        %v7862 = vpack.c.b16 %v5573, %v5570
        %v7863 = vpack.c.b16 %v5577, %v5574
        %v7864 = vpack.c.b16 %v5578, %v5575
        %v7865 = vpack.c.b16 %v5579, %v5576
        %v7866 = vpack.c.b16 %v5583, %v5580
        %v7867 = vpack.c.b16 %v5584, %v5581
        %v7868 = vpack.c.b16 %v5585, %v5582
        %v7869 = vpack.c.b16 %v5589, %v5586
        %v7870 = vpack.c.b16 %v5590, %v5587
        %v7871 = vpack.c.b16 %v5591, %v5588
        %v7872 = vpack.c.b16 %v5595, %v5592
        %v7873 = vpack.c.b16 %v5596, %v5593
        %v7874 = vpack.c.b16 %v5597, %v5594
        %v7875 = vpack.c.b16 %v5601, %v5598
        %v7876 = vpack.c.b16 %v5602, %v5599
        %v7877 = vpack.c.b16 %v5603, %v5600
        %v7878 = vpack.c.b16 %v5607, %v5604
        %v7879 = vpack.c.b16 %v5608, %v5605
        %v7880 = vpack.c.b16 %v5609, %v5606
        %v7881 = vpack.c.b16 %v5613, %v5610
        %v7882 = vpack.c.b16 %v5614, %v5611
        %v7883 = vpack.c.b16 %v5615, %v5612
        %v7884 = vpack.c.b16 %v5619, %v5616
        %v7885 = vpack.c.b16 %v5620, %v5617
        %v7886 = vpack.c.b16 %v5621, %v5618
        %v7887 = vpack.c.b16 %v5625, %v5622
        %v7888 = vpack.c.b16 %v5626, %v5623
        %v7889 = vpack.c.b16 %v5627, %v5624
        %v7890 = vpack.c.b16 %v5631, %v5628
        %v7891 = vpack.c.b16 %v5632, %v5629
        %v7892 = vpack.c.b16 %v5633, %v5630
        %v7893 = vpack.c.b16 %v5637, %v5634
        %v7894 = vpack.c.b16 %v5638, %v5635
        %v7895 = vpack.c.b16 %v5639, %v5636
        %v7896 = vpack.c.b16 %v5643, %v5640
        %v7897 = vpack.c.b16 %v5644, %v5641
        %v7898 = vpack.c.b16 %v5645, %v5642
        %v7899 = vpack.c.b16 %v5649, %v5646
        %v7900 = vpack.c.b16 %v5650, %v5647
        %v7901 = vpack.c.b16 %v5651, %v5648
        %v7902 = vpack.c.b16 %v5655, %v5652
        %v7903 = vpack.c.b16 %v5656, %v5653
        %v7904 = vpack.c.b16 %v5657, %v5654
        %v7905 = vpack.c.b16 %v5661, %v5658
        %v7906 = vpack.c.b16 %v5662, %v5659
        %v7907 = vpack.c.b16 %v5663, %v5660
        %v7908 = vpack.c.b16 %v5667, %v5664
        %v7909 = vpack.c.b16 %v5668, %v5665
        %v7910 = vpack.c.b16 %v5669, %v5666
        %v7911 = vpack.c.b16 %v5673, %v5670
        %v7912 = vpack.c.b16 %v5674, %v5671
        %v7913 = vpack.c.b16 %v5675, %v5672
        %v7914 = vpack.c.b16 %v5679, %v5676
        %v7915 = vpack.c.b16 %v5680, %v5677
        %v7916 = vpack.c.b16 %v5681, %v5678
        %v7917 = vpack.c.b16 %v5685, %v5682
        %v7918 = vpack.c.b16 %v5686, %v5683
        %v7919 = vpack.c.b16 %v5687, %v5684
        %v7920 = vpack.c.b16 %v5691, %v5688
        %v7921 = vpack.c.b16 %v5692, %v5689
        %v7922 = vpack.c.b16 %v5693, %v5690
        %v7923 = vpack.c.b16 %v5697, %v5694
        %v7924 = vpack.c.b16 %v5698, %v5695
        %v7925 = vpack.c.b16 %v5699, %v5696
        %v7926 = vpack.c.b16 %v5703, %v5700
        %v7927 = vpack.c.b16 %v5704, %v5701
        %v7928 = vpack.c.b16 %v5705, %v5702
        %v7929 = vpack.c.b16 %v5709, %v5706
        %v7930 = vpack.c.b16 %v5710, %v5707
        %v7931 = vpack.c.b16 %v5711, %v5708
        %v7932 = vpack.c.b16 %v5715, %v5712
        %v7933 = vpack.c.b16 %v5716, %v5713
        %v7934 = vpack.c.b16 %v5717, %v5714
        %v7935 = vpack.c.b16 %v5721, %v5718
        %v7936 = vpack.c.b16 %v5722, %v5719
        %v7937 = vpack.c.b16 %v5723, %v5720
        %v7938 = vpack.c.b16 %v5727, %v5724
        %v7939 = vpack.c.b16 %v5728, %v5725
        %v7940 = vpack.c.b16 %v5729, %v5726
        %v7941 = vpack.c.b16 %v5733, %v5730
        %v7942 = vpack.c.b16 %v5734, %v5731
        %v7943 = vpack.c.b16 %v5735, %v5732
        %v7944 = vpack.c.b16 %v5739, %v5736
        %v7945 = vpack.c.b16 %v5740, %v5737
        %v7946 = vpack.c.b16 %v5741, %v5738
        %v7947 = vpack.c.b16 %v5745, %v5742
        %v7948 = vpack.c.b16 %v5746, %v5743
        %v7949 = vpack.c.b16 %v5747, %v5744
        %v7950 = vpack.c.b16 %v5751, %v5748
        %v7951 = vpack.c.b16 %v5752, %v5749
        %v7952 = vpack.c.b16 %v5753, %v5750
        %v7953 = vpack.c.b16 %v5757, %v5754
        %v7954 = vpack.c.b16 %v5758, %v5755
        %v7955 = vpack.c.b16 %v5759, %v5756
        %v7956 = vpack.c.b16 %v5763, %v5760
        %v7957 = vpack.c.b16 %v5764, %v5761
        %v7958 = vpack.c.b16 %v5765, %v5762
        %v7959 = vpack.c.b16 %v5769, %v5766
        %v7960 = vpack.c.b16 %v5770, %v5767
        %v7961 = vpack.c.b16 %v5771, %v5768
        %v7962 = vpack.c.b16 %v5775, %v5772
        %v7963 = vpack.c.b16 %v5776, %v5773
        %v7964 = vpack.c.b16 %v5777, %v5774
        %v7965 = vpack.c.b16 %v5781, %v5778
        %v7966 = vpack.c.b16 %v5782, %v5779
        %v7967 = vpack.c.b16 %v5783, %v5780
        %v7968 = vpack.c.b16 %v5787, %v5784
        %v7969 = vpack.c.b16 %v5788, %v5785
        %v7970 = vpack.c.b16 %v5789, %v5786
        %v7971 = vpack.c.b16 %v5793, %v5790
        %v7972 = vpack.c.b16 %v5794, %v5791
        %v7973 = vpack.c.b16 %v5795, %v5792
        %v7974 = vpack.c.b16 %v5799, %v5796
        %v7975 = vpack.c.b16 %v5800, %v5797
        %v7976 = vpack.c.b16 %v5801, %v5798
        %v7977 = vpack.c.b16 %v5805, %v5802
        %v7978 = vpack.c.b16 %v5806, %v5803
        %v7979 = vpack.c.b16 %v5807, %v5804
        %v7980 = vpack.c.b16 %v5811, %v5808
        %v7981 = vpack.c.b16 %v5812, %v5809
        %v7982 = vpack.c.b16 %v5813, %v5810
        %v7983 = vpack.c.b16 %v5817, %v5814
        %v7984 = vpack.c.b16 %v5818, %v5815
        %v7985 = vpack.c.b16 %v5819, %v5816
        %v7986 = vpack.c.b16 %v5823, %v5820
        %v7987 = vpack.c.b16 %v5824, %v5821
        %v7988 = vpack.c.b16 %v5825, %v5822
        %v7989 = vpack.c.b16 %v5829, %v5826
        %v7990 = vpack.c.b16 %v5830, %v5827
        %v7991 = vpack.c.b16 %v5831, %v5828
        %v7992 = vpack.c.b16 %v5835, %v5832
        %v7993 = vpack.c.b16 %v5836, %v5833
        %v7994 = vpack.c.b16 %v5837, %v5834
        %v7995 = vpack.c.b16 %v5841, %v5838
        %v7996 = vpack.c.b16 %v5842, %v5839
        %v7997 = vpack.c.b16 %v5843, %v5840
        %v7998 = vpack.c.b16 %v5847, %v5844
        %v7999 = vpack.c.b16 %v5848, %v5845
        %v8000 = vpack.c.b16 %v5849, %v5846
        %v8001 = vpack.c.b16 %v5853, %v5850
        %v8002 = vpack.c.b16 %v5854, %v5851
        %v8003 = vpack.c.b16 %v5855, %v5852
        %v8004 = vpack.c.b16 %v5859, %v5856
        %v8005 = vpack.c.b16 %v5860, %v5857
        %v8006 = vpack.c.b16 %v5861, %v5858
        %v8007 = vpack.c.b16 %v5865, %v5862
        %v8008 = vpack.c.b16 %v5866, %v5863
        %v8009 = vpack.c.b16 %v5867, %v5864
        %v8010 = vpack.c.b16 %v5871, %v5868
        %v8011 = vpack.c.b16 %v5872, %v5869
        %v8012 = vpack.c.b16 %v5873, %v5870
        %v8013 = vpack.c.b16 %v5877, %v5874
        %v8014 = vpack.c.b16 %v5878, %v5875
        %v8015 = vpack.c.b16 %v5879, %v5876
        %v8016 = vpack.c.b16 %v5883, %v5880
        %v8017 = vpack.c.b16 %v5884, %v5881
        %v8018 = vpack.c.b16 %v5885, %v5882
        %v8019 = vpack.c.b16 %v5889, %v5886
        %v8020 = vpack.c.b16 %v5890, %v5887
        %v8021 = vpack.c.b16 %v5891, %v5888
        %v8022 = vpack.c.b16 %v5895, %v5892
        %v8023 = vpack.c.b16 %v5896, %v5893
        %v8024 = vpack.c.b16 %v5897, %v5894
        %v8025 = vpack.c.b16 %v5901, %v5898
        %v8026 = vpack.c.b16 %v5902, %v5899
        %v8027 = vpack.c.b16 %v5903, %v5900
        %v8028 = vpack.c.b16 %v5907, %v5904
        %v8029 = vpack.c.b16 %v5908, %v5905
        %v8030 = vpack.c.b16 %v5909, %v5906
        %v8031 = vpack.c.b16 %v5913, %v5910
        %v8032 = vpack.c.b16 %v5914, %v5911
        %v8033 = vpack.c.b16 %v5915, %v5912
        %v8034 = vpack.c.b16 %v5919, %v5916
        %v8035 = vpack.c.b16 %v5920, %v5917
        %v8036 = vpack.c.b16 %v5921, %v5918
        %v8037 = vpack.c.b16 %v5925, %v5922
        %v8038 = vpack.c.b16 %v5926, %v5923
        %v8039 = vpack.c.b16 %v5927, %v5924
        %v8040 = vpack.c.b16 %v5931, %v5928
        %v8041 = vpack.c.b16 %v5932, %v5929
        %v8042 = vpack.c.b16 %v5933, %v5930
        %v8043 = vpack.c.b16 %v5937, %v5934
        %v8044 = vpack.c.b16 %v5938, %v5935
        %v8045 = vpack.c.b16 %v5939, %v5936
        %v8046 = vpack.c.b16 %v5943, %v5940
        %v8047 = vpack.c.b16 %v5944, %v5941
        %v8048 = vpack.c.b16 %v5945, %v5942
        %v8049 = vpack.c.b16 %v5949, %v5946
        %v8050 = vpack.c.b16 %v5950, %v5947
        %v8051 = vpack.c.b16 %v5951, %v5948
        %v8052 = vpack.c.b16 %v5955, %v5952
        %v8053 = vpack.c.b16 %v5956, %v5953
        %v8054 = vpack.c.b16 %v5957, %v5954
        %v8055 = vpack.c.b16 %v5961, %v5958
        %v8056 = vpack.c.b16 %v5962, %v5959
        %v8057 = vpack.c.b16 %v5963, %v5960
        %v8058 = vpack.c.b16 %v5967, %v5964
        %v8059 = vpack.c.b16 %v5968, %v5965
        %v8060 = vpack.c.b16 %v5969, %v5966
        %v8061 = vpack.c.b16 %v5973, %v5970
        %v8062 = vpack.c.b16 %v5974, %v5971
        %v8063 = vpack.c.b16 %v5975, %v5972
        %v8064 = vpack.c.b16 %v5979, %v5976
        %v8065 = vpack.c.b16 %v5980, %v5977
        %v8066 = vpack.c.b16 %v5981, %v5978
        %v8067 = vpack.c.b16 %v5985, %v5982
        %v8068 = vpack.c.b16 %v5986, %v5983
        %v8069 = vpack.c.b16 %v5987, %v5984
        %v8070 = vpack.c.b16 %v5991, %v5988
        %v8071 = vpack.c.b16 %v5992, %v5989
        %v8072 = vpack.c.b16 %v5993, %v5990
        %v8073 = vpack.c.b16 %v5997, %v5994
        %v8074 = vpack.c.b16 %v5998, %v5995
        %v8075 = vpack.c.b16 %v5999, %v5996
        %v8076 = vpack.c.b16 %v6003, %v6000
        %v8077 = vpack.c.b16 %v6004, %v6001
        %v8078 = vpack.c.b16 %v6005, %v6002
        %v8079 = vpack.c.b16 %v6009, %v6006
        %v8080 = vpack.c.b16 %v6010, %v6007
        %v8081 = vpack.c.b16 %v6011, %v6008
        %v8082 = vpack.c.b16 %v6015, %v6012
        %v8083 = vpack.c.b16 %v6016, %v6013
        %v8084 = vpack.c.b16 %v6017, %v6014
        %v8085 = vpack.c.b16 %v6021, %v6018
        %v8086 = vpack.c.b16 %v6022, %v6019
        %v8087 = vpack.c.b16 %v6023, %v6020
        %v8088 = vpack.c.b16 %v6027, %v6024
        %v8089 = vpack.c.b16 %v6028, %v6025
        %v8090 = vpack.c.b16 %v6029, %v6026
        %v8091 = vpack.c.b16 %v6033, %v6030
        %v8092 = vpack.c.b16 %v6034, %v6031
        %v8093 = vpack.c.b16 %v6035, %v6032
        %v8094 = vpack.c.b16 %v6039, %v6036
        %v8095 = vpack.c.b16 %v6040, %v6037
        %v8096 = vpack.c.b16 %v6041, %v6038
        %v8097 = vpack.c.b16 %v6045, %v6042
        %v8098 = vpack.c.b16 %v6046, %v6043
        %v8099 = vpack.c.b16 %v6047, %v6044
        %v8100 = vpack.c.b16 %v6051, %v6048
        %v8101 = vpack.c.b16 %v6052, %v6049
        %v8102 = vpack.c.b16 %v6053, %v6050
        %v8103 = vpack.c.b16 %v6057, %v6054
        %v8104 = vpack.c.b16 %v6058, %v6055
        %v8105 = vpack.c.b16 %v6059, %v6056
        %v8106 = vpack.c.b16 %v6063, %v6060
        %v8107 = vpack.c.b16 %v6064, %v6061
        %v8108 = vpack.c.b16 %v6065, %v6062
        %v8109 = vpack.c.b16 %v6069, %v6066
        %v8110 = vpack.c.b16 %v6070, %v6067
        %v8111 = vpack.c.b16 %v6071, %v6068
        %v8112 = vpack.c.b16 %v6075, %v6072
        %v8113 = vpack.c.b16 %v6076, %v6073
        %v8114 = vpack.c.b16 %v6077, %v6074
        %v8115 = vpack.c.b16 %v6081, %v6078
        %v8116 = vpack.c.b16 %v6082, %v6079
        %v8117 = vpack.c.b16 %v6083, %v6080
        %v8118 = vpack.c.b16 %v6087, %v6084
        %v8119 = vpack.c.b16 %v6088, %v6085
        %v8120 = vpack.c.b16 %v6089, %v6086
        %v8121 = vpack.c.b16 %v6093, %v6090
        %v8122 = vpack.c.b16 %v6094, %v6091
        %v8123 = vpack.c.b16 %v6095, %v6092
        %v8124 = vpack.c.b16 %v6099, %v6096
        %v8125 = vpack.c.b16 %v6100, %v6097
        %v8126 = vpack.c.b16 %v6101, %v6098
        %v8127 = vpack.c.b16 %v6105, %v6102
        %v8128 = vpack.c.b16 %v6106, %v6103
        %v8129 = vpack.c.b16 %v6107, %v6104
        %v8130 = vpack.c.b16 %v6111, %v6108
        %v8131 = vpack.c.b16 %v6112, %v6109
        %v8132 = vpack.c.b16 %v6113, %v6110
        %v8133 = vpack.c.b16 %v6117, %v6114
        %v8134 = vpack.c.b16 %v6118, %v6115
        %v8135 = vpack.c.b16 %v6119, %v6116
        %v8136 = vpack.c.b16 %v6123, %v6120
        %v8137 = vpack.c.b16 %v6124, %v6121
        %v8138 = vpack.c.b16 %v6125, %v6122
        %v8139 = vpack.c.b16 %v6129, %v6126
        %v8140 = vpack.c.b16 %v6130, %v6127
        %v8141 = vpack.c.b16 %v6131, %v6128
        %v8142 = vpack.c.b16 %v6135, %v6132
        %v8143 = vpack.c.b16 %v6136, %v6133
        %v8144 = vpack.c.b16 %v6137, %v6134
        %v8145 = vpack.c.b16 %v6141, %v6138
        %v8146 = vpack.c.b16 %v6142, %v6139
        %v8147 = vpack.c.b16 %v6143, %v6140
        %v8148 = vpack.c.b16 %v6147, %v6144
        %v8149 = vpack.c.b16 %v6148, %v6145
        %v8150 = vpack.c.b16 %v6149, %v6146
        %v8151 = vpack.c.b16 %v6153, %v6150
        %v8152 = vpack.c.b16 %v6154, %v6151
        %v8153 = vpack.c.b16 %v6155, %v6152
        %v8154 = vpack.c.b16 %v6159, %v6156
        %v8155 = vpack.c.b16 %v6160, %v6157
        %v8156 = vpack.c.b16 %v6161, %v6158
        %v8157 = vpack.c.b16 %v6165, %v6162
        %v8158 = vpack.c.b16 %v6166, %v6163
        %v8159 = vpack.c.b16 %v6167, %v6164
        %v8160 = vpack.c.b16 %v6171, %v6168
        %v8161 = vpack.c.b16 %v6172, %v6169
        %v8162 = vpack.c.b16 %v6173, %v6170
        %v8163 = vpack.c.b16 %v6177, %v6174
        %v8164 = vpack.c.b16 %v6178, %v6175
        %v8165 = vpack.c.b16 %v6179, %v6176
        %v8166 = vpack.c.b16 %v6183, %v6180
        %v8167 = vpack.c.b16 %v6184, %v6181
        %v8168 = vpack.c.b16 %v6185, %v6182
        %v8169 = vpack.c.b16 %v6189, %v6186
        %v8170 = vpack.c.b16 %v6190, %v6187
        %v8171 = vpack.c.b16 %v6191, %v6188
        %v8172 = vpack.c.b16 %v6195, %v6192
        %v8173 = vpack.c.b16 %v6196, %v6193
        %v8174 = vpack.c.b16 %v6197, %v6194
        %v8175 = vpack.c.b16 %v6201, %v6198
        %v8176 = vpack.c.b16 %v6202, %v6199
        %v8177 = vpack.c.b16 %v6203, %v6200
        %v8178 = vpack.c.b16 %v6207, %v6204
        %v8179 = vpack.c.b16 %v6208, %v6205
        %v8180 = vpack.c.b16 %v6209, %v6206
        %v8181 = vpack.c.b16 %v6213, %v6210
        %v8182 = vpack.c.b16 %v6214, %v6211
        %v8183 = vpack.c.b16 %v6215, %v6212
        %v8184 = vpack.c.b16 %v6219, %v6216
        %v8185 = vpack.c.b16 %v6220, %v6217
        %v8186 = vpack.c.b16 %v6221, %v6218
        %v8187 = vpack.c.b16 %v6225, %v6222
        %v8188 = vpack.c.b16 %v6226, %v6223
        %v8189 = vpack.c.b16 %v6227, %v6224
        %v8190 = vpack.c.b16 %v6231, %v6228
        %v8191 = vpack.c.b16 %v6232, %v6229
        %v8192 = vpack.c.b16 %v6233, %v6230
        %v8193 = vpack.c.b16 %v6237, %v6234
        %v8194 = vpack.c.b16 %v6238, %v6235
        %v8195 = vpack.c.b16 %v6239, %v6236
        %v8196 = vpack.c.b16 %v6243, %v6240
        %v8197 = vpack.c.b16 %v6244, %v6241
        %v8198 = vpack.c.b16 %v6245, %v6242
        %v8199 = vpack.c.b16 %v6249, %v6246
        %v8200 = vpack.c.b16 %v6250, %v6247
        %v8201 = vpack.c.b16 %v6251, %v6248
        %v8202 = vpack.c.b16 %v6255, %v6252
        %v8203 = vpack.c.b16 %v6256, %v6253
        %v8204 = vpack.c.b16 %v6257, %v6254
        %v8205 = vpack.c.b16 %v6261, %v6258
        %v8206 = vpack.c.b16 %v6262, %v6259
        %v8207 = vpack.c.b16 %v6263, %v6260
        %v8208 = vpack.c.b16 %v6267, %v6264
        %v8209 = vpack.c.b16 %v6268, %v6265
        %v8210 = vpack.c.b16 %v6269, %v6266
        %v8211 = vpack.c.b16 %v6273, %v6270
        %v8212 = vpack.c.b16 %v6274, %v6271
        %v8213 = vpack.c.b16 %v6275, %v6272
        %v8214 = vpack.c.b16 %v6279, %v6276
        %v8215 = vpack.c.b16 %v6280, %v6277
        %v8216 = vpack.c.b16 %v6281, %v6278
        %v8217 = vpack.c.b16 %v6285, %v6282
        %v8218 = vpack.c.b16 %v6286, %v6283
        %v8219 = vpack.c.b16 %v6287, %v6284
        %v8220 = vpack.c.b16 %v6291, %v6288
        %v8221 = vpack.c.b16 %v6292, %v6289
        %v8222 = vpack.c.b16 %v6293, %v6290
        %v8223 = vpack.c.b16 %v6297, %v6294
        %v8224 = vpack.c.b16 %v6298, %v6295
        %v8225 = vpack.c.b16 %v6299, %v6296
        %v8226 = vpack.c.b16 %v6303, %v6300
        %v8227 = vpack.c.b16 %v6304, %v6301
        %v8228 = vpack.c.b16 %v6305, %v6302
        %v8229 = vpack.c.b16 %v6309, %v6306
        %v8230 = vpack.c.b16 %v6310, %v6307
        %v8231 = vpack.c.b16 %v6311, %v6308
        %v8232 = vpack.c.b16 %v6315, %v6312
        %v8233 = vpack.c.b16 %v6316, %v6313
        %v8234 = vpack.c.b16 %v6317, %v6314
        %v8235 = vpack.c.b16 %v6321, %v6318
        %v8236 = vpack.c.b16 %v6322, %v6319
        %v8237 = vpack.c.b16 %v6323, %v6320
        %v8238 = vpack.c.b16 %v6327, %v6324
        %v8239 = vpack.c.b16 %v6328, %v6325
        %v8240 = vpack.c.b16 %v6329, %v6326
        %v8241 = vpack.c.b16 %v6333, %v6330
        %v8242 = vpack.c.b16 %v6334, %v6331
        %v8243 = vpack.c.b16 %v6335, %v6332
        %v8244 = vpack.c.b16 %v6339, %v6336
        %v8245 = vpack.c.b16 %v6340, %v6337
        %v8246 = vpack.c.b16 %v6341, %v6338
        %v8247 = vpack.c.b16 %v6345, %v6342
        %v8248 = vpack.c.b16 %v6346, %v6343
        %v8249 = vpack.c.b16 %v6347, %v6344
        %v8250 = vpack.c.b16 %v6351, %v6348
        %v8251 = vpack.c.b16 %v6352, %v6349
        %v8252 = vpack.c.b16 %v6353, %v6350
        %v8253 = vpack.c.b16 %v6357, %v6354
        %v8254 = vpack.c.b16 %v6358, %v6355
        %v8255 = vpack.c.b16 %v6359, %v6356
        %v8256 = vpack.c.b16 %v6363, %v6360
        %v8257 = vpack.c.b16 %v6364, %v6361
        %v8258 = vpack.c.b16 %v6365, %v6362
        %v8259 = vpack.c.b16 %v6369, %v6366
        %v8260 = vpack.c.b16 %v6370, %v6367
        %v8261 = vpack.c.b16 %v6371, %v6368
        %v8262 = vpack.c.b16 %v6375, %v6372
        %v8263 = vpack.c.b16 %v6376, %v6373
        %v8264 = vpack.c.b16 %v6377, %v6374
        %v8265 = vpack.c.b16 %v6381, %v6378
        %v8266 = vpack.c.b16 %v6382, %v6379
        %v8267 = vpack.c.b16 %v6383, %v6380
        %v8268 = vpack.c.b16 %v6387, %v6384
        %v8269 = vpack.c.b16 %v6388, %v6385
        %v8270 = vpack.c.b16 %v6389, %v6386
        %v8271 = vpack.c.b16 %v6393, %v6390
        %v8272 = vpack.c.b16 %v6394, %v6391
        %v8273 = vpack.c.b16 %v6395, %v6392
        %v8274 = vpack.c.b16 %v6399, %v6396
        %v8275 = vpack.c.b16 %v6400, %v6397
        %v8276 = vpack.c.b16 %v6401, %v6398
        %v8277 = vpack.c.b16 %v6405, %v6402
        %v8278 = vpack.c.b16 %v6406, %v6403
        %v8279 = vpack.c.b16 %v6407, %v6404
        %v8280 = vpack.c.b16 %v6411, %v6408
        %v8281 = vpack.c.b16 %v6412, %v6409
        %v8282 = vpack.c.b16 %v6413, %v6410
        %v8283 = vpack.c.b16 %v6417, %v6414
        %v8284 = vpack.c.b16 %v6418, %v6415
        %v8285 = vpack.c.b16 %v6419, %v6416
        %v8286 = vpack.c.b16 %v6423, %v6420
        %v8287 = vpack.c.b16 %v6424, %v6421
        %v8288 = vpack.c.b16 %v6425, %v6422
        %v8289 = vpack.c.b16 %v6429, %v6426
        %v8290 = vpack.c.b16 %v6430, %v6427
        %v8291 = vpack.c.b16 %v6431, %v6428
        %v8292 = vpack.c.b16 %v6435, %v6432
        %v8293 = vpack.c.b16 %v6436, %v6433
        %v8294 = vpack.c.b16 %v6437, %v6434
        %v8295 = vpack.c.b16 %v6441, %v6438
        %v8296 = vpack.c.b16 %v6442, %v6439
        %v8297 = vpack.c.b16 %v6443, %v6440
        %v8298 = vpack.c.b16 %v6447, %v6444
        %v8299 = vpack.c.b16 %v6448, %v6445
        %v8300 = vpack.c.b16 %v6449, %v6446
        %v8301 = vpack.c.b16 %v6453, %v6450
        %v8302 = vpack.c.b16 %v6454, %v6451
        %v8303 = vpack.c.b16 %v6455, %v6452
        %v8304 = vpack.c.b16 %v6459, %v6456
        %v8305 = vpack.c.b16 %v6460, %v6457
        %v8306 = vpack.c.b16 %v6461, %v6458
        %v8307 = vpack.c.b16 %v6465, %v6462
        %v8308 = vpack.c.b16 %v6466, %v6463
        %v8309 = vpack.c.b16 %v6467, %v6464
        %v8310 = vpack.c.b16 %v6471, %v6468
        %v8311 = vpack.c.b16 %v6472, %v6469
        %v8312 = vpack.c.b16 %v6473, %v6470
        %v8313 = vpack.c.b16 %v6477, %v6474
        %v8314 = vpack.c.b16 %v6478, %v6475
        %v8315 = vpack.c.b16 %v6479, %v6476
        %v8316 = vpack.c.b16 %v6483, %v6480
        %v8317 = vpack.c.b16 %v6484, %v6481
        %v8318 = vpack.c.b16 %v6485, %v6482
        %v8319 = vpack.c.b16 %v6489, %v6486
        %v8320 = vpack.c.b16 %v6490, %v6487
        %v8321 = vpack.c.b16 %v6491, %v6488
        %v8322 = vpack.c.b16 %v6495, %v6492
        %v8323 = vpack.c.b16 %v6496, %v6493
        %v8324 = vpack.c.b16 %v6497, %v6494
        %v8325 = vpack.c.b16 %v6501, %v6498
        %v8326 = vpack.c.b16 %v6502, %v6499
        %v8327 = vpack.c.b16 %v6503, %v6500
        %v8328 = vpack.c.b16 %v6507, %v6504
        %v8329 = vpack.c.b16 %v6508, %v6505
        %v8330 = vpack.c.b16 %v6509, %v6506
        %v8331 = vpack.c.b16 %v6513, %v6510
        %v8332 = vpack.c.b16 %v6514, %v6511
        %v8333 = vpack.c.b16 %v6515, %v6512
        %v8334 = vpack.c.b16 %v6519, %v6516
        %v8335 = vpack.c.b16 %v6520, %v6517
        %v8336 = vpack.c.b16 %v6521, %v6518
        %v8337 = vpack.c.b16 %v6525, %v6522
        %v8338 = vpack.c.b16 %v6526, %v6523
        %v8339 = vpack.c.b16 %v6527, %v6524
        %v8340 = vpack.c.b16 %v6531, %v6528
        %v8341 = vpack.c.b16 %v6532, %v6529
        %v8342 = vpack.c.b16 %v6533, %v6530
        %v8343 = vpack.c.b16 %v6537, %v6534
        %v8344 = vpack.c.b16 %v6538, %v6535
        %v8345 = vpack.c.b16 %v6539, %v6536
        %v8346 = vpack.c.b16 %v6543, %v6540
        %v8347 = vpack.c.b16 %v6544, %v6541
        %v8348 = vpack.c.b16 %v6545, %v6542
        %v8349 = vpack.c.b16 %v6549, %v6546
        %v8350 = vpack.c.b16 %v6550, %v6547
        %v8351 = vpack.c.b16 %v6551, %v6548
        %v8352 = vpack.c.b16 %v6555, %v6552
        %v8353 = vpack.c.b16 %v6556, %v6553
        %v8354 = vpack.c.b16 %v6557, %v6554
        %v8355 = vpack.c.b16 %v6561, %v6558
        %v8356 = vpack.c.b16 %v6562, %v6559
        %v8357 = vpack.c.b16 %v6563, %v6560
        %v8358 = vpack.c.b16 %v6567, %v6564
        %v8359 = vpack.c.b16 %v6568, %v6565
        %v8360 = vpack.c.b16 %v6569, %v6566
        %v8361 = vpack.c.b16 %v6573, %v6570
        %v8362 = vpack.c.b16 %v6574, %v6571
        %v8363 = vpack.c.b16 %v6575, %v6572
        %v8364 = vpack.c.b16 %v6579, %v6576
        %v8365 = vpack.c.b16 %v6580, %v6577
        %v8366 = vpack.c.b16 %v6581, %v6578
        %v8367 = vpack.c.b16 %v6585, %v6582
        %v8368 = vpack.c.b16 %v6586, %v6583
        %v8369 = vpack.c.b16 %v6587, %v6584
        %v8370 = vpack.c.b16 %v6591, %v6588
        %v8371 = vpack.c.b16 %v6592, %v6589
        %v8372 = vpack.c.b16 %v6593, %v6590
        %v8373 = vpack.c.b16 %v6597, %v6594
        %v8374 = vpack.c.b16 %v6598, %v6595
        %v8375 = vpack.c.b16 %v6599, %v6596
        %v8376 = vpack.c.b16 %v6603, %v6600
        %v8377 = vpack.c.b16 %v6604, %v6601
        %v8378 = vpack.c.b16 %v6605, %v6602
        %v8379 = vpack.c.b16 %v6609, %v6606
        %v8380 = vpack.c.b16 %v6610, %v6607
        %v8381 = vpack.c.b16 %v6611, %v6608
        %v8382 = vpack.c.b16 %v6615, %v6612
        %v8383 = vpack.c.b16 %v6616, %v6613
        %v8384 = vpack.c.b16 %v6617, %v6614
        %v8385 = vpack.c.b16 %v6621, %v6618
        %v8386 = vpack.c.b16 %v6622, %v6619
        %v8387 = vpack.c.b16 %v6623, %v6620
        %v8388 = vpack.c.b16 %v6627, %v6624
        %v8389 = vpack.c.b16 %v6628, %v6625
        %v8390 = vpack.c.b16 %v6629, %v6626
        %v8391 = vpack.c.b16 %v6633, %v6630
        %v8392 = vpack.c.b16 %v6634, %v6631
        %v8393 = vpack.c.b16 %v6635, %v6632
        %v8394 = vpack.c.b16 %v6639, %v6636
        %v8395 = vpack.c.b16 %v6640, %v6637
        %v8396 = vpack.c.b16 %v6641, %v6638
        %v8397 = vpack.c.b16 %v6645, %v6642
        %v8398 = vpack.c.b16 %v6646, %v6643
        %v8399 = vpack.c.b16 %v6647, %v6644
        %v8400 = vpack.c.b16 %v6651, %v6648
        %v8401 = vpack.c.b16 %v6652, %v6649
        %v8402 = vpack.c.b16 %v6653, %v6650
        %v8403 = vpack.c.b16 %v6657, %v6654
        %v8404 = vpack.c.b16 %v6658, %v6655
        %v8405 = vpack.c.b16 %v6659, %v6656
        %v8406 = vpack.c.b16 %v6663, %v6660
        %v8407 = vpack.c.b16 %v6664, %v6661
        %v8408 = vpack.c.b16 %v6665, %v6662
        %v8409 = vpack.c.b16 %v6669, %v6666
        %v8410 = vpack.c.b16 %v6670, %v6667
        %v8411 = vpack.c.b16 %v6671, %v6668
        %v8412 = vpack.c.b16 %v6675, %v6672
        %v8413 = vpack.c.b16 %v6676, %v6673
        %v8414 = vpack.c.b16 %v6677, %v6674
        %v8415 = vpack.c.b16 %v6681, %v6678
        %v8416 = vpack.c.b16 %v6682, %v6679
        %v8417 = vpack.c.b16 %v6683, %v6680
        %v8418 = vpack.c.b16 %v6687, %v6684
        %v8419 = vpack.c.b16 %v6688, %v6685
        %v8420 = vpack.c.b16 %v6689, %v6686
        %v8421 = vpack.c.b16 %v6693, %v6690
        %v8422 = vpack.c.b16 %v6694, %v6691
        %v8423 = vpack.c.b16 %v6695, %v6692
        %v8424 = vpack.c.b16 %v6699, %v6696
        %v8425 = vpack.c.b16 %v6700, %v6697
        %v8426 = vpack.c.b16 %v6701, %v6698
        %v8427 = vpack.c.b16 %v6705, %v6702
        %v8428 = vpack.c.b16 %v6706, %v6703
        %v8429 = vpack.c.b16 %v6707, %v6704
        %v8430 = vpack.c.b16 %v6711, %v6708
        %v8431 = vpack.c.b16 %v6712, %v6709
        %v8432 = vpack.c.b16 %v6713, %v6710
        %v8433 = vpack.c.b16 %v6717, %v6714
        %v8434 = vpack.c.b16 %v6718, %v6715
        %v8435 = vpack.c.b16 %v6719, %v6716
        %v8436 = vpack.c.b16 %v6723, %v6720
        %v8437 = vpack.c.b16 %v6724, %v6721
        %v8438 = vpack.c.b16 %v6725, %v6722
        %v8439 = vpack.c.b16 %v6729, %v6726
        %v8440 = vpack.c.b16 %v6730, %v6727
        %v8441 = vpack.c.b16 %v6731, %v6728
        %v8442 = vpack.c.b16 %v6735, %v6732
        %v8443 = vpack.c.b16 %v6736, %v6733
        %v8444 = vpack.c.b16 %v6737, %v6734
        %v8445 = vpack.c.b16 %v6741, %v6738
        %v8446 = vpack.c.b16 %v6742, %v6739
        %v8447 = vpack.c.b16 %v6743, %v6740
        %v8448 = vpack.c.b16 %v6747, %v6744
        %v8449 = vpack.c.b16 %v6748, %v6745
        %v8450 = vpack.c.b16 %v6749, %v6746
        %v8451 = vpack.c.b16 %v6753, %v6750
        %v8452 = vpack.c.b16 %v6754, %v6751
        %v8453 = vpack.c.b16 %v6755, %v6752
        %v8454 = vpack.c.b16 %v6759, %v6756
        %v8455 = vpack.c.b16 %v6760, %v6757
        %v8456 = vpack.c.b16 %v6761, %v6758
        %v8457 = vpack.c.b16 %v6765, %v6762
        %v8458 = vpack.c.b16 %v6766, %v6763
        %v8459 = vpack.c.b16 %v6767, %v6764
        %v8460 = vpack.c.b16 %v6771, %v6768
        %v8461 = vpack.c.b16 %v6772, %v6769
        %v8462 = vpack.c.b16 %v6773, %v6770
        %v8463 = vpack.c.b16 %v6777, %v6774
        %v8464 = vpack.c.b16 %v6778, %v6775
        %v8465 = vpack.c.b16 %v6779, %v6776
        %v8466 = vpack.c.b16 %v6783, %v6780
        %v8467 = vpack.c.b16 %v6784, %v6781
        %v8468 = vpack.c.b16 %v6785, %v6782
        %v8469 = vpack.c.b16 %v6789, %v6786
        %v8470 = vpack.c.b16 %v6790, %v6787
        %v8471 = vpack.c.b16 %v6791, %v6788
        %v8472 = vpack.c.b16 %v6795, %v6792
        %v8473 = vpack.c.b16 %v6796, %v6793
        %v8474 = vpack.c.b16 %v6797, %v6794
        %v8475 = vpack.c.b16 %v6801, %v6798
        %v8476 = vpack.c.b16 %v6802, %v6799
        %v8477 = vpack.c.b16 %v6803, %v6800
        %v8478 = vpack.c.b16 %v6807, %v6804
        %v8479 = vpack.c.b16 %v6808, %v6805
        %v8480 = vpack.c.b16 %v6809, %v6806
        %v8481 = vpack.c.b16 %v6813, %v6810
        %v8482 = vpack.c.b16 %v6814, %v6811
        %v8483 = vpack.c.b16 %v6815, %v6812
        %v8484 = vpack.c.b16 %v6819, %v6816
        %v8485 = vpack.c.b16 %v6820, %v6817
        %v8486 = vpack.c.b16 %v6821, %v6818
        %v8487 = vpack.c.b16 %v6825, %v6822
        %v8488 = vpack.c.b16 %v6826, %v6823
        %v8489 = vpack.c.b16 %v6827, %v6824
        %v8490 = vpack.c.b16 %v6831, %v6828
        %v8491 = vpack.c.b16 %v6832, %v6829
        %v8492 = vpack.c.b16 %v6833, %v6830
        %v8493 = vpack.c.b16 %v6837, %v6834
        %v8494 = vpack.c.b16 %v6838, %v6835
        %v8495 = vpack.c.b16 %v6839, %v6836
        %v8496 = vpack.c.b16 %v6843, %v6840
        %v8497 = vpack.c.b16 %v6844, %v6841
        %v8498 = vpack.c.b16 %v6845, %v6842
        %v8499 = vpack.c.b16 %v6849, %v6846
        %v8500 = vpack.c.b16 %v6850, %v6847
        %v8501 = vpack.c.b16 %v6851, %v6848
        %v8502 = vpack.c.b16 %v6855, %v6852
        %v8503 = vpack.c.b16 %v6856, %v6853
        %v8504 = vpack.c.b16 %v6857, %v6854
        %v8505 = vpack.c.b16 %v6861, %v6858
        %v8506 = vpack.c.b16 %v6862, %v6859
        %v8507 = vpack.c.b16 %v6863, %v6860
        %v8508 = vpack.c.b16 %v6867, %v6864
        %v8509 = vpack.c.b16 %v6868, %v6865
        %v8510 = vpack.c.b16 %v6869, %v6866
        %v8511 = vpack.c.b16 %v6873, %v6870
        %v8512 = vpack.c.b16 %v6874, %v6871
        %v8513 = vpack.c.b16 %v6875, %v6872
        %v8514 = vpack.c.b16 %v6879, %v6876
        %v8515 = vpack.c.b16 %v6880, %v6877
        %v8516 = vpack.c.b16 %v6881, %v6878
        %v8517 = vpack.c.b16 %v6885, %v6882
        %v8518 = vpack.c.b16 %v6886, %v6883
        %v8519 = vpack.c.b16 %v6887, %v6884
        %v8520 = vpack.c.b16 %v6891, %v6888
        %v8521 = vpack.c.b16 %v6892, %v6889
        %v8522 = vpack.c.b16 %v6893, %v6890
        %v8523 = vpack.c.b16 %v6897, %v6894
        %v8524 = vpack.c.b16 %v6898, %v6895
        %v8525 = vpack.c.b16 %v6899, %v6896
        %v8526 = vpack.c.b16 %v6903, %v6900
        %v8527 = vpack.c.b16 %v6904, %v6901
        %v8528 = vpack.c.b16 %v6905, %v6902
        %v8529 = vpack.c.b16 %v6909, %v6906
        %v8530 = vpack.c.b16 %v6910, %v6907
        %v8531 = vpack.c.b16 %v6911, %v6908
        %v8532 = vpack.c.b16 %v6915, %v6912
        %v8533 = vpack.c.b16 %v6916, %v6913
        %v8534 = vpack.c.b16 %v6917, %v6914
        %v8535 = vpack.c.b16 %v6921, %v6918
        %v8536 = vpack.c.b16 %v6922, %v6919
        %v8537 = vpack.c.b16 %v6923, %v6920
        %v8538 = vpack.c.b16 %v6927, %v6924
        %v8539 = vpack.c.b16 %v6928, %v6925
        %v8540 = vpack.c.b16 %v6929, %v6926
        %v8541 = vpack.c.b16 %v6933, %v6930
        %v8542 = vpack.c.b16 %v6934, %v6931
        %v8543 = vpack.c.b16 %v6935, %v6932
        %v8544 = vpack.c.b16 %v6939, %v6936
        %v8545 = vpack.c.b16 %v6940, %v6937
        %v8546 = vpack.c.b16 %v6941, %v6938
        %v8547 = vpack.c.b16 %v6945, %v6942
        %v8548 = vpack.c.b16 %v6946, %v6943
        %v8549 = vpack.c.b16 %v6947, %v6944
        %v8550 = vpack.c.b16 %v6951, %v6948
        %v8551 = vpack.c.b16 %v6952, %v6949
        %v8552 = vpack.c.b16 %v6953, %v6950
        %v8553 = vpack.c.b16 %v6957, %v6954
        %v8554 = vpack.c.b16 %v6958, %v6955
        %v8555 = vpack.c.b16 %v6959, %v6956
        %v8556 = vpack.c.b16 %v6963, %v6960
        %v8557 = vpack.c.b16 %v6964, %v6961
        %v8558 = vpack.c.b16 %v6965, %v6962
        %v8559 = vpack.c.b16 %v6969, %v6966
        %v8560 = vpack.c.b16 %v6970, %v6967
        %v8561 = vpack.c.b16 %v6971, %v6968
        %v8562 = vpack.c.b16 %v6975, %v6972
        %v8563 = vpack.c.b16 %v6976, %v6973
        %v8564 = vpack.c.b16 %v6977, %v6974
        %v8565 = vpack.c.b16 %v6981, %v6978
        %v8566 = vpack.c.b16 %v6982, %v6979
        %v8567 = vpack.c.b16 %v6983, %v6980
        %v8568 = vpack.c.b16 %v6987, %v6984
        %v8569 = vpack.c.b16 %v6988, %v6985
        %v8570 = vpack.c.b16 %v6989, %v6986
        %v8571 = vpack.c.b16 %v6993, %v6990
        %v8572 = vpack.c.b16 %v6994, %v6991
        %v8573 = vpack.c.b16 %v6995, %v6992
        %v8574 = vpack.c.b16 %v6999, %v6996
        %v8575 = vpack.c.b16 %v7000, %v6997
        %v8576 = vpack.c.b16 %v7001, %v6998
        %v8577 = vpack.c.b16 %v7005, %v7002
        %v8578 = vpack.c.b16 %v7006, %v7003
        %v8579 = vpack.c.b16 %v7007, %v7004
        %v8580 = vpack.c.b16 %v7011, %v7008
        %v8581 = vpack.c.b16 %v7012, %v7009
        %v8582 = vpack.c.b16 %v7013, %v7010
        %v8583 = vpack.c.b16 %v7017, %v7014
        %v8584 = vpack.c.b16 %v7018, %v7015
        %v8585 = vpack.c.b16 %v7019, %v7016
        %v8586 = vpack.c.b16 %v7023, %v7020
        %v8587 = vpack.c.b16 %v7024, %v7021
        %v8588 = vpack.c.b16 %v7025, %v7022
        %v8589 = vpack.c.b16 %v7029, %v7026
        %v8590 = vpack.c.b16 %v7030, %v7027
        %v8591 = vpack.c.b16 %v7031, %v7028
        %v8592 = vpack.c.b16 %v7035, %v7032
        %v8593 = vpack.c.b16 %v7036, %v7033
        %v8594 = vpack.c.b16 %v7037, %v7034
        %v8595 = vpack.c.b16 %v7041, %v7038
        %v8596 = vpack.c.b16 %v7042, %v7039
        %v8597 = vpack.c.b16 %v7043, %v7040
        %v8598 = vpack.c.b16 %v7047, %v7044
        %v8599 = vpack.c.b16 %v7048, %v7045
        %v8600 = vpack.c.b16 %v7049, %v7046
        %v8601 = vpack.c.b16 %v7053, %v7050
        %v8602 = vpack.c.b16 %v7054, %v7051
        %v8603 = vpack.c.b16 %v7055, %v7052
        %v8604 = vpack.c.b16 %v7059, %v7056
        %v8605 = vpack.c.b16 %v7060, %v7057
        %v8606 = vpack.c.b16 %v7061, %v7058
        %v8607 = vpack.c.b16 %v7065, %v7062
        %v8608 = vpack.c.b16 %v7066, %v7063
        %v8609 = vpack.c.b16 %v7067, %v7064
        %v8610 = vpack.c.b16 %v7071, %v7068
        %v8611 = vpack.c.b16 %v7072, %v7069
        %v8612 = vpack.c.b16 %v7073, %v7070
        %v8613 = vpack.c.b16 %v7077, %v7074
        %v8614 = vpack.c.b16 %v7078, %v7075
        %v8615 = vpack.c.b16 %v7079, %v7076
        %v8616 = vpack.c.b16 %v7083, %v7080
        %v8617 = vpack.c.b16 %v7084, %v7081
        %v8618 = vpack.c.b16 %v7085, %v7082
        %v8619 = vpack.c.b16 %v7089, %v7086
        %v8620 = vpack.c.b16 %v7090, %v7087
        %v8621 = vpack.c.b16 %v7091, %v7088
        %v8622 = vpack.c.b16 %v7095, %v7092
        %v8623 = vpack.c.b16 %v7096, %v7093
        %v8624 = vpack.c.b16 %v7097, %v7094
        %v8625 = vpack.c.b16 %v7101, %v7098
        %v8626 = vpack.c.b16 %v7102, %v7099
        %v8627 = vpack.c.b16 %v7103, %v7100
        %v8628 = vpack.c.b16 %v7107, %v7104
        %v8629 = vpack.c.b16 %v7108, %v7105
        %v8630 = vpack.c.b16 %v7109, %v7106
        %v8631 = vpack.c.b16 %v7113, %v7110
        %v8632 = vpack.c.b16 %v7114, %v7111
        %v8633 = vpack.c.b16 %v7115, %v7112
        %v8634 = vpack.c.b16 %v7119, %v7116
        %v8635 = vpack.c.b16 %v7120, %v7117
        %v8636 = vpack.c.b16 %v7121, %v7118
        %v8637 = vpack.c.b16 %v7125, %v7122
        %v8638 = vpack.c.b16 %v7126, %v7123
        %v8639 = vpack.c.b16 %v7127, %v7124
        %v8640 = vpack.c.b16 %v7131, %v7128
        %v8641 = vpack.c.b16 %v7132, %v7129
        %v8642 = vpack.c.b16 %v7133, %v7130
        %v8643 = vpack.c.b16 %v7137, %v7134
        %v8644 = vpack.c.b16 %v7138, %v7135
        %v8645 = vpack.c.b16 %v7139, %v7136
        %v8646 = vpack.c.b16 %v7143, %v7140
        %v8647 = vpack.c.b16 %v7144, %v7141
        %v8648 = vpack.c.b16 %v7145, %v7142
        %v8649 = vpack.c.b16 %v7149, %v7146
        %v8650 = vpack.c.b16 %v7150, %v7147
        %v8651 = vpack.c.b16 %v7151, %v7148
        %v8652 = vpack.c.b16 %v7155, %v7152
        %v8653 = vpack.c.b16 %v7156, %v7153
        %v8654 = vpack.c.b16 %v7157, %v7154
        %v8655 = vpack.c.b16 %v7161, %v7158
        %v8656 = vpack.c.b16 %v7162, %v7159
        %v8657 = vpack.c.b16 %v7163, %v7160
        %v8658 = vpack.c.b16 %v7167, %v7164
        %v8659 = vpack.c.b16 %v7168, %v7165
        %v8660 = vpack.c.b16 %v7169, %v7166
        %v8661 = vpack.c.b16 %v7173, %v7170
        %v8662 = vpack.c.b16 %v7174, %v7171
        %v8663 = vpack.c.b16 %v7175, %v7172
        %v8664 = vpack.c.b16 %v7179, %v7176
        %v8665 = vpack.c.b16 %v7180, %v7177
        %v8666 = vpack.c.b16 %v7181, %v7178
        %v8667 = vpack.c.b16 %v7185, %v7182
        %v8668 = vpack.c.b16 %v7186, %v7183
        %v8669 = vpack.c.b16 %v7187, %v7184
        %v8670 = vpack.c.b16 %v7191, %v7188
        %v8671 = vpack.c.b16 %v7192, %v7189
        %v8672 = vpack.c.b16 %v7193, %v7190
        %v8673 = vpack.c.b16 %v7197, %v7194
        %v8674 = vpack.c.b16 %v7198, %v7195
        %v8675 = vpack.c.b16 %v7199, %v7196
        %v8676 = vpack.c.b16 %v7203, %v7200
        %v8677 = vpack.c.b16 %v7204, %v7201
        %v8678 = vpack.c.b16 %v7205, %v7202
        %v8679 = vpack.c.b16 %v7209, %v7206
        %v8680 = vpack.c.b16 %v7210, %v7207
        %v8681 = vpack.c.b16 %v7211, %v7208
        %v8682 = vpack.c.b16 %v7215, %v7212
        %v8683 = vpack.c.b16 %v7216, %v7213
        %v8684 = vpack.c.b16 %v7217, %v7214
        %v8685 = vpack.c.b16 %v7221, %v7218
        %v8686 = vpack.c.b16 %v7222, %v7219
        %v8687 = vpack.c.b16 %v7223, %v7220
        %v8688 = vpack.c.b16 %v7227, %v7224
        %v8689 = vpack.c.b16 %v7228, %v7225
        %v8690 = vpack.c.b16 %v7229, %v7226
        %v8691 = vpack.c.b16 %v7233, %v7230
        %v8692 = vpack.c.b16 %v7234, %v7231
        %v8693 = vpack.c.b16 %v7235, %v7232
        %v8694 = vpack.c.b16 %v7239, %v7236
        %v8695 = vpack.c.b16 %v7240, %v7237
        %v8696 = vpack.c.b16 %v7241, %v7238
        %v8697 = vpack.c.b16 %v7245, %v7242
        %v8698 = vpack.c.b16 %v7246, %v7243
        %v8699 = vpack.c.b16 %v7247, %v7244
        %v8700 = vpack.c.b16 %v7251, %v7248
        %v8701 = vpack.c.b16 %v7252, %v7249
        %v8702 = vpack.c.b16 %v7253, %v7250
        %v8703 = vpack.c.b16 %v7257, %v7254
        %v8704 = vpack.c.b16 %v7258, %v7255
        %v8705 = vpack.c.b16 %v7259, %v7256
        %v8706 = vpack.c.b16 %v7263, %v7260
        %v8707 = vpack.c.b16 %v7264, %v7261
        %v8708 = vpack.c.b16 %v7265, %v7262
        %v8709 = vpack.c.b16 %v7269, %v7266
        %v8710 = vpack.c.b16 %v7270, %v7267
        %v8711 = vpack.c.b16 %v7271, %v7268
        %10152 = vmatpush.bf16.msra.mxu0 %v7293
        %10153 = vmatpush.bf16.msra.mxu0 %v7290
        %10154 = vmatpush.bf16.msra.mxu0 %v7287
        %10155 = vmatpush.bf16.msra.mxu0 %v7284
        %10156 = vmatpush.bf16.msra.mxu0 %v7281
        %10157 = vmatpush.bf16.msra.mxu0 %v7278
        %10158 = vmatpush.bf16.msra.mxu0 %v7275
        %10159 = vmatpush.bf16.msra.mxu0 %v7272
        %10160 = vmatmul.bf16.gmra.mxu0 %v2352
        %v10161 = vpop.f32.mrf.mxu0
        %v10162 = vadd.f32 0.0, %v10161
        %v10163 = vpop.f32.mrf.mxu0
        %10164 = vdwg.mxu0
        %10165 = vmatpush.bf16.msra.mxu0 %v7317
        %10166 = vmatpush.bf16.msra.mxu0 %v7314
        %10167 = vmatpush.bf16.msra.mxu0 %v7311
        %10168 = vmatpush.bf16.msra.mxu0 %v7308
        %10169 = vmatpush.bf16.msra.mxu0 %v7305
        %10170 = vmatpush.bf16.msra.mxu0 %v7302
        %10171 = vmatpush.bf16.msra.mxu0 %v7299
        %10172 = vmatpush.bf16.msra.mxu0 %v7296
        %10173 = vmatmul.bf16.gmra.mxu0 %v2353
        %v10174 = vpop.f32.mrf.mxu0
        %v10175 = vadd.f32 %v10162, %v10174
        %v10176 = vpop.f32.mrf.mxu0
        %10177 = vdwg.mxu0
        %10178 = vmatpush.bf16.msra.mxu0 %v7341
        %10179 = vmatpush.bf16.msra.mxu0 %v7338
        %10180 = vmatpush.bf16.msra.mxu0 %v7335
        %10181 = vmatpush.bf16.msra.mxu0 %v7332
        %10182 = vmatpush.bf16.msra.mxu0 %v7329
        %10183 = vmatpush.bf16.msra.mxu0 %v7326
        %10184 = vmatpush.bf16.msra.mxu0 %v7323
        %10185 = vmatpush.bf16.msra.mxu0 %v7320
        %10186 = vmatmul.bf16.gmra.mxu0 %v2354
        %v10187 = vpop.f32.mrf.mxu0
        %v10188 = vadd.f32 %v10175, %v10187
        %v10189 = vpop.f32.mrf.mxu0
        %10190 = vdwg.mxu0
        %10191 = vmatpush.bf16.msra.mxu0 %v7365
        %10192 = vmatpush.bf16.msra.mxu0 %v7362
        %10193 = vmatpush.bf16.msra.mxu0 %v7359
        %10194 = vmatpush.bf16.msra.mxu0 %v7356
        %10195 = vmatpush.bf16.msra.mxu0 %v7353
        %10196 = vmatpush.bf16.msra.mxu0 %v7350
        %10197 = vmatpush.bf16.msra.mxu0 %v7347
        %10198 = vmatpush.bf16.msra.mxu0 %v7344
        %10199 = vmatmul.bf16.gmra.mxu0 %v2355
        %v10200 = vpop.f32.mrf.mxu0
        %v10201 = vadd.f32 %v10188, %v10200
        %v10202 = vpop.f32.mrf.mxu0
        %10203 = vdwg.mxu0
        %10204 = vmatpush.bf16.msra.mxu0 %v7389
        %10205 = vmatpush.bf16.msra.mxu0 %v7386
        %10206 = vmatpush.bf16.msra.mxu0 %v7383
        %10207 = vmatpush.bf16.msra.mxu0 %v7380
        %10208 = vmatpush.bf16.msra.mxu0 %v7377
        %10209 = vmatpush.bf16.msra.mxu0 %v7374
        %10210 = vmatpush.bf16.msra.mxu0 %v7371
        %10211 = vmatpush.bf16.msra.mxu0 %v7368
        %10212 = vmatmul.bf16.gmra.mxu0 %v2356
        %v10213 = vpop.f32.mrf.mxu0
        %v10214 = vadd.f32 %v10201, %v10213
        %v10215 = vpop.f32.mrf.mxu0
        %10216 = vdwg.mxu0
        %10217 = vmatpush.bf16.msra.mxu0 %v7413
        %10218 = vmatpush.bf16.msra.mxu0 %v7410
        %10219 = vmatpush.bf16.msra.mxu0 %v7407
        %10220 = vmatpush.bf16.msra.mxu0 %v7404
        %10221 = vmatpush.bf16.msra.mxu0 %v7401
        %10222 = vmatpush.bf16.msra.mxu0 %v7398
        %10223 = vmatpush.bf16.msra.mxu0 %v7395
        %10224 = vmatpush.bf16.msra.mxu0 %v7392
        %10225 = vmatmul.bf16.gmra.mxu0 %v2357
        %v10226 = vpop.f32.mrf.mxu0
        %v10227 = vadd.f32 %v10214, %v10226
        %v10228 = vpop.f32.mrf.mxu0
        %10229 = vdwg.mxu0
        %10230 = vmatpush.bf16.msra.mxu0 %v7437
        %10231 = vmatpush.bf16.msra.mxu0 %v7434
        %10232 = vmatpush.bf16.msra.mxu0 %v7431
        %10233 = vmatpush.bf16.msra.mxu0 %v7428
        %10234 = vmatpush.bf16.msra.mxu0 %v7425
        %10235 = vmatpush.bf16.msra.mxu0 %v7422
        %10236 = vmatpush.bf16.msra.mxu0 %v7419
        %10237 = vmatpush.bf16.msra.mxu0 %v7416
        %10238 = vmatmul.bf16.gmra.mxu0 %v2358
        %v10239 = vpop.f32.mrf.mxu0
        %v10240 = vadd.f32 %v10227, %v10239
        %v10241 = vpop.f32.mrf.mxu0
        %10242 = vdwg.mxu0
        %10243 = vmatpush.bf16.msra.mxu0 %v7461
        %10244 = vmatpush.bf16.msra.mxu0 %v7458
        %10245 = vmatpush.bf16.msra.mxu0 %v7455
        %10246 = vmatpush.bf16.msra.mxu0 %v7452
        %10247 = vmatpush.bf16.msra.mxu0 %v7449
        %10248 = vmatpush.bf16.msra.mxu0 %v7446
        %10249 = vmatpush.bf16.msra.mxu0 %v7443
        %10250 = vmatpush.bf16.msra.mxu0 %v7440
        %10251 = vmatmul.bf16.gmra.mxu0 %v2359
        %v10252 = vpop.f32.mrf.mxu0
        %v10253 = vadd.f32 %v10240, %v10252
        %v10254 = vpop.f32.mrf.mxu0
        %10255 = vdwg.mxu0
        %10256 = vmatpush.bf16.msra.mxu0 %v7485
        %10257 = vmatpush.bf16.msra.mxu0 %v7482
        %10258 = vmatpush.bf16.msra.mxu0 %v7479
        %10259 = vmatpush.bf16.msra.mxu0 %v7476
        %10260 = vmatpush.bf16.msra.mxu0 %v7473
        %10261 = vmatpush.bf16.msra.mxu0 %v7470
        %10262 = vmatpush.bf16.msra.mxu0 %v7467
        %10263 = vmatpush.bf16.msra.mxu0 %v7464
        %10264 = vmatmul.bf16.gmra.mxu0 %v2360
        %v10265 = vpop.f32.mrf.mxu0
        %v10266 = vadd.f32 %v10253, %v10265
        %v10267 = vpop.f32.mrf.mxu0
        %10268 = vdwg.mxu0
        %10269 = vmatpush.bf16.msra.mxu0 %v7509
        %10270 = vmatpush.bf16.msra.mxu0 %v7506
        %10271 = vmatpush.bf16.msra.mxu0 %v7503
        %10272 = vmatpush.bf16.msra.mxu0 %v7500
        %10273 = vmatpush.bf16.msra.mxu0 %v7497
        %10274 = vmatpush.bf16.msra.mxu0 %v7494
        %10275 = vmatpush.bf16.msra.mxu0 %v7491
        %10276 = vmatpush.bf16.msra.mxu0 %v7488
        %10277 = vmatmul.bf16.gmra.mxu0 %v2361
        %v10278 = vpop.f32.mrf.mxu0
        %v10279 = vadd.f32 %v10266, %v10278
        %v10280 = vpop.f32.mrf.mxu0
        %10281 = vdwg.mxu0
        %10282 = vmatpush.bf16.msra.mxu0 %v7533
        %10283 = vmatpush.bf16.msra.mxu0 %v7530
        %10284 = vmatpush.bf16.msra.mxu0 %v7527
        %10285 = vmatpush.bf16.msra.mxu0 %v7524
        %10286 = vmatpush.bf16.msra.mxu0 %v7521
        %10287 = vmatpush.bf16.msra.mxu0 %v7518
        %10288 = vmatpush.bf16.msra.mxu0 %v7515
        %10289 = vmatpush.bf16.msra.mxu0 %v7512
        %10290 = vmatmul.bf16.gmra.mxu0 %v2362
        %v10291 = vpop.f32.mrf.mxu0
        %v10292 = vadd.f32 %v10279, %v10291
        %v10293 = vpop.f32.mrf.mxu0
        %10294 = vdwg.mxu0
        %10295 = vmatpush.bf16.msra.mxu0 %v7557
        %10296 = vmatpush.bf16.msra.mxu0 %v7554
        %10297 = vmatpush.bf16.msra.mxu0 %v7551
        %10298 = vmatpush.bf16.msra.mxu0 %v7548
        %10299 = vmatpush.bf16.msra.mxu0 %v7545
        %10300 = vmatpush.bf16.msra.mxu0 %v7542
        %10301 = vmatpush.bf16.msra.mxu0 %v7539
        %10302 = vmatpush.bf16.msra.mxu0 %v7536
        %10303 = vmatmul.bf16.gmra.mxu0 %v2363
        %v10304 = vpop.f32.mrf.mxu0
        %v10305 = vadd.f32 %v10292, %v10304
        %v10306 = vpop.f32.mrf.mxu0
        %10307 = vdwg.mxu0
        %10308 = vmatpush.bf16.msra.mxu0 %v7581
        %10309 = vmatpush.bf16.msra.mxu0 %v7578
        %10310 = vmatpush.bf16.msra.mxu0 %v7575
        %10311 = vmatpush.bf16.msra.mxu0 %v7572
        %10312 = vmatpush.bf16.msra.mxu0 %v7569
        %10313 = vmatpush.bf16.msra.mxu0 %v7566
        %10314 = vmatpush.bf16.msra.mxu0 %v7563
        %10315 = vmatpush.bf16.msra.mxu0 %v7560
        %10316 = vmatmul.bf16.gmra.mxu0 %v2364
        %v10317 = vpop.f32.mrf.mxu0
        %v10318 = vadd.f32 %v10305, %v10317
        %v10319 = vpop.f32.mrf.mxu0
        %10320 = vdwg.mxu0
        %10321 = vmatpush.bf16.msra.mxu0 %v7605
        %10322 = vmatpush.bf16.msra.mxu0 %v7602
        %10323 = vmatpush.bf16.msra.mxu0 %v7599
        %10324 = vmatpush.bf16.msra.mxu0 %v7596
        %10325 = vmatpush.bf16.msra.mxu0 %v7593
        %10326 = vmatpush.bf16.msra.mxu0 %v7590
        %10327 = vmatpush.bf16.msra.mxu0 %v7587
        %10328 = vmatpush.bf16.msra.mxu0 %v7584
        %10329 = vmatmul.bf16.gmra.mxu0 %v2365
        %v10330 = vpop.f32.mrf.mxu0
        %v10331 = vadd.f32 %v10318, %v10330
        %v10332 = vpop.f32.mrf.mxu0
        %10333 = vdwg.mxu0
        %10334 = vmatpush.bf16.msra.mxu0 %v7629
        %10335 = vmatpush.bf16.msra.mxu0 %v7626
        %10336 = vmatpush.bf16.msra.mxu0 %v7623
        %10337 = vmatpush.bf16.msra.mxu0 %v7620
        %10338 = vmatpush.bf16.msra.mxu0 %v7617
        %10339 = vmatpush.bf16.msra.mxu0 %v7614
        %10340 = vmatpush.bf16.msra.mxu0 %v7611
        %10341 = vmatpush.bf16.msra.mxu0 %v7608
        %10342 = vmatmul.bf16.gmra.mxu0 %v2366
        %v10343 = vpop.f32.mrf.mxu0
        %v10344 = vadd.f32 %v10331, %v10343
        %v10345 = vpop.f32.mrf.mxu0
        %10346 = vdwg.mxu0
        %10347 = vmatpush.bf16.msra.mxu0 %v7653
        %10348 = vmatpush.bf16.msra.mxu0 %v7650
        %10349 = vmatpush.bf16.msra.mxu0 %v7647
        %10350 = vmatpush.bf16.msra.mxu0 %v7644
        %10351 = vmatpush.bf16.msra.mxu0 %v7641
        %10352 = vmatpush.bf16.msra.mxu0 %v7638
        %10353 = vmatpush.bf16.msra.mxu0 %v7635
        %10354 = vmatpush.bf16.msra.mxu0 %v7632
        %10355 = vmatmul.bf16.gmra.mxu0 %v2367
        %v10356 = vpop.f32.mrf.mxu0
        %v10357 = vadd.f32 %v10344, %v10356
        %v10358 = vpop.f32.mrf.mxu0
        %10359 = vdwg.mxu0
        %10360 = vmatpush.bf16.msra.mxu0 %v7677
        %10361 = vmatpush.bf16.msra.mxu0 %v7674
        %10362 = vmatpush.bf16.msra.mxu0 %v7671
        %10363 = vmatpush.bf16.msra.mxu0 %v7668
        %10364 = vmatpush.bf16.msra.mxu0 %v7665
        %10365 = vmatpush.bf16.msra.mxu0 %v7662
        %10366 = vmatpush.bf16.msra.mxu0 %v7659
        %10367 = vmatpush.bf16.msra.mxu0 %v7656
        %10368 = vmatmul.bf16.gmra.mxu0 %v2368
        %v10369 = vpop.f32.mrf.mxu0
        %v10370 = vadd.f32 %v10357, %v10369
        %v10371 = vpop.f32.mrf.mxu0
        %10372 = vdwg.mxu0
        %10373 = vmatpush.bf16.msra.mxu0 %v7701
        %10374 = vmatpush.bf16.msra.mxu0 %v7698
        %10375 = vmatpush.bf16.msra.mxu0 %v7695
        %10376 = vmatpush.bf16.msra.mxu0 %v7692
        %10377 = vmatpush.bf16.msra.mxu0 %v7689
        %10378 = vmatpush.bf16.msra.mxu0 %v7686
        %10379 = vmatpush.bf16.msra.mxu0 %v7683
        %10380 = vmatpush.bf16.msra.mxu0 %v7680
        %10381 = vmatmul.bf16.gmra.mxu0 %v2369
        %v10382 = vpop.f32.mrf.mxu0
        %v10383 = vadd.f32 %v10370, %v10382
        %v10384 = vpop.f32.mrf.mxu0
        %10385 = vdwg.mxu0
        %10386 = vmatpush.bf16.msra.mxu0 %v7725
        %10387 = vmatpush.bf16.msra.mxu0 %v7722
        %10388 = vmatpush.bf16.msra.mxu0 %v7719
        %10389 = vmatpush.bf16.msra.mxu0 %v7716
        %10390 = vmatpush.bf16.msra.mxu0 %v7713
        %10391 = vmatpush.bf16.msra.mxu0 %v7710
        %10392 = vmatpush.bf16.msra.mxu0 %v7707
        %10393 = vmatpush.bf16.msra.mxu0 %v7704
        %10394 = vmatmul.bf16.gmra.mxu0 %v2370
        %v10395 = vpop.f32.mrf.mxu0
        %v10396 = vadd.f32 %v10383, %v10395
        %v10397 = vpop.f32.mrf.mxu0
        %10398 = vdwg.mxu0
        %10399 = vmatpush.bf16.msra.mxu0 %v7749
        %10400 = vmatpush.bf16.msra.mxu0 %v7746
        %10401 = vmatpush.bf16.msra.mxu0 %v7743
        %10402 = vmatpush.bf16.msra.mxu0 %v7740
        %10403 = vmatpush.bf16.msra.mxu0 %v7737
        %10404 = vmatpush.bf16.msra.mxu0 %v7734
        %10405 = vmatpush.bf16.msra.mxu0 %v7731
        %10406 = vmatpush.bf16.msra.mxu0 %v7728
        %10407 = vmatmul.bf16.gmra.mxu0 %v2371
        %v10408 = vpop.f32.mrf.mxu0
        %v10409 = vadd.f32 %v10396, %v10408
        %v10410 = vpop.f32.mrf.mxu0
        %10411 = vdwg.mxu0
        %10412 = vmatpush.bf16.msra.mxu0 %v7773
        %10413 = vmatpush.bf16.msra.mxu0 %v7770
        %10414 = vmatpush.bf16.msra.mxu0 %v7767
        %10415 = vmatpush.bf16.msra.mxu0 %v7764
        %10416 = vmatpush.bf16.msra.mxu0 %v7761
        %10417 = vmatpush.bf16.msra.mxu0 %v7758
        %10418 = vmatpush.bf16.msra.mxu0 %v7755
        %10419 = vmatpush.bf16.msra.mxu0 %v7752
        %10420 = vmatmul.bf16.gmra.mxu0 %v2372
        %v10421 = vpop.f32.mrf.mxu0
        %v10422 = vadd.f32 %v10409, %v10421
        %v10423 = vpop.f32.mrf.mxu0
        %10424 = vdwg.mxu0
        %10425 = vmatpush.bf16.msra.mxu0 %v7797
        %10426 = vmatpush.bf16.msra.mxu0 %v7794
        %10427 = vmatpush.bf16.msra.mxu0 %v7791
        %10428 = vmatpush.bf16.msra.mxu0 %v7788
        %10429 = vmatpush.bf16.msra.mxu0 %v7785
        %10430 = vmatpush.bf16.msra.mxu0 %v7782
        %10431 = vmatpush.bf16.msra.mxu0 %v7779
        %10432 = vmatpush.bf16.msra.mxu0 %v7776
        %10433 = vmatmul.bf16.gmra.mxu0 %v2373
        %v10434 = vpop.f32.mrf.mxu0
        %v10435 = vadd.f32 %v10422, %v10434
        %v10436 = vpop.f32.mrf.mxu0
        %10437 = vdwg.mxu0
        %10438 = vmatpush.bf16.msra.mxu0 %v7821
        %10439 = vmatpush.bf16.msra.mxu0 %v7818
        %10440 = vmatpush.bf16.msra.mxu0 %v7815
        %10441 = vmatpush.bf16.msra.mxu0 %v7812
        %10442 = vmatpush.bf16.msra.mxu0 %v7809
        %10443 = vmatpush.bf16.msra.mxu0 %v7806
        %10444 = vmatpush.bf16.msra.mxu0 %v7803
        %10445 = vmatpush.bf16.msra.mxu0 %v7800
        %10446 = vmatmul.bf16.gmra.mxu0 %v2374
        %v10447 = vpop.f32.mrf.mxu0
        %v10448 = vadd.f32 %v10435, %v10447
        %v10449 = vpop.f32.mrf.mxu0
        %10450 = vdwg.mxu0
        %10451 = vmatpush.bf16.msra.mxu0 %v7845
        %10452 = vmatpush.bf16.msra.mxu0 %v7842
        %10453 = vmatpush.bf16.msra.mxu0 %v7839
        %10454 = vmatpush.bf16.msra.mxu0 %v7836
        %10455 = vmatpush.bf16.msra.mxu0 %v7833
        %10456 = vmatpush.bf16.msra.mxu0 %v7830
        %10457 = vmatpush.bf16.msra.mxu0 %v7827
        %10458 = vmatpush.bf16.msra.mxu0 %v7824
        %10459 = vmatmul.bf16.gmra.mxu0 %v2375
        %v10460 = vpop.f32.mrf.mxu0
        %v10461 = vadd.f32 %v10448, %v10460
        %v10462 = vpop.f32.mrf.mxu0
        %10463 = vdwg.mxu0
        %10464 = vmatpush.bf16.msra.mxu0 %v7869
        %10465 = vmatpush.bf16.msra.mxu0 %v7866
        %10466 = vmatpush.bf16.msra.mxu0 %v7863
        %10467 = vmatpush.bf16.msra.mxu0 %v7860
        %10468 = vmatpush.bf16.msra.mxu0 %v7857
        %10469 = vmatpush.bf16.msra.mxu0 %v7854
        %10470 = vmatpush.bf16.msra.mxu0 %v7851
        %10471 = vmatpush.bf16.msra.mxu0 %v7848
        %10472 = vmatmul.bf16.gmra.mxu0 %v2376
        %v10473 = vpop.f32.mrf.mxu0
        %v10474 = vadd.f32 %v10461, %v10473
        %v10475 = vpop.f32.mrf.mxu0
        %10476 = vdwg.mxu0
        %10477 = vmatpush.bf16.msra.mxu0 %v7893
        %10478 = vmatpush.bf16.msra.mxu0 %v7890
        %10479 = vmatpush.bf16.msra.mxu0 %v7887
        %10480 = vmatpush.bf16.msra.mxu0 %v7884
        %10481 = vmatpush.bf16.msra.mxu0 %v7881
        %10482 = vmatpush.bf16.msra.mxu0 %v7878
        %10483 = vmatpush.bf16.msra.mxu0 %v7875
        %10484 = vmatpush.bf16.msra.mxu0 %v7872
        %10485 = vmatmul.bf16.gmra.mxu0 %v2377
        %v10486 = vpop.f32.mrf.mxu0
        %v10487 = vadd.f32 %v10474, %v10486
        %v10488 = vpop.f32.mrf.mxu0
        %10489 = vdwg.mxu0
        %10490 = vmatpush.bf16.msra.mxu0 %v7917
        %10491 = vmatpush.bf16.msra.mxu0 %v7914
        %10492 = vmatpush.bf16.msra.mxu0 %v7911
        %10493 = vmatpush.bf16.msra.mxu0 %v7908
        %10494 = vmatpush.bf16.msra.mxu0 %v7905
        %10495 = vmatpush.bf16.msra.mxu0 %v7902
        %10496 = vmatpush.bf16.msra.mxu0 %v7899
        %10497 = vmatpush.bf16.msra.mxu0 %v7896
        %10498 = vmatmul.bf16.gmra.mxu0 %v2378
        %v10499 = vpop.f32.mrf.mxu0
        %v10500 = vadd.f32 %v10487, %v10499
        %v10501 = vpop.f32.mrf.mxu0
        %10502 = vdwg.mxu0
        %10503 = vmatpush.bf16.msra.mxu0 %v7941
        %10504 = vmatpush.bf16.msra.mxu0 %v7938
        %10505 = vmatpush.bf16.msra.mxu0 %v7935
        %10506 = vmatpush.bf16.msra.mxu0 %v7932
        %10507 = vmatpush.bf16.msra.mxu0 %v7929
        %10508 = vmatpush.bf16.msra.mxu0 %v7926
        %10509 = vmatpush.bf16.msra.mxu0 %v7923
        %10510 = vmatpush.bf16.msra.mxu0 %v7920
        %10511 = vmatmul.bf16.gmra.mxu0 %v2379
        %v10512 = vpop.f32.mrf.mxu0
        %v10513 = vadd.f32 %v10500, %v10512
        %v10514 = vpop.f32.mrf.mxu0
        %10515 = vdwg.mxu0
        %10516 = vmatpush.bf16.msra.mxu0 %v7965
        %10517 = vmatpush.bf16.msra.mxu0 %v7962
        %10518 = vmatpush.bf16.msra.mxu0 %v7959
        %10519 = vmatpush.bf16.msra.mxu0 %v7956
        %10520 = vmatpush.bf16.msra.mxu0 %v7953
        %10521 = vmatpush.bf16.msra.mxu0 %v7950
        %10522 = vmatpush.bf16.msra.mxu0 %v7947
        %10523 = vmatpush.bf16.msra.mxu0 %v7944
        %10524 = vmatmul.bf16.gmra.mxu0 %v2380
        %v10525 = vpop.f32.mrf.mxu0
        %v10526 = vadd.f32 %v10513, %v10525
        %v10527 = vpop.f32.mrf.mxu0
        %10528 = vdwg.mxu0
        %10529 = vmatpush.bf16.msra.mxu0 %v7989
        %10530 = vmatpush.bf16.msra.mxu0 %v7986
        %10531 = vmatpush.bf16.msra.mxu0 %v7983
        %10532 = vmatpush.bf16.msra.mxu0 %v7980
        %10533 = vmatpush.bf16.msra.mxu0 %v7977
        %10534 = vmatpush.bf16.msra.mxu0 %v7974
        %10535 = vmatpush.bf16.msra.mxu0 %v7971
        %10536 = vmatpush.bf16.msra.mxu0 %v7968
        %10537 = vmatmul.bf16.gmra.mxu0 %v2381
        %v10538 = vpop.f32.mrf.mxu0
        %v10539 = vadd.f32 %v10526, %v10538
        %v10540 = vpop.f32.mrf.mxu0
        %10541 = vdwg.mxu0
        %10542 = vmatpush.bf16.msra.mxu0 %v8013
        %10543 = vmatpush.bf16.msra.mxu0 %v8010
        %10544 = vmatpush.bf16.msra.mxu0 %v8007
        %10545 = vmatpush.bf16.msra.mxu0 %v8004
        %10546 = vmatpush.bf16.msra.mxu0 %v8001
        %10547 = vmatpush.bf16.msra.mxu0 %v7998
        %10548 = vmatpush.bf16.msra.mxu0 %v7995
        %10549 = vmatpush.bf16.msra.mxu0 %v7992
        %10550 = vmatmul.bf16.gmra.mxu0 %v2382
        %v10551 = vpop.f32.mrf.mxu0
        %v10552 = vadd.f32 %v10539, %v10551
        %v10553 = vpop.f32.mrf.mxu0
        %10554 = vdwg.mxu0
        %10555 = vmatpush.bf16.msra.mxu0 %v8037
        %10556 = vmatpush.bf16.msra.mxu0 %v8034
        %10557 = vmatpush.bf16.msra.mxu0 %v8031
        %10558 = vmatpush.bf16.msra.mxu0 %v8028
        %10559 = vmatpush.bf16.msra.mxu0 %v8025
        %10560 = vmatpush.bf16.msra.mxu0 %v8022
        %10561 = vmatpush.bf16.msra.mxu0 %v8019
        %10562 = vmatpush.bf16.msra.mxu0 %v8016
        %10563 = vmatmul.bf16.gmra.mxu0 %v2383
        %v10564 = vpop.f32.mrf.mxu0
        %v10565 = vadd.f32 %v10552, %v10564
        %v10566 = vpop.f32.mrf.mxu0
        %10567 = vdwg.mxu0
        %10568 = vmatpush.bf16.msra.mxu0 %v8061
        %10569 = vmatpush.bf16.msra.mxu0 %v8058
        %10570 = vmatpush.bf16.msra.mxu0 %v8055
        %10571 = vmatpush.bf16.msra.mxu0 %v8052
        %10572 = vmatpush.bf16.msra.mxu0 %v8049
        %10573 = vmatpush.bf16.msra.mxu0 %v8046
        %10574 = vmatpush.bf16.msra.mxu0 %v8043
        %10575 = vmatpush.bf16.msra.mxu0 %v8040
        %10576 = vmatmul.bf16.gmra.mxu0 %v2384
        %v10577 = vpop.f32.mrf.mxu0
        %v10578 = vadd.f32 %v10565, %v10577
        %v10579 = vpop.f32.mrf.mxu0
        %10580 = vdwg.mxu0
        %10581 = vmatpush.bf16.msra.mxu0 %v8085
        %10582 = vmatpush.bf16.msra.mxu0 %v8082
        %10583 = vmatpush.bf16.msra.mxu0 %v8079
        %10584 = vmatpush.bf16.msra.mxu0 %v8076
        %10585 = vmatpush.bf16.msra.mxu0 %v8073
        %10586 = vmatpush.bf16.msra.mxu0 %v8070
        %10587 = vmatpush.bf16.msra.mxu0 %v8067
        %10588 = vmatpush.bf16.msra.mxu0 %v8064
        %10589 = vmatmul.bf16.gmra.mxu0 %v2385
        %v10590 = vpop.f32.mrf.mxu0
        %v10591 = vadd.f32 %v10578, %v10590
        %v10592 = vpop.f32.mrf.mxu0
        %10593 = vdwg.mxu0
        %10594 = vmatpush.bf16.msra.mxu0 %v8109
        %10595 = vmatpush.bf16.msra.mxu0 %v8106
        %10596 = vmatpush.bf16.msra.mxu0 %v8103
        %10597 = vmatpush.bf16.msra.mxu0 %v8100
        %10598 = vmatpush.bf16.msra.mxu0 %v8097
        %10599 = vmatpush.bf16.msra.mxu0 %v8094
        %10600 = vmatpush.bf16.msra.mxu0 %v8091
        %10601 = vmatpush.bf16.msra.mxu0 %v8088
        %10602 = vmatmul.bf16.gmra.mxu0 %v2386
        %v10603 = vpop.f32.mrf.mxu0
        %v10604 = vadd.f32 %v10591, %v10603
        %v10605 = vpop.f32.mrf.mxu0
        %10606 = vdwg.mxu0
        %10607 = vmatpush.bf16.msra.mxu0 %v8133
        %10608 = vmatpush.bf16.msra.mxu0 %v8130
        %10609 = vmatpush.bf16.msra.mxu0 %v8127
        %10610 = vmatpush.bf16.msra.mxu0 %v8124
        %10611 = vmatpush.bf16.msra.mxu0 %v8121
        %10612 = vmatpush.bf16.msra.mxu0 %v8118
        %10613 = vmatpush.bf16.msra.mxu0 %v8115
        %10614 = vmatpush.bf16.msra.mxu0 %v8112
        %10615 = vmatmul.bf16.gmra.mxu0 %v2387
        %v10616 = vpop.f32.mrf.mxu0
        %v10617 = vadd.f32 %v10604, %v10616
        %v10618 = vpop.f32.mrf.mxu0
        %10619 = vdwg.mxu0
        %10620 = vmatpush.bf16.msra.mxu0 %v8157
        %10621 = vmatpush.bf16.msra.mxu0 %v8154
        %10622 = vmatpush.bf16.msra.mxu0 %v8151
        %10623 = vmatpush.bf16.msra.mxu0 %v8148
        %10624 = vmatpush.bf16.msra.mxu0 %v8145
        %10625 = vmatpush.bf16.msra.mxu0 %v8142
        %10626 = vmatpush.bf16.msra.mxu0 %v8139
        %10627 = vmatpush.bf16.msra.mxu0 %v8136
        %10628 = vmatmul.bf16.gmra.mxu0 %v2388
        %v10629 = vpop.f32.mrf.mxu0
        %v10630 = vadd.f32 %v10617, %v10629
        %v10631 = vpop.f32.mrf.mxu0
        %10632 = vdwg.mxu0
        %10633 = vmatpush.bf16.msra.mxu0 %v8181
        %10634 = vmatpush.bf16.msra.mxu0 %v8178
        %10635 = vmatpush.bf16.msra.mxu0 %v8175
        %10636 = vmatpush.bf16.msra.mxu0 %v8172
        %10637 = vmatpush.bf16.msra.mxu0 %v8169
        %10638 = vmatpush.bf16.msra.mxu0 %v8166
        %10639 = vmatpush.bf16.msra.mxu0 %v8163
        %10640 = vmatpush.bf16.msra.mxu0 %v8160
        %10641 = vmatmul.bf16.gmra.mxu0 %v2389
        %v10642 = vpop.f32.mrf.mxu0
        %v10643 = vadd.f32 %v10630, %v10642
        %v10644 = vpop.f32.mrf.mxu0
        %10645 = vdwg.mxu0
        %10646 = vmatpush.bf16.msra.mxu0 %v8205
        %10647 = vmatpush.bf16.msra.mxu0 %v8202
        %10648 = vmatpush.bf16.msra.mxu0 %v8199
        %10649 = vmatpush.bf16.msra.mxu0 %v8196
        %10650 = vmatpush.bf16.msra.mxu0 %v8193
        %10651 = vmatpush.bf16.msra.mxu0 %v8190
        %10652 = vmatpush.bf16.msra.mxu0 %v8187
        %10653 = vmatpush.bf16.msra.mxu0 %v8184
        %10654 = vmatmul.bf16.gmra.mxu0 %v2390
        %v10655 = vpop.f32.mrf.mxu0
        %v10656 = vadd.f32 %v10643, %v10655
        %v10657 = vpop.f32.mrf.mxu0
        %10658 = vdwg.mxu0
        %10659 = vmatpush.bf16.msra.mxu0 %v8229
        %10660 = vmatpush.bf16.msra.mxu0 %v8226
        %10661 = vmatpush.bf16.msra.mxu0 %v8223
        %10662 = vmatpush.bf16.msra.mxu0 %v8220
        %10663 = vmatpush.bf16.msra.mxu0 %v8217
        %10664 = vmatpush.bf16.msra.mxu0 %v8214
        %10665 = vmatpush.bf16.msra.mxu0 %v8211
        %10666 = vmatpush.bf16.msra.mxu0 %v8208
        %10667 = vmatmul.bf16.gmra.mxu0 %v2391
        %v10668 = vpop.f32.mrf.mxu0
        %v10669 = vadd.f32 %v10656, %v10668
        %v10670 = vpop.f32.mrf.mxu0
        %10671 = vdwg.mxu0
        %10672 = vmatpush.bf16.msra.mxu0 %v8253
        %10673 = vmatpush.bf16.msra.mxu0 %v8250
        %10674 = vmatpush.bf16.msra.mxu0 %v8247
        %10675 = vmatpush.bf16.msra.mxu0 %v8244
        %10676 = vmatpush.bf16.msra.mxu0 %v8241
        %10677 = vmatpush.bf16.msra.mxu0 %v8238
        %10678 = vmatpush.bf16.msra.mxu0 %v8235
        %10679 = vmatpush.bf16.msra.mxu0 %v8232
        %10680 = vmatmul.bf16.gmra.mxu0 %v2392
        %v10681 = vpop.f32.mrf.mxu0
        %v10682 = vadd.f32 %v10669, %v10681
        %v10683 = vpop.f32.mrf.mxu0
        %10684 = vdwg.mxu0
        %10685 = vmatpush.bf16.msra.mxu0 %v8277
        %10686 = vmatpush.bf16.msra.mxu0 %v8274
        %10687 = vmatpush.bf16.msra.mxu0 %v8271
        %10688 = vmatpush.bf16.msra.mxu0 %v8268
        %10689 = vmatpush.bf16.msra.mxu0 %v8265
        %10690 = vmatpush.bf16.msra.mxu0 %v8262
        %10691 = vmatpush.bf16.msra.mxu0 %v8259
        %10692 = vmatpush.bf16.msra.mxu0 %v8256
        %10693 = vmatmul.bf16.gmra.mxu0 %v2393
        %v10694 = vpop.f32.mrf.mxu0
        %v10695 = vadd.f32 %v10682, %v10694
        %v10696 = vpop.f32.mrf.mxu0
        %10697 = vdwg.mxu0
        %10698 = vmatpush.bf16.msra.mxu0 %v8301
        %10699 = vmatpush.bf16.msra.mxu0 %v8298
        %10700 = vmatpush.bf16.msra.mxu0 %v8295
        %10701 = vmatpush.bf16.msra.mxu0 %v8292
        %10702 = vmatpush.bf16.msra.mxu0 %v8289
        %10703 = vmatpush.bf16.msra.mxu0 %v8286
        %10704 = vmatpush.bf16.msra.mxu0 %v8283
        %10705 = vmatpush.bf16.msra.mxu0 %v8280
        %10706 = vmatmul.bf16.gmra.mxu0 %v2394
        %v10707 = vpop.f32.mrf.mxu0
        %v10708 = vadd.f32 %v10695, %v10707
        %v10709 = vpop.f32.mrf.mxu0
        %10710 = vdwg.mxu0
        %10711 = vmatpush.bf16.msra.mxu0 %v8325
        %10712 = vmatpush.bf16.msra.mxu0 %v8322
        %10713 = vmatpush.bf16.msra.mxu0 %v8319
        %10714 = vmatpush.bf16.msra.mxu0 %v8316
        %10715 = vmatpush.bf16.msra.mxu0 %v8313
        %10716 = vmatpush.bf16.msra.mxu0 %v8310
        %10717 = vmatpush.bf16.msra.mxu0 %v8307
        %10718 = vmatpush.bf16.msra.mxu0 %v8304
        %10719 = vmatmul.bf16.gmra.mxu0 %v2395
        %v10720 = vpop.f32.mrf.mxu0
        %v10721 = vadd.f32 %v10708, %v10720
        %v10722 = vpop.f32.mrf.mxu0
        %10723 = vdwg.mxu0
        %10724 = vmatpush.bf16.msra.mxu0 %v8349
        %10725 = vmatpush.bf16.msra.mxu0 %v8346
        %10726 = vmatpush.bf16.msra.mxu0 %v8343
        %10727 = vmatpush.bf16.msra.mxu0 %v8340
        %10728 = vmatpush.bf16.msra.mxu0 %v8337
        %10729 = vmatpush.bf16.msra.mxu0 %v8334
        %10730 = vmatpush.bf16.msra.mxu0 %v8331
        %10731 = vmatpush.bf16.msra.mxu0 %v8328
        %10732 = vmatmul.bf16.gmra.mxu0 %v2396
        %v10733 = vpop.f32.mrf.mxu0
        %v10734 = vadd.f32 %v10721, %v10733
        %v10735 = vpop.f32.mrf.mxu0
        %10736 = vdwg.mxu0
        %10737 = vmatpush.bf16.msra.mxu0 %v8373
        %10738 = vmatpush.bf16.msra.mxu0 %v8370
        %10739 = vmatpush.bf16.msra.mxu0 %v8367
        %10740 = vmatpush.bf16.msra.mxu0 %v8364
        %10741 = vmatpush.bf16.msra.mxu0 %v8361
        %10742 = vmatpush.bf16.msra.mxu0 %v8358
        %10743 = vmatpush.bf16.msra.mxu0 %v8355
        %10744 = vmatpush.bf16.msra.mxu0 %v8352
        %10745 = vmatmul.bf16.gmra.mxu0 %v2397
        %v10746 = vpop.f32.mrf.mxu0
        %v10747 = vadd.f32 %v10734, %v10746
        %v10748 = vpop.f32.mrf.mxu0
        %10749 = vdwg.mxu0
        %10750 = vmatpush.bf16.msra.mxu0 %v8397
        %10751 = vmatpush.bf16.msra.mxu0 %v8394
        %10752 = vmatpush.bf16.msra.mxu0 %v8391
        %10753 = vmatpush.bf16.msra.mxu0 %v8388
        %10754 = vmatpush.bf16.msra.mxu0 %v8385
        %10755 = vmatpush.bf16.msra.mxu0 %v8382
        %10756 = vmatpush.bf16.msra.mxu0 %v8379
        %10757 = vmatpush.bf16.msra.mxu0 %v8376
        %10758 = vmatmul.bf16.gmra.mxu0 %v2398
        %v10759 = vpop.f32.mrf.mxu0
        %v10760 = vadd.f32 %v10747, %v10759
        %v10761 = vpop.f32.mrf.mxu0
        %10762 = vdwg.mxu0
        %10763 = vmatpush.bf16.msra.mxu0 %v8421
        %10764 = vmatpush.bf16.msra.mxu0 %v8418
        %10765 = vmatpush.bf16.msra.mxu0 %v8415
        %10766 = vmatpush.bf16.msra.mxu0 %v8412
        %10767 = vmatpush.bf16.msra.mxu0 %v8409
        %10768 = vmatpush.bf16.msra.mxu0 %v8406
        %10769 = vmatpush.bf16.msra.mxu0 %v8403
        %10770 = vmatpush.bf16.msra.mxu0 %v8400
        %10771 = vmatmul.bf16.gmra.mxu0 %v2399
        %v10772 = vpop.f32.mrf.mxu0
        %v10773 = vadd.f32 %v10760, %v10772
        %v10774 = vpop.f32.mrf.mxu0
        %10775 = vdwg.mxu0
        %10776 = vmatpush.bf16.msra.mxu0 %v8445
        %10777 = vmatpush.bf16.msra.mxu0 %v8442
        %10778 = vmatpush.bf16.msra.mxu0 %v8439
        %10779 = vmatpush.bf16.msra.mxu0 %v8436
        %10780 = vmatpush.bf16.msra.mxu0 %v8433
        %10781 = vmatpush.bf16.msra.mxu0 %v8430
        %10782 = vmatpush.bf16.msra.mxu0 %v8427
        %10783 = vmatpush.bf16.msra.mxu0 %v8424
        %10784 = vmatmul.bf16.gmra.mxu0 %v2400
        %v10785 = vpop.f32.mrf.mxu0
        %v10786 = vadd.f32 %v10773, %v10785
        %v10787 = vpop.f32.mrf.mxu0
        %10788 = vdwg.mxu0
        %10789 = vmatpush.bf16.msra.mxu0 %v8469
        %10790 = vmatpush.bf16.msra.mxu0 %v8466
        %10791 = vmatpush.bf16.msra.mxu0 %v8463
        %10792 = vmatpush.bf16.msra.mxu0 %v8460
        %10793 = vmatpush.bf16.msra.mxu0 %v8457
        %10794 = vmatpush.bf16.msra.mxu0 %v8454
        %10795 = vmatpush.bf16.msra.mxu0 %v8451
        %10796 = vmatpush.bf16.msra.mxu0 %v8448
        %10797 = vmatmul.bf16.gmra.mxu0 %v2401
        %v10798 = vpop.f32.mrf.mxu0
        %v10799 = vadd.f32 %v10786, %v10798
        %v10800 = vpop.f32.mrf.mxu0
        %10801 = vdwg.mxu0
        %10802 = vmatpush.bf16.msra.mxu0 %v8493
        %10803 = vmatpush.bf16.msra.mxu0 %v8490
        %10804 = vmatpush.bf16.msra.mxu0 %v8487
        %10805 = vmatpush.bf16.msra.mxu0 %v8484
        %10806 = vmatpush.bf16.msra.mxu0 %v8481
        %10807 = vmatpush.bf16.msra.mxu0 %v8478
        %10808 = vmatpush.bf16.msra.mxu0 %v8475
        %10809 = vmatpush.bf16.msra.mxu0 %v8472
        %10810 = vmatmul.bf16.gmra.mxu0 %v2402
        %v10811 = vpop.f32.mrf.mxu0
        %v10812 = vadd.f32 %v10799, %v10811
        %v10813 = vpop.f32.mrf.mxu0
        %10814 = vdwg.mxu0
        %10815 = vmatpush.bf16.msra.mxu0 %v8517
        %10816 = vmatpush.bf16.msra.mxu0 %v8514
        %10817 = vmatpush.bf16.msra.mxu0 %v8511
        %10818 = vmatpush.bf16.msra.mxu0 %v8508
        %10819 = vmatpush.bf16.msra.mxu0 %v8505
        %10820 = vmatpush.bf16.msra.mxu0 %v8502
        %10821 = vmatpush.bf16.msra.mxu0 %v8499
        %10822 = vmatpush.bf16.msra.mxu0 %v8496
        %10823 = vmatmul.bf16.gmra.mxu0 %v2403
        %v10824 = vpop.f32.mrf.mxu0
        %v10825 = vadd.f32 %v10812, %v10824
        %v10826 = vpop.f32.mrf.mxu0
        %10827 = vdwg.mxu0
        %10828 = vmatpush.bf16.msra.mxu0 %v8541
        %10829 = vmatpush.bf16.msra.mxu0 %v8538
        %10830 = vmatpush.bf16.msra.mxu0 %v8535
        %10831 = vmatpush.bf16.msra.mxu0 %v8532
        %10832 = vmatpush.bf16.msra.mxu0 %v8529
        %10833 = vmatpush.bf16.msra.mxu0 %v8526
        %10834 = vmatpush.bf16.msra.mxu0 %v8523
        %10835 = vmatpush.bf16.msra.mxu0 %v8520
        %10836 = vmatmul.bf16.gmra.mxu0 %v2404
        %v10837 = vpop.f32.mrf.mxu0
        %v10838 = vadd.f32 %v10825, %v10837
        %v10839 = vpop.f32.mrf.mxu0
        %10840 = vdwg.mxu0
        %10841 = vmatpush.bf16.msra.mxu0 %v8565
        %10842 = vmatpush.bf16.msra.mxu0 %v8562
        %10843 = vmatpush.bf16.msra.mxu0 %v8559
        %10844 = vmatpush.bf16.msra.mxu0 %v8556
        %10845 = vmatpush.bf16.msra.mxu0 %v8553
        %10846 = vmatpush.bf16.msra.mxu0 %v8550
        %10847 = vmatpush.bf16.msra.mxu0 %v8547
        %10848 = vmatpush.bf16.msra.mxu0 %v8544
        %10849 = vmatmul.bf16.gmra.mxu0 %v2405
        %v10850 = vpop.f32.mrf.mxu0
        %v10851 = vadd.f32 %v10838, %v10850
        %v10852 = vpop.f32.mrf.mxu0
        %10853 = vdwg.mxu0
        %10854 = vmatpush.bf16.msra.mxu0 %v8589
        %10855 = vmatpush.bf16.msra.mxu0 %v8586
        %10856 = vmatpush.bf16.msra.mxu0 %v8583
        %10857 = vmatpush.bf16.msra.mxu0 %v8580
        %10858 = vmatpush.bf16.msra.mxu0 %v8577
        %10859 = vmatpush.bf16.msra.mxu0 %v8574
        %10860 = vmatpush.bf16.msra.mxu0 %v8571
        %10861 = vmatpush.bf16.msra.mxu0 %v8568
        %10862 = vmatmul.bf16.gmra.mxu0 %v2406
        %v10863 = vpop.f32.mrf.mxu0
        %v10864 = vadd.f32 %v10851, %v10863
        %v10865 = vpop.f32.mrf.mxu0
        %10866 = vdwg.mxu0
        %10867 = vmatpush.bf16.msra.mxu0 %v8613
        %10868 = vmatpush.bf16.msra.mxu0 %v8610
        %10869 = vmatpush.bf16.msra.mxu0 %v8607
        %10870 = vmatpush.bf16.msra.mxu0 %v8604
        %10871 = vmatpush.bf16.msra.mxu0 %v8601
        %10872 = vmatpush.bf16.msra.mxu0 %v8598
        %10873 = vmatpush.bf16.msra.mxu0 %v8595
        %10874 = vmatpush.bf16.msra.mxu0 %v8592
        %10875 = vmatmul.bf16.gmra.mxu0 %v2407
        %v10876 = vpop.f32.mrf.mxu0
        %v10877 = vadd.f32 %v10864, %v10876
        %v10878 = vpop.f32.mrf.mxu0
        %10879 = vdwg.mxu0
        %10880 = vmatpush.bf16.msra.mxu0 %v8637
        %10881 = vmatpush.bf16.msra.mxu0 %v8634
        %10882 = vmatpush.bf16.msra.mxu0 %v8631
        %10883 = vmatpush.bf16.msra.mxu0 %v8628
        %10884 = vmatpush.bf16.msra.mxu0 %v8625
        %10885 = vmatpush.bf16.msra.mxu0 %v8622
        %10886 = vmatpush.bf16.msra.mxu0 %v8619
        %10887 = vmatpush.bf16.msra.mxu0 %v8616
        %10888 = vmatmul.bf16.gmra.mxu0 %v2408
        %v10889 = vpop.f32.mrf.mxu0
        %v10890 = vadd.f32 %v10877, %v10889
        %v10891 = vpop.f32.mrf.mxu0
        %10892 = vdwg.mxu0
        %10893 = vmatpush.bf16.msra.mxu0 %v8661
        %10894 = vmatpush.bf16.msra.mxu0 %v8658
        %10895 = vmatpush.bf16.msra.mxu0 %v8655
        %10896 = vmatpush.bf16.msra.mxu0 %v8652
        %10897 = vmatpush.bf16.msra.mxu0 %v8649
        %10898 = vmatpush.bf16.msra.mxu0 %v8646
        %10899 = vmatpush.bf16.msra.mxu0 %v8643
        %10900 = vmatpush.bf16.msra.mxu0 %v8640
        %10901 = vmatmul.bf16.gmra.mxu0 %v2409
        %v10902 = vpop.f32.mrf.mxu0
        %v10903 = vadd.f32 %v10890, %v10902
        %v10904 = vpop.f32.mrf.mxu0
        %10905 = vdwg.mxu0
        %10906 = vmatpush.bf16.msra.mxu0 %v8685
        %10907 = vmatpush.bf16.msra.mxu0 %v8682
        %10908 = vmatpush.bf16.msra.mxu0 %v8679
        %10909 = vmatpush.bf16.msra.mxu0 %v8676
        %10910 = vmatpush.bf16.msra.mxu0 %v8673
        %10911 = vmatpush.bf16.msra.mxu0 %v8670
        %10912 = vmatpush.bf16.msra.mxu0 %v8667
        %10913 = vmatpush.bf16.msra.mxu0 %v8664
        %10914 = vmatmul.bf16.gmra.mxu0 %v2410
        %v10915 = vpop.f32.mrf.mxu0
        %v10916 = vadd.f32 %v10903, %v10915
        %v10917 = vpop.f32.mrf.mxu0
        %10918 = vdwg.mxu0
        %10919 = vmatpush.bf16.msra.mxu0 %v8709
        %10920 = vmatpush.bf16.msra.mxu0 %v8706
        %10921 = vmatpush.bf16.msra.mxu0 %v8703
        %10922 = vmatpush.bf16.msra.mxu0 %v8700
        %10923 = vmatpush.bf16.msra.mxu0 %v8697
        %10924 = vmatpush.bf16.msra.mxu0 %v8694
        %10925 = vmatpush.bf16.msra.mxu0 %v8691
        %10926 = vmatpush.bf16.msra.mxu0 %v8688
        %10927 = vmatmul.bf16.gmra.mxu0 %v2411
        %v10928 = vpop.f32.mrf.mxu0
        %v10929 = vadd.f32 %v10916, %v10928
        %v10930 = vpop.f32.mrf.mxu0
        %10931 = vdwg.mxu0
        %10932 = vmatpush.bf16.msra.mxu0 %v7294
        %10933 = vmatpush.bf16.msra.mxu0 %v7291
        %10934 = vmatpush.bf16.msra.mxu0 %v7288
        %10935 = vmatpush.bf16.msra.mxu0 %v7285
        %10936 = vmatpush.bf16.msra.mxu0 %v7282
        %10937 = vmatpush.bf16.msra.mxu0 %v7279
        %10938 = vmatpush.bf16.msra.mxu0 %v7276
        %10939 = vmatpush.bf16.msra.mxu0 %v7273
        %10940 = vmatmul.bf16.gmra.mxu0 %v2352
        %v10941 = vpop.f32.mrf.mxu0
        %v10942 = vadd.f32 0.0, %v10941
        %v10943 = vpop.f32.mrf.mxu0
        %10944 = vdwg.mxu0
        %10945 = vmatpush.bf16.msra.mxu0 %v7318
        %10946 = vmatpush.bf16.msra.mxu0 %v7315
        %10947 = vmatpush.bf16.msra.mxu0 %v7312
        %10948 = vmatpush.bf16.msra.mxu0 %v7309
        %10949 = vmatpush.bf16.msra.mxu0 %v7306
        %10950 = vmatpush.bf16.msra.mxu0 %v7303
        %10951 = vmatpush.bf16.msra.mxu0 %v7300
        %10952 = vmatpush.bf16.msra.mxu0 %v7297
        %10953 = vmatmul.bf16.gmra.mxu0 %v2353
        %v10954 = vpop.f32.mrf.mxu0
        %v10955 = vadd.f32 %v10942, %v10954
        %v10956 = vpop.f32.mrf.mxu0
        %10957 = vdwg.mxu0
        %10958 = vmatpush.bf16.msra.mxu0 %v7342
        %10959 = vmatpush.bf16.msra.mxu0 %v7339
        %10960 = vmatpush.bf16.msra.mxu0 %v7336
        %10961 = vmatpush.bf16.msra.mxu0 %v7333
        %10962 = vmatpush.bf16.msra.mxu0 %v7330
        %10963 = vmatpush.bf16.msra.mxu0 %v7327
        %10964 = vmatpush.bf16.msra.mxu0 %v7324
        %10965 = vmatpush.bf16.msra.mxu0 %v7321
        %10966 = vmatmul.bf16.gmra.mxu0 %v2354
        %v10967 = vpop.f32.mrf.mxu0
        %v10968 = vadd.f32 %v10955, %v10967
        %v10969 = vpop.f32.mrf.mxu0
        %10970 = vdwg.mxu0
        %10971 = vmatpush.bf16.msra.mxu0 %v7366
        %10972 = vmatpush.bf16.msra.mxu0 %v7363
        %10973 = vmatpush.bf16.msra.mxu0 %v7360
        %10974 = vmatpush.bf16.msra.mxu0 %v7357
        %10975 = vmatpush.bf16.msra.mxu0 %v7354
        %10976 = vmatpush.bf16.msra.mxu0 %v7351
        %10977 = vmatpush.bf16.msra.mxu0 %v7348
        %10978 = vmatpush.bf16.msra.mxu0 %v7345
        %10979 = vmatmul.bf16.gmra.mxu0 %v2355
        %v10980 = vpop.f32.mrf.mxu0
        %v10981 = vadd.f32 %v10968, %v10980
        %v10982 = vpop.f32.mrf.mxu0
        %10983 = vdwg.mxu0
        %10984 = vmatpush.bf16.msra.mxu0 %v7390
        %10985 = vmatpush.bf16.msra.mxu0 %v7387
        %10986 = vmatpush.bf16.msra.mxu0 %v7384
        %10987 = vmatpush.bf16.msra.mxu0 %v7381
        %10988 = vmatpush.bf16.msra.mxu0 %v7378
        %10989 = vmatpush.bf16.msra.mxu0 %v7375
        %10990 = vmatpush.bf16.msra.mxu0 %v7372
        %10991 = vmatpush.bf16.msra.mxu0 %v7369
        %10992 = vmatmul.bf16.gmra.mxu0 %v2356
        %v10993 = vpop.f32.mrf.mxu0
        %v10994 = vadd.f32 %v10981, %v10993
        %v10995 = vpop.f32.mrf.mxu0
        %10996 = vdwg.mxu0
        %10997 = vmatpush.bf16.msra.mxu0 %v7414
        %10998 = vmatpush.bf16.msra.mxu0 %v7411
        %10999 = vmatpush.bf16.msra.mxu0 %v7408
        %11000 = vmatpush.bf16.msra.mxu0 %v7405
        %11001 = vmatpush.bf16.msra.mxu0 %v7402
        %11002 = vmatpush.bf16.msra.mxu0 %v7399
        %11003 = vmatpush.bf16.msra.mxu0 %v7396
        %11004 = vmatpush.bf16.msra.mxu0 %v7393
        %11005 = vmatmul.bf16.gmra.mxu0 %v2357
        %v11006 = vpop.f32.mrf.mxu0
        %v11007 = vadd.f32 %v10994, %v11006
        %v11008 = vpop.f32.mrf.mxu0
        %11009 = vdwg.mxu0
        %11010 = vmatpush.bf16.msra.mxu0 %v7438
        %11011 = vmatpush.bf16.msra.mxu0 %v7435
        %11012 = vmatpush.bf16.msra.mxu0 %v7432
        %11013 = vmatpush.bf16.msra.mxu0 %v7429
        %11014 = vmatpush.bf16.msra.mxu0 %v7426
        %11015 = vmatpush.bf16.msra.mxu0 %v7423
        %11016 = vmatpush.bf16.msra.mxu0 %v7420
        %11017 = vmatpush.bf16.msra.mxu0 %v7417
        %11018 = vmatmul.bf16.gmra.mxu0 %v2358
        %v11019 = vpop.f32.mrf.mxu0
        %v11020 = vadd.f32 %v11007, %v11019
        %v11021 = vpop.f32.mrf.mxu0
        %11022 = vdwg.mxu0
        %11023 = vmatpush.bf16.msra.mxu0 %v7462
        %11024 = vmatpush.bf16.msra.mxu0 %v7459
        %11025 = vmatpush.bf16.msra.mxu0 %v7456
        %11026 = vmatpush.bf16.msra.mxu0 %v7453
        %11027 = vmatpush.bf16.msra.mxu0 %v7450
        %11028 = vmatpush.bf16.msra.mxu0 %v7447
        %11029 = vmatpush.bf16.msra.mxu0 %v7444
        %11030 = vmatpush.bf16.msra.mxu0 %v7441
        %11031 = vmatmul.bf16.gmra.mxu0 %v2359
        %v11032 = vpop.f32.mrf.mxu0
        %v11033 = vadd.f32 %v11020, %v11032
        %v11034 = vpop.f32.mrf.mxu0
        %11035 = vdwg.mxu0
        %11036 = vmatpush.bf16.msra.mxu0 %v7486
        %11037 = vmatpush.bf16.msra.mxu0 %v7483
        %11038 = vmatpush.bf16.msra.mxu0 %v7480
        %11039 = vmatpush.bf16.msra.mxu0 %v7477
        %11040 = vmatpush.bf16.msra.mxu0 %v7474
        %11041 = vmatpush.bf16.msra.mxu0 %v7471
        %11042 = vmatpush.bf16.msra.mxu0 %v7468
        %11043 = vmatpush.bf16.msra.mxu0 %v7465
        %11044 = vmatmul.bf16.gmra.mxu0 %v2360
        %v11045 = vpop.f32.mrf.mxu0
        %v11046 = vadd.f32 %v11033, %v11045
        %v11047 = vpop.f32.mrf.mxu0
        %11048 = vdwg.mxu0
        %11049 = vmatpush.bf16.msra.mxu0 %v7510
        %11050 = vmatpush.bf16.msra.mxu0 %v7507
        %11051 = vmatpush.bf16.msra.mxu0 %v7504
        %11052 = vmatpush.bf16.msra.mxu0 %v7501
        %11053 = vmatpush.bf16.msra.mxu0 %v7498
        %11054 = vmatpush.bf16.msra.mxu0 %v7495
        %11055 = vmatpush.bf16.msra.mxu0 %v7492
        %11056 = vmatpush.bf16.msra.mxu0 %v7489
        %11057 = vmatmul.bf16.gmra.mxu0 %v2361
        %v11058 = vpop.f32.mrf.mxu0
        %v11059 = vadd.f32 %v11046, %v11058
        %v11060 = vpop.f32.mrf.mxu0
        %11061 = vdwg.mxu0
        %11062 = vmatpush.bf16.msra.mxu0 %v7534
        %11063 = vmatpush.bf16.msra.mxu0 %v7531
        %11064 = vmatpush.bf16.msra.mxu0 %v7528
        %11065 = vmatpush.bf16.msra.mxu0 %v7525
        %11066 = vmatpush.bf16.msra.mxu0 %v7522
        %11067 = vmatpush.bf16.msra.mxu0 %v7519
        %11068 = vmatpush.bf16.msra.mxu0 %v7516
        %11069 = vmatpush.bf16.msra.mxu0 %v7513
        %11070 = vmatmul.bf16.gmra.mxu0 %v2362
        %v11071 = vpop.f32.mrf.mxu0
        %v11072 = vadd.f32 %v11059, %v11071
        %v11073 = vpop.f32.mrf.mxu0
        %11074 = vdwg.mxu0
        %11075 = vmatpush.bf16.msra.mxu0 %v7558
        %11076 = vmatpush.bf16.msra.mxu0 %v7555
        %11077 = vmatpush.bf16.msra.mxu0 %v7552
        %11078 = vmatpush.bf16.msra.mxu0 %v7549
        %11079 = vmatpush.bf16.msra.mxu0 %v7546
        %11080 = vmatpush.bf16.msra.mxu0 %v7543
        %11081 = vmatpush.bf16.msra.mxu0 %v7540
        %11082 = vmatpush.bf16.msra.mxu0 %v7537
        %11083 = vmatmul.bf16.gmra.mxu0 %v2363
        %v11084 = vpop.f32.mrf.mxu0
        %v11085 = vadd.f32 %v11072, %v11084
        %v11086 = vpop.f32.mrf.mxu0
        %11087 = vdwg.mxu0
        %11088 = vmatpush.bf16.msra.mxu0 %v7582
        %11089 = vmatpush.bf16.msra.mxu0 %v7579
        %11090 = vmatpush.bf16.msra.mxu0 %v7576
        %11091 = vmatpush.bf16.msra.mxu0 %v7573
        %11092 = vmatpush.bf16.msra.mxu0 %v7570
        %11093 = vmatpush.bf16.msra.mxu0 %v7567
        %11094 = vmatpush.bf16.msra.mxu0 %v7564
        %11095 = vmatpush.bf16.msra.mxu0 %v7561
        %11096 = vmatmul.bf16.gmra.mxu0 %v2364
        %v11097 = vpop.f32.mrf.mxu0
        %v11098 = vadd.f32 %v11085, %v11097
        %v11099 = vpop.f32.mrf.mxu0
        %11100 = vdwg.mxu0
        %11101 = vmatpush.bf16.msra.mxu0 %v7606
        %11102 = vmatpush.bf16.msra.mxu0 %v7603
        %11103 = vmatpush.bf16.msra.mxu0 %v7600
        %11104 = vmatpush.bf16.msra.mxu0 %v7597
        %11105 = vmatpush.bf16.msra.mxu0 %v7594
        %11106 = vmatpush.bf16.msra.mxu0 %v7591
        %11107 = vmatpush.bf16.msra.mxu0 %v7588
        %11108 = vmatpush.bf16.msra.mxu0 %v7585
        %11109 = vmatmul.bf16.gmra.mxu0 %v2365
        %v11110 = vpop.f32.mrf.mxu0
        %v11111 = vadd.f32 %v11098, %v11110
        %v11112 = vpop.f32.mrf.mxu0
        %11113 = vdwg.mxu0
        %11114 = vmatpush.bf16.msra.mxu0 %v7630
        %11115 = vmatpush.bf16.msra.mxu0 %v7627
        %11116 = vmatpush.bf16.msra.mxu0 %v7624
        %11117 = vmatpush.bf16.msra.mxu0 %v7621
        %11118 = vmatpush.bf16.msra.mxu0 %v7618
        %11119 = vmatpush.bf16.msra.mxu0 %v7615
        %11120 = vmatpush.bf16.msra.mxu0 %v7612
        %11121 = vmatpush.bf16.msra.mxu0 %v7609
        %11122 = vmatmul.bf16.gmra.mxu0 %v2366
        %v11123 = vpop.f32.mrf.mxu0
        %v11124 = vadd.f32 %v11111, %v11123
        %v11125 = vpop.f32.mrf.mxu0
        %11126 = vdwg.mxu0
        %11127 = vmatpush.bf16.msra.mxu0 %v7654
        %11128 = vmatpush.bf16.msra.mxu0 %v7651
        %11129 = vmatpush.bf16.msra.mxu0 %v7648
        %11130 = vmatpush.bf16.msra.mxu0 %v7645
        %11131 = vmatpush.bf16.msra.mxu0 %v7642
        %11132 = vmatpush.bf16.msra.mxu0 %v7639
        %11133 = vmatpush.bf16.msra.mxu0 %v7636
        %11134 = vmatpush.bf16.msra.mxu0 %v7633
        %11135 = vmatmul.bf16.gmra.mxu0 %v2367
        %v11136 = vpop.f32.mrf.mxu0
        %v11137 = vadd.f32 %v11124, %v11136
        %v11138 = vpop.f32.mrf.mxu0
        %11139 = vdwg.mxu0
        %11140 = vmatpush.bf16.msra.mxu0 %v7678
        %11141 = vmatpush.bf16.msra.mxu0 %v7675
        %11142 = vmatpush.bf16.msra.mxu0 %v7672
        %11143 = vmatpush.bf16.msra.mxu0 %v7669
        %11144 = vmatpush.bf16.msra.mxu0 %v7666
        %11145 = vmatpush.bf16.msra.mxu0 %v7663
        %11146 = vmatpush.bf16.msra.mxu0 %v7660
        %11147 = vmatpush.bf16.msra.mxu0 %v7657
        %11148 = vmatmul.bf16.gmra.mxu0 %v2368
        %v11149 = vpop.f32.mrf.mxu0
        %v11150 = vadd.f32 %v11137, %v11149
        %v11151 = vpop.f32.mrf.mxu0
        %11152 = vdwg.mxu0
        %11153 = vmatpush.bf16.msra.mxu0 %v7702
        %11154 = vmatpush.bf16.msra.mxu0 %v7699
        %11155 = vmatpush.bf16.msra.mxu0 %v7696
        %11156 = vmatpush.bf16.msra.mxu0 %v7693
        %11157 = vmatpush.bf16.msra.mxu0 %v7690
        %11158 = vmatpush.bf16.msra.mxu0 %v7687
        %11159 = vmatpush.bf16.msra.mxu0 %v7684
        %11160 = vmatpush.bf16.msra.mxu0 %v7681
        %11161 = vmatmul.bf16.gmra.mxu0 %v2369
        %v11162 = vpop.f32.mrf.mxu0
        %v11163 = vadd.f32 %v11150, %v11162
        %v11164 = vpop.f32.mrf.mxu0
        %11165 = vdwg.mxu0
        %11166 = vmatpush.bf16.msra.mxu0 %v7726
        %11167 = vmatpush.bf16.msra.mxu0 %v7723
        %11168 = vmatpush.bf16.msra.mxu0 %v7720
        %11169 = vmatpush.bf16.msra.mxu0 %v7717
        %11170 = vmatpush.bf16.msra.mxu0 %v7714
        %11171 = vmatpush.bf16.msra.mxu0 %v7711
        %11172 = vmatpush.bf16.msra.mxu0 %v7708
        %11173 = vmatpush.bf16.msra.mxu0 %v7705
        %11174 = vmatmul.bf16.gmra.mxu0 %v2370
        %v11175 = vpop.f32.mrf.mxu0
        %v11176 = vadd.f32 %v11163, %v11175
        %v11177 = vpop.f32.mrf.mxu0
        %11178 = vdwg.mxu0
        %11179 = vmatpush.bf16.msra.mxu0 %v7750
        %11180 = vmatpush.bf16.msra.mxu0 %v7747
        %11181 = vmatpush.bf16.msra.mxu0 %v7744
        %11182 = vmatpush.bf16.msra.mxu0 %v7741
        %11183 = vmatpush.bf16.msra.mxu0 %v7738
        %11184 = vmatpush.bf16.msra.mxu0 %v7735
        %11185 = vmatpush.bf16.msra.mxu0 %v7732
        %11186 = vmatpush.bf16.msra.mxu0 %v7729
        %11187 = vmatmul.bf16.gmra.mxu0 %v2371
        %v11188 = vpop.f32.mrf.mxu0
        %v11189 = vadd.f32 %v11176, %v11188
        %v11190 = vpop.f32.mrf.mxu0
        %11191 = vdwg.mxu0
        %11192 = vmatpush.bf16.msra.mxu0 %v7774
        %11193 = vmatpush.bf16.msra.mxu0 %v7771
        %11194 = vmatpush.bf16.msra.mxu0 %v7768
        %11195 = vmatpush.bf16.msra.mxu0 %v7765
        %11196 = vmatpush.bf16.msra.mxu0 %v7762
        %11197 = vmatpush.bf16.msra.mxu0 %v7759
        %11198 = vmatpush.bf16.msra.mxu0 %v7756
        %11199 = vmatpush.bf16.msra.mxu0 %v7753
        %11200 = vmatmul.bf16.gmra.mxu0 %v2372
        %v11201 = vpop.f32.mrf.mxu0
        %v11202 = vadd.f32 %v11189, %v11201
        %v11203 = vpop.f32.mrf.mxu0
        %11204 = vdwg.mxu0
        %11205 = vmatpush.bf16.msra.mxu0 %v7798
        %11206 = vmatpush.bf16.msra.mxu0 %v7795
        %11207 = vmatpush.bf16.msra.mxu0 %v7792
        %11208 = vmatpush.bf16.msra.mxu0 %v7789
        %11209 = vmatpush.bf16.msra.mxu0 %v7786
        %11210 = vmatpush.bf16.msra.mxu0 %v7783
        %11211 = vmatpush.bf16.msra.mxu0 %v7780
        %11212 = vmatpush.bf16.msra.mxu0 %v7777
        %11213 = vmatmul.bf16.gmra.mxu0 %v2373
        %v11214 = vpop.f32.mrf.mxu0
        %v11215 = vadd.f32 %v11202, %v11214
        %v11216 = vpop.f32.mrf.mxu0
        %11217 = vdwg.mxu0
        %11218 = vmatpush.bf16.msra.mxu0 %v7822
        %11219 = vmatpush.bf16.msra.mxu0 %v7819
        %11220 = vmatpush.bf16.msra.mxu0 %v7816
        %11221 = vmatpush.bf16.msra.mxu0 %v7813
        %11222 = vmatpush.bf16.msra.mxu0 %v7810
        %11223 = vmatpush.bf16.msra.mxu0 %v7807
        %11224 = vmatpush.bf16.msra.mxu0 %v7804
        %11225 = vmatpush.bf16.msra.mxu0 %v7801
        %11226 = vmatmul.bf16.gmra.mxu0 %v2374
        %v11227 = vpop.f32.mrf.mxu0
        %v11228 = vadd.f32 %v11215, %v11227
        %v11229 = vpop.f32.mrf.mxu0
        %11230 = vdwg.mxu0
        %11231 = vmatpush.bf16.msra.mxu0 %v7846
        %11232 = vmatpush.bf16.msra.mxu0 %v7843
        %11233 = vmatpush.bf16.msra.mxu0 %v7840
        %11234 = vmatpush.bf16.msra.mxu0 %v7837
        %11235 = vmatpush.bf16.msra.mxu0 %v7834
        %11236 = vmatpush.bf16.msra.mxu0 %v7831
        %11237 = vmatpush.bf16.msra.mxu0 %v7828
        %11238 = vmatpush.bf16.msra.mxu0 %v7825
        %11239 = vmatmul.bf16.gmra.mxu0 %v2375
        %v11240 = vpop.f32.mrf.mxu0
        %v11241 = vadd.f32 %v11228, %v11240
        %v11242 = vpop.f32.mrf.mxu0
        %11243 = vdwg.mxu0
        %11244 = vmatpush.bf16.msra.mxu0 %v7870
        %11245 = vmatpush.bf16.msra.mxu0 %v7867
        %11246 = vmatpush.bf16.msra.mxu0 %v7864
        %11247 = vmatpush.bf16.msra.mxu0 %v7861
        %11248 = vmatpush.bf16.msra.mxu0 %v7858
        %11249 = vmatpush.bf16.msra.mxu0 %v7855
        %11250 = vmatpush.bf16.msra.mxu0 %v7852
        %11251 = vmatpush.bf16.msra.mxu0 %v7849
        %11252 = vmatmul.bf16.gmra.mxu0 %v2376
        %v11253 = vpop.f32.mrf.mxu0
        %v11254 = vadd.f32 %v11241, %v11253
        %v11255 = vpop.f32.mrf.mxu0
        %11256 = vdwg.mxu0
        %11257 = vmatpush.bf16.msra.mxu0 %v7894
        %11258 = vmatpush.bf16.msra.mxu0 %v7891
        %11259 = vmatpush.bf16.msra.mxu0 %v7888
        %11260 = vmatpush.bf16.msra.mxu0 %v7885
        %11261 = vmatpush.bf16.msra.mxu0 %v7882
        %11262 = vmatpush.bf16.msra.mxu0 %v7879
        %11263 = vmatpush.bf16.msra.mxu0 %v7876
        %11264 = vmatpush.bf16.msra.mxu0 %v7873
        %11265 = vmatmul.bf16.gmra.mxu0 %v2377
        %v11266 = vpop.f32.mrf.mxu0
        %v11267 = vadd.f32 %v11254, %v11266
        %v11268 = vpop.f32.mrf.mxu0
        %11269 = vdwg.mxu0
        %11270 = vmatpush.bf16.msra.mxu0 %v7918
        %11271 = vmatpush.bf16.msra.mxu0 %v7915
        %11272 = vmatpush.bf16.msra.mxu0 %v7912
        %11273 = vmatpush.bf16.msra.mxu0 %v7909
        %11274 = vmatpush.bf16.msra.mxu0 %v7906
        %11275 = vmatpush.bf16.msra.mxu0 %v7903
        %11276 = vmatpush.bf16.msra.mxu0 %v7900
        %11277 = vmatpush.bf16.msra.mxu0 %v7897
        %11278 = vmatmul.bf16.gmra.mxu0 %v2378
        %v11279 = vpop.f32.mrf.mxu0
        %v11280 = vadd.f32 %v11267, %v11279
        %v11281 = vpop.f32.mrf.mxu0
        %11282 = vdwg.mxu0
        %11283 = vmatpush.bf16.msra.mxu0 %v7942
        %11284 = vmatpush.bf16.msra.mxu0 %v7939
        %11285 = vmatpush.bf16.msra.mxu0 %v7936
        %11286 = vmatpush.bf16.msra.mxu0 %v7933
        %11287 = vmatpush.bf16.msra.mxu0 %v7930
        %11288 = vmatpush.bf16.msra.mxu0 %v7927
        %11289 = vmatpush.bf16.msra.mxu0 %v7924
        %11290 = vmatpush.bf16.msra.mxu0 %v7921
        %11291 = vmatmul.bf16.gmra.mxu0 %v2379
        %v11292 = vpop.f32.mrf.mxu0
        %v11293 = vadd.f32 %v11280, %v11292
        %v11294 = vpop.f32.mrf.mxu0
        %11295 = vdwg.mxu0
        %11296 = vmatpush.bf16.msra.mxu0 %v7966
        %11297 = vmatpush.bf16.msra.mxu0 %v7963
        %11298 = vmatpush.bf16.msra.mxu0 %v7960
        %11299 = vmatpush.bf16.msra.mxu0 %v7957
        %11300 = vmatpush.bf16.msra.mxu0 %v7954
        %11301 = vmatpush.bf16.msra.mxu0 %v7951
        %11302 = vmatpush.bf16.msra.mxu0 %v7948
        %11303 = vmatpush.bf16.msra.mxu0 %v7945
        %11304 = vmatmul.bf16.gmra.mxu0 %v2380
        %v11305 = vpop.f32.mrf.mxu0
        %v11306 = vadd.f32 %v11293, %v11305
        %v11307 = vpop.f32.mrf.mxu0
        %11308 = vdwg.mxu0
        %11309 = vmatpush.bf16.msra.mxu0 %v7990
        %11310 = vmatpush.bf16.msra.mxu0 %v7987
        %11311 = vmatpush.bf16.msra.mxu0 %v7984
        %11312 = vmatpush.bf16.msra.mxu0 %v7981
        %11313 = vmatpush.bf16.msra.mxu0 %v7978
        %11314 = vmatpush.bf16.msra.mxu0 %v7975
        %11315 = vmatpush.bf16.msra.mxu0 %v7972
        %11316 = vmatpush.bf16.msra.mxu0 %v7969
        %11317 = vmatmul.bf16.gmra.mxu0 %v2381
        %v11318 = vpop.f32.mrf.mxu0
        %v11319 = vadd.f32 %v11306, %v11318
        %v11320 = vpop.f32.mrf.mxu0
        %11321 = vdwg.mxu0
        %11322 = vmatpush.bf16.msra.mxu0 %v8014
        %11323 = vmatpush.bf16.msra.mxu0 %v8011
        %11324 = vmatpush.bf16.msra.mxu0 %v8008
        %11325 = vmatpush.bf16.msra.mxu0 %v8005
        %11326 = vmatpush.bf16.msra.mxu0 %v8002
        %11327 = vmatpush.bf16.msra.mxu0 %v7999
        %11328 = vmatpush.bf16.msra.mxu0 %v7996
        %11329 = vmatpush.bf16.msra.mxu0 %v7993
        %11330 = vmatmul.bf16.gmra.mxu0 %v2382
        %v11331 = vpop.f32.mrf.mxu0
        %v11332 = vadd.f32 %v11319, %v11331
        %v11333 = vpop.f32.mrf.mxu0
        %11334 = vdwg.mxu0
        %11335 = vmatpush.bf16.msra.mxu0 %v8038
        %11336 = vmatpush.bf16.msra.mxu0 %v8035
        %11337 = vmatpush.bf16.msra.mxu0 %v8032
        %11338 = vmatpush.bf16.msra.mxu0 %v8029
        %11339 = vmatpush.bf16.msra.mxu0 %v8026
        %11340 = vmatpush.bf16.msra.mxu0 %v8023
        %11341 = vmatpush.bf16.msra.mxu0 %v8020
        %11342 = vmatpush.bf16.msra.mxu0 %v8017
        %11343 = vmatmul.bf16.gmra.mxu0 %v2383
        %v11344 = vpop.f32.mrf.mxu0
        %v11345 = vadd.f32 %v11332, %v11344
        %v11346 = vpop.f32.mrf.mxu0
        %11347 = vdwg.mxu0
        %11348 = vmatpush.bf16.msra.mxu0 %v8062
        %11349 = vmatpush.bf16.msra.mxu0 %v8059
        %11350 = vmatpush.bf16.msra.mxu0 %v8056
        %11351 = vmatpush.bf16.msra.mxu0 %v8053
        %11352 = vmatpush.bf16.msra.mxu0 %v8050
        %11353 = vmatpush.bf16.msra.mxu0 %v8047
        %11354 = vmatpush.bf16.msra.mxu0 %v8044
        %11355 = vmatpush.bf16.msra.mxu0 %v8041
        %11356 = vmatmul.bf16.gmra.mxu0 %v2384
        %v11357 = vpop.f32.mrf.mxu0
        %v11358 = vadd.f32 %v11345, %v11357
        %v11359 = vpop.f32.mrf.mxu0
        %11360 = vdwg.mxu0
        %11361 = vmatpush.bf16.msra.mxu0 %v8086
        %11362 = vmatpush.bf16.msra.mxu0 %v8083
        %11363 = vmatpush.bf16.msra.mxu0 %v8080
        %11364 = vmatpush.bf16.msra.mxu0 %v8077
        %11365 = vmatpush.bf16.msra.mxu0 %v8074
        %11366 = vmatpush.bf16.msra.mxu0 %v8071
        %11367 = vmatpush.bf16.msra.mxu0 %v8068
        %11368 = vmatpush.bf16.msra.mxu0 %v8065
        %11369 = vmatmul.bf16.gmra.mxu0 %v2385
        %v11370 = vpop.f32.mrf.mxu0
        %v11371 = vadd.f32 %v11358, %v11370
        %v11372 = vpop.f32.mrf.mxu0
        %11373 = vdwg.mxu0
        %11374 = vmatpush.bf16.msra.mxu0 %v8110
        %11375 = vmatpush.bf16.msra.mxu0 %v8107
        %11376 = vmatpush.bf16.msra.mxu0 %v8104
        %11377 = vmatpush.bf16.msra.mxu0 %v8101
        %11378 = vmatpush.bf16.msra.mxu0 %v8098
        %11379 = vmatpush.bf16.msra.mxu0 %v8095
        %11380 = vmatpush.bf16.msra.mxu0 %v8092
        %11381 = vmatpush.bf16.msra.mxu0 %v8089
        %11382 = vmatmul.bf16.gmra.mxu0 %v2386
        %v11383 = vpop.f32.mrf.mxu0
        %v11384 = vadd.f32 %v11371, %v11383
        %v11385 = vpop.f32.mrf.mxu0
        %11386 = vdwg.mxu0
        %11387 = vmatpush.bf16.msra.mxu0 %v8134
        %11388 = vmatpush.bf16.msra.mxu0 %v8131
        %11389 = vmatpush.bf16.msra.mxu0 %v8128
        %11390 = vmatpush.bf16.msra.mxu0 %v8125
        %11391 = vmatpush.bf16.msra.mxu0 %v8122
        %11392 = vmatpush.bf16.msra.mxu0 %v8119
        %11393 = vmatpush.bf16.msra.mxu0 %v8116
        %11394 = vmatpush.bf16.msra.mxu0 %v8113
        %11395 = vmatmul.bf16.gmra.mxu0 %v2387
        %v11396 = vpop.f32.mrf.mxu0
        %v11397 = vadd.f32 %v11384, %v11396
        %v11398 = vpop.f32.mrf.mxu0
        %11399 = vdwg.mxu0
        %11400 = vmatpush.bf16.msra.mxu0 %v8158
        %11401 = vmatpush.bf16.msra.mxu0 %v8155
        %11402 = vmatpush.bf16.msra.mxu0 %v8152
        %11403 = vmatpush.bf16.msra.mxu0 %v8149
        %11404 = vmatpush.bf16.msra.mxu0 %v8146
        %11405 = vmatpush.bf16.msra.mxu0 %v8143
        %11406 = vmatpush.bf16.msra.mxu0 %v8140
        %11407 = vmatpush.bf16.msra.mxu0 %v8137
        %11408 = vmatmul.bf16.gmra.mxu0 %v2388
        %v11409 = vpop.f32.mrf.mxu0
        %v11410 = vadd.f32 %v11397, %v11409
        %v11411 = vpop.f32.mrf.mxu0
        %11412 = vdwg.mxu0
        %11413 = vmatpush.bf16.msra.mxu0 %v8182
        %11414 = vmatpush.bf16.msra.mxu0 %v8179
        %11415 = vmatpush.bf16.msra.mxu0 %v8176
        %11416 = vmatpush.bf16.msra.mxu0 %v8173
        %11417 = vmatpush.bf16.msra.mxu0 %v8170
        %11418 = vmatpush.bf16.msra.mxu0 %v8167
        %11419 = vmatpush.bf16.msra.mxu0 %v8164
        %11420 = vmatpush.bf16.msra.mxu0 %v8161
        %11421 = vmatmul.bf16.gmra.mxu0 %v2389
        %v11422 = vpop.f32.mrf.mxu0
        %v11423 = vadd.f32 %v11410, %v11422
        %v11424 = vpop.f32.mrf.mxu0
        %11425 = vdwg.mxu0
        %11426 = vmatpush.bf16.msra.mxu0 %v8206
        %11427 = vmatpush.bf16.msra.mxu0 %v8203
        %11428 = vmatpush.bf16.msra.mxu0 %v8200
        %11429 = vmatpush.bf16.msra.mxu0 %v8197
        %11430 = vmatpush.bf16.msra.mxu0 %v8194
        %11431 = vmatpush.bf16.msra.mxu0 %v8191
        %11432 = vmatpush.bf16.msra.mxu0 %v8188
        %11433 = vmatpush.bf16.msra.mxu0 %v8185
        %11434 = vmatmul.bf16.gmra.mxu0 %v2390
        %v11435 = vpop.f32.mrf.mxu0
        %v11436 = vadd.f32 %v11423, %v11435
        %v11437 = vpop.f32.mrf.mxu0
        %11438 = vdwg.mxu0
        %11439 = vmatpush.bf16.msra.mxu0 %v8230
        %11440 = vmatpush.bf16.msra.mxu0 %v8227
        %11441 = vmatpush.bf16.msra.mxu0 %v8224
        %11442 = vmatpush.bf16.msra.mxu0 %v8221
        %11443 = vmatpush.bf16.msra.mxu0 %v8218
        %11444 = vmatpush.bf16.msra.mxu0 %v8215
        %11445 = vmatpush.bf16.msra.mxu0 %v8212
        %11446 = vmatpush.bf16.msra.mxu0 %v8209
        %11447 = vmatmul.bf16.gmra.mxu0 %v2391
        %v11448 = vpop.f32.mrf.mxu0
        %v11449 = vadd.f32 %v11436, %v11448
        %v11450 = vpop.f32.mrf.mxu0
        %11451 = vdwg.mxu0
        %11452 = vmatpush.bf16.msra.mxu0 %v8254
        %11453 = vmatpush.bf16.msra.mxu0 %v8251
        %11454 = vmatpush.bf16.msra.mxu0 %v8248
        %11455 = vmatpush.bf16.msra.mxu0 %v8245
        %11456 = vmatpush.bf16.msra.mxu0 %v8242
        %11457 = vmatpush.bf16.msra.mxu0 %v8239
        %11458 = vmatpush.bf16.msra.mxu0 %v8236
        %11459 = vmatpush.bf16.msra.mxu0 %v8233
        %11460 = vmatmul.bf16.gmra.mxu0 %v2392
        %v11461 = vpop.f32.mrf.mxu0
        %v11462 = vadd.f32 %v11449, %v11461
        %v11463 = vpop.f32.mrf.mxu0
        %11464 = vdwg.mxu0
        %11465 = vmatpush.bf16.msra.mxu0 %v8278
        %11466 = vmatpush.bf16.msra.mxu0 %v8275
        %11467 = vmatpush.bf16.msra.mxu0 %v8272
        %11468 = vmatpush.bf16.msra.mxu0 %v8269
        %11469 = vmatpush.bf16.msra.mxu0 %v8266
        %11470 = vmatpush.bf16.msra.mxu0 %v8263
        %11471 = vmatpush.bf16.msra.mxu0 %v8260
        %11472 = vmatpush.bf16.msra.mxu0 %v8257
        %11473 = vmatmul.bf16.gmra.mxu0 %v2393
        %v11474 = vpop.f32.mrf.mxu0
        %v11475 = vadd.f32 %v11462, %v11474
        %v11476 = vpop.f32.mrf.mxu0
        %11477 = vdwg.mxu0
        %11478 = vmatpush.bf16.msra.mxu0 %v8302
        %11479 = vmatpush.bf16.msra.mxu0 %v8299
        %11480 = vmatpush.bf16.msra.mxu0 %v8296
        %11481 = vmatpush.bf16.msra.mxu0 %v8293
        %11482 = vmatpush.bf16.msra.mxu0 %v8290
        %11483 = vmatpush.bf16.msra.mxu0 %v8287
        %11484 = vmatpush.bf16.msra.mxu0 %v8284
        %11485 = vmatpush.bf16.msra.mxu0 %v8281
        %11486 = vmatmul.bf16.gmra.mxu0 %v2394
        %v11487 = vpop.f32.mrf.mxu0
        %v11488 = vadd.f32 %v11475, %v11487
        %v11489 = vpop.f32.mrf.mxu0
        %11490 = vdwg.mxu0
        %11491 = vmatpush.bf16.msra.mxu0 %v8326
        %11492 = vmatpush.bf16.msra.mxu0 %v8323
        %11493 = vmatpush.bf16.msra.mxu0 %v8320
        %11494 = vmatpush.bf16.msra.mxu0 %v8317
        %11495 = vmatpush.bf16.msra.mxu0 %v8314
        %11496 = vmatpush.bf16.msra.mxu0 %v8311
        %11497 = vmatpush.bf16.msra.mxu0 %v8308
        %11498 = vmatpush.bf16.msra.mxu0 %v8305
        %11499 = vmatmul.bf16.gmra.mxu0 %v2395
        %v11500 = vpop.f32.mrf.mxu0
        %v11501 = vadd.f32 %v11488, %v11500
        %v11502 = vpop.f32.mrf.mxu0
        %11503 = vdwg.mxu0
        %11504 = vmatpush.bf16.msra.mxu0 %v8350
        %11505 = vmatpush.bf16.msra.mxu0 %v8347
        %11506 = vmatpush.bf16.msra.mxu0 %v8344
        %11507 = vmatpush.bf16.msra.mxu0 %v8341
        %11508 = vmatpush.bf16.msra.mxu0 %v8338
        %11509 = vmatpush.bf16.msra.mxu0 %v8335
        %11510 = vmatpush.bf16.msra.mxu0 %v8332
        %11511 = vmatpush.bf16.msra.mxu0 %v8329
        %11512 = vmatmul.bf16.gmra.mxu0 %v2396
        %v11513 = vpop.f32.mrf.mxu0
        %v11514 = vadd.f32 %v11501, %v11513
        %v11515 = vpop.f32.mrf.mxu0
        %11516 = vdwg.mxu0
        %11517 = vmatpush.bf16.msra.mxu0 %v8374
        %11518 = vmatpush.bf16.msra.mxu0 %v8371
        %11519 = vmatpush.bf16.msra.mxu0 %v8368
        %11520 = vmatpush.bf16.msra.mxu0 %v8365
        %11521 = vmatpush.bf16.msra.mxu0 %v8362
        %11522 = vmatpush.bf16.msra.mxu0 %v8359
        %11523 = vmatpush.bf16.msra.mxu0 %v8356
        %11524 = vmatpush.bf16.msra.mxu0 %v8353
        %11525 = vmatmul.bf16.gmra.mxu0 %v2397
        %v11526 = vpop.f32.mrf.mxu0
        %v11527 = vadd.f32 %v11514, %v11526
        %v11528 = vpop.f32.mrf.mxu0
        %11529 = vdwg.mxu0
        %11530 = vmatpush.bf16.msra.mxu0 %v8398
        %11531 = vmatpush.bf16.msra.mxu0 %v8395
        %11532 = vmatpush.bf16.msra.mxu0 %v8392
        %11533 = vmatpush.bf16.msra.mxu0 %v8389
        %11534 = vmatpush.bf16.msra.mxu0 %v8386
        %11535 = vmatpush.bf16.msra.mxu0 %v8383
        %11536 = vmatpush.bf16.msra.mxu0 %v8380
        %11537 = vmatpush.bf16.msra.mxu0 %v8377
        %11538 = vmatmul.bf16.gmra.mxu0 %v2398
        %v11539 = vpop.f32.mrf.mxu0
        %v11540 = vadd.f32 %v11527, %v11539
        %v11541 = vpop.f32.mrf.mxu0
        %11542 = vdwg.mxu0
        %11543 = vmatpush.bf16.msra.mxu0 %v8422
        %11544 = vmatpush.bf16.msra.mxu0 %v8419
        %11545 = vmatpush.bf16.msra.mxu0 %v8416
        %11546 = vmatpush.bf16.msra.mxu0 %v8413
        %11547 = vmatpush.bf16.msra.mxu0 %v8410
        %11548 = vmatpush.bf16.msra.mxu0 %v8407
        %11549 = vmatpush.bf16.msra.mxu0 %v8404
        %11550 = vmatpush.bf16.msra.mxu0 %v8401
        %11551 = vmatmul.bf16.gmra.mxu0 %v2399
        %v11552 = vpop.f32.mrf.mxu0
        %v11553 = vadd.f32 %v11540, %v11552
        %v11554 = vpop.f32.mrf.mxu0
        %11555 = vdwg.mxu0
        %11556 = vmatpush.bf16.msra.mxu0 %v8446
        %11557 = vmatpush.bf16.msra.mxu0 %v8443
        %11558 = vmatpush.bf16.msra.mxu0 %v8440
        %11559 = vmatpush.bf16.msra.mxu0 %v8437
        %11560 = vmatpush.bf16.msra.mxu0 %v8434
        %11561 = vmatpush.bf16.msra.mxu0 %v8431
        %11562 = vmatpush.bf16.msra.mxu0 %v8428
        %11563 = vmatpush.bf16.msra.mxu0 %v8425
        %11564 = vmatmul.bf16.gmra.mxu0 %v2400
        %v11565 = vpop.f32.mrf.mxu0
        %v11566 = vadd.f32 %v11553, %v11565
        %v11567 = vpop.f32.mrf.mxu0
        %11568 = vdwg.mxu0
        %11569 = vmatpush.bf16.msra.mxu0 %v8470
        %11570 = vmatpush.bf16.msra.mxu0 %v8467
        %11571 = vmatpush.bf16.msra.mxu0 %v8464
        %11572 = vmatpush.bf16.msra.mxu0 %v8461
        %11573 = vmatpush.bf16.msra.mxu0 %v8458
        %11574 = vmatpush.bf16.msra.mxu0 %v8455
        %11575 = vmatpush.bf16.msra.mxu0 %v8452
        %11576 = vmatpush.bf16.msra.mxu0 %v8449
        %11577 = vmatmul.bf16.gmra.mxu0 %v2401
        %v11578 = vpop.f32.mrf.mxu0
        %v11579 = vadd.f32 %v11566, %v11578
        %v11580 = vpop.f32.mrf.mxu0
        %11581 = vdwg.mxu0
        %11582 = vmatpush.bf16.msra.mxu0 %v8494
        %11583 = vmatpush.bf16.msra.mxu0 %v8491
        %11584 = vmatpush.bf16.msra.mxu0 %v8488
        %11585 = vmatpush.bf16.msra.mxu0 %v8485
        %11586 = vmatpush.bf16.msra.mxu0 %v8482
        %11587 = vmatpush.bf16.msra.mxu0 %v8479
        %11588 = vmatpush.bf16.msra.mxu0 %v8476
        %11589 = vmatpush.bf16.msra.mxu0 %v8473
        %11590 = vmatmul.bf16.gmra.mxu0 %v2402
        %v11591 = vpop.f32.mrf.mxu0
        %v11592 = vadd.f32 %v11579, %v11591
        %v11593 = vpop.f32.mrf.mxu0
        %11594 = vdwg.mxu0
        %11595 = vmatpush.bf16.msra.mxu0 %v8518
        %11596 = vmatpush.bf16.msra.mxu0 %v8515
        %11597 = vmatpush.bf16.msra.mxu0 %v8512
        %11598 = vmatpush.bf16.msra.mxu0 %v8509
        %11599 = vmatpush.bf16.msra.mxu0 %v8506
        %11600 = vmatpush.bf16.msra.mxu0 %v8503
        %11601 = vmatpush.bf16.msra.mxu0 %v8500
        %11602 = vmatpush.bf16.msra.mxu0 %v8497
        %11603 = vmatmul.bf16.gmra.mxu0 %v2403
        %v11604 = vpop.f32.mrf.mxu0
        %v11605 = vadd.f32 %v11592, %v11604
        %v11606 = vpop.f32.mrf.mxu0
        %11607 = vdwg.mxu0
        %11608 = vmatpush.bf16.msra.mxu0 %v8542
        %11609 = vmatpush.bf16.msra.mxu0 %v8539
        %11610 = vmatpush.bf16.msra.mxu0 %v8536
        %11611 = vmatpush.bf16.msra.mxu0 %v8533
        %11612 = vmatpush.bf16.msra.mxu0 %v8530
        %11613 = vmatpush.bf16.msra.mxu0 %v8527
        %11614 = vmatpush.bf16.msra.mxu0 %v8524
        %11615 = vmatpush.bf16.msra.mxu0 %v8521
        %11616 = vmatmul.bf16.gmra.mxu0 %v2404
        %v11617 = vpop.f32.mrf.mxu0
        %v11618 = vadd.f32 %v11605, %v11617
        %v11619 = vpop.f32.mrf.mxu0
        %11620 = vdwg.mxu0
        %11621 = vmatpush.bf16.msra.mxu0 %v8566
        %11622 = vmatpush.bf16.msra.mxu0 %v8563
        %11623 = vmatpush.bf16.msra.mxu0 %v8560
        %11624 = vmatpush.bf16.msra.mxu0 %v8557
        %11625 = vmatpush.bf16.msra.mxu0 %v8554
        %11626 = vmatpush.bf16.msra.mxu0 %v8551
        %11627 = vmatpush.bf16.msra.mxu0 %v8548
        %11628 = vmatpush.bf16.msra.mxu0 %v8545
        %11629 = vmatmul.bf16.gmra.mxu0 %v2405
        %v11630 = vpop.f32.mrf.mxu0
        %v11631 = vadd.f32 %v11618, %v11630
        %v11632 = vpop.f32.mrf.mxu0
        %11633 = vdwg.mxu0
        %11634 = vmatpush.bf16.msra.mxu0 %v8590
        %11635 = vmatpush.bf16.msra.mxu0 %v8587
        %11636 = vmatpush.bf16.msra.mxu0 %v8584
        %11637 = vmatpush.bf16.msra.mxu0 %v8581
        %11638 = vmatpush.bf16.msra.mxu0 %v8578
        %11639 = vmatpush.bf16.msra.mxu0 %v8575
        %11640 = vmatpush.bf16.msra.mxu0 %v8572
        %11641 = vmatpush.bf16.msra.mxu0 %v8569
        %11642 = vmatmul.bf16.gmra.mxu0 %v2406
        %v11643 = vpop.f32.mrf.mxu0
        %v11644 = vadd.f32 %v11631, %v11643
        %v11645 = vpop.f32.mrf.mxu0
        %11646 = vdwg.mxu0
        %11647 = vmatpush.bf16.msra.mxu0 %v8614
        %11648 = vmatpush.bf16.msra.mxu0 %v8611
        %11649 = vmatpush.bf16.msra.mxu0 %v8608
        %11650 = vmatpush.bf16.msra.mxu0 %v8605
        %11651 = vmatpush.bf16.msra.mxu0 %v8602
        %11652 = vmatpush.bf16.msra.mxu0 %v8599
        %11653 = vmatpush.bf16.msra.mxu0 %v8596
        %11654 = vmatpush.bf16.msra.mxu0 %v8593
        %11655 = vmatmul.bf16.gmra.mxu0 %v2407
        %v11656 = vpop.f32.mrf.mxu0
        %v11657 = vadd.f32 %v11644, %v11656
        %v11658 = vpop.f32.mrf.mxu0
        %11659 = vdwg.mxu0
        %11660 = vmatpush.bf16.msra.mxu0 %v8638
        %11661 = vmatpush.bf16.msra.mxu0 %v8635
        %11662 = vmatpush.bf16.msra.mxu0 %v8632
        %11663 = vmatpush.bf16.msra.mxu0 %v8629
        %11664 = vmatpush.bf16.msra.mxu0 %v8626
        %11665 = vmatpush.bf16.msra.mxu0 %v8623
        %11666 = vmatpush.bf16.msra.mxu0 %v8620
        %11667 = vmatpush.bf16.msra.mxu0 %v8617
        %11668 = vmatmul.bf16.gmra.mxu0 %v2408
        %v11669 = vpop.f32.mrf.mxu0
        %v11670 = vadd.f32 %v11657, %v11669
        %v11671 = vpop.f32.mrf.mxu0
        %11672 = vdwg.mxu0
        %11673 = vmatpush.bf16.msra.mxu0 %v8662
        %11674 = vmatpush.bf16.msra.mxu0 %v8659
        %11675 = vmatpush.bf16.msra.mxu0 %v8656
        %11676 = vmatpush.bf16.msra.mxu0 %v8653
        %11677 = vmatpush.bf16.msra.mxu0 %v8650
        %11678 = vmatpush.bf16.msra.mxu0 %v8647
        %11679 = vmatpush.bf16.msra.mxu0 %v8644
        %11680 = vmatpush.bf16.msra.mxu0 %v8641
        %11681 = vmatmul.bf16.gmra.mxu0 %v2409
        %v11682 = vpop.f32.mrf.mxu0
        %v11683 = vadd.f32 %v11670, %v11682
        %v11684 = vpop.f32.mrf.mxu0
        %11685 = vdwg.mxu0
        %11686 = vmatpush.bf16.msra.mxu0 %v8686
        %11687 = vmatpush.bf16.msra.mxu0 %v8683
        %11688 = vmatpush.bf16.msra.mxu0 %v8680
        %11689 = vmatpush.bf16.msra.mxu0 %v8677
        %11690 = vmatpush.bf16.msra.mxu0 %v8674
        %11691 = vmatpush.bf16.msra.mxu0 %v8671
        %11692 = vmatpush.bf16.msra.mxu0 %v8668
        %11693 = vmatpush.bf16.msra.mxu0 %v8665
        %11694 = vmatmul.bf16.gmra.mxu0 %v2410
        %v11695 = vpop.f32.mrf.mxu0
        %v11696 = vadd.f32 %v11683, %v11695
        %v11697 = vpop.f32.mrf.mxu0
        %11698 = vdwg.mxu0
        %11699 = vmatpush.bf16.msra.mxu0 %v8710
        %11700 = vmatpush.bf16.msra.mxu0 %v8707
        %11701 = vmatpush.bf16.msra.mxu0 %v8704
        %11702 = vmatpush.bf16.msra.mxu0 %v8701
        %11703 = vmatpush.bf16.msra.mxu0 %v8698
        %11704 = vmatpush.bf16.msra.mxu0 %v8695
        %11705 = vmatpush.bf16.msra.mxu0 %v8692
        %11706 = vmatpush.bf16.msra.mxu0 %v8689
        %11707 = vmatmul.bf16.gmra.mxu0 %v2411
        %v11708 = vpop.f32.mrf.mxu0
        %v11709 = vadd.f32 %v11696, %v11708
        %v11710 = vpop.f32.mrf.mxu0
        %11711 = vdwg.mxu0
        %11712 = vmatpush.bf16.msra.mxu0 %v7295
        %11713 = vmatpush.bf16.msra.mxu0 %v7292
        %11714 = vmatpush.bf16.msra.mxu0 %v7289
        %11715 = vmatpush.bf16.msra.mxu0 %v7286
        %11716 = vmatpush.bf16.msra.mxu0 %v7283
        %11717 = vmatpush.bf16.msra.mxu0 %v7280
        %11718 = vmatpush.bf16.msra.mxu0 %v7277
        %11719 = vmatpush.bf16.msra.mxu0 %v7274
        %11720 = vmatmul.bf16.gmra.mxu0 %v2352
        %v11721 = vpop.f32.mrf.mxu0
        %v11722 = vadd.f32 0.0, %v11721
        %v11723 = vpop.f32.mrf.mxu0
        %11724 = vdwg.mxu0
        %11725 = vmatpush.bf16.msra.mxu0 %v7319
        %11726 = vmatpush.bf16.msra.mxu0 %v7316
        %11727 = vmatpush.bf16.msra.mxu0 %v7313
        %11728 = vmatpush.bf16.msra.mxu0 %v7310
        %11729 = vmatpush.bf16.msra.mxu0 %v7307
        %11730 = vmatpush.bf16.msra.mxu0 %v7304
        %11731 = vmatpush.bf16.msra.mxu0 %v7301
        %11732 = vmatpush.bf16.msra.mxu0 %v7298
        %11733 = vmatmul.bf16.gmra.mxu0 %v2353
        %v11734 = vpop.f32.mrf.mxu0
        %v11735 = vadd.f32 %v11722, %v11734
        %v11736 = vpop.f32.mrf.mxu0
        %11737 = vdwg.mxu0
        %11738 = vmatpush.bf16.msra.mxu0 %v7343
        %11739 = vmatpush.bf16.msra.mxu0 %v7340
        %11740 = vmatpush.bf16.msra.mxu0 %v7337
        %11741 = vmatpush.bf16.msra.mxu0 %v7334
        %11742 = vmatpush.bf16.msra.mxu0 %v7331
        %11743 = vmatpush.bf16.msra.mxu0 %v7328
        %11744 = vmatpush.bf16.msra.mxu0 %v7325
        %11745 = vmatpush.bf16.msra.mxu0 %v7322
        %11746 = vmatmul.bf16.gmra.mxu0 %v2354
        %v11747 = vpop.f32.mrf.mxu0
        %v11748 = vadd.f32 %v11735, %v11747
        %v11749 = vpop.f32.mrf.mxu0
        %11750 = vdwg.mxu0
        %11751 = vmatpush.bf16.msra.mxu0 %v7367
        %11752 = vmatpush.bf16.msra.mxu0 %v7364
        %11753 = vmatpush.bf16.msra.mxu0 %v7361
        %11754 = vmatpush.bf16.msra.mxu0 %v7358
        %11755 = vmatpush.bf16.msra.mxu0 %v7355
        %11756 = vmatpush.bf16.msra.mxu0 %v7352
        %11757 = vmatpush.bf16.msra.mxu0 %v7349
        %11758 = vmatpush.bf16.msra.mxu0 %v7346
        %11759 = vmatmul.bf16.gmra.mxu0 %v2355
        %v11760 = vpop.f32.mrf.mxu0
        %v11761 = vadd.f32 %v11748, %v11760
        %v11762 = vpop.f32.mrf.mxu0
        %11763 = vdwg.mxu0
        %11764 = vmatpush.bf16.msra.mxu0 %v7391
        %11765 = vmatpush.bf16.msra.mxu0 %v7388
        %11766 = vmatpush.bf16.msra.mxu0 %v7385
        %11767 = vmatpush.bf16.msra.mxu0 %v7382
        %11768 = vmatpush.bf16.msra.mxu0 %v7379
        %11769 = vmatpush.bf16.msra.mxu0 %v7376
        %11770 = vmatpush.bf16.msra.mxu0 %v7373
        %11771 = vmatpush.bf16.msra.mxu0 %v7370
        %11772 = vmatmul.bf16.gmra.mxu0 %v2356
        %v11773 = vpop.f32.mrf.mxu0
        %v11774 = vadd.f32 %v11761, %v11773
        %v11775 = vpop.f32.mrf.mxu0
        %11776 = vdwg.mxu0
        %11777 = vmatpush.bf16.msra.mxu0 %v7415
        %11778 = vmatpush.bf16.msra.mxu0 %v7412
        %11779 = vmatpush.bf16.msra.mxu0 %v7409
        %11780 = vmatpush.bf16.msra.mxu0 %v7406
        %11781 = vmatpush.bf16.msra.mxu0 %v7403
        %11782 = vmatpush.bf16.msra.mxu0 %v7400
        %11783 = vmatpush.bf16.msra.mxu0 %v7397
        %11784 = vmatpush.bf16.msra.mxu0 %v7394
        %11785 = vmatmul.bf16.gmra.mxu0 %v2357
        %v11786 = vpop.f32.mrf.mxu0
        %v11787 = vadd.f32 %v11774, %v11786
        %v11788 = vpop.f32.mrf.mxu0
        %11789 = vdwg.mxu0
        %11790 = vmatpush.bf16.msra.mxu0 %v7439
        %11791 = vmatpush.bf16.msra.mxu0 %v7436
        %11792 = vmatpush.bf16.msra.mxu0 %v7433
        %11793 = vmatpush.bf16.msra.mxu0 %v7430
        %11794 = vmatpush.bf16.msra.mxu0 %v7427
        %11795 = vmatpush.bf16.msra.mxu0 %v7424
        %11796 = vmatpush.bf16.msra.mxu0 %v7421
        %11797 = vmatpush.bf16.msra.mxu0 %v7418
        %11798 = vmatmul.bf16.gmra.mxu0 %v2358
        %v11799 = vpop.f32.mrf.mxu0
        %v11800 = vadd.f32 %v11787, %v11799
        %v11801 = vpop.f32.mrf.mxu0
        %11802 = vdwg.mxu0
        %11803 = vmatpush.bf16.msra.mxu0 %v7463
        %11804 = vmatpush.bf16.msra.mxu0 %v7460
        %11805 = vmatpush.bf16.msra.mxu0 %v7457
        %11806 = vmatpush.bf16.msra.mxu0 %v7454
        %11807 = vmatpush.bf16.msra.mxu0 %v7451
        %11808 = vmatpush.bf16.msra.mxu0 %v7448
        %11809 = vmatpush.bf16.msra.mxu0 %v7445
        %11810 = vmatpush.bf16.msra.mxu0 %v7442
        %11811 = vmatmul.bf16.gmra.mxu0 %v2359
        %v11812 = vpop.f32.mrf.mxu0
        %v11813 = vadd.f32 %v11800, %v11812
        %v11814 = vpop.f32.mrf.mxu0
        %11815 = vdwg.mxu0
        %11816 = vmatpush.bf16.msra.mxu0 %v7487
        %11817 = vmatpush.bf16.msra.mxu0 %v7484
        %11818 = vmatpush.bf16.msra.mxu0 %v7481
        %11819 = vmatpush.bf16.msra.mxu0 %v7478
        %11820 = vmatpush.bf16.msra.mxu0 %v7475
        %11821 = vmatpush.bf16.msra.mxu0 %v7472
        %11822 = vmatpush.bf16.msra.mxu0 %v7469
        %11823 = vmatpush.bf16.msra.mxu0 %v7466
        %11824 = vmatmul.bf16.gmra.mxu0 %v2360
        %v11825 = vpop.f32.mrf.mxu0
        %v11826 = vadd.f32 %v11813, %v11825
        %v11827 = vpop.f32.mrf.mxu0
        %11828 = vdwg.mxu0
        %11829 = vmatpush.bf16.msra.mxu0 %v7511
        %11830 = vmatpush.bf16.msra.mxu0 %v7508
        %11831 = vmatpush.bf16.msra.mxu0 %v7505
        %11832 = vmatpush.bf16.msra.mxu0 %v7502
        %11833 = vmatpush.bf16.msra.mxu0 %v7499
        %11834 = vmatpush.bf16.msra.mxu0 %v7496
        %11835 = vmatpush.bf16.msra.mxu0 %v7493
        %11836 = vmatpush.bf16.msra.mxu0 %v7490
        %11837 = vmatmul.bf16.gmra.mxu0 %v2361
        %v11838 = vpop.f32.mrf.mxu0
        %v11839 = vadd.f32 %v11826, %v11838
        %v11840 = vpop.f32.mrf.mxu0
        %11841 = vdwg.mxu0
        %11842 = vmatpush.bf16.msra.mxu0 %v7535
        %11843 = vmatpush.bf16.msra.mxu0 %v7532
        %11844 = vmatpush.bf16.msra.mxu0 %v7529
        %11845 = vmatpush.bf16.msra.mxu0 %v7526
        %11846 = vmatpush.bf16.msra.mxu0 %v7523
        %11847 = vmatpush.bf16.msra.mxu0 %v7520
        %11848 = vmatpush.bf16.msra.mxu0 %v7517
        %11849 = vmatpush.bf16.msra.mxu0 %v7514
        %11850 = vmatmul.bf16.gmra.mxu0 %v2362
        %v11851 = vpop.f32.mrf.mxu0
        %v11852 = vadd.f32 %v11839, %v11851
        %v11853 = vpop.f32.mrf.mxu0
        %11854 = vdwg.mxu0
        %11855 = vmatpush.bf16.msra.mxu0 %v7559
        %11856 = vmatpush.bf16.msra.mxu0 %v7556
        %11857 = vmatpush.bf16.msra.mxu0 %v7553
        %11858 = vmatpush.bf16.msra.mxu0 %v7550
        %11859 = vmatpush.bf16.msra.mxu0 %v7547
        %11860 = vmatpush.bf16.msra.mxu0 %v7544
        %11861 = vmatpush.bf16.msra.mxu0 %v7541
        %11862 = vmatpush.bf16.msra.mxu0 %v7538
        %11863 = vmatmul.bf16.gmra.mxu0 %v2363
        %v11864 = vpop.f32.mrf.mxu0
        %v11865 = vadd.f32 %v11852, %v11864
        %v11866 = vpop.f32.mrf.mxu0
        %11867 = vdwg.mxu0
        %11868 = vmatpush.bf16.msra.mxu0 %v7583
        %11869 = vmatpush.bf16.msra.mxu0 %v7580
        %11870 = vmatpush.bf16.msra.mxu0 %v7577
        %11871 = vmatpush.bf16.msra.mxu0 %v7574
        %11872 = vmatpush.bf16.msra.mxu0 %v7571
        %11873 = vmatpush.bf16.msra.mxu0 %v7568
        %11874 = vmatpush.bf16.msra.mxu0 %v7565
        %11875 = vmatpush.bf16.msra.mxu0 %v7562
        %11876 = vmatmul.bf16.gmra.mxu0 %v2364
        %v11877 = vpop.f32.mrf.mxu0
        %v11878 = vadd.f32 %v11865, %v11877
        %v11879 = vpop.f32.mrf.mxu0
        %11880 = vdwg.mxu0
        %11881 = vmatpush.bf16.msra.mxu0 %v7607
        %11882 = vmatpush.bf16.msra.mxu0 %v7604
        %11883 = vmatpush.bf16.msra.mxu0 %v7601
        %11884 = vmatpush.bf16.msra.mxu0 %v7598
        %11885 = vmatpush.bf16.msra.mxu0 %v7595
        %11886 = vmatpush.bf16.msra.mxu0 %v7592
        %11887 = vmatpush.bf16.msra.mxu0 %v7589
        %11888 = vmatpush.bf16.msra.mxu0 %v7586
        %11889 = vmatmul.bf16.gmra.mxu0 %v2365
        %v11890 = vpop.f32.mrf.mxu0
        %v11891 = vadd.f32 %v11878, %v11890
        %v11892 = vpop.f32.mrf.mxu0
        %11893 = vdwg.mxu0
        %11894 = vmatpush.bf16.msra.mxu0 %v7631
        %11895 = vmatpush.bf16.msra.mxu0 %v7628
        %11896 = vmatpush.bf16.msra.mxu0 %v7625
        %11897 = vmatpush.bf16.msra.mxu0 %v7622
        %11898 = vmatpush.bf16.msra.mxu0 %v7619
        %11899 = vmatpush.bf16.msra.mxu0 %v7616
        %11900 = vmatpush.bf16.msra.mxu0 %v7613
        %11901 = vmatpush.bf16.msra.mxu0 %v7610
        %11902 = vmatmul.bf16.gmra.mxu0 %v2366
        %v11903 = vpop.f32.mrf.mxu0
        %v11904 = vadd.f32 %v11891, %v11903
        %v11905 = vpop.f32.mrf.mxu0
        %11906 = vdwg.mxu0
        %11907 = vmatpush.bf16.msra.mxu0 %v7655
        %11908 = vmatpush.bf16.msra.mxu0 %v7652
        %11909 = vmatpush.bf16.msra.mxu0 %v7649
        %11910 = vmatpush.bf16.msra.mxu0 %v7646
        %11911 = vmatpush.bf16.msra.mxu0 %v7643
        %11912 = vmatpush.bf16.msra.mxu0 %v7640
        %11913 = vmatpush.bf16.msra.mxu0 %v7637
        %11914 = vmatpush.bf16.msra.mxu0 %v7634
        %11915 = vmatmul.bf16.gmra.mxu0 %v2367
        %v11916 = vpop.f32.mrf.mxu0
        %v11917 = vadd.f32 %v11904, %v11916
        %v11918 = vpop.f32.mrf.mxu0
        %11919 = vdwg.mxu0
        %11920 = vmatpush.bf16.msra.mxu0 %v7679
        %11921 = vmatpush.bf16.msra.mxu0 %v7676
        %11922 = vmatpush.bf16.msra.mxu0 %v7673
        %11923 = vmatpush.bf16.msra.mxu0 %v7670
        %11924 = vmatpush.bf16.msra.mxu0 %v7667
        %11925 = vmatpush.bf16.msra.mxu0 %v7664
        %11926 = vmatpush.bf16.msra.mxu0 %v7661
        %11927 = vmatpush.bf16.msra.mxu0 %v7658
        %11928 = vmatmul.bf16.gmra.mxu0 %v2368
        %v11929 = vpop.f32.mrf.mxu0
        %v11930 = vadd.f32 %v11917, %v11929
        %v11931 = vpop.f32.mrf.mxu0
        %11932 = vdwg.mxu0
        %11933 = vmatpush.bf16.msra.mxu0 %v7703
        %11934 = vmatpush.bf16.msra.mxu0 %v7700
        %11935 = vmatpush.bf16.msra.mxu0 %v7697
        %11936 = vmatpush.bf16.msra.mxu0 %v7694
        %11937 = vmatpush.bf16.msra.mxu0 %v7691
        %11938 = vmatpush.bf16.msra.mxu0 %v7688
        %11939 = vmatpush.bf16.msra.mxu0 %v7685
        %11940 = vmatpush.bf16.msra.mxu0 %v7682
        %11941 = vmatmul.bf16.gmra.mxu0 %v2369
        %v11942 = vpop.f32.mrf.mxu0
        %v11943 = vadd.f32 %v11930, %v11942
        %v11944 = vpop.f32.mrf.mxu0
        %11945 = vdwg.mxu0
        %11946 = vmatpush.bf16.msra.mxu0 %v7727
        %11947 = vmatpush.bf16.msra.mxu0 %v7724
        %11948 = vmatpush.bf16.msra.mxu0 %v7721
        %11949 = vmatpush.bf16.msra.mxu0 %v7718
        %11950 = vmatpush.bf16.msra.mxu0 %v7715
        %11951 = vmatpush.bf16.msra.mxu0 %v7712
        %11952 = vmatpush.bf16.msra.mxu0 %v7709
        %11953 = vmatpush.bf16.msra.mxu0 %v7706
        %11954 = vmatmul.bf16.gmra.mxu0 %v2370
        %v11955 = vpop.f32.mrf.mxu0
        %v11956 = vadd.f32 %v11943, %v11955
        %v11957 = vpop.f32.mrf.mxu0
        %11958 = vdwg.mxu0
        %11959 = vmatpush.bf16.msra.mxu0 %v7751
        %11960 = vmatpush.bf16.msra.mxu0 %v7748
        %11961 = vmatpush.bf16.msra.mxu0 %v7745
        %11962 = vmatpush.bf16.msra.mxu0 %v7742
        %11963 = vmatpush.bf16.msra.mxu0 %v7739
        %11964 = vmatpush.bf16.msra.mxu0 %v7736
        %11965 = vmatpush.bf16.msra.mxu0 %v7733
        %11966 = vmatpush.bf16.msra.mxu0 %v7730
        %11967 = vmatmul.bf16.gmra.mxu0 %v2371
        %v11968 = vpop.f32.mrf.mxu0
        %v11969 = vadd.f32 %v11956, %v11968
        %v11970 = vpop.f32.mrf.mxu0
        %11971 = vdwg.mxu0
        %11972 = vmatpush.bf16.msra.mxu0 %v7775
        %11973 = vmatpush.bf16.msra.mxu0 %v7772
        %11974 = vmatpush.bf16.msra.mxu0 %v7769
        %11975 = vmatpush.bf16.msra.mxu0 %v7766
        %11976 = vmatpush.bf16.msra.mxu0 %v7763
        %11977 = vmatpush.bf16.msra.mxu0 %v7760
        %11978 = vmatpush.bf16.msra.mxu0 %v7757
        %11979 = vmatpush.bf16.msra.mxu0 %v7754
        %11980 = vmatmul.bf16.gmra.mxu0 %v2372
        %v11981 = vpop.f32.mrf.mxu0
        %v11982 = vadd.f32 %v11969, %v11981
        %v11983 = vpop.f32.mrf.mxu0
        %11984 = vdwg.mxu0
        %11985 = vmatpush.bf16.msra.mxu0 %v7799
        %11986 = vmatpush.bf16.msra.mxu0 %v7796
        %11987 = vmatpush.bf16.msra.mxu0 %v7793
        %11988 = vmatpush.bf16.msra.mxu0 %v7790
        %11989 = vmatpush.bf16.msra.mxu0 %v7787
        %11990 = vmatpush.bf16.msra.mxu0 %v7784
        %11991 = vmatpush.bf16.msra.mxu0 %v7781
        %11992 = vmatpush.bf16.msra.mxu0 %v7778
        %11993 = vmatmul.bf16.gmra.mxu0 %v2373
        %v11994 = vpop.f32.mrf.mxu0
        %v11995 = vadd.f32 %v11982, %v11994
        %v11996 = vpop.f32.mrf.mxu0
        %11997 = vdwg.mxu0
        %11998 = vmatpush.bf16.msra.mxu0 %v7823
        %11999 = vmatpush.bf16.msra.mxu0 %v7820
        %12000 = vmatpush.bf16.msra.mxu0 %v7817
        %12001 = vmatpush.bf16.msra.mxu0 %v7814
        %12002 = vmatpush.bf16.msra.mxu0 %v7811
        %12003 = vmatpush.bf16.msra.mxu0 %v7808
        %12004 = vmatpush.bf16.msra.mxu0 %v7805
        %12005 = vmatpush.bf16.msra.mxu0 %v7802
        %12006 = vmatmul.bf16.gmra.mxu0 %v2374
        %v12007 = vpop.f32.mrf.mxu0
        %v12008 = vadd.f32 %v11995, %v12007
        %v12009 = vpop.f32.mrf.mxu0
        %12010 = vdwg.mxu0
        %12011 = vmatpush.bf16.msra.mxu0 %v7847
        %12012 = vmatpush.bf16.msra.mxu0 %v7844
        %12013 = vmatpush.bf16.msra.mxu0 %v7841
        %12014 = vmatpush.bf16.msra.mxu0 %v7838
        %12015 = vmatpush.bf16.msra.mxu0 %v7835
        %12016 = vmatpush.bf16.msra.mxu0 %v7832
        %12017 = vmatpush.bf16.msra.mxu0 %v7829
        %12018 = vmatpush.bf16.msra.mxu0 %v7826
        %12019 = vmatmul.bf16.gmra.mxu0 %v2375
        %v12020 = vpop.f32.mrf.mxu0
        %v12021 = vadd.f32 %v12008, %v12020
        %v12022 = vpop.f32.mrf.mxu0
        %12023 = vdwg.mxu0
        %12024 = vmatpush.bf16.msra.mxu0 %v7871
        %12025 = vmatpush.bf16.msra.mxu0 %v7868
        %12026 = vmatpush.bf16.msra.mxu0 %v7865
        %12027 = vmatpush.bf16.msra.mxu0 %v7862
        %12028 = vmatpush.bf16.msra.mxu0 %v7859
        %12029 = vmatpush.bf16.msra.mxu0 %v7856
        %12030 = vmatpush.bf16.msra.mxu0 %v7853
        %12031 = vmatpush.bf16.msra.mxu0 %v7850
        %12032 = vmatmul.bf16.gmra.mxu0 %v2376
        %v12033 = vpop.f32.mrf.mxu0
        %v12034 = vadd.f32 %v12021, %v12033
        %v12035 = vpop.f32.mrf.mxu0
        %12036 = vdwg.mxu0
        %12037 = vmatpush.bf16.msra.mxu0 %v7895
        %12038 = vmatpush.bf16.msra.mxu0 %v7892
        %12039 = vmatpush.bf16.msra.mxu0 %v7889
        %12040 = vmatpush.bf16.msra.mxu0 %v7886
        %12041 = vmatpush.bf16.msra.mxu0 %v7883
        %12042 = vmatpush.bf16.msra.mxu0 %v7880
        %12043 = vmatpush.bf16.msra.mxu0 %v7877
        %12044 = vmatpush.bf16.msra.mxu0 %v7874
        %12045 = vmatmul.bf16.gmra.mxu0 %v2377
        %v12046 = vpop.f32.mrf.mxu0
        %v12047 = vadd.f32 %v12034, %v12046
        %v12048 = vpop.f32.mrf.mxu0
        %12049 = vdwg.mxu0
        %12050 = vmatpush.bf16.msra.mxu0 %v7919
        %12051 = vmatpush.bf16.msra.mxu0 %v7916
        %12052 = vmatpush.bf16.msra.mxu0 %v7913
        %12053 = vmatpush.bf16.msra.mxu0 %v7910
        %12054 = vmatpush.bf16.msra.mxu0 %v7907
        %12055 = vmatpush.bf16.msra.mxu0 %v7904
        %12056 = vmatpush.bf16.msra.mxu0 %v7901
        %12057 = vmatpush.bf16.msra.mxu0 %v7898
        %12058 = vmatmul.bf16.gmra.mxu0 %v2378
        %v12059 = vpop.f32.mrf.mxu0
        %v12060 = vadd.f32 %v12047, %v12059
        %v12061 = vpop.f32.mrf.mxu0
        %12062 = vdwg.mxu0
        %12063 = vmatpush.bf16.msra.mxu0 %v7943
        %12064 = vmatpush.bf16.msra.mxu0 %v7940
        %12065 = vmatpush.bf16.msra.mxu0 %v7937
        %12066 = vmatpush.bf16.msra.mxu0 %v7934
        %12067 = vmatpush.bf16.msra.mxu0 %v7931
        %12068 = vmatpush.bf16.msra.mxu0 %v7928
        %12069 = vmatpush.bf16.msra.mxu0 %v7925
        %12070 = vmatpush.bf16.msra.mxu0 %v7922
        %12071 = vmatmul.bf16.gmra.mxu0 %v2379
        %v12072 = vpop.f32.mrf.mxu0
        %v12073 = vadd.f32 %v12060, %v12072
        %v12074 = vpop.f32.mrf.mxu0
        %12075 = vdwg.mxu0
        %12076 = vmatpush.bf16.msra.mxu0 %v7967
        %12077 = vmatpush.bf16.msra.mxu0 %v7964
        %12078 = vmatpush.bf16.msra.mxu0 %v7961
        %12079 = vmatpush.bf16.msra.mxu0 %v7958
        %12080 = vmatpush.bf16.msra.mxu0 %v7955
        %12081 = vmatpush.bf16.msra.mxu0 %v7952
        %12082 = vmatpush.bf16.msra.mxu0 %v7949
        %12083 = vmatpush.bf16.msra.mxu0 %v7946
        %12084 = vmatmul.bf16.gmra.mxu0 %v2380
        %v12085 = vpop.f32.mrf.mxu0
        %v12086 = vadd.f32 %v12073, %v12085
        %v12087 = vpop.f32.mrf.mxu0
        %12088 = vdwg.mxu0
        %12089 = vmatpush.bf16.msra.mxu0 %v7991
        %12090 = vmatpush.bf16.msra.mxu0 %v7988
        %12091 = vmatpush.bf16.msra.mxu0 %v7985
        %12092 = vmatpush.bf16.msra.mxu0 %v7982
        %12093 = vmatpush.bf16.msra.mxu0 %v7979
        %12094 = vmatpush.bf16.msra.mxu0 %v7976
        %12095 = vmatpush.bf16.msra.mxu0 %v7973
        %12096 = vmatpush.bf16.msra.mxu0 %v7970
        %12097 = vmatmul.bf16.gmra.mxu0 %v2381
        %v12098 = vpop.f32.mrf.mxu0
        %v12099 = vadd.f32 %v12086, %v12098
        %v12100 = vpop.f32.mrf.mxu0
        %12101 = vdwg.mxu0
        %12102 = vmatpush.bf16.msra.mxu0 %v8015
        %12103 = vmatpush.bf16.msra.mxu0 %v8012
        %12104 = vmatpush.bf16.msra.mxu0 %v8009
        %12105 = vmatpush.bf16.msra.mxu0 %v8006
        %12106 = vmatpush.bf16.msra.mxu0 %v8003
        %12107 = vmatpush.bf16.msra.mxu0 %v8000
        %12108 = vmatpush.bf16.msra.mxu0 %v7997
        %12109 = vmatpush.bf16.msra.mxu0 %v7994
        %12110 = vmatmul.bf16.gmra.mxu0 %v2382
        %v12111 = vpop.f32.mrf.mxu0
        %v12112 = vadd.f32 %v12099, %v12111
        %v12113 = vpop.f32.mrf.mxu0
        %12114 = vdwg.mxu0
        %12115 = vmatpush.bf16.msra.mxu0 %v8039
        %12116 = vmatpush.bf16.msra.mxu0 %v8036
        %12117 = vmatpush.bf16.msra.mxu0 %v8033
        %12118 = vmatpush.bf16.msra.mxu0 %v8030
        %12119 = vmatpush.bf16.msra.mxu0 %v8027
        %12120 = vmatpush.bf16.msra.mxu0 %v8024
        %12121 = vmatpush.bf16.msra.mxu0 %v8021
        %12122 = vmatpush.bf16.msra.mxu0 %v8018
        %12123 = vmatmul.bf16.gmra.mxu0 %v2383
        %v12124 = vpop.f32.mrf.mxu0
        %v12125 = vadd.f32 %v12112, %v12124
        %v12126 = vpop.f32.mrf.mxu0
        %12127 = vdwg.mxu0
        %12128 = vmatpush.bf16.msra.mxu0 %v8063
        %12129 = vmatpush.bf16.msra.mxu0 %v8060
        %12130 = vmatpush.bf16.msra.mxu0 %v8057
        %12131 = vmatpush.bf16.msra.mxu0 %v8054
        %12132 = vmatpush.bf16.msra.mxu0 %v8051
        %12133 = vmatpush.bf16.msra.mxu0 %v8048
        %12134 = vmatpush.bf16.msra.mxu0 %v8045
        %12135 = vmatpush.bf16.msra.mxu0 %v8042
        %12136 = vmatmul.bf16.gmra.mxu0 %v2384
        %v12137 = vpop.f32.mrf.mxu0
        %v12138 = vadd.f32 %v12125, %v12137
        %v12139 = vpop.f32.mrf.mxu0
        %12140 = vdwg.mxu0
        %12141 = vmatpush.bf16.msra.mxu0 %v8087
        %12142 = vmatpush.bf16.msra.mxu0 %v8084
        %12143 = vmatpush.bf16.msra.mxu0 %v8081
        %12144 = vmatpush.bf16.msra.mxu0 %v8078
        %12145 = vmatpush.bf16.msra.mxu0 %v8075
        %12146 = vmatpush.bf16.msra.mxu0 %v8072
        %12147 = vmatpush.bf16.msra.mxu0 %v8069
        %12148 = vmatpush.bf16.msra.mxu0 %v8066
        %12149 = vmatmul.bf16.gmra.mxu0 %v2385
        %v12150 = vpop.f32.mrf.mxu0
        %v12151 = vadd.f32 %v12138, %v12150
        %v12152 = vpop.f32.mrf.mxu0
        %12153 = vdwg.mxu0
        %12154 = vmatpush.bf16.msra.mxu0 %v8111
        %12155 = vmatpush.bf16.msra.mxu0 %v8108
        %12156 = vmatpush.bf16.msra.mxu0 %v8105
        %12157 = vmatpush.bf16.msra.mxu0 %v8102
        %12158 = vmatpush.bf16.msra.mxu0 %v8099
        %12159 = vmatpush.bf16.msra.mxu0 %v8096
        %12160 = vmatpush.bf16.msra.mxu0 %v8093
        %12161 = vmatpush.bf16.msra.mxu0 %v8090
        %12162 = vmatmul.bf16.gmra.mxu0 %v2386
        %v12163 = vpop.f32.mrf.mxu0
        %v12164 = vadd.f32 %v12151, %v12163
        %v12165 = vpop.f32.mrf.mxu0
        %12166 = vdwg.mxu0
        %12167 = vmatpush.bf16.msra.mxu0 %v8135
        %12168 = vmatpush.bf16.msra.mxu0 %v8132
        %12169 = vmatpush.bf16.msra.mxu0 %v8129
        %12170 = vmatpush.bf16.msra.mxu0 %v8126
        %12171 = vmatpush.bf16.msra.mxu0 %v8123
        %12172 = vmatpush.bf16.msra.mxu0 %v8120
        %12173 = vmatpush.bf16.msra.mxu0 %v8117
        %12174 = vmatpush.bf16.msra.mxu0 %v8114
        %12175 = vmatmul.bf16.gmra.mxu0 %v2387
        %v12176 = vpop.f32.mrf.mxu0
        %v12177 = vadd.f32 %v12164, %v12176
        %v12178 = vpop.f32.mrf.mxu0
        %12179 = vdwg.mxu0
        %12180 = vmatpush.bf16.msra.mxu0 %v8159
        %12181 = vmatpush.bf16.msra.mxu0 %v8156
        %12182 = vmatpush.bf16.msra.mxu0 %v8153
        %12183 = vmatpush.bf16.msra.mxu0 %v8150
        %12184 = vmatpush.bf16.msra.mxu0 %v8147
        %12185 = vmatpush.bf16.msra.mxu0 %v8144
        %12186 = vmatpush.bf16.msra.mxu0 %v8141
        %12187 = vmatpush.bf16.msra.mxu0 %v8138
        %12188 = vmatmul.bf16.gmra.mxu0 %v2388
        %v12189 = vpop.f32.mrf.mxu0
        %v12190 = vadd.f32 %v12177, %v12189
        %v12191 = vpop.f32.mrf.mxu0
        %12192 = vdwg.mxu0
        %12193 = vmatpush.bf16.msra.mxu0 %v8183
        %12194 = vmatpush.bf16.msra.mxu0 %v8180
        %12195 = vmatpush.bf16.msra.mxu0 %v8177
        %12196 = vmatpush.bf16.msra.mxu0 %v8174
        %12197 = vmatpush.bf16.msra.mxu0 %v8171
        %12198 = vmatpush.bf16.msra.mxu0 %v8168
        %12199 = vmatpush.bf16.msra.mxu0 %v8165
        %12200 = vmatpush.bf16.msra.mxu0 %v8162
        %12201 = vmatmul.bf16.gmra.mxu0 %v2389
        %v12202 = vpop.f32.mrf.mxu0
        %v12203 = vadd.f32 %v12190, %v12202
        %v12204 = vpop.f32.mrf.mxu0
        %12205 = vdwg.mxu0
        %12206 = vmatpush.bf16.msra.mxu0 %v8207
        %12207 = vmatpush.bf16.msra.mxu0 %v8204
        %12208 = vmatpush.bf16.msra.mxu0 %v8201
        %12209 = vmatpush.bf16.msra.mxu0 %v8198
        %12210 = vmatpush.bf16.msra.mxu0 %v8195
        %12211 = vmatpush.bf16.msra.mxu0 %v8192
        %12212 = vmatpush.bf16.msra.mxu0 %v8189
        %12213 = vmatpush.bf16.msra.mxu0 %v8186
        %12214 = vmatmul.bf16.gmra.mxu0 %v2390
        %v12215 = vpop.f32.mrf.mxu0
        %v12216 = vadd.f32 %v12203, %v12215
        %v12217 = vpop.f32.mrf.mxu0
        %12218 = vdwg.mxu0
        %12219 = vmatpush.bf16.msra.mxu0 %v8231
        %12220 = vmatpush.bf16.msra.mxu0 %v8228
        %12221 = vmatpush.bf16.msra.mxu0 %v8225
        %12222 = vmatpush.bf16.msra.mxu0 %v8222
        %12223 = vmatpush.bf16.msra.mxu0 %v8219
        %12224 = vmatpush.bf16.msra.mxu0 %v8216
        %12225 = vmatpush.bf16.msra.mxu0 %v8213
        %12226 = vmatpush.bf16.msra.mxu0 %v8210
        %12227 = vmatmul.bf16.gmra.mxu0 %v2391
        %v12228 = vpop.f32.mrf.mxu0
        %v12229 = vadd.f32 %v12216, %v12228
        %v12230 = vpop.f32.mrf.mxu0
        %12231 = vdwg.mxu0
        %12232 = vmatpush.bf16.msra.mxu0 %v8255
        %12233 = vmatpush.bf16.msra.mxu0 %v8252
        %12234 = vmatpush.bf16.msra.mxu0 %v8249
        %12235 = vmatpush.bf16.msra.mxu0 %v8246
        %12236 = vmatpush.bf16.msra.mxu0 %v8243
        %12237 = vmatpush.bf16.msra.mxu0 %v8240
        %12238 = vmatpush.bf16.msra.mxu0 %v8237
        %12239 = vmatpush.bf16.msra.mxu0 %v8234
        %12240 = vmatmul.bf16.gmra.mxu0 %v2392
        %v12241 = vpop.f32.mrf.mxu0
        %v12242 = vadd.f32 %v12229, %v12241
        %v12243 = vpop.f32.mrf.mxu0
        %12244 = vdwg.mxu0
        %12245 = vmatpush.bf16.msra.mxu0 %v8279
        %12246 = vmatpush.bf16.msra.mxu0 %v8276
        %12247 = vmatpush.bf16.msra.mxu0 %v8273
        %12248 = vmatpush.bf16.msra.mxu0 %v8270
        %12249 = vmatpush.bf16.msra.mxu0 %v8267
        %12250 = vmatpush.bf16.msra.mxu0 %v8264
        %12251 = vmatpush.bf16.msra.mxu0 %v8261
        %12252 = vmatpush.bf16.msra.mxu0 %v8258
        %12253 = vmatmul.bf16.gmra.mxu0 %v2393
        %v12254 = vpop.f32.mrf.mxu0
        %v12255 = vadd.f32 %v12242, %v12254
        %v12256 = vpop.f32.mrf.mxu0
        %12257 = vdwg.mxu0
        %12258 = vmatpush.bf16.msra.mxu0 %v8303
        %12259 = vmatpush.bf16.msra.mxu0 %v8300
        %12260 = vmatpush.bf16.msra.mxu0 %v8297
        %12261 = vmatpush.bf16.msra.mxu0 %v8294
        %12262 = vmatpush.bf16.msra.mxu0 %v8291
        %12263 = vmatpush.bf16.msra.mxu0 %v8288
        %12264 = vmatpush.bf16.msra.mxu0 %v8285
        %12265 = vmatpush.bf16.msra.mxu0 %v8282
        %12266 = vmatmul.bf16.gmra.mxu0 %v2394
        %v12267 = vpop.f32.mrf.mxu0
        %v12268 = vadd.f32 %v12255, %v12267
        %v12269 = vpop.f32.mrf.mxu0
        %12270 = vdwg.mxu0
        %12271 = vmatpush.bf16.msra.mxu0 %v8327
        %12272 = vmatpush.bf16.msra.mxu0 %v8324
        %12273 = vmatpush.bf16.msra.mxu0 %v8321
        %12274 = vmatpush.bf16.msra.mxu0 %v8318
        %12275 = vmatpush.bf16.msra.mxu0 %v8315
        %12276 = vmatpush.bf16.msra.mxu0 %v8312
        %12277 = vmatpush.bf16.msra.mxu0 %v8309
        %12278 = vmatpush.bf16.msra.mxu0 %v8306
        %12279 = vmatmul.bf16.gmra.mxu0 %v2395
        %v12280 = vpop.f32.mrf.mxu0
        %v12281 = vadd.f32 %v12268, %v12280
        %v12282 = vpop.f32.mrf.mxu0
        %12283 = vdwg.mxu0
        %12284 = vmatpush.bf16.msra.mxu0 %v8351
        %12285 = vmatpush.bf16.msra.mxu0 %v8348
        %12286 = vmatpush.bf16.msra.mxu0 %v8345
        %12287 = vmatpush.bf16.msra.mxu0 %v8342
        %12288 = vmatpush.bf16.msra.mxu0 %v8339
        %12289 = vmatpush.bf16.msra.mxu0 %v8336
        %12290 = vmatpush.bf16.msra.mxu0 %v8333
        %12291 = vmatpush.bf16.msra.mxu0 %v8330
        %12292 = vmatmul.bf16.gmra.mxu0 %v2396
        %v12293 = vpop.f32.mrf.mxu0
        %v12294 = vadd.f32 %v12281, %v12293
        %v12295 = vpop.f32.mrf.mxu0
        %12296 = vdwg.mxu0
        %12297 = vmatpush.bf16.msra.mxu0 %v8375
        %12298 = vmatpush.bf16.msra.mxu0 %v8372
        %12299 = vmatpush.bf16.msra.mxu0 %v8369
        %12300 = vmatpush.bf16.msra.mxu0 %v8366
        %12301 = vmatpush.bf16.msra.mxu0 %v8363
        %12302 = vmatpush.bf16.msra.mxu0 %v8360
        %12303 = vmatpush.bf16.msra.mxu0 %v8357
        %12304 = vmatpush.bf16.msra.mxu0 %v8354
        %12305 = vmatmul.bf16.gmra.mxu0 %v2397
        %v12306 = vpop.f32.mrf.mxu0
        %v12307 = vadd.f32 %v12294, %v12306
        %v12308 = vpop.f32.mrf.mxu0
        %12309 = vdwg.mxu0
        %12310 = vmatpush.bf16.msra.mxu0 %v8399
        %12311 = vmatpush.bf16.msra.mxu0 %v8396
        %12312 = vmatpush.bf16.msra.mxu0 %v8393
        %12313 = vmatpush.bf16.msra.mxu0 %v8390
        %12314 = vmatpush.bf16.msra.mxu0 %v8387
        %12315 = vmatpush.bf16.msra.mxu0 %v8384
        %12316 = vmatpush.bf16.msra.mxu0 %v8381
        %12317 = vmatpush.bf16.msra.mxu0 %v8378
        %12318 = vmatmul.bf16.gmra.mxu0 %v2398
        %v12319 = vpop.f32.mrf.mxu0
        %v12320 = vadd.f32 %v12307, %v12319
        %v12321 = vpop.f32.mrf.mxu0
        %12322 = vdwg.mxu0
        %12323 = vmatpush.bf16.msra.mxu0 %v8423
        %12324 = vmatpush.bf16.msra.mxu0 %v8420
        %12325 = vmatpush.bf16.msra.mxu0 %v8417
        %12326 = vmatpush.bf16.msra.mxu0 %v8414
        %12327 = vmatpush.bf16.msra.mxu0 %v8411
        %12328 = vmatpush.bf16.msra.mxu0 %v8408
        %12329 = vmatpush.bf16.msra.mxu0 %v8405
        %12330 = vmatpush.bf16.msra.mxu0 %v8402
        %12331 = vmatmul.bf16.gmra.mxu0 %v2399
        %v12332 = vpop.f32.mrf.mxu0
        %v12333 = vadd.f32 %v12320, %v12332
        %v12334 = vpop.f32.mrf.mxu0
        %12335 = vdwg.mxu0
        %12336 = vmatpush.bf16.msra.mxu0 %v8447
        %12337 = vmatpush.bf16.msra.mxu0 %v8444
        %12338 = vmatpush.bf16.msra.mxu0 %v8441
        %12339 = vmatpush.bf16.msra.mxu0 %v8438
        %12340 = vmatpush.bf16.msra.mxu0 %v8435
        %12341 = vmatpush.bf16.msra.mxu0 %v8432
        %12342 = vmatpush.bf16.msra.mxu0 %v8429
        %12343 = vmatpush.bf16.msra.mxu0 %v8426
        %12344 = vmatmul.bf16.gmra.mxu0 %v2400
        %v12345 = vpop.f32.mrf.mxu0
        %v12346 = vadd.f32 %v12333, %v12345
        %v12347 = vpop.f32.mrf.mxu0
        %12348 = vdwg.mxu0
        %12349 = vmatpush.bf16.msra.mxu0 %v8471
        %12350 = vmatpush.bf16.msra.mxu0 %v8468
        %12351 = vmatpush.bf16.msra.mxu0 %v8465
        %12352 = vmatpush.bf16.msra.mxu0 %v8462
        %12353 = vmatpush.bf16.msra.mxu0 %v8459
        %12354 = vmatpush.bf16.msra.mxu0 %v8456
        %12355 = vmatpush.bf16.msra.mxu0 %v8453
        %12356 = vmatpush.bf16.msra.mxu0 %v8450
        %12357 = vmatmul.bf16.gmra.mxu0 %v2401
        %v12358 = vpop.f32.mrf.mxu0
        %v12359 = vadd.f32 %v12346, %v12358
        %v12360 = vpop.f32.mrf.mxu0
        %12361 = vdwg.mxu0
        %12362 = vmatpush.bf16.msra.mxu0 %v8495
        %12363 = vmatpush.bf16.msra.mxu0 %v8492
        %12364 = vmatpush.bf16.msra.mxu0 %v8489
        %12365 = vmatpush.bf16.msra.mxu0 %v8486
        %12366 = vmatpush.bf16.msra.mxu0 %v8483
        %12367 = vmatpush.bf16.msra.mxu0 %v8480
        %12368 = vmatpush.bf16.msra.mxu0 %v8477
        %12369 = vmatpush.bf16.msra.mxu0 %v8474
        %12370 = vmatmul.bf16.gmra.mxu0 %v2402
        %v12371 = vpop.f32.mrf.mxu0
        %v12372 = vadd.f32 %v12359, %v12371
        %v12373 = vpop.f32.mrf.mxu0
        %12374 = vdwg.mxu0
        %12375 = vmatpush.bf16.msra.mxu0 %v8519
        %12376 = vmatpush.bf16.msra.mxu0 %v8516
        %12377 = vmatpush.bf16.msra.mxu0 %v8513
        %12378 = vmatpush.bf16.msra.mxu0 %v8510
        %12379 = vmatpush.bf16.msra.mxu0 %v8507
        %12380 = vmatpush.bf16.msra.mxu0 %v8504
        %12381 = vmatpush.bf16.msra.mxu0 %v8501
        %12382 = vmatpush.bf16.msra.mxu0 %v8498
        %12383 = vmatmul.bf16.gmra.mxu0 %v2403
        %v12384 = vpop.f32.mrf.mxu0
        %v12385 = vadd.f32 %v12372, %v12384
        %v12386 = vpop.f32.mrf.mxu0
        %12387 = vdwg.mxu0
        %12388 = vmatpush.bf16.msra.mxu0 %v8543
        %12389 = vmatpush.bf16.msra.mxu0 %v8540
        %12390 = vmatpush.bf16.msra.mxu0 %v8537
        %12391 = vmatpush.bf16.msra.mxu0 %v8534
        %12392 = vmatpush.bf16.msra.mxu0 %v8531
        %12393 = vmatpush.bf16.msra.mxu0 %v8528
        %12394 = vmatpush.bf16.msra.mxu0 %v8525
        %12395 = vmatpush.bf16.msra.mxu0 %v8522
        %12396 = vmatmul.bf16.gmra.mxu0 %v2404
        %v12397 = vpop.f32.mrf.mxu0
        %v12398 = vadd.f32 %v12385, %v12397
        %v12399 = vpop.f32.mrf.mxu0
        %12400 = vdwg.mxu0
        %12401 = vmatpush.bf16.msra.mxu0 %v8567
        %12402 = vmatpush.bf16.msra.mxu0 %v8564
        %12403 = vmatpush.bf16.msra.mxu0 %v8561
        %12404 = vmatpush.bf16.msra.mxu0 %v8558
        %12405 = vmatpush.bf16.msra.mxu0 %v8555
        %12406 = vmatpush.bf16.msra.mxu0 %v8552
        %12407 = vmatpush.bf16.msra.mxu0 %v8549
        %12408 = vmatpush.bf16.msra.mxu0 %v8546
        %12409 = vmatmul.bf16.gmra.mxu0 %v2405
        %v12410 = vpop.f32.mrf.mxu0
        %v12411 = vadd.f32 %v12398, %v12410
        %v12412 = vpop.f32.mrf.mxu0
        %12413 = vdwg.mxu0
        %12414 = vmatpush.bf16.msra.mxu0 %v8591
        %12415 = vmatpush.bf16.msra.mxu0 %v8588
        %12416 = vmatpush.bf16.msra.mxu0 %v8585
        %12417 = vmatpush.bf16.msra.mxu0 %v8582
        %12418 = vmatpush.bf16.msra.mxu0 %v8579
        %12419 = vmatpush.bf16.msra.mxu0 %v8576
        %12420 = vmatpush.bf16.msra.mxu0 %v8573
        %12421 = vmatpush.bf16.msra.mxu0 %v8570
        %12422 = vmatmul.bf16.gmra.mxu0 %v2406
        %v12423 = vpop.f32.mrf.mxu0
        %v12424 = vadd.f32 %v12411, %v12423
        %v12425 = vpop.f32.mrf.mxu0
        %12426 = vdwg.mxu0
        %12427 = vmatpush.bf16.msra.mxu0 %v8615
        %12428 = vmatpush.bf16.msra.mxu0 %v8612
        %12429 = vmatpush.bf16.msra.mxu0 %v8609
        %12430 = vmatpush.bf16.msra.mxu0 %v8606
        %12431 = vmatpush.bf16.msra.mxu0 %v8603
        %12432 = vmatpush.bf16.msra.mxu0 %v8600
        %12433 = vmatpush.bf16.msra.mxu0 %v8597
        %12434 = vmatpush.bf16.msra.mxu0 %v8594
        %12435 = vmatmul.bf16.gmra.mxu0 %v2407
        %v12436 = vpop.f32.mrf.mxu0
        %v12437 = vadd.f32 %v12424, %v12436
        %v12438 = vpop.f32.mrf.mxu0
        %12439 = vdwg.mxu0
        %12440 = vmatpush.bf16.msra.mxu0 %v8639
        %12441 = vmatpush.bf16.msra.mxu0 %v8636
        %12442 = vmatpush.bf16.msra.mxu0 %v8633
        %12443 = vmatpush.bf16.msra.mxu0 %v8630
        %12444 = vmatpush.bf16.msra.mxu0 %v8627
        %12445 = vmatpush.bf16.msra.mxu0 %v8624
        %12446 = vmatpush.bf16.msra.mxu0 %v8621
        %12447 = vmatpush.bf16.msra.mxu0 %v8618
        %12448 = vmatmul.bf16.gmra.mxu0 %v2408
        %v12449 = vpop.f32.mrf.mxu0
        %v12450 = vadd.f32 %v12437, %v12449
        %v12451 = vpop.f32.mrf.mxu0
        %12452 = vdwg.mxu0
        %12453 = vmatpush.bf16.msra.mxu0 %v8663
        %12454 = vmatpush.bf16.msra.mxu0 %v8660
        %12455 = vmatpush.bf16.msra.mxu0 %v8657
        %12456 = vmatpush.bf16.msra.mxu0 %v8654
        %12457 = vmatpush.bf16.msra.mxu0 %v8651
        %12458 = vmatpush.bf16.msra.mxu0 %v8648
        %12459 = vmatpush.bf16.msra.mxu0 %v8645
        %12460 = vmatpush.bf16.msra.mxu0 %v8642
        %12461 = vmatmul.bf16.gmra.mxu0 %v2409
        %v12462 = vpop.f32.mrf.mxu0
        %v12463 = vadd.f32 %v12450, %v12462
        %v12464 = vpop.f32.mrf.mxu0
        %12465 = vdwg.mxu0
        %12466 = vmatpush.bf16.msra.mxu0 %v8687
        %12467 = vmatpush.bf16.msra.mxu0 %v8684
        %12468 = vmatpush.bf16.msra.mxu0 %v8681
        %12469 = vmatpush.bf16.msra.mxu0 %v8678
        %12470 = vmatpush.bf16.msra.mxu0 %v8675
        %12471 = vmatpush.bf16.msra.mxu0 %v8672
        %12472 = vmatpush.bf16.msra.mxu0 %v8669
        %12473 = vmatpush.bf16.msra.mxu0 %v8666
        %12474 = vmatmul.bf16.gmra.mxu0 %v2410
        %v12475 = vpop.f32.mrf.mxu0
        %v12476 = vadd.f32 %v12463, %v12475
        %v12477 = vpop.f32.mrf.mxu0
        %12478 = vdwg.mxu0
        %12479 = vmatpush.bf16.msra.mxu0 %v8711
        %12480 = vmatpush.bf16.msra.mxu0 %v8708
        %12481 = vmatpush.bf16.msra.mxu0 %v8705
        %12482 = vmatpush.bf16.msra.mxu0 %v8702
        %12483 = vmatpush.bf16.msra.mxu0 %v8699
        %12484 = vmatpush.bf16.msra.mxu0 %v8696
        %12485 = vmatpush.bf16.msra.mxu0 %v8693
        %12486 = vmatpush.bf16.msra.mxu0 %v8690
        %12487 = vmatmul.bf16.gmra.mxu0 %v2411
        %v12488 = vpop.f32.mrf.mxu0
        %v12489 = vadd.f32 %v12476, %v12488
        %v12490 = vpop.f32.mrf.mxu0
        %12491 = vdwg.mxu0
        %v12492 = vadd.f32 %v309, %v10929
        %v12493 = vadd.f32 %v310, %v11709
        %v12494 = vadd.f32 %v311, %v12489
        %12495 = vst [vmem:[#allocation2] sm:$0xff] %v12492
        %12496 = vst [vmem:[#allocation2 + $0x8] sm:$0xff] %v12493
        %vm12497 = vcmask 359424
        %12498 = vst.msk [vmem:[#allocation2 + $0x10] sm:$0xff] %vm12497, %v12494
        %p12499 = scmp.eq.s32.totalorder %s19, 3
        // Predicated region
        $region53: #{dssm_forward.1} parent=47 // pred_check
          %p12500 = pneg %p12499
        $region54: #{dssm_forward.1} parent=47 // pred_check_branch
          %12502 = sbr.rel (%p12500) target = $region56
        $region55: #{dssm_forward.1} parent=47 // pred_region
          %v12503 = vld [vmem:[#allocation2] sm:$0xff]
          %v12504 = vld [vmem:[#allocation2 + $0x8] sm:$0xff]
          %v12505 = vld [vmem:[#allocation2 + $0x10] sm:$0xff]
          %v12506 = vtanh.pop %v12503
          %v12507 = vtanh.pop %v12504
          %v12508 = vtanh.pop %v12505
          %v12509 = vpack.c.bf16 %v12506, %v12506
          %v12510 = vpack.c.bf16 %v12507, %v12507
          %v12511 = vpack.c.bf16 %v12508, %v12508
          %v12512 = vld [vmem:[%s3] sm:$0xff]
          %v12513 = vld [vmem:[%s3 + $0x8] sm:$0xf]
          %v12514 = vld [vmem:[%s3 + $0xc] sm:$0xff]
          %v12515 = vld [vmem:[%s3 + $0x14] sm:$0xf]
          %v12516 = vld [vmem:[%s3 + $0x18] sm:$0xff]
          %v12517 = vld [vmem:[%s3 + $0x20] sm:$0xf]
          %v12518 = vld [vmem:[%s3 + $0x24] sm:$0xff]
          %v12519 = vld [vmem:[%s3 + $0x2c] sm:$0xf]
          %v12520 = vld [vmem:[%s3 + $0x30] sm:$0xff]
          %v12521 = vld [vmem:[%s3 + $0x38] sm:$0xf]
          %v12522 = vld [vmem:[%s3 + $0x3c] sm:$0xff]
          %v12523 = vld [vmem:[%s3 + $0x44] sm:$0xf]
          %v12524 = vld [vmem:[%s3 + $0x48] sm:$0xff]
          %v12525 = vld [vmem:[%s3 + $0x50] sm:$0xf]
          %v12526 = vld [vmem:[%s3 + $0x54] sm:$0xff]
          %v12527 = vld [vmem:[%s3 + $0x5c] sm:$0xf]
          %v12528 = vld [vmem:[%s3 + $0x60] sm:$0xff]
          %v12529 = vld [vmem:[%s3 + $0x68] sm:$0xf]
          %v12530 = vld [vmem:[%s3 + $0x6c] sm:$0xff]
          %v12531 = vld [vmem:[%s3 + $0x74] sm:$0xf]
          %v12532 = vld [vmem:[%s3 + $0x78] sm:$0xff]
          %v12533 = vld [vmem:[%s3 + $0x80] sm:$0xf]
          %v12534 = vld [vmem:[%s3 + $0x84] sm:$0xff]
          %v12535 = vld [vmem:[%s3 + $0x8c] sm:$0xf]
          %v12536 = vld [vmem:[%s3 + $0x90] sm:$0xff]
          %v12537 = vld [vmem:[%s3 + $0x98] sm:$0xf]
          %v12538 = vld [vmem:[%s3 + $0x9c] sm:$0xff]
          %v12539 = vld [vmem:[%s3 + $0xa4] sm:$0xf]
          %v12540 = vld [vmem:[%s3 + $0xa8] sm:$0xff]
          %v12541 = vld [vmem:[%s3 + $0xb0] sm:$0xf]
          %v12542 = vld [vmem:[%s3 + $0xb4] sm:$0xff]
          %v12543 = vld [vmem:[%s3 + $0xbc] sm:$0xf]
          %v12544 = vld [vmem:[%s3 + $0xc0] sm:$0xff]
          %v12545 = vld [vmem:[%s3 + $0xc8] sm:$0xf]
          %v12546 = vld [vmem:[%s3 + $0xcc] sm:$0xff]
          %v12547 = vld [vmem:[%s3 + $0xd4] sm:$0xf]
          %v12548 = vld [vmem:[%s3 + $0xd8] sm:$0xff]
          %v12549 = vld [vmem:[%s3 + $0xe0] sm:$0xf]
          %v12550 = vld [vmem:[%s3 + $0xe4] sm:$0xff]
          %v12551 = vld [vmem:[%s3 + $0xec] sm:$0xf]
          %v12552 = vld [vmem:[%s3 + $0xf0] sm:$0xff]
          %v12553 = vld [vmem:[%s3 + $0xf8] sm:$0xf]
          %v12554 = vld [vmem:[%s3 + $0xfc] sm:$0xff]
          %v12555 = vld [vmem:[%s3 + $0x104] sm:$0xf]
          %v12556 = vld [vmem:[%s3 + $0x108] sm:$0xff]
          %v12557 = vld [vmem:[%s3 + $0x110] sm:$0xf]
          %v12558 = vld [vmem:[%s3 + $0x114] sm:$0xff]
          %v12559 = vld [vmem:[%s3 + $0x11c] sm:$0xf]
          %v12560 = vld [vmem:[%s3 + $0x120] sm:$0xff]
          %v12561 = vld [vmem:[%s3 + $0x128] sm:$0xf]
          %v12562 = vld [vmem:[%s3 + $0x12c] sm:$0xff]
          %v12563 = vld [vmem:[%s3 + $0x134] sm:$0xf]
          %v12564 = vld [vmem:[%s3 + $0x138] sm:$0xff]
          %v12565 = vld [vmem:[%s3 + $0x140] sm:$0xf]
          %v12566 = vld [vmem:[%s3 + $0x144] sm:$0xff]
          %v12567 = vld [vmem:[%s3 + $0x14c] sm:$0xf]
          %v12568 = vld [vmem:[%s3 + $0x150] sm:$0xff]
          %v12569 = vld [vmem:[%s3 + $0x158] sm:$0xf]
          %v12570 = vld [vmem:[%s3 + $0x15c] sm:$0xff]
          %v12571 = vld [vmem:[%s3 + $0x164] sm:$0xf]
          %v12572 = vld [vmem:[%s3 + $0x168] sm:$0xff]
          %v12573 = vld [vmem:[%s3 + $0x170] sm:$0xf]
          %v12574 = vld [vmem:[%s3 + $0x174] sm:$0xff]
          %v12575 = vld [vmem:[%s3 + $0x17c] sm:$0xf]
          %v12576 = vld [vmem:[%s3 + $0x180] sm:$0xff]
          %v12577 = vld [vmem:[%s3 + $0x188] sm:$0xf]
          %v12578 = vld [vmem:[%s3 + $0x18c] sm:$0xff]
          %v12579 = vld [vmem:[%s3 + $0x194] sm:$0xf]
          %v12580 = vld [vmem:[%s3 + $0x198] sm:$0xff]
          %v12581 = vld [vmem:[%s3 + $0x1a0] sm:$0xf]
          %v12582 = vld [vmem:[%s3 + $0x1a4] sm:$0xff]
          %v12583 = vld [vmem:[%s3 + $0x1ac] sm:$0xf]
          %v12584 = vld [vmem:[%s3 + $0x1b0] sm:$0xff]
          %v12585 = vld [vmem:[%s3 + $0x1b8] sm:$0xf]
          %v12586 = vld [vmem:[%s3 + $0x1bc] sm:$0x33]
          %v12587 = vld [vmem:[%s3 + $0x1c4] sm:$0x3]
          %v12588 = vld [vmem:[%s4] sm:$0x7]
          %v12590 = vperm.slane %v12588, 0
          %v12591 = vperm.slane %v12588, 1
          %v12592 = vperm.slane %v12588, 2
          %v12672 = vunpack.c.l.b16 %v12512
          %v12673 = vunpack.c.h.b16 %v12512
          %v12674 = vunpack.c.l.b16 %v12513
          %v12675 = vunpack.c.l.b16 %v12514
          %v12676 = vunpack.c.h.b16 %v12514
          %v12677 = vunpack.c.l.b16 %v12515
          %v12678 = vunpack.c.l.b16 %v12516
          %v12679 = vunpack.c.h.b16 %v12516
          %v12680 = vunpack.c.l.b16 %v12517
          %v12681 = vunpack.c.l.b16 %v12518
          %v12682 = vunpack.c.h.b16 %v12518
          %v12683 = vunpack.c.l.b16 %v12519
          %v12684 = vunpack.c.l.b16 %v12520
          %v12685 = vunpack.c.h.b16 %v12520
          %v12686 = vunpack.c.l.b16 %v12521
          %v12687 = vunpack.c.l.b16 %v12522
          %v12688 = vunpack.c.h.b16 %v12522
          %v12689 = vunpack.c.l.b16 %v12523
          %v12690 = vunpack.c.l.b16 %v12524
          %v12691 = vunpack.c.h.b16 %v12524
          %v12692 = vunpack.c.l.b16 %v12525
          %v12693 = vunpack.c.l.b16 %v12526
          %v12694 = vunpack.c.h.b16 %v12526
          %v12695 = vunpack.c.l.b16 %v12527
          %v12696 = vunpack.c.l.b16 %v12528
          %v12697 = vunpack.c.h.b16 %v12528
          %v12698 = vunpack.c.l.b16 %v12529
          %v12699 = vunpack.c.l.b16 %v12530
          %v12700 = vunpack.c.h.b16 %v12530
          %v12701 = vunpack.c.l.b16 %v12531
          %v12702 = vunpack.c.l.b16 %v12532
          %v12703 = vunpack.c.h.b16 %v12532
          %v12704 = vunpack.c.l.b16 %v12533
          %v12705 = vunpack.c.l.b16 %v12534
          %v12706 = vunpack.c.h.b16 %v12534
          %v12707 = vunpack.c.l.b16 %v12535
          %v12708 = vunpack.c.l.b16 %v12536
          %v12709 = vunpack.c.h.b16 %v12536
          %v12710 = vunpack.c.l.b16 %v12537
          %v12711 = vunpack.c.l.b16 %v12538
          %v12712 = vunpack.c.h.b16 %v12538
          %v12713 = vunpack.c.l.b16 %v12539
          %v12714 = vunpack.c.l.b16 %v12540
          %v12715 = vunpack.c.h.b16 %v12540
          %v12716 = vunpack.c.l.b16 %v12541
          %v12717 = vunpack.c.l.b16 %v12542
          %v12718 = vunpack.c.h.b16 %v12542
          %v12719 = vunpack.c.l.b16 %v12543
          %v12720 = vunpack.c.l.b16 %v12544
          %v12721 = vunpack.c.h.b16 %v12544
          %v12722 = vunpack.c.l.b16 %v12545
          %v12723 = vunpack.c.l.b16 %v12546
          %v12724 = vunpack.c.h.b16 %v12546
          %v12725 = vunpack.c.l.b16 %v12547
          %v12726 = vunpack.c.l.b16 %v12548
          %v12727 = vunpack.c.h.b16 %v12548
          %v12728 = vunpack.c.l.b16 %v12549
          %v12729 = vunpack.c.l.b16 %v12550
          %v12730 = vunpack.c.h.b16 %v12550
          %v12731 = vunpack.c.l.b16 %v12551
          %v12732 = vunpack.c.l.b16 %v12552
          %v12733 = vunpack.c.h.b16 %v12552
          %v12734 = vunpack.c.l.b16 %v12553
          %v12735 = vunpack.c.l.b16 %v12554
          %v12736 = vunpack.c.h.b16 %v12554
          %v12737 = vunpack.c.l.b16 %v12555
          %v12738 = vunpack.c.l.b16 %v12556
          %v12739 = vunpack.c.h.b16 %v12556
          %v12740 = vunpack.c.l.b16 %v12557
          %v12741 = vunpack.c.l.b16 %v12558
          %v12742 = vunpack.c.h.b16 %v12558
          %v12743 = vunpack.c.l.b16 %v12559
          %v12744 = vunpack.c.l.b16 %v12560
          %v12745 = vunpack.c.h.b16 %v12560
          %v12746 = vunpack.c.l.b16 %v12561
          %v12747 = vunpack.c.l.b16 %v12562
          %v12748 = vunpack.c.h.b16 %v12562
          %v12749 = vunpack.c.l.b16 %v12563
          %v12750 = vunpack.c.l.b16 %v12564
          %v12751 = vunpack.c.h.b16 %v12564
          %v12752 = vunpack.c.l.b16 %v12565
          %v12753 = vunpack.c.l.b16 %v12566
          %v12754 = vunpack.c.h.b16 %v12566
          %v12755 = vunpack.c.l.b16 %v12567
          %v12756 = vunpack.c.l.b16 %v12568
          %v12757 = vunpack.c.h.b16 %v12568
          %v12758 = vunpack.c.l.b16 %v12569
          %v12759 = vunpack.c.l.b16 %v12570
          %v12760 = vunpack.c.h.b16 %v12570
          %v12761 = vunpack.c.l.b16 %v12571
          %v12762 = vunpack.c.l.b16 %v12572
          %v12763 = vunpack.c.h.b16 %v12572
          %v12764 = vunpack.c.l.b16 %v12573
          %v12765 = vunpack.c.l.b16 %v12574
          %v12766 = vunpack.c.h.b16 %v12574
          %v12767 = vunpack.c.l.b16 %v12575
          %v12768 = vunpack.c.l.b16 %v12576
          %v12769 = vunpack.c.h.b16 %v12576
          %v12770 = vunpack.c.l.b16 %v12577
          %v12771 = vunpack.c.l.b16 %v12578
          %v12772 = vunpack.c.h.b16 %v12578
          %v12773 = vunpack.c.l.b16 %v12579
          %v12774 = vunpack.c.l.b16 %v12580
          %v12775 = vunpack.c.h.b16 %v12580
          %v12776 = vunpack.c.l.b16 %v12581
          %v12777 = vunpack.c.l.b16 %v12582
          %v12778 = vunpack.c.h.b16 %v12582
          %v12779 = vunpack.c.l.b16 %v12583
          %v12780 = vunpack.c.l.b16 %v12584
          %v12781 = vunpack.c.h.b16 %v12584
          %v12782 = vunpack.c.l.b16 %v12585
          %v12783 = vunpack.c.l.b16 %v12586
          %v12784 = vunpack.c.h.b16 %v12586
          %v12785 = vunpack.c.l.b16 %v12587
          %v12786 = vpack.c.b16 %v12675, %v12672
          %v12787 = vpack.c.b16 %v12676, %v12673
          %v12788 = vpack.c.b16 %v12677, %v12674
          %v12789 = vpack.c.b16 %v12681, %v12678
          %v12790 = vpack.c.b16 %v12682, %v12679
          %v12791 = vpack.c.b16 %v12683, %v12680
          %v12792 = vpack.c.b16 %v12687, %v12684
          %v12793 = vpack.c.b16 %v12688, %v12685
          %v12794 = vpack.c.b16 %v12689, %v12686
          %v12795 = vpack.c.b16 %v12693, %v12690
          %v12796 = vpack.c.b16 %v12694, %v12691
          %v12797 = vpack.c.b16 %v12695, %v12692
          %v12798 = vpack.c.b16 %v12699, %v12696
          %v12799 = vpack.c.b16 %v12700, %v12697
          %v12800 = vpack.c.b16 %v12701, %v12698
          %v12801 = vpack.c.b16 %v12705, %v12702
          %v12802 = vpack.c.b16 %v12706, %v12703
          %v12803 = vpack.c.b16 %v12707, %v12704
          %v12804 = vpack.c.b16 %v12711, %v12708
          %v12805 = vpack.c.b16 %v12712, %v12709
          %v12806 = vpack.c.b16 %v12713, %v12710
          %v12807 = vpack.c.b16 %v12717, %v12714
          %v12808 = vpack.c.b16 %v12718, %v12715
          %v12809 = vpack.c.b16 %v12719, %v12716
          %v12810 = vpack.c.b16 %v12723, %v12720
          %v12811 = vpack.c.b16 %v12724, %v12721
          %v12812 = vpack.c.b16 %v12725, %v12722
          %v12813 = vpack.c.b16 %v12729, %v12726
          %v12814 = vpack.c.b16 %v12730, %v12727
          %v12815 = vpack.c.b16 %v12731, %v12728
          %v12816 = vpack.c.b16 %v12735, %v12732
          %v12817 = vpack.c.b16 %v12736, %v12733
          %v12818 = vpack.c.b16 %v12737, %v12734
          %v12819 = vpack.c.b16 %v12741, %v12738
          %v12820 = vpack.c.b16 %v12742, %v12739
          %v12821 = vpack.c.b16 %v12743, %v12740
          %v12822 = vpack.c.b16 %v12747, %v12744
          %v12823 = vpack.c.b16 %v12748, %v12745
          %v12824 = vpack.c.b16 %v12749, %v12746
          %v12825 = vpack.c.b16 %v12753, %v12750
          %v12826 = vpack.c.b16 %v12754, %v12751
          %v12827 = vpack.c.b16 %v12755, %v12752
          %v12828 = vpack.c.b16 %v12759, %v12756
          %v12829 = vpack.c.b16 %v12760, %v12757
          %v12830 = vpack.c.b16 %v12761, %v12758
          %v12831 = vpack.c.b16 %v12765, %v12762
          %v12832 = vpack.c.b16 %v12766, %v12763
          %v12833 = vpack.c.b16 %v12767, %v12764
          %v12834 = vpack.c.b16 %v12771, %v12768
          %v12835 = vpack.c.b16 %v12772, %v12769
          %v12836 = vpack.c.b16 %v12773, %v12770
          %v12837 = vpack.c.b16 %v12777, %v12774
          %v12838 = vpack.c.b16 %v12778, %v12775
          %v12839 = vpack.c.b16 %v12779, %v12776
          %v12840 = vpack.c.b16 %v12783, %v12780
          %v12841 = vpack.c.b16 %v12784, %v12781
          %v12842 = vpack.c.b16 %v12785, %v12782
          %v12898 = vsel %vm12497, %v12511, 0
          %vm12900 = vcmask 1045504
          %v12902 = vsel %vm12900, %v12840, 0
          %v12905 = vsel %vm12900, %v12841, 0
          %v12908 = vsel %vm12900, %v12842, 0
          %12910 = vmatpush.bf16.msra.mxu0 %v12807
          %12911 = vmatpush.bf16.msra.mxu0 %v12804
          %12912 = vmatpush.bf16.msra.mxu0 %v12801
          %12913 = vmatpush.bf16.msra.mxu0 %v12798
          %12914 = vmatpush.bf16.msra.mxu0 %v12795
          %12915 = vmatpush.bf16.msra.mxu0 %v12792
          %12916 = vmatpush.bf16.msra.mxu0 %v12789
          %12917 = vmatpush.bf16.msra.mxu0 %v12786
          %12918 = vmatmul.bf16.gmra.mxu0 %v12509
          %v12919 = vpop.f32.mrf.mxu0
          %v12920 = vadd.f32 %v12590, %v12919
          %v12921 = vpop.f32.mrf.mxu0
          %12922 = vdwg.mxu0
          %12923 = vmatpush.bf16.msra.mxu0 %v12831
          %12924 = vmatpush.bf16.msra.mxu0 %v12828
          %12925 = vmatpush.bf16.msra.mxu0 %v12825
          %12926 = vmatpush.bf16.msra.mxu0 %v12822
          %12927 = vmatpush.bf16.msra.mxu0 %v12819
          %12928 = vmatpush.bf16.msra.mxu0 %v12816
          %12929 = vmatpush.bf16.msra.mxu0 %v12813
          %12930 = vmatpush.bf16.msra.mxu0 %v12810
          %12931 = vmatmul.bf16.gmra.mxu0 %v12510
          %v12932 = vpop.f32.mrf.mxu0
          %v12933 = vadd.f32 %v12920, %v12932
          %v12934 = vpop.f32.mrf.mxu0
          %12935 = vdwg.mxu0
          %12936 = vmatpush.bf16.msra.mxu0 0
          %12937 = vmatpush.bf16.msra.mxu0 0
          %12938 = vmatpush.bf16.msra.mxu0 0
          %12939 = vmatpush.bf16.msra.mxu0 0
          %12940 = vmatpush.bf16.msra.mxu0 0
          %12941 = vmatpush.bf16.msra.mxu0 %v12902
          %12942 = vmatpush.bf16.msra.mxu0 %v12837
          %12943 = vmatpush.bf16.msra.mxu0 %v12834
          %12944 = vmatmul.bf16.gmra.mxu0 %v12898
          %v12945 = vpop.f32.mrf.mxu0
          %v12946 = vadd.f32 %v12933, %v12945
          %v12947 = vpop.f32.mrf.mxu0
          %12948 = vdwg.mxu0
          %12949 = vmatpush.bf16.msra.mxu0 %v12808
          %12950 = vmatpush.bf16.msra.mxu0 %v12805
          %12951 = vmatpush.bf16.msra.mxu0 %v12802
          %12952 = vmatpush.bf16.msra.mxu0 %v12799
          %12953 = vmatpush.bf16.msra.mxu0 %v12796
          %12954 = vmatpush.bf16.msra.mxu0 %v12793
          %12955 = vmatpush.bf16.msra.mxu0 %v12790
          %12956 = vmatpush.bf16.msra.mxu0 %v12787
          %12957 = vmatmul.bf16.gmra.mxu0 %v12509
          %v12958 = vpop.f32.mrf.mxu0
          %v12959 = vadd.f32 %v12591, %v12958
          %v12960 = vpop.f32.mrf.mxu0
          %12961 = vdwg.mxu0
          %12962 = vmatpush.bf16.msra.mxu0 %v12832
          %12963 = vmatpush.bf16.msra.mxu0 %v12829
          %12964 = vmatpush.bf16.msra.mxu0 %v12826
          %12965 = vmatpush.bf16.msra.mxu0 %v12823
          %12966 = vmatpush.bf16.msra.mxu0 %v12820
          %12967 = vmatpush.bf16.msra.mxu0 %v12817
          %12968 = vmatpush.bf16.msra.mxu0 %v12814
          %12969 = vmatpush.bf16.msra.mxu0 %v12811
          %12970 = vmatmul.bf16.gmra.mxu0 %v12510
          %v12971 = vpop.f32.mrf.mxu0
          %v12972 = vadd.f32 %v12959, %v12971
          %v12973 = vpop.f32.mrf.mxu0
          %12974 = vdwg.mxu0
          %12975 = vmatpush.bf16.msra.mxu0 0
          %12976 = vmatpush.bf16.msra.mxu0 0
          %12977 = vmatpush.bf16.msra.mxu0 0
          %12978 = vmatpush.bf16.msra.mxu0 0
          %12979 = vmatpush.bf16.msra.mxu0 0
          %12980 = vmatpush.bf16.msra.mxu0 %v12905
          %12981 = vmatpush.bf16.msra.mxu0 %v12838
          %12982 = vmatpush.bf16.msra.mxu0 %v12835
          %12983 = vmatmul.bf16.gmra.mxu0 %v12898
          %v12984 = vpop.f32.mrf.mxu0
          %v12985 = vadd.f32 %v12972, %v12984
          %v12986 = vpop.f32.mrf.mxu0
          %12987 = vdwg.mxu0
          %12988 = vmatpush.bf16.msra.mxu0 %v12809
          %12989 = vmatpush.bf16.msra.mxu0 %v12806
          %12990 = vmatpush.bf16.msra.mxu0 %v12803
          %12991 = vmatpush.bf16.msra.mxu0 %v12800
          %12992 = vmatpush.bf16.msra.mxu0 %v12797
          %12993 = vmatpush.bf16.msra.mxu0 %v12794
          %12994 = vmatpush.bf16.msra.mxu0 %v12791
          %12995 = vmatpush.bf16.msra.mxu0 %v12788
          %12996 = vmatmul.bf16.gmra.mxu0 %v12509
          %v12997 = vpop.f32.mrf.mxu0
          %v12998 = vadd.f32 %v12592, %v12997
          %v12999 = vpop.f32.mrf.mxu0
          %13000 = vdwg.mxu0
          %13001 = vmatpush.bf16.msra.mxu0 %v12833
          %13002 = vmatpush.bf16.msra.mxu0 %v12830
          %13003 = vmatpush.bf16.msra.mxu0 %v12827
          %13004 = vmatpush.bf16.msra.mxu0 %v12824
          %13005 = vmatpush.bf16.msra.mxu0 %v12821
          %13006 = vmatpush.bf16.msra.mxu0 %v12818
          %13007 = vmatpush.bf16.msra.mxu0 %v12815
          %13008 = vmatpush.bf16.msra.mxu0 %v12812
          %13009 = vmatmul.bf16.gmra.mxu0 %v12510
          %v13010 = vpop.f32.mrf.mxu0
          %v13011 = vadd.f32 %v12998, %v13010
          %v13012 = vpop.f32.mrf.mxu0
          %13013 = vdwg.mxu0
          %13014 = vmatpush.bf16.msra.mxu0 0
          %13015 = vmatpush.bf16.msra.mxu0 0
          %13016 = vmatpush.bf16.msra.mxu0 0
          %13017 = vmatpush.bf16.msra.mxu0 0
          %13018 = vmatpush.bf16.msra.mxu0 0
          %13019 = vmatpush.bf16.msra.mxu0 %v12908
          %13020 = vmatpush.bf16.msra.mxu0 %v12839
          %13021 = vmatpush.bf16.msra.mxu0 %v12836
          %13022 = vmatmul.bf16.gmra.mxu0 %v12898
          %v13023 = vpop.f32.mrf.mxu0
          %v13024 = vadd.f32 %v13011, %v13023
          %v13025 = vpop.f32.mrf.mxu0
          %13026 = vdwg.mxu0
          %v13027 = vtanh.pop %v12946
          %v13028 = vtanh.pop %v12985
          %v13029 = vtanh.pop %v13024
          %v13030 = vpack.c.bf16 %v13027, %v13027
          %v13031 = vpack.c.bf16 %v13028, %v13028
          %v13032 = vpack.c.bf16 %v13029, %v13029
          %v13033 = vld [vmem:[%s5] sm:$0xf]
          %v13034 = vld [vmem:[%s5 + $0x4] sm:$0xf]
          %v13035 = vld [vmem:[%s5 + $0x8] sm:$0xf]
          %v13036 = vld [vmem:[%s5 + $0xc] sm:$0xf]
          %v13037 = vld [vmem:[%s5 + $0x10] sm:$0xf]
          %v13038 = vld [vmem:[%s5 + $0x14] sm:$0xf]
          %v13039 = vld [vmem:[%s5 + $0x18] sm:$0xf]
          %v13040 = vld [vmem:[%s5 + $0x1c] sm:$0xf]
          %v13041 = vld [vmem:[%s5 + $0x20] sm:$0xf]
          %v13042 = vld [vmem:[%s5 + $0x24] sm:$0xf]
          %v13043 = vld [vmem:[%s5 + $0x28] sm:$0xf]
          %v13044 = vld [vmem:[%s5 + $0x2c] sm:$0xf]
          %v13045 = vld [vmem:[%s5 + $0x30] sm:$0xf]
          %v13046 = vld [vmem:[%s5 + $0x34] sm:$0xf]
          %v13047 = vld [vmem:[%s5 + $0x38] sm:$0xf]
          %v13048 = vld [vmem:[%s5 + $0x3c] sm:$0xf]
          %v13049 = vld [vmem:[%s5 + $0x40] sm:$0xf]
          %v13050 = vld [vmem:[%s5 + $0x44] sm:$0xf]
          %v13051 = vld [vmem:[%s5 + $0x48] sm:$0xf]
          %v13052 = vld [vmem:[%s5 + $0x4c] sm:$0xf]
          %v13053 = vld [vmem:[%s5 + $0x50] sm:$0xf]
          %v13054 = vld [vmem:[%s5 + $0x54] sm:$0xf]
          %v13055 = vld [vmem:[%s5 + $0x58] sm:$0xf]
          %v13056 = vld [vmem:[%s5 + $0x5c] sm:$0xf]
          %v13057 = vld [vmem:[%s5 + $0x60] sm:$0xf]
          %v13058 = vld [vmem:[%s5 + $0x64] sm:$0xf]
          %v13059 = vld [vmem:[%s5 + $0x68] sm:$0xf]
          %v13060 = vld [vmem:[%s5 + $0x6c] sm:$0xf]
          %v13061 = vld [vmem:[%s5 + $0x70] sm:$0xf]
          %v13062 = vld [vmem:[%s5 + $0x74] sm:$0xf]
          %v13063 = vld [vmem:[%s5 + $0x78] sm:$0xf]
          %v13064 = vld [vmem:[%s5 + $0x7c] sm:$0xf]
          %v13065 = vld [vmem:[%s5 + $0x80] sm:$0xf]
          %v13066 = vld [vmem:[%s5 + $0x84] sm:$0xf]
          %v13067 = vld [vmem:[%s5 + $0x88] sm:$0xf]
          %v13068 = vld [vmem:[%s5 + $0x8c] sm:$0xf]
          %v13069 = vld [vmem:[%s5 + $0x90] sm:$0xf]
          %v13070 = vld [vmem:[%s5 + $0x94] sm:$0x3]
          %v13071 = vld [vmem:[%s6] sm:$0x1]
          %v13073 = vperm.slane %v13071, 0
          %v13113 = vunpack.c.l.b16 %v13033
          %v13114 = vunpack.c.l.b16 %v13034
          %v13115 = vunpack.c.l.b16 %v13035
          %v13116 = vunpack.c.l.b16 %v13036
          %v13117 = vunpack.c.l.b16 %v13037
          %v13118 = vunpack.c.l.b16 %v13038
          %v13119 = vunpack.c.l.b16 %v13039
          %v13120 = vunpack.c.l.b16 %v13040
          %v13121 = vunpack.c.l.b16 %v13041
          %v13122 = vunpack.c.l.b16 %v13042
          %v13123 = vunpack.c.l.b16 %v13043
          %v13124 = vunpack.c.l.b16 %v13044
          %v13125 = vunpack.c.l.b16 %v13045
          %v13126 = vunpack.c.l.b16 %v13046
          %v13127 = vunpack.c.l.b16 %v13047
          %v13128 = vunpack.c.l.b16 %v13048
          %v13129 = vunpack.c.l.b16 %v13049
          %v13130 = vunpack.c.l.b16 %v13050
          %v13131 = vunpack.c.l.b16 %v13051
          %v13132 = vunpack.c.l.b16 %v13052
          %v13133 = vunpack.c.l.b16 %v13053
          %v13134 = vunpack.c.l.b16 %v13054
          %v13135 = vunpack.c.l.b16 %v13055
          %v13136 = vunpack.c.l.b16 %v13056
          %v13137 = vunpack.c.l.b16 %v13057
          %v13138 = vunpack.c.l.b16 %v13058
          %v13139 = vunpack.c.l.b16 %v13059
          %v13140 = vunpack.c.l.b16 %v13060
          %v13141 = vunpack.c.l.b16 %v13061
          %v13142 = vunpack.c.l.b16 %v13062
          %v13143 = vunpack.c.l.b16 %v13063
          %v13144 = vunpack.c.l.b16 %v13064
          %v13145 = vunpack.c.l.b16 %v13065
          %v13146 = vunpack.c.l.b16 %v13066
          %v13147 = vunpack.c.l.b16 %v13067
          %v13148 = vunpack.c.l.b16 %v13068
          %v13149 = vunpack.c.l.b16 %v13069
          %v13150 = vunpack.c.l.b16 %v13070
          %v13151 = vpack.c.b16 %v13114, %v13113
          %v13152 = vpack.c.b16 %v13116, %v13115
          %v13153 = vpack.c.b16 %v13118, %v13117
          %v13154 = vpack.c.b16 %v13120, %v13119
          %v13155 = vpack.c.b16 %v13122, %v13121
          %v13156 = vpack.c.b16 %v13124, %v13123
          %v13157 = vpack.c.b16 %v13126, %v13125
          %v13158 = vpack.c.b16 %v13128, %v13127
          %v13159 = vpack.c.b16 %v13130, %v13129
          %v13160 = vpack.c.b16 %v13132, %v13131
          %v13161 = vpack.c.b16 %v13134, %v13133
          %v13162 = vpack.c.b16 %v13136, %v13135
          %v13163 = vpack.c.b16 %v13138, %v13137
          %v13164 = vpack.c.b16 %v13140, %v13139
          %v13165 = vpack.c.b16 %v13142, %v13141
          %v13166 = vpack.c.b16 %v13144, %v13143
          %v13167 = vpack.c.b16 %v13146, %v13145
          %v13168 = vpack.c.b16 %v13148, %v13147
          %v13169 = vpack.c.b16 %v13150, %v13149
          %v13189 = vsel %vm12497, %v13032, 0
          %v13192 = vsel %vm12900, %v13169, 0
          %13194 = vmatpush.bf16.msra.mxu0 %v13158
          %13195 = vmatpush.bf16.msra.mxu0 %v13157
          %13196 = vmatpush.bf16.msra.mxu0 %v13156
          %13197 = vmatpush.bf16.msra.mxu0 %v13155
          %13198 = vmatpush.bf16.msra.mxu0 %v13154
          %13199 = vmatpush.bf16.msra.mxu0 %v13153
          %13200 = vmatpush.bf16.msra.mxu0 %v13152
          %13201 = vmatpush.bf16.msra.mxu0 %v13151
          %13202 = vmatmul.bf16.gmra.mxu0 %v13030
          %v13203 = vpop.f32.mrf.mxu0
          %v13204 = vadd.f32 %v13073, %v13203
          %v13205 = vpop.f32.mrf.mxu0
          %13206 = vdwg.mxu0
          %13207 = vmatpush.bf16.msra.mxu0 %v13166
          %13208 = vmatpush.bf16.msra.mxu0 %v13165
          %13209 = vmatpush.bf16.msra.mxu0 %v13164
          %13210 = vmatpush.bf16.msra.mxu0 %v13163
          %13211 = vmatpush.bf16.msra.mxu0 %v13162
          %13212 = vmatpush.bf16.msra.mxu0 %v13161
          %13213 = vmatpush.bf16.msra.mxu0 %v13160
          %13214 = vmatpush.bf16.msra.mxu0 %v13159
          %13215 = vmatmul.bf16.gmra.mxu0 %v13031
          %v13216 = vpop.f32.mrf.mxu0
          %v13217 = vadd.f32 %v13204, %v13216
          %v13218 = vpop.f32.mrf.mxu0
          %13219 = vdwg.mxu0
          %13220 = vmatpush.bf16.msra.mxu0 0
          %13221 = vmatpush.bf16.msra.mxu0 0
          %13222 = vmatpush.bf16.msra.mxu0 0
          %13223 = vmatpush.bf16.msra.mxu0 0
          %13224 = vmatpush.bf16.msra.mxu0 0
          %13225 = vmatpush.bf16.msra.mxu0 %v13192
          %13226 = vmatpush.bf16.msra.mxu0 %v13168
          %13227 = vmatpush.bf16.msra.mxu0 %v13167
          %13228 = vmatmul.bf16.gmra.mxu0 %v13189
          %v13229 = vpop.f32.mrf.mxu0
          %v13230 = vadd.f32 %v13217, %v13229
          %v13231 = vpop.f32.mrf.mxu0
          %13232 = vdwg.mxu0
          %v13233 = vtanh.pop %v13230
          %13234 = vst [vmem:[#allocation3] sm:$0xff] %v13233
        $region56: #{dssm_forward.1} parent=47 // pred_fallthru
          _
        // Predicated region
        $region57: #{dssm_forward.1} parent=47 // pred_check
          %p13235 = pneg %p189
        $region58: #{dssm_forward.1} parent=47 // pred_check_branch
          %13237 = sbr.rel (%p13235) target = $region60
        $region59: #{dssm_forward.1} parent=47 // pred_region
          %13239 = vsyncadd [#allocation4], 0
          %s13241 = sshll.u32 [#allocation3], 4
          %s13242 = int_to_ptr.vmem [resolvable:$true] %s13241
          %s13243 = sshll.u32 %s7, 4
          %s13244 = int_to_ptr.hbm [resolvable:$true] %s13243
          %13246 = dma.vmem_to_hbm [thread:$0]  %s13242, 128, %s13244, [#allocation4]
        $region60: #{dssm_forward.1} parent=47 // pred_fallthru
          _
        // Predicated region
        $region61: #{dssm_forward.1} parent=47 // pred_check
          %p13247 = pneg %p189
        $region62: #{dssm_forward.1} parent=47 // pred_check_branch
          %13249 = sbr.rel (%p13247) target = $region64
        $region63: #{dssm_forward.1} parent=47 // pred_region
          %13251 = dma.done [#allocation4], 128
        $region64: #{dssm_forward.1} parent=47 // pred_fallthru
          _
      $region48: #{dssm_forward.1} parent=5 // pred_fallthru
        _
      %p13252 = scmp.le.s32.totalorder 2, %s14
      // Predicated region
      $region65: #{dssm_forward.1} parent=5 // pred_check
        %p13253 = pneg %p13252
      $region66: #{dssm_forward.1} parent=5 // pred_check_branch
        %13255 = sbr.rel (%p13253) target = $region68
      $region67: #{dssm_forward.1} parent=5 // pred_region
        %s13256 = ssub.s32 %s14, 2
      $region68: #{dssm_forward.1} parent=5 // pred_fallthru
        _
    $region6: #{dssm_forward.1} parent=1 // loop_footer
      %s18 = sadd.s32 1, %s14
    $region7: #{dssm_forward.1} parent=1 // loop_footer_branch
      %13 = sbr.rel target = $region3
    $region8: #{dssm_forward.1} parent=1 // loop_exit
      _
    %13257 = vsyncpa [#allocation4], 1
    %s13258 = scalar_lea.sflag [#allocation4], 1
    %13259 = vsyncpa %s13258, 1

</llo_original>
